<compile_context>
chip_gen: v7x
topology: tpu7x:2x2x1
jax: 0.10.0
libtpu: 0.0.40
codegen_flags: <defaults>
</compile_context>

<pallas_src>
import functools
import math

import jax
import jax.numpy as jnp
from jax import lax
from jax.experimental import pallas as pl
from jax.experimental.pallas import tpu as pltpu


def _round_up(x: int, m: int) -> int:
    return ((x + m - 1) // m) * m


# --------------------------------------------------------------------------
# Parameter init (mirrors nn.Embedding / nn.LSTM / nn.Linear shapes & init)
# --------------------------------------------------------------------------
def init_params(key, input_size, embed_size, hidden_size, output_size, n_layers):
    keys = jax.random.split(key, 1 + 4 * n_layers + 2)
    ki = iter(keys)
    params = {}
    params["embedding"] = jax.random.normal(
        next(ki), (input_size, embed_size), jnp.float32)
    bound = 1.0 / math.sqrt(hidden_size)
    layers = []
    for l in range(n_layers):
        in_dim = embed_size if l == 0 else hidden_size
        w_ih = jax.random.uniform(next(ki), (4 * hidden_size, in_dim),
                                  jnp.float32, -bound, bound)
        w_hh = jax.random.uniform(next(ki), (4 * hidden_size, hidden_size),
                                  jnp.float32, -bound, bound)
        b_ih = jax.random.uniform(next(ki), (4 * hidden_size,),
                                  jnp.float32, -bound, bound)
        b_hh = jax.random.uniform(next(ki), (4 * hidden_size,),
                                  jnp.float32, -bound, bound)
        layers.append((w_ih, w_hh, b_ih, b_hh))
    params["lstm"] = layers
    params["dec_w"] = jax.random.uniform(next(ki), (output_size, hidden_size),
                                         jnp.float32, -bound, bound)
    params["dec_b"] = jax.random.uniform(next(ki), (output_size,),
                                         jnp.float32, -bound, bound)
    return params


# --------------------------------------------------------------------------
# One-time parameter preparation: fold embedding into layer-0's input
# projection, transpose, combine biases, pad to lane-aligned shapes and cast
# matmul operands to bf16.  Zero padding is exact: padded hidden/vocab/output
# units stay identically 0 through the recurrence and decoder.
# --------------------------------------------------------------------------
def prepare_params(params):
    emb = params["embedding"]                        # (V, E) f32
    V, E = emb.shape
    H = params["lstm"][0][1].shape[-1]               # w_hh: (4H, H)
    O = params["dec_w"].shape[0]
    Hp = _round_up(H, 128)
    Op = _round_up(O, 128)
    Vp = _round_up(V, 128)

    def pad_gate_cols(w_t):
        # (K, 4H) -> (K, 4Hp): pad each of the 4 gate blocks to Hp columns.
        parts = []
        for g in range(4):
            parts.append(jnp.pad(w_t[:, g * H:(g + 1) * H],
                                 ((0, 0), (0, Hp - H))))
        return jnp.concatenate(parts, axis=1)

    prep = {"whh": [], "wih": [], "b": []}

    for l, (w_ih, w_hh, b_ih, b_hh) in enumerate(params["lstm"]):
        whh_t = pad_gate_cols(jnp.transpose(w_hh))                # (H, 4Hp)
        whh_t = jnp.pad(whh_t, ((0, Hp - H), (0, 0))).astype(jnp.bfloat16)
        prep["whh"].append(whh_t)
        bias = pad_gate_cols((b_ih + b_hh)[None, :])              # (1, 4Hp) f32
        if l == 0:
            # Fold the embedding into layer 0's input projection:
            #   emb_proj[v] = embedding[v] @ W_ih0^T               (V, 4H)
            emb_proj = pad_gate_cols(emb @ jnp.transpose(w_ih))   # (V, 4Hp) f32
            emb_proj = jnp.pad(emb_proj,
                               ((0, Vp - V), (0, 0))).astype(jnp.bfloat16)
            prep["emb_proj"] = emb_proj
            prep["b0"] = bias
        else:
            wih_t = pad_gate_cols(jnp.transpose(w_ih))            # (H, 4Hp)
            wih_t = jnp.pad(wih_t, ((0, Hp - H), (0, 0))).astype(jnp.bfloat16)
            prep["wih"].append(wih_t)
            prep["b"].append(bias)

    prep["dec_w_t"] = jnp.pad(jnp.transpose(params["dec_w"]),
                              ((0, Hp - H), (0, Op - O))).astype(jnp.bfloat16)
    prep["dec_b"] = jnp.pad(params["dec_b"], (0, Op - O))[None, :]   # (1, Op)
    return prep


# --------------------------------------------------------------------------
# Pallas kernel: one (batch tile, time chunk) per grid step, (h,c) state
# carried in VMEM scratch, wavefront-interleaved layers.
# --------------------------------------------------------------------------
def _make_lstm_kernel(n_layers: int, Tc: int, Bt: int, Hp: int, Vp: int,
                      unroll: int):
    def kernel(*refs):
        tok_ref = refs[0]                                 # (Tc*Bt, 1) int32
        emb_proj_ref = refs[1]                            # (Vp, 4Hp) bf16
        b0_ref = refs[2]                                  # (1, 4Hp) f32
        whh_refs = [refs[3 + l] for l in range(n_layers)] # (Hp, 4Hp) bf16
        off = 3 + n_layers
        wih_refs = [None] * n_layers
        b_refs = [None] * n_layers
        for l in range(1, n_layers):
            wih_refs[l] = refs[off]                       # (Hp, 4Hp) bf16
            b_refs[l] = refs[off + 1]                     # (1, 4Hp) f32
            off += 2
        dec_w_ref = refs[off]                             # (Hp, Op) bf16
        dec_b_ref = refs[off + 1]                         # (1, Op) f32
        out_ref = refs[off + 2]                           # (Tc, Bt, Op) f32
        xp_ref, seq_ref, h_state, c_state = refs[off + 3:]

        # Zero the carried (h, c) state at each batch tile's first time chunk.
        @pl.when(pl.program_id(1) == 0)
        def _():
            h_state[...] = jnp.zeros_like(h_state)
            c_state[...] = jnp.zeros_like(c_state)

        # ---- Layer-0 input projection for the whole chunk:
        #      one_hot(tokens) @ (embedding @ W_ih0^T)  (embedding folded in).
        tok = tok_ref[...]                                          # (Tc*Bt, 1)
        iota = lax.broadcasted_iota(jnp.int32, (Tc * Bt, Vp), 1)
        one_hot = jnp.where(iota == tok, 1.0, 0.0).astype(jnp.bfloat16)
        xp0 = jnp.dot(one_hot, emb_proj_ref[...],
                      preferred_element_type=jnp.float32)           # (Tc*Bt, 4Hp)
        xp_ref[...] = xp0.reshape(Tc, Bt, 4 * Hp).astype(jnp.bfloat16)

        # Hoisted f32 bias broadcasts (JAX does not CSE broadcast_in_dim).
        b_full = [jnp.broadcast_to(b0_ref[...], (Bt, 4 * Hp))]
        for l in range(1, n_layers):
            b_full.append(jnp.broadcast_to(b_refs[l][...], (Bt, 4 * Hp)))

        def wave(w, state, active):
            # One wavefront: layer l processes time step t = w - l.  Every
            # active (l, t) pair reads only previous-wave `state`, so their
            # gate matmuls / EUP chains are independent (latency hiding).
            new_state = list(state)
            for l in active:
                t = w - l
                h_prev, c_prev = state[l]
                if l == 0:
                    xg = xp_ref[t] + b_full[0]
                else:
                    h_below = state[l - 1][0]     # layer l-1 output at time t
                    xg = jnp.dot(h_below.astype(jnp.bfloat16), wih_refs[l][...],
                                 preferred_element_type=jnp.float32) + b_full[l]
                gates = xg + jnp.dot(h_prev.astype(jnp.bfloat16),
                                     whh_refs[l][...],
                                     preferred_element_type=jnp.float32)
                # PyTorch gate order: i, f, g(cell), o -- lane-aligned slices.
                i_g = jax.nn.sigmoid(gates[:, 0 * Hp:1 * Hp])
                f_g = jax.nn.sigmoid(gates[:, 1 * Hp:2 * Hp])
                g_g = jnp.tanh(gates[:, 2 * Hp:3 * Hp])
                o_g = jax.nn.sigmoid(gates[:, 3 * Hp:4 * Hp])
                c_new = f_g * c_prev + i_g * g_g
                h_new = o_g * jnp.tanh(c_new)
                new_state[l] = (h_new, c_new)
                if l == n_layers - 1:
                    seq_ref[t] = h_new.astype(jnp.bfloat16)  # one vst per step
            return tuple(new_state)

        state = tuple((h_state[l], c_state[l]) for l in range(n_layers))
        all_layers = list(range(n_layers))
        if Tc >= n_layers:
            for w in range(n_layers - 1):                       # static prologue
                state = wave(w, state,
                             [l for l in all_layers if 0 <= w - l < Tc])
            state = lax.fori_loop(n_layers - 1, Tc,             # steady state
                                  lambda w, st: wave(w, st, all_layers),
                                  state, unroll=unroll)
            for w in range(Tc, Tc + n_layers - 1):              # static epilogue
                state = wave(w, state,
                             [l for l in all_layers if 0 <= w - l < Tc])
        else:
            for w in range(Tc + n_layers - 1):
                state = wave(w, state,
                             [l for l in all_layers if 0 <= w - l < Tc])

        for l in range(n_layers):
            h_state[l] = state[l][0]
            c_state[l] = state[l][1]

        # ---- Decoder fused per chunk (lane-dense Op store).
        Op = dec_w_ref.shape[-1]
        logits = jnp.dot(seq_ref[...].reshape(Tc * Bt, Hp), dec_w_ref[...],
                         preferred_element_type=jnp.float32) + dec_b_ref[...]
        out_ref[...] = logits.reshape(Tc, Bt, Op)

    return kernel


# --------------------------------------------------------------------------
# Forward: tokens (B, T) int32 -> (B, output_size, T) f32
# --------------------------------------------------------------------------
@functools.partial(jax.jit, static_argnames=("n_layers", "output_size",
                                             "time_chunk", "batch_tile"))
def next_character_lstm_forward(tokens, prep, *, n_layers, output_size,
                                time_chunk=128, batch_tile=64):
    B, T = tokens.shape
    Vp, fourHp = prep["emb_proj"].shape
    Hp = fourHp // 4
    Op = prep["dec_w_t"].shape[1]
    O = output_size

    B8 = _round_up(max(B, 8), 8)                  # f32 sublane alignment
    Bt = max(8, min(B8, (batch_tile // 8) * 8))   # per-core batch tile
    Bp = _round_up(B8, Bt)
    n_btiles = Bp // Bt

    # Generation-aware VMEM budget (128 MiB on v5e/v6e, 64 MiB/core on v7x).
    try:
        vmem_cap = int(pltpu.get_tpu_info().vmem_capacity_bytes)
    except Exception:
        vmem_cap = 64 << 20                       # conservative fallback (v7x)

    # Weights are double-buffered by the default pipeline.
    w_bytes = 2 * (prep["emb_proj"].size * 2 + prep["b0"].size * 4
                   + sum(w.size * 2 for w in prep["whh"])
                   + sum(w.size * 2 for w in prep["wih"])
                   + sum(b.size * 4 for b in prep["b"])
                   + prep["dec_w_t"].size * 2 + prep["dec_b"].size * 4)
    per_t = Bt * (2 * 4                 # token block (double buffered, int32)
                  + 2 * Op * 4          # output block (double buffered, f32)
                  + 4 * Hp * 2          # xp scratch (bf16)
                  + Hp * 2)             # hidden-seq scratch (bf16)
    fixed = w_bytes + 2 * n_layers * Bt * Hp * 4 + (4 << 20)
    budget = vmem_cap * 8 // 10
    tc_budget = max(1, (budget - fixed) // per_t) if budget > fixed else 1
    Tc = int(max(1, min(time_chunk, T, tc_budget)))
    n_chunks = pl.cdiv(T, Tc)
    Tp = n_chunks * Tc

    est = w_bytes + per_t * Tc + 2 * n_layers * Bt * Hp * 4
    vmem_limit = int(min(max(est * 3 // 2 + (8 << 20), 32 << 20),
                         vmem_cap - (4 << 20)))

    # Glue: only int32 token layout plumbing -- no embedding gather and no
    # (T, B, E) activation materialization in HBM.
    tok = jnp.pad(tokens.astype(jnp.int32), ((0, Bp - B), (0, Tp - T)))
    tok = jnp.transpose(tok, (1, 0))                              # (Tp, Bp)
    tok = tok.reshape(n_chunks, Tc, n_btiles, Bt).transpose(0, 2, 1, 3)
    tok = tok.reshape(n_chunks, n_btiles, Tc * Bt, 1)

    kernel_inputs = [tok, prep["emb_proj"], prep["b0"]]
    in_specs = [
        pl.BlockSpec((None, None, Tc * Bt, 1), lambda b, t: (t, b, 0, 0)),
        pl.BlockSpec(prep["emb_proj"].shape, lambda b, t: (0, 0)),
        pl.BlockSpec(prep["b0"].shape, lambda b, t: (0, 0)),
    ]
    for w in prep["whh"]:
        kernel_inputs.append(w)
        in_specs.append(pl.BlockSpec(w.shape, lambda b, t: (0, 0)))
    for w, bb in zip(prep["wih"], prep["b"]):
        kernel_inputs += [w, bb]
        in_specs += [pl.BlockSpec(w.shape, lambda b, t: (0, 0)),
                     pl.BlockSpec(bb.shape, lambda b, t: (0, 0))]
    kernel_inputs += [prep["dec_w_t"], prep["dec_b"]]
    in_specs += [pl.BlockSpec(prep["dec_w_t"].shape, lambda b, t: (0, 0)),
                 pl.BlockSpec(prep["dec_b"].shape, lambda b, t: (0, 0))]

    out_specs = pl.BlockSpec((Tc, Bt, Op), lambda b, t: (t, b, 0))
    out_shape = jax.ShapeDtypeStruct((Tp, Bp, Op), jnp.float32)

    scratch_shapes = [
        pltpu.VMEM((Tc, Bt, 4 * Hp), jnp.bfloat16),   # layer-0 input projection
        pltpu.VMEM((Tc, Bt, Hp), jnp.bfloat16),       # last-layer hidden seq
        pltpu.VMEM((n_layers, Bt, Hp), jnp.float32),  # h carried across chunks
        pltpu.VMEM((n_layers, Bt, Hp), jnp.float32),  # c carried across chunks
    ]

    steady_trip = max(Tc - n_layers + 1, 0)
    unroll = max(1, min(8, steady_trip))
    kernel = _make_lstm_kernel(n_layers, Tc, Bt, Hp, Vp, unroll)

    out_tbo = pl.pallas_call(
        kernel,
        out_shape=out_shape,
        grid_spec=pltpu.PrefetchScalarGridSpec(
            num_scalar_prefetch=0,
            grid=(n_btiles, n_chunks),
            in_specs=in_specs,
            out_specs=out_specs,
            scratch_shapes=scratch_shapes,
        ),
        compiler_params=pltpu.CompilerParams(
            # batch tiles are independent (megacore split); time chunks carry
            # (h, c) state and must run sequentially.
            dimension_semantics=("parallel", "arbitrary"),
            vmem_limit_bytes=vmem_limit,
        ),
    )(*kernel_inputs)

    out = out_tbo[:T, :B, :O]                 # drop time/batch/output padding
    return jnp.transpose(out, (1, 2, 0))      # (B, O, T) == permute(0, 2, 1)


# --------------------------------------------------------------------------
# Pure-JAX f32 reference (for correctness check)
# --------------------------------------------------------------------------
def lstm_reference(tokens, params):
    x = jnp.take(params["embedding"], tokens, axis=0)      # (B, T, E)
    B = x.shape[0]
    H = params["lstm"][0][1].shape[-1]
    seq = x
    for (w_ih, w_hh, b_ih, b_hh) in params["lstm"]:
        def step(carry, x_t, w_ih=w_ih, w_hh=w_hh, b_ih=b_ih, b_hh=b_hh):
            h, c = carry
            g = x_t @ w_ih.T + h @ w_hh.T + b_ih + b_hh
            i = jax.nn.sigmoid(g[:, 0 * H:1 * H])
            f = jax.nn.sigmoid(g[:, 1 * H:2 * H])
            gg = jnp.tanh(g[:, 2 * H:3 * H])
            o = jax.nn.sigmoid(g[:, 3 * H:4 * H])
            c = f * c + i * gg
            h = o * jnp.tanh(c)
            return (h, c), h
        init = (jnp.zeros((B, H), jnp.float32), jnp.zeros((B, H), jnp.float32))
        _, hs = lax.scan(step, init, jnp.transpose(seq, (1, 0, 2)))
        seq = jnp.transpose(hs, (1, 0, 2))                  # (B, T, H)
    logits = seq @ params["dec_w"].T + params["dec_b"]      # (B, T, O)
    return jnp.transpose(logits, (0, 2, 1))                 # (B, O, T)


if __name__ == "__main__":
    input_size = 16     # vocab
    embed_size = 8
    hidden_size = 32
    output_size = 16
    n_layers = 2
    batch = 2
    seq_len = 8

    key = jax.random.PRNGKey(0)
    pkey, tkey = jax.random.split(key)
    params = init_params(pkey, input_size, embed_size, hidden_size,
                         output_size, n_layers)
    prep = prepare_params(params)
    tokens = jax.random.randint(tkey, (batch, seq_len), 0, input_size,
                                dtype=jnp.int32)

    out = next_character_lstm_forward(tokens, prep, n_layers=n_layers,
                                      output_size=output_size)
    out = jax.block_until_ready(out)
    assert out.shape == (batch, output_size, seq_len), out.shape
    assert out.dtype == jnp.float32

    ref = jax.block_until_ready(lstm_reference(tokens, params))
    max_err = float(jnp.max(jnp.abs(out - ref)))
    assert max_err < 0.1, f"max abs err vs f32 reference: {max_err}"
    print("KERNEL_OK")
</pallas_src>

<mosaic_0001>
module attributes {stable_mosaic.version = 11 : i64} {
  func.func @kernel(%arg0: i32, %arg1: i32, %arg2: memref<1x1x64x1xi32, #tpu.memory_space<vmem>>, %arg3: memref<128x512xbf16, #tpu.memory_space<vmem>>, %arg4: memref<1x512xf32, #tpu.memory_space<vmem>>, %arg5: memref<128x512xbf16, #tpu.memory_space<vmem>>, %arg6: memref<128x512xbf16, #tpu.memory_space<vmem>>, %arg7: memref<128x512xbf16, #tpu.memory_space<vmem>>, %arg8: memref<1x512xf32, #tpu.memory_space<vmem>>, %arg9: memref<128x128xbf16, #tpu.memory_space<vmem>>, %arg10: memref<1x128xf32, #tpu.memory_space<vmem>>, %arg11: memref<8x8x128xf32, #tpu.memory_space<vmem>>, %arg12: memref<8x8x512xbf16, #tpu.memory_space<vmem>>, %arg13: memref<8x8x128xbf16, #tpu.memory_space<vmem>>, %arg14: memref<2x8x128xf32, #tpu.memory_space<vmem>>, %arg15: memref<2x8x128xf32, #tpu.memory_space<vmem>>) attributes {dimension_semantics = [#tpu.dimension_semantics<parallel>, #tpu.dimension_semantics<arbitrary>], iteration_bounds = array<i64: 1, 1>, scalar_prefetch = 0 : i64, scratch_operands = 4 : i64, tpu.core_type = #tpu.core_type<tc>, window_params = [{transform_indices = @transform_0, window_bounds = array<i64: 1, 1, 64, 1>}, {pipeline_mode = #tpu.pipeline_mode<synchronous>, transform_indices = @transform_1, window_bounds = array<i64: 128, 512>}, {pipeline_mode = #tpu.pipeline_mode<synchronous>, transform_indices = @transform_2, window_bounds = array<i64: 1, 512>}, {pipeline_mode = #tpu.pipeline_mode<synchronous>, transform_indices = @transform_3, window_bounds = array<i64: 128, 512>}, {pipeline_mode = #tpu.pipeline_mode<synchronous>, transform_indices = @transform_4, window_bounds = array<i64: 128, 512>}, {pipeline_mode = #tpu.pipeline_mode<synchronous>, transform_indices = @transform_5, window_bounds = array<i64: 128, 512>}, {pipeline_mode = #tpu.pipeline_mode<synchronous>, transform_indices = @transform_6, window_bounds = array<i64: 1, 512>}, {pipeline_mode = #tpu.pipeline_mode<synchronous>, transform_indices = @transform_7, window_bounds = array<i64: 128, 128>}, {pipeline_mode = #tpu.pipeline_mode<synchronous>, transform_indices = @transform_8, window_bounds = array<i64: 1, 128>}, {transform_indices = @transform_9, window_bounds = array<i64: 8, 8, 128>}]} {
    %c0_i32 = arith.constant 0 : i32
    %0 = arith.cmpi eq, %arg1, %c0_i32 : i32
    %1 = arith.extui %0 : i1 to i32
    %c0_i32_0 = arith.constant 0 : i32
    %2 = arith.cmpi ne, %1, %c0_i32_0 : i32
    scf.if %2 {
      %cst_217 = arith.constant 0.000000e+00 : f32
      %640 = vector.broadcast %cst_217 : f32 to vector<2x8x128xf32>
      %c0_218 = arith.constant 0 : index
      %c0_219 = arith.constant 0 : index
      %c0_220 = arith.constant 0 : index
      %641 = vector.load %arg14[%c0_218, %c0_219, %c0_220] : memref<2x8x128xf32, #tpu.memory_space<vmem>>, vector<2x8x128xf32>
      tpu.vector_store %arg14[%c0_218, %c0_219, %c0_220], %640 {strides = array<i32>} : memref<2x8x128xf32, #tpu.memory_space<vmem>>, vector<2x8x128xf32>,
      %cst_221 = arith.constant 0.000000e+00 : f32
      %642 = vector.broadcast %cst_221 : f32 to vector<2x8x128xf32>
      %c0_222 = arith.constant 0 : index
      %c0_223 = arith.constant 0 : index
      %c0_224 = arith.constant 0 : index
      %643 = vector.load %arg15[%c0_222, %c0_223, %c0_224] : memref<2x8x128xf32, #tpu.memory_space<vmem>>, vector<2x8x128xf32>
      tpu.vector_store %arg15[%c0_222, %c0_223, %c0_224], %642 {strides = array<i32>} : memref<2x8x128xf32, #tpu.memory_space<vmem>>, vector<2x8x128xf32>,
    } else {
    }
    %c0 = arith.constant 0 : index
    %c0_1 = arith.constant 0 : index
    %c0_2 = arith.constant 0 : index
    %c0_3 = arith.constant 0 : index
    %3 = vector.load %arg2[%c0, %c0_1, %c0_2, %c0_3] : memref<1x1x64x1xi32, #tpu.memory_space<vmem>>, vector<1x1x64x1xi32>
    %4 = vector.shape_cast %3 : vector<1x1x64x1xi32> to vector<64x1xi32>
    %5 = tpu.iota {dimensions = array<i32: 1>} : vector<64x128xi32>
    %6 = vector.broadcast %4 : vector<64x1xi32> to vector<64x128xi32>
    %7 = arith.cmpi eq, %5, %6 : vector<64x128xi32>
    %cst = arith.constant 1.000000e+00 : f32
    %cst_4 = arith.constant 0.000000e+00 : f32
    %8 = vector.broadcast %cst : f32 to vector<64x128xf32>
    %9 = vector.broadcast %cst_4 : f32 to vector<64x128xf32>
    %10 = arith.select %7, %8, %9 : vector<64x128xi1>, vector<64x128xf32>
    %11 = arith.truncf %10 : vector<64x128xf32> to vector<64x128xbf16>
    %c0_5 = arith.constant 0 : index
    %c0_6 = arith.constant 0 : index
    %12 = vector.load %arg3[%c0_5, %c0_6] : memref<128x512xbf16, #tpu.memory_space<vmem>>, vector<128x512xbf16>
    %cst_7 = arith.constant dense<0.000000e+00> : vector<64x512xf32>
    %13 = tpu.matmul %11, %12, %cst_7 {dimension_numbers = #tpu.dot_dimension_numbers<[1], [0], [0], [1], [0, 0, 1, 1], [], []>} : vector<64x128xbf16>, vector<128x512xbf16>, vector<64x512xf32> -> vector<64x512xf32>
    %14 = vector.shape_cast %13 : vector<64x512xf32> to vector<8x8x512xf32>
    %15 = arith.truncf %14 : vector<8x8x512xf32> to vector<8x8x512xbf16>
    %c0_8 = arith.constant 0 : index
    %c0_9 = arith.constant 0 : index
    %c0_10 = arith.constant 0 : index
    %16 = vector.load %arg12[%c0_8, %c0_9, %c0_10] : memref<8x8x512xbf16, #tpu.memory_space<vmem>>, vector<8x8x512xbf16>
    tpu.vector_store %arg12[%c0_8, %c0_9, %c0_10], %15 {strides = array<i32>} : memref<8x8x512xbf16, #tpu.memory_space<vmem>>, vector<8x8x512xbf16>,
    %c0_11 = arith.constant 0 : index
    %c0_12 = arith.constant 0 : index
    %17 = vector.load %arg4[%c0_11, %c0_12] : memref<1x512xf32, #tpu.memory_space<vmem>>, vector<1x512xf32>
    %18 = vector.shape_cast %17 : vector<1x512xf32> to vector<1x512xf32>
    %19 = vector.broadcast %18 : vector<1x512xf32> to vector<8x512xf32>
    %c0_13 = arith.constant 0 : index
    %c0_14 = arith.constant 0 : index
    %20 = vector.load %arg8[%c0_13, %c0_14] : memref<1x512xf32, #tpu.memory_space<vmem>>, vector<1x512xf32>
    %21 = vector.shape_cast %20 : vector<1x512xf32> to vector<1x512xf32>
    %22 = vector.broadcast %21 : vector<1x512xf32> to vector<8x512xf32>
    %c0_15 = arith.constant 0 : index
    %c0_16 = arith.constant 0 : index
    %c0_17 = arith.constant 0 : index
    %23 = vector.load %arg14[%c0_15, %c0_16, %c0_17] : memref<2x8x128xf32, #tpu.memory_space<vmem>>, vector<1x8x128xf32>
    %24 = vector.shape_cast %23 : vector<1x8x128xf32> to vector<8x128xf32>
    %c0_18 = arith.constant 0 : index
    %c0_19 = arith.constant 0 : index
    %c0_20 = arith.constant 0 : index
    %25 = vector.load %arg15[%c0_18, %c0_19, %c0_20] : memref<2x8x128xf32, #tpu.memory_space<vmem>>, vector<1x8x128xf32>
    %26 = vector.shape_cast %25 : vector<1x8x128xf32> to vector<8x128xf32>
    %c1 = arith.constant 1 : index
    %c0_21 = arith.constant 0 : index
    %c0_22 = arith.constant 0 : index
    %27 = vector.load %arg14[%c1, %c0_21, %c0_22] : memref<2x8x128xf32, #tpu.memory_space<vmem>>, vector<1x8x128xf32>
    %28 = vector.shape_cast %27 : vector<1x8x128xf32> to vector<8x128xf32>
    %c1_23 = arith.constant 1 : index
    %c0_24 = arith.constant 0 : index
    %c0_25 = arith.constant 0 : index
    %29 = vector.load %arg15[%c1_23, %c0_24, %c0_25] : memref<2x8x128xf32, #tpu.memory_space<vmem>>, vector<1x8x128xf32>
    %30 = vector.shape_cast %29 : vector<1x8x128xf32> to vector<8x128xf32>
    %c0_26 = arith.constant 0 : index
    %c0_27 = arith.constant 0 : index
    %c0_28 = arith.constant 0 : index
    %31 = vector.load %arg12[%c0_26, %c0_27, %c0_28] : memref<8x8x512xbf16, #tpu.memory_space<vmem>>, vector<1x8x512xbf16>
    %32 = vector.shape_cast %31 : vector<1x8x512xbf16> to vector<8x512xbf16>
    %33 = arith.extf %32 : vector<8x512xbf16> to vector<8x512xf32>
    %34 = arith.addf %33, %19 : vector<8x512xf32>
    %35 = arith.truncf %24 : vector<8x128xf32> to vector<8x128xbf16>
    %c0_29 = arith.constant 0 : index
    %c0_30 = arith.constant 0 : index
    %36 = vector.load %arg5[%c0_29, %c0_30] : memref<128x512xbf16, #tpu.memory_space<vmem>>, vector<128x512xbf16>
    %cst_31 = arith.constant dense<0.000000e+00> : vector<8x512xf32>
    %37 = tpu.matmul %35, %36, %cst_31 {dimension_numbers = #tpu.dot_dimension_numbers<[1], [0], [0], [1], [0, 0, 1, 1], [], []>} : vector<8x128xbf16>, vector<128x512xbf16>, vector<8x512xf32> -> vector<8x512xf32>
    %38 = arith.addf %34, %37 : vector<8x512xf32>
    %39 = vector.extract_strided_slice %38 {offsets = [0, 0], sizes = [8, 128], strides = [1, 1]} : vector<8x512xf32> to vector<8x128xf32>
    %40 = arith.negf %39 : vector<8x128xf32>
    %41 = math.exp %40 : vector<8x128xf32>
    %cst_32 = arith.constant 1.000000e+00 : f32
    %42 = vector.broadcast %cst_32 : f32 to vector<8x128xf32>
    %43 = arith.addf %42, %41 : vector<8x128xf32>
    %44 = arith.divf %42, %43 : vector<8x128xf32>
    %45 = vector.extract_strided_slice %38 {offsets = [0, 128], sizes = [8, 128], strides = [1, 1]} : vector<8x512xf32> to vector<8x128xf32>
    %46 = arith.negf %45 : vector<8x128xf32>
    %47 = math.exp %46 : vector<8x128xf32>
    %cst_33 = arith.constant 1.000000e+00 : f32
    %48 = vector.broadcast %cst_33 : f32 to vector<8x128xf32>
    %49 = arith.addf %48, %47 : vector<8x128xf32>
    %50 = arith.divf %48, %49 : vector<8x128xf32>
    %51 = vector.extract_strided_slice %38 {offsets = [0, 256], sizes = [8, 128], strides = [1, 1]} : vector<8x512xf32> to vector<8x128xf32>
    %52 = math.tanh %51 : vector<8x128xf32>
    %53 = vector.extract_strided_slice %38 {offsets = [0, 384], sizes = [8, 128], strides = [1, 1]} : vector<8x512xf32> to vector<8x128xf32>
    %54 = arith.negf %53 : vector<8x128xf32>
    %55 = math.exp %54 : vector<8x128xf32>
    %cst_34 = arith.constant 1.000000e+00 : f32
    %56 = vector.broadcast %cst_34 : f32 to vector<8x128xf32>
    %57 = arith.addf %56, %55 : vector<8x128xf32>
    %58 = arith.divf %56, %57 : vector<8x128xf32>
    %59 = arith.mulf %50, %26 : vector<8x128xf32>
    %60 = arith.mulf %44, %52 : vector<8x128xf32>
    %61 = arith.addf %59, %60 : vector<8x128xf32>
    %62 = math.tanh %61 : vector<8x128xf32>
    %63 = arith.mulf %58, %62 : vector<8x128xf32>
    %c1_i32 = arith.constant 1 : i32
    %c0_i32_35 = arith.constant 0 : i32
    %64 = arith.subi %c1_i32, %c0_i32_35 : i32
    %65 = arith.index_cast %64 : i32 to index
    %c0_36 = arith.constant 0 : index
    %c0_37 = arith.constant 0 : index
    %66 = vector.load %arg12[%65, %c0_36, %c0_37] : memref<8x8x512xbf16, #tpu.memory_space<vmem>>, vector<1x8x512xbf16>
    %67 = vector.shape_cast %66 : vector<1x8x512xbf16> to vector<8x512xbf16>
    %68 = arith.extf %67 : vector<8x512xbf16> to vector<8x512xf32>
    %69 = arith.addf %68, %19 : vector<8x512xf32>
    %70 = arith.truncf %63 : vector<8x128xf32> to vector<8x128xbf16>
    %c0_38 = arith.constant 0 : index
    %c0_39 = arith.constant 0 : index
    %71 = vector.load %arg5[%c0_38, %c0_39] : memref<128x512xbf16, #tpu.memory_space<vmem>>, vector<128x512xbf16>
    %cst_40 = arith.constant dense<0.000000e+00> : vector<8x512xf32>
    %72 = tpu.matmul %70, %71, %cst_40 {dimension_numbers = #tpu.dot_dimension_numbers<[1], [0], [0], [1], [0, 0, 1, 1], [], []>} : vector<8x128xbf16>, vector<128x512xbf16>, vector<8x512xf32> -> vector<8x512xf32>
    %73 = arith.addf %69, %72 : vector<8x512xf32>
    %74 = vector.extract_strided_slice %73 {offsets = [0, 0], sizes = [8, 128], strides = [1, 1]} : vector<8x512xf32> to vector<8x128xf32>
    %75 = arith.negf %74 : vector<8x128xf32>
    %76 = math.exp %75 : vector<8x128xf32>
    %cst_41 = arith.constant 1.000000e+00 : f32
    %77 = vector.broadcast %cst_41 : f32 to vector<8x128xf32>
    %78 = arith.addf %77, %76 : vector<8x128xf32>
    %79 = arith.divf %77, %78 : vector<8x128xf32>
    %80 = vector.extract_strided_slice %73 {offsets = [0, 128], sizes = [8, 128], strides = [1, 1]} : vector<8x512xf32> to vector<8x128xf32>
    %81 = arith.negf %80 : vector<8x128xf32>
    %82 = math.exp %81 : vector<8x128xf32>
    %cst_42 = arith.constant 1.000000e+00 : f32
    %83 = vector.broadcast %cst_42 : f32 to vector<8x128xf32>
    %84 = arith.addf %83, %82 : vector<8x128xf32>
    %85 = arith.divf %83, %84 : vector<8x128xf32>
    %86 = vector.extract_strided_slice %73 {offsets = [0, 256], sizes = [8, 128], strides = [1, 1]} : vector<8x512xf32> to vector<8x128xf32>
    %87 = math.tanh %86 : vector<8x128xf32>
    %88 = vector.extract_strided_slice %73 {offsets = [0, 384], sizes = [8, 128], strides = [1, 1]} : vector<8x512xf32> to vector<8x128xf32>
    %89 = arith.negf %88 : vector<8x128xf32>
    %90 = math.exp %89 : vector<8x128xf32>
    %cst_43 = arith.constant 1.000000e+00 : f32
    %91 = vector.broadcast %cst_43 : f32 to vector<8x128xf32>
    %92 = arith.addf %91, %90 : vector<8x128xf32>
    %93 = arith.divf %91, %92 : vector<8x128xf32>
    %94 = arith.mulf %85, %61 : vector<8x128xf32>
    %95 = arith.mulf %79, %87 : vector<8x128xf32>
    %96 = arith.addf %94, %95 : vector<8x128xf32>
    %97 = math.tanh %96 : vector<8x128xf32>
    %98 = arith.mulf %93, %97 : vector<8x128xf32>
    %c1_i32_44 = arith.constant 1 : i32
    %99 = arith.subi %c1_i32, %c1_i32_44 : i32
    %100 = arith.truncf %63 : vector<8x128xf32> to vector<8x128xbf16>
    %c0_45 = arith.constant 0 : index
    %c0_46 = arith.constant 0 : index
    %101 = vector.load %arg7[%c0_45, %c0_46] : memref<128x512xbf16, #tpu.memory_space<vmem>>, vector<128x512xbf16>
    %cst_47 = arith.constant dense<0.000000e+00> : vector<8x512xf32>
    %102 = tpu.matmul %100, %101, %cst_47 {dimension_numbers = #tpu.dot_dimension_numbers<[1], [0], [0], [1], [0, 0, 1, 1], [], []>} : vector<8x128xbf16>, vector<128x512xbf16>, vector<8x512xf32> -> vector<8x512xf32>
    %103 = arith.addf %102, %22 : vector<8x512xf32>
    %104 = arith.truncf %28 : vector<8x128xf32> to vector<8x128xbf16>
    %c0_48 = arith.constant 0 : index
    %c0_49 = arith.constant 0 : index
    %105 = vector.load %arg6[%c0_48, %c0_49] : memref<128x512xbf16, #tpu.memory_space<vmem>>, vector<128x512xbf16>
    %cst_50 = arith.constant dense<0.000000e+00> : vector<8x512xf32>
    %106 = tpu.matmul %104, %105, %cst_50 {dimension_numbers = #tpu.dot_dimension_numbers<[1], [0], [0], [1], [0, 0, 1, 1], [], []>} : vector<8x128xbf16>, vector<128x512xbf16>, vector<8x512xf32> -> vector<8x512xf32>
    %107 = arith.addf %103, %106 : vector<8x512xf32>
    %108 = vector.extract_strided_slice %107 {offsets = [0, 0], sizes = [8, 128], strides = [1, 1]} : vector<8x512xf32> to vector<8x128xf32>
    %109 = arith.negf %108 : vector<8x128xf32>
    %110 = math.exp %109 : vector<8x128xf32>
    %cst_51 = arith.constant 1.000000e+00 : f32
    %111 = vector.broadcast %cst_51 : f32 to vector<8x128xf32>
    %112 = arith.addf %111, %110 : vector<8x128xf32>
    %113 = arith.divf %111, %112 : vector<8x128xf32>
    %114 = vector.extract_strided_slice %107 {offsets = [0, 128], sizes = [8, 128], strides = [1, 1]} : vector<8x512xf32> to vector<8x128xf32>
    %115 = arith.negf %114 : vector<8x128xf32>
    %116 = math.exp %115 : vector<8x128xf32>
    %cst_52 = arith.constant 1.000000e+00 : f32
    %117 = vector.broadcast %cst_52 : f32 to vector<8x128xf32>
    %118 = arith.addf %117, %116 : vector<8x128xf32>
    %119 = arith.divf %117, %118 : vector<8x128xf32>
    %120 = vector.extract_strided_slice %107 {offsets = [0, 256], sizes = [8, 128], strides = [1, 1]} : vector<8x512xf32> to vector<8x128xf32>
    %121 = math.tanh %120 : vector<8x128xf32>
    %122 = vector.extract_strided_slice %107 {offsets = [0, 384], sizes = [8, 128], strides = [1, 1]} : vector<8x512xf32> to vector<8x128xf32>
    %123 = arith.negf %122 : vector<8x128xf32>
    %124 = math.exp %123 : vector<8x128xf32>
    %cst_53 = arith.constant 1.000000e+00 : f32
    %125 = vector.broadcast %cst_53 : f32 to vector<8x128xf32>
    %126 = arith.addf %125, %124 : vector<8x128xf32>
    %127 = arith.divf %125, %126 : vector<8x128xf32>
    %128 = arith.mulf %119, %30 : vector<8x128xf32>
    %129 = arith.mulf %113, %121 : vector<8x128xf32>
    %130 = arith.addf %128, %129 : vector<8x128xf32>
    %131 = math.tanh %130 : vector<8x128xf32>
    %132 = arith.mulf %127, %131 : vector<8x128xf32>
    %133 = arith.truncf %132 : vector<8x128xf32> to vector<8x128xbf16>
    %134 = arith.index_cast %99 : i32 to index
    %c0_54 = arith.constant 0 : index
    %c0_55 = arith.constant 0 : index
    %135 = vector.load %arg13[%134, %c0_54, %c0_55] : memref<8x8x128xbf16, #tpu.memory_space<vmem>>, vector<1x8x128xbf16>
    %136 = vector.shape_cast %135 : vector<1x8x128xbf16> to vector<8x128xbf16>
    %137 = vector.shape_cast %133 : vector<8x128xbf16> to vector<1x8x128xbf16>
    tpu.vector_store %arg13[%134, %c0_54, %c0_55], %137 {strides = array<i32>} : memref<8x8x128xbf16, #tpu.memory_space<vmem>>, vector<1x8x128xbf16>,
    %c2_i32 = arith.constant 2 : i32
    %c0_i32_56 = arith.constant 0 : i32
    %138 = arith.subi %c2_i32, %c0_i32_56 : i32
    %139 = arith.index_cast %138 : i32 to index
    %c0_57 = arith.constant 0 : index
    %c0_58 = arith.constant 0 : index
    %140 = vector.load %arg12[%139, %c0_57, %c0_58] : memref<8x8x512xbf16, #tpu.memory_space<vmem>>, vector<1x8x512xbf16>
    %141 = vector.shape_cast %140 : vector<1x8x512xbf16> to vector<8x512xbf16>
    %142 = arith.extf %141 : vector<8x512xbf16> to vector<8x512xf32>
    %143 = arith.addf %142, %19 : vector<8x512xf32>
    %144 = arith.truncf %98 : vector<8x128xf32> to vector<8x128xbf16>
    %c0_59 = arith.constant 0 : index
    %c0_60 = arith.constant 0 : index
    %145 = vector.load %arg5[%c0_59, %c0_60] : memref<128x512xbf16, #tpu.memory_space<vmem>>, vector<128x512xbf16>
    %cst_61 = arith.constant dense<0.000000e+00> : vector<8x512xf32>
    %146 = tpu.matmul %144, %145, %cst_61 {dimension_numbers = #tpu.dot_dimension_numbers<[1], [0], [0], [1], [0, 0, 1, 1], [], []>} : vector<8x128xbf16>, vector<128x512xbf16>, vector<8x512xf32> -> vector<8x512xf32>
    %147 = arith.addf %143, %146 : vector<8x512xf32>
    %148 = vector.extract_strided_slice %147 {offsets = [0, 0], sizes = [8, 128], strides = [1, 1]} : vector<8x512xf32> to vector<8x128xf32>
    %149 = arith.negf %148 : vector<8x128xf32>
    %150 = math.exp %149 : vector<8x128xf32>
    %cst_62 = arith.constant 1.000000e+00 : f32
    %151 = vector.broadcast %cst_62 : f32 to vector<8x128xf32>
    %152 = arith.addf %151, %150 : vector<8x128xf32>
    %153 = arith.divf %151, %152 : vector<8x128xf32>
    %154 = vector.extract_strided_slice %147 {offsets = [0, 128], sizes = [8, 128], strides = [1, 1]} : vector<8x512xf32> to vector<8x128xf32>
    %155 = arith.negf %154 : vector<8x128xf32>
    %156 = math.exp %155 : vector<8x128xf32>
    %cst_63 = arith.constant 1.000000e+00 : f32
    %157 = vector.broadcast %cst_63 : f32 to vector<8x128xf32>
    %158 = arith.addf %157, %156 : vector<8x128xf32>
    %159 = arith.divf %157, %158 : vector<8x128xf32>
    %160 = vector.extract_strided_slice %147 {offsets = [0, 256], sizes = [8, 128], strides = [1, 1]} : vector<8x512xf32> to vector<8x128xf32>
    %161 = math.tanh %160 : vector<8x128xf32>
    %162 = vector.extract_strided_slice %147 {offsets = [0, 384], sizes = [8, 128], strides = [1, 1]} : vector<8x512xf32> to vector<8x128xf32>
    %163 = arith.negf %162 : vector<8x128xf32>
    %164 = math.exp %163 : vector<8x128xf32>
    %cst_64 = arith.constant 1.000000e+00 : f32
    %165 = vector.broadcast %cst_64 : f32 to vector<8x128xf32>
    %166 = arith.addf %165, %164 : vector<8x128xf32>
    %167 = arith.divf %165, %166 : vector<8x128xf32>
    %168 = arith.mulf %159, %96 : vector<8x128xf32>
    %169 = arith.mulf %153, %161 : vector<8x128xf32>
    %170 = arith.addf %168, %169 : vector<8x128xf32>
    %171 = math.tanh %170 : vector<8x128xf32>
    %172 = arith.mulf %167, %171 : vector<8x128xf32>
    %c1_i32_65 = arith.constant 1 : i32
    %173 = arith.subi %c2_i32, %c1_i32_65 : i32
    %174 = arith.truncf %98 : vector<8x128xf32> to vector<8x128xbf16>
    %c0_66 = arith.constant 0 : index
    %c0_67 = arith.constant 0 : index
    %175 = vector.load %arg7[%c0_66, %c0_67] : memref<128x512xbf16, #tpu.memory_space<vmem>>, vector<128x512xbf16>
    %cst_68 = arith.constant dense<0.000000e+00> : vector<8x512xf32>
    %176 = tpu.matmul %174, %175, %cst_68 {dimension_numbers = #tpu.dot_dimension_numbers<[1], [0], [0], [1], [0, 0, 1, 1], [], []>} : vector<8x128xbf16>, vector<128x512xbf16>, vector<8x512xf32> -> vector<8x512xf32>
    %177 = arith.addf %176, %22 : vector<8x512xf32>
    %178 = arith.truncf %132 : vector<8x128xf32> to vector<8x128xbf16>
    %c0_69 = arith.constant 0 : index
    %c0_70 = arith.constant 0 : index
    %179 = vector.load %arg6[%c0_69, %c0_70] : memref<128x512xbf16, #tpu.memory_space<vmem>>, vector<128x512xbf16>
    %cst_71 = arith.constant dense<0.000000e+00> : vector<8x512xf32>
    %180 = tpu.matmul %178, %179, %cst_71 {dimension_numbers = #tpu.dot_dimension_numbers<[1], [0], [0], [1], [0, 0, 1, 1], [], []>} : vector<8x128xbf16>, vector<128x512xbf16>, vector<8x512xf32> -> vector<8x512xf32>
    %181 = arith.addf %177, %180 : vector<8x512xf32>
    %182 = vector.extract_strided_slice %181 {offsets = [0, 0], sizes = [8, 128], strides = [1, 1]} : vector<8x512xf32> to vector<8x128xf32>
    %183 = arith.negf %182 : vector<8x128xf32>
    %184 = math.exp %183 : vector<8x128xf32>
    %cst_72 = arith.constant 1.000000e+00 : f32
    %185 = vector.broadcast %cst_72 : f32 to vector<8x128xf32>
    %186 = arith.addf %185, %184 : vector<8x128xf32>
    %187 = arith.divf %185, %186 : vector<8x128xf32>
    %188 = vector.extract_strided_slice %181 {offsets = [0, 128], sizes = [8, 128], strides = [1, 1]} : vector<8x512xf32> to vector<8x128xf32>
    %189 = arith.negf %188 : vector<8x128xf32>
    %190 = math.exp %189 : vector<8x128xf32>
    %cst_73 = arith.constant 1.000000e+00 : f32
    %191 = vector.broadcast %cst_73 : f32 to vector<8x128xf32>
    %192 = arith.addf %191, %190 : vector<8x128xf32>
    %193 = arith.divf %191, %192 : vector<8x128xf32>
    %194 = vector.extract_strided_slice %181 {offsets = [0, 256], sizes = [8, 128], strides = [1, 1]} : vector<8x512xf32> to vector<8x128xf32>
    %195 = math.tanh %194 : vector<8x128xf32>
    %196 = vector.extract_strided_slice %181 {offsets = [0, 384], sizes = [8, 128], strides = [1, 1]} : vector<8x512xf32> to vector<8x128xf32>
    %197 = arith.negf %196 : vector<8x128xf32>
    %198 = math.exp %197 : vector<8x128xf32>
    %cst_74 = arith.constant 1.000000e+00 : f32
    %199 = vector.broadcast %cst_74 : f32 to vector<8x128xf32>
    %200 = arith.addf %199, %198 : vector<8x128xf32>
    %201 = arith.divf %199, %200 : vector<8x128xf32>
    %202 = arith.mulf %193, %130 : vector<8x128xf32>
    %203 = arith.mulf %187, %195 : vector<8x128xf32>
    %204 = arith.addf %202, %203 : vector<8x128xf32>
    %205 = math.tanh %204 : vector<8x128xf32>
    %206 = arith.mulf %201, %205 : vector<8x128xf32>
    %207 = arith.truncf %206 : vector<8x128xf32> to vector<8x128xbf16>
    %208 = arith.index_cast %173 : i32 to index
    %c0_75 = arith.constant 0 : index
    %c0_76 = arith.constant 0 : index
    %209 = vector.load %arg13[%208, %c0_75, %c0_76] : memref<8x8x128xbf16, #tpu.memory_space<vmem>>, vector<1x8x128xbf16>
    %210 = vector.shape_cast %209 : vector<1x8x128xbf16> to vector<8x128xbf16>
    %211 = vector.shape_cast %207 : vector<8x128xbf16> to vector<1x8x128xbf16>
    tpu.vector_store %arg13[%208, %c0_75, %c0_76], %211 {strides = array<i32>} : memref<8x8x128xbf16, #tpu.memory_space<vmem>>, vector<1x8x128xbf16>,
    %c3_i32 = arith.constant 3 : i32
    %c0_i32_77 = arith.constant 0 : i32
    %212 = arith.subi %c3_i32, %c0_i32_77 : i32
    %213 = arith.index_cast %212 : i32 to index
    %c0_78 = arith.constant 0 : index
    %c0_79 = arith.constant 0 : index
    %214 = vector.load %arg12[%213, %c0_78, %c0_79] : memref<8x8x512xbf16, #tpu.memory_space<vmem>>, vector<1x8x512xbf16>
    %215 = vector.shape_cast %214 : vector<1x8x512xbf16> to vector<8x512xbf16>
    %216 = arith.extf %215 : vector<8x512xbf16> to vector<8x512xf32>
    %217 = arith.addf %216, %19 : vector<8x512xf32>
    %218 = arith.truncf %172 : vector<8x128xf32> to vector<8x128xbf16>
    %c0_80 = arith.constant 0 : index
    %c0_81 = arith.constant 0 : index
    %219 = vector.load %arg5[%c0_80, %c0_81] : memref<128x512xbf16, #tpu.memory_space<vmem>>, vector<128x512xbf16>
    %cst_82 = arith.constant dense<0.000000e+00> : vector<8x512xf32>
    %220 = tpu.matmul %218, %219, %cst_82 {dimension_numbers = #tpu.dot_dimension_numbers<[1], [0], [0], [1], [0, 0, 1, 1], [], []>} : vector<8x128xbf16>, vector<128x512xbf16>, vector<8x512xf32> -> vector<8x512xf32>
    %221 = arith.addf %217, %220 : vector<8x512xf32>
    %222 = vector.extract_strided_slice %221 {offsets = [0, 0], sizes = [8, 128], strides = [1, 1]} : vector<8x512xf32> to vector<8x128xf32>
    %223 = arith.negf %222 : vector<8x128xf32>
    %224 = math.exp %223 : vector<8x128xf32>
    %cst_83 = arith.constant 1.000000e+00 : f32
    %225 = vector.broadcast %cst_83 : f32 to vector<8x128xf32>
    %226 = arith.addf %225, %224 : vector<8x128xf32>
    %227 = arith.divf %225, %226 : vector<8x128xf32>
    %228 = vector.extract_strided_slice %221 {offsets = [0, 128], sizes = [8, 128], strides = [1, 1]} : vector<8x512xf32> to vector<8x128xf32>
    %229 = arith.negf %228 : vector<8x128xf32>
    %230 = math.exp %229 : vector<8x128xf32>
    %cst_84 = arith.constant 1.000000e+00 : f32
    %231 = vector.broadcast %cst_84 : f32 to vector<8x128xf32>
    %232 = arith.addf %231, %230 : vector<8x128xf32>
    %233 = arith.divf %231, %232 : vector<8x128xf32>
    %234 = vector.extract_strided_slice %221 {offsets = [0, 256], sizes = [8, 128], strides = [1, 1]} : vector<8x512xf32> to vector<8x128xf32>
    %235 = math.tanh %234 : vector<8x128xf32>
    %236 = vector.extract_strided_slice %221 {offsets = [0, 384], sizes = [8, 128], strides = [1, 1]} : vector<8x512xf32> to vector<8x128xf32>
    %237 = arith.negf %236 : vector<8x128xf32>
    %238 = math.exp %237 : vector<8x128xf32>
    %cst_85 = arith.constant 1.000000e+00 : f32
    %239 = vector.broadcast %cst_85 : f32 to vector<8x128xf32>
    %240 = arith.addf %239, %238 : vector<8x128xf32>
    %241 = arith.divf %239, %240 : vector<8x128xf32>
    %242 = arith.mulf %233, %170 : vector<8x128xf32>
    %243 = arith.mulf %227, %235 : vector<8x128xf32>
    %244 = arith.addf %242, %243 : vector<8x128xf32>
    %245 = math.tanh %244 : vector<8x128xf32>
    %246 = arith.mulf %241, %245 : vector<8x128xf32>
    %c1_i32_86 = arith.constant 1 : i32
    %247 = arith.subi %c3_i32, %c1_i32_86 : i32
    %248 = arith.truncf %172 : vector<8x128xf32> to vector<8x128xbf16>
    %c0_87 = arith.constant 0 : index
    %c0_88 = arith.constant 0 : index
    %249 = vector.load %arg7[%c0_87, %c0_88] : memref<128x512xbf16, #tpu.memory_space<vmem>>, vector<128x512xbf16>
    %cst_89 = arith.constant dense<0.000000e+00> : vector<8x512xf32>
    %250 = tpu.matmul %248, %249, %cst_89 {dimension_numbers = #tpu.dot_dimension_numbers<[1], [0], [0], [1], [0, 0, 1, 1], [], []>} : vector<8x128xbf16>, vector<128x512xbf16>, vector<8x512xf32> -> vector<8x512xf32>
    %251 = arith.addf %250, %22 : vector<8x512xf32>
    %252 = arith.truncf %206 : vector<8x128xf32> to vector<8x128xbf16>
    %c0_90 = arith.constant 0 : index
    %c0_91 = arith.constant 0 : index
    %253 = vector.load %arg6[%c0_90, %c0_91] : memref<128x512xbf16, #tpu.memory_space<vmem>>, vector<128x512xbf16>
    %cst_92 = arith.constant dense<0.000000e+00> : vector<8x512xf32>
    %254 = tpu.matmul %252, %253, %cst_92 {dimension_numbers = #tpu.dot_dimension_numbers<[1], [0], [0], [1], [0, 0, 1, 1], [], []>} : vector<8x128xbf16>, vector<128x512xbf16>, vector<8x512xf32> -> vector<8x512xf32>
    %255 = arith.addf %251, %254 : vector<8x512xf32>
    %256 = vector.extract_strided_slice %255 {offsets = [0, 0], sizes = [8, 128], strides = [1, 1]} : vector<8x512xf32> to vector<8x128xf32>
    %257 = arith.negf %256 : vector<8x128xf32>
    %258 = math.exp %257 : vector<8x128xf32>
    %cst_93 = arith.constant 1.000000e+00 : f32
    %259 = vector.broadcast %cst_93 : f32 to vector<8x128xf32>
    %260 = arith.addf %259, %258 : vector<8x128xf32>
    %261 = arith.divf %259, %260 : vector<8x128xf32>
    %262 = vector.extract_strided_slice %255 {offsets = [0, 128], sizes = [8, 128], strides = [1, 1]} : vector<8x512xf32> to vector<8x128xf32>
    %263 = arith.negf %262 : vector<8x128xf32>
    %264 = math.exp %263 : vector<8x128xf32>
    %cst_94 = arith.constant 1.000000e+00 : f32
    %265 = vector.broadcast %cst_94 : f32 to vector<8x128xf32>
    %266 = arith.addf %265, %264 : vector<8x128xf32>
    %267 = arith.divf %265, %266 : vector<8x128xf32>
    %268 = vector.extract_strided_slice %255 {offsets = [0, 256], sizes = [8, 128], strides = [1, 1]} : vector<8x512xf32> to vector<8x128xf32>
    %269 = math.tanh %268 : vector<8x128xf32>
    %270 = vector.extract_strided_slice %255 {offsets = [0, 384], sizes = [8, 128], strides = [1, 1]} : vector<8x512xf32> to vector<8x128xf32>
    %271 = arith.negf %270 : vector<8x128xf32>
    %272 = math.exp %271 : vector<8x128xf32>
    %cst_95 = arith.constant 1.000000e+00 : f32
    %273 = vector.broadcast %cst_95 : f32 to vector<8x128xf32>
    %274 = arith.addf %273, %272 : vector<8x128xf32>
    %275 = arith.divf %273, %274 : vector<8x128xf32>
    %276 = arith.mulf %267, %204 : vector<8x128xf32>
    %277 = arith.mulf %261, %269 : vector<8x128xf32>
    %278 = arith.addf %276, %277 : vector<8x128xf32>
    %279 = math.tanh %278 : vector<8x128xf32>
    %280 = arith.mulf %275, %279 : vector<8x128xf32>
    %281 = arith.truncf %280 : vector<8x128xf32> to vector<8x128xbf16>
    %282 = arith.index_cast %247 : i32 to index
    %c0_96 = arith.constant 0 : index
    %c0_97 = arith.constant 0 : index
    %283 = vector.load %arg13[%282, %c0_96, %c0_97] : memref<8x8x128xbf16, #tpu.memory_space<vmem>>, vector<1x8x128xbf16>
    %284 = vector.shape_cast %283 : vector<1x8x128xbf16> to vector<8x128xbf16>
    %285 = vector.shape_cast %281 : vector<8x128xbf16> to vector<1x8x128xbf16>
    tpu.vector_store %arg13[%282, %c0_96, %c0_97], %285 {strides = array<i32>} : memref<8x8x128xbf16, #tpu.memory_space<vmem>>, vector<1x8x128xbf16>,
    %c4_i32 = arith.constant 4 : i32
    %c0_i32_98 = arith.constant 0 : i32
    %286 = arith.subi %c4_i32, %c0_i32_98 : i32
    %287 = arith.index_cast %286 : i32 to index
    %c0_99 = arith.constant 0 : index
    %c0_100 = arith.constant 0 : index
    %288 = vector.load %arg12[%287, %c0_99, %c0_100] : memref<8x8x512xbf16, #tpu.memory_space<vmem>>, vector<1x8x512xbf16>
    %289 = vector.shape_cast %288 : vector<1x8x512xbf16> to vector<8x512xbf16>
    %290 = arith.extf %289 : vector<8x512xbf16> to vector<8x512xf32>
    %291 = arith.addf %290, %19 : vector<8x512xf32>
    %292 = arith.truncf %246 : vector<8x128xf32> to vector<8x128xbf16>
    %c0_101 = arith.constant 0 : index
    %c0_102 = arith.constant 0 : index
    %293 = vector.load %arg5[%c0_101, %c0_102] : memref<128x512xbf16, #tpu.memory_space<vmem>>, vector<128x512xbf16>
    %cst_103 = arith.constant dense<0.000000e+00> : vector<8x512xf32>
    %294 = tpu.matmul %292, %293, %cst_103 {dimension_numbers = #tpu.dot_dimension_numbers<[1], [0], [0], [1], [0, 0, 1, 1], [], []>} : vector<8x128xbf16>, vector<128x512xbf16>, vector<8x512xf32> -> vector<8x512xf32>
    %295 = arith.addf %291, %294 : vector<8x512xf32>
    %296 = vector.extract_strided_slice %295 {offsets = [0, 0], sizes = [8, 128], strides = [1, 1]} : vector<8x512xf32> to vector<8x128xf32>
    %297 = arith.negf %296 : vector<8x128xf32>
    %298 = math.exp %297 : vector<8x128xf32>
    %cst_104 = arith.constant 1.000000e+00 : f32
    %299 = vector.broadcast %cst_104 : f32 to vector<8x128xf32>
    %300 = arith.addf %299, %298 : vector<8x128xf32>
    %301 = arith.divf %299, %300 : vector<8x128xf32>
    %302 = vector.extract_strided_slice %295 {offsets = [0, 128], sizes = [8, 128], strides = [1, 1]} : vector<8x512xf32> to vector<8x128xf32>
    %303 = arith.negf %302 : vector<8x128xf32>
    %304 = math.exp %303 : vector<8x128xf32>
    %cst_105 = arith.constant 1.000000e+00 : f32
    %305 = vector.broadcast %cst_105 : f32 to vector<8x128xf32>
    %306 = arith.addf %305, %304 : vector<8x128xf32>
    %307 = arith.divf %305, %306 : vector<8x128xf32>
    %308 = vector.extract_strided_slice %295 {offsets = [0, 256], sizes = [8, 128], strides = [1, 1]} : vector<8x512xf32> to vector<8x128xf32>
    %309 = math.tanh %308 : vector<8x128xf32>
    %310 = vector.extract_strided_slice %295 {offsets = [0, 384], sizes = [8, 128], strides = [1, 1]} : vector<8x512xf32> to vector<8x128xf32>
    %311 = arith.negf %310 : vector<8x128xf32>
    %312 = math.exp %311 : vector<8x128xf32>
    %cst_106 = arith.constant 1.000000e+00 : f32
    %313 = vector.broadcast %cst_106 : f32 to vector<8x128xf32>
    %314 = arith.addf %313, %312 : vector<8x128xf32>
    %315 = arith.divf %313, %314 : vector<8x128xf32>
    %316 = arith.mulf %307, %244 : vector<8x128xf32>
    %317 = arith.mulf %301, %309 : vector<8x128xf32>
    %318 = arith.addf %316, %317 : vector<8x128xf32>
    %319 = math.tanh %318 : vector<8x128xf32>
    %320 = arith.mulf %315, %319 : vector<8x128xf32>
    %c1_i32_107 = arith.constant 1 : i32
    %321 = arith.subi %c4_i32, %c1_i32_107 : i32
    %322 = arith.truncf %246 : vector<8x128xf32> to vector<8x128xbf16>
    %c0_108 = arith.constant 0 : index
    %c0_109 = arith.constant 0 : index
    %323 = vector.load %arg7[%c0_108, %c0_109] : memref<128x512xbf16, #tpu.memory_space<vmem>>, vector<128x512xbf16>
    %cst_110 = arith.constant dense<0.000000e+00> : vector<8x512xf32>
    %324 = tpu.matmul %322, %323, %cst_110 {dimension_numbers = #tpu.dot_dimension_numbers<[1], [0], [0], [1], [0, 0, 1, 1], [], []>} : vector<8x128xbf16>, vector<128x512xbf16>, vector<8x512xf32> -> vector<8x512xf32>
    %325 = arith.addf %324, %22 : vector<8x512xf32>
    %326 = arith.truncf %280 : vector<8x128xf32> to vector<8x128xbf16>
    %c0_111 = arith.constant 0 : index
    %c0_112 = arith.constant 0 : index
    %327 = vector.load %arg6[%c0_111, %c0_112] : memref<128x512xbf16, #tpu.memory_space<vmem>>, vector<128x512xbf16>
    %cst_113 = arith.constant dense<0.000000e+00> : vector<8x512xf32>
    %328 = tpu.matmul %326, %327, %cst_113 {dimension_numbers = #tpu.dot_dimension_numbers<[1], [0], [0], [1], [0, 0, 1, 1], [], []>} : vector<8x128xbf16>, vector<128x512xbf16>, vector<8x512xf32> -> vector<8x512xf32>
    %329 = arith.addf %325, %328 : vector<8x512xf32>
    %330 = vector.extract_strided_slice %329 {offsets = [0, 0], sizes = [8, 128], strides = [1, 1]} : vector<8x512xf32> to vector<8x128xf32>
    %331 = arith.negf %330 : vector<8x128xf32>
    %332 = math.exp %331 : vector<8x128xf32>
    %cst_114 = arith.constant 1.000000e+00 : f32
    %333 = vector.broadcast %cst_114 : f32 to vector<8x128xf32>
    %334 = arith.addf %333, %332 : vector<8x128xf32>
    %335 = arith.divf %333, %334 : vector<8x128xf32>
    %336 = vector.extract_strided_slice %329 {offsets = [0, 128], sizes = [8, 128], strides = [1, 1]} : vector<8x512xf32> to vector<8x128xf32>
    %337 = arith.negf %336 : vector<8x128xf32>
    %338 = math.exp %337 : vector<8x128xf32>
    %cst_115 = arith.constant 1.000000e+00 : f32
    %339 = vector.broadcast %cst_115 : f32 to vector<8x128xf32>
    %340 = arith.addf %339, %338 : vector<8x128xf32>
    %341 = arith.divf %339, %340 : vector<8x128xf32>
    %342 = vector.extract_strided_slice %329 {offsets = [0, 256], sizes = [8, 128], strides = [1, 1]} : vector<8x512xf32> to vector<8x128xf32>
    %343 = math.tanh %342 : vector<8x128xf32>
    %344 = vector.extract_strided_slice %329 {offsets = [0, 384], sizes = [8, 128], strides = [1, 1]} : vector<8x512xf32> to vector<8x128xf32>
    %345 = arith.negf %344 : vector<8x128xf32>
    %346 = math.exp %345 : vector<8x128xf32>
    %cst_116 = arith.constant 1.000000e+00 : f32
    %347 = vector.broadcast %cst_116 : f32 to vector<8x128xf32>
    %348 = arith.addf %347, %346 : vector<8x128xf32>
    %349 = arith.divf %347, %348 : vector<8x128xf32>
    %350 = arith.mulf %341, %278 : vector<8x128xf32>
    %351 = arith.mulf %335, %343 : vector<8x128xf32>
    %352 = arith.addf %350, %351 : vector<8x128xf32>
    %353 = math.tanh %352 : vector<8x128xf32>
    %354 = arith.mulf %349, %353 : vector<8x128xf32>
    %355 = arith.truncf %354 : vector<8x128xf32> to vector<8x128xbf16>
    %356 = arith.index_cast %321 : i32 to index
    %c0_117 = arith.constant 0 : index
    %c0_118 = arith.constant 0 : index
    %357 = vector.load %arg13[%356, %c0_117, %c0_118] : memref<8x8x128xbf16, #tpu.memory_space<vmem>>, vector<1x8x128xbf16>
    %358 = vector.shape_cast %357 : vector<1x8x128xbf16> to vector<8x128xbf16>
    %359 = vector.shape_cast %355 : vector<8x128xbf16> to vector<1x8x128xbf16>
    tpu.vector_store %arg13[%356, %c0_117, %c0_118], %359 {strides = array<i32>} : memref<8x8x128xbf16, #tpu.memory_space<vmem>>, vector<1x8x128xbf16>,
    %c5_i32 = arith.constant 5 : i32
    %c0_i32_119 = arith.constant 0 : i32
    %360 = arith.subi %c5_i32, %c0_i32_119 : i32
    %361 = arith.index_cast %360 : i32 to index
    %c0_120 = arith.constant 0 : index
    %c0_121 = arith.constant 0 : index
    %362 = vector.load %arg12[%361, %c0_120, %c0_121] : memref<8x8x512xbf16, #tpu.memory_space<vmem>>, vector<1x8x512xbf16>
    %363 = vector.shape_cast %362 : vector<1x8x512xbf16> to vector<8x512xbf16>
    %364 = arith.extf %363 : vector<8x512xbf16> to vector<8x512xf32>
    %365 = arith.addf %364, %19 : vector<8x512xf32>
    %366 = arith.truncf %320 : vector<8x128xf32> to vector<8x128xbf16>
    %c0_122 = arith.constant 0 : index
    %c0_123 = arith.constant 0 : index
    %367 = vector.load %arg5[%c0_122, %c0_123] : memref<128x512xbf16, #tpu.memory_space<vmem>>, vector<128x512xbf16>
    %cst_124 = arith.constant dense<0.000000e+00> : vector<8x512xf32>
    %368 = tpu.matmul %366, %367, %cst_124 {dimension_numbers = #tpu.dot_dimension_numbers<[1], [0], [0], [1], [0, 0, 1, 1], [], []>} : vector<8x128xbf16>, vector<128x512xbf16>, vector<8x512xf32> -> vector<8x512xf32>
    %369 = arith.addf %365, %368 : vector<8x512xf32>
    %370 = vector.extract_strided_slice %369 {offsets = [0, 0], sizes = [8, 128], strides = [1, 1]} : vector<8x512xf32> to vector<8x128xf32>
    %371 = arith.negf %370 : vector<8x128xf32>
    %372 = math.exp %371 : vector<8x128xf32>
    %cst_125 = arith.constant 1.000000e+00 : f32
    %373 = vector.broadcast %cst_125 : f32 to vector<8x128xf32>
    %374 = arith.addf %373, %372 : vector<8x128xf32>
    %375 = arith.divf %373, %374 : vector<8x128xf32>
    %376 = vector.extract_strided_slice %369 {offsets = [0, 128], sizes = [8, 128], strides = [1, 1]} : vector<8x512xf32> to vector<8x128xf32>
    %377 = arith.negf %376 : vector<8x128xf32>
    %378 = math.exp %377 : vector<8x128xf32>
    %cst_126 = arith.constant 1.000000e+00 : f32
    %379 = vector.broadcast %cst_126 : f32 to vector<8x128xf32>
    %380 = arith.addf %379, %378 : vector<8x128xf32>
    %381 = arith.divf %379, %380 : vector<8x128xf32>
    %382 = vector.extract_strided_slice %369 {offsets = [0, 256], sizes = [8, 128], strides = [1, 1]} : vector<8x512xf32> to vector<8x128xf32>
    %383 = math.tanh %382 : vector<8x128xf32>
    %384 = vector.extract_strided_slice %369 {offsets = [0, 384], sizes = [8, 128], strides = [1, 1]} : vector<8x512xf32> to vector<8x128xf32>
    %385 = arith.negf %384 : vector<8x128xf32>
    %386 = math.exp %385 : vector<8x128xf32>
    %cst_127 = arith.constant 1.000000e+00 : f32
    %387 = vector.broadcast %cst_127 : f32 to vector<8x128xf32>
    %388 = arith.addf %387, %386 : vector<8x128xf32>
    %389 = arith.divf %387, %388 : vector<8x128xf32>
    %390 = arith.mulf %381, %318 : vector<8x128xf32>
    %391 = arith.mulf %375, %383 : vector<8x128xf32>
    %392 = arith.addf %390, %391 : vector<8x128xf32>
    %393 = math.tanh %392 : vector<8x128xf32>
    %394 = arith.mulf %389, %393 : vector<8x128xf32>
    %c1_i32_128 = arith.constant 1 : i32
    %395 = arith.subi %c5_i32, %c1_i32_128 : i32
    %396 = arith.truncf %320 : vector<8x128xf32> to vector<8x128xbf16>
    %c0_129 = arith.constant 0 : index
    %c0_130 = arith.constant 0 : index
    %397 = vector.load %arg7[%c0_129, %c0_130] : memref<128x512xbf16, #tpu.memory_space<vmem>>, vector<128x512xbf16>
    %cst_131 = arith.constant dense<0.000000e+00> : vector<8x512xf32>
    %398 = tpu.matmul %396, %397, %cst_131 {dimension_numbers = #tpu.dot_dimension_numbers<[1], [0], [0], [1], [0, 0, 1, 1], [], []>} : vector<8x128xbf16>, vector<128x512xbf16>, vector<8x512xf32> -> vector<8x512xf32>
    %399 = arith.addf %398, %22 : vector<8x512xf32>
    %400 = arith.truncf %354 : vector<8x128xf32> to vector<8x128xbf16>
    %c0_132 = arith.constant 0 : index
    %c0_133 = arith.constant 0 : index
    %401 = vector.load %arg6[%c0_132, %c0_133] : memref<128x512xbf16, #tpu.memory_space<vmem>>, vector<128x512xbf16>
    %cst_134 = arith.constant dense<0.000000e+00> : vector<8x512xf32>
    %402 = tpu.matmul %400, %401, %cst_134 {dimension_numbers = #tpu.dot_dimension_numbers<[1], [0], [0], [1], [0, 0, 1, 1], [], []>} : vector<8x128xbf16>, vector<128x512xbf16>, vector<8x512xf32> -> vector<8x512xf32>
    %403 = arith.addf %399, %402 : vector<8x512xf32>
    %404 = vector.extract_strided_slice %403 {offsets = [0, 0], sizes = [8, 128], strides = [1, 1]} : vector<8x512xf32> to vector<8x128xf32>
    %405 = arith.negf %404 : vector<8x128xf32>
    %406 = math.exp %405 : vector<8x128xf32>
    %cst_135 = arith.constant 1.000000e+00 : f32
    %407 = vector.broadcast %cst_135 : f32 to vector<8x128xf32>
    %408 = arith.addf %407, %406 : vector<8x128xf32>
    %409 = arith.divf %407, %408 : vector<8x128xf32>
    %410 = vector.extract_strided_slice %403 {offsets = [0, 128], sizes = [8, 128], strides = [1, 1]} : vector<8x512xf32> to vector<8x128xf32>
    %411 = arith.negf %410 : vector<8x128xf32>
    %412 = math.exp %411 : vector<8x128xf32>
    %cst_136 = arith.constant 1.000000e+00 : f32
    %413 = vector.broadcast %cst_136 : f32 to vector<8x128xf32>
    %414 = arith.addf %413, %412 : vector<8x128xf32>
    %415 = arith.divf %413, %414 : vector<8x128xf32>
    %416 = vector.extract_strided_slice %403 {offsets = [0, 256], sizes = [8, 128], strides = [1, 1]} : vector<8x512xf32> to vector<8x128xf32>
    %417 = math.tanh %416 : vector<8x128xf32>
    %418 = vector.extract_strided_slice %403 {offsets = [0, 384], sizes = [8, 128], strides = [1, 1]} : vector<8x512xf32> to vector<8x128xf32>
    %419 = arith.negf %418 : vector<8x128xf32>
    %420 = math.exp %419 : vector<8x128xf32>
    %cst_137 = arith.constant 1.000000e+00 : f32
    %421 = vector.broadcast %cst_137 : f32 to vector<8x128xf32>
    %422 = arith.addf %421, %420 : vector<8x128xf32>
    %423 = arith.divf %421, %422 : vector<8x128xf32>
    %424 = arith.mulf %415, %352 : vector<8x128xf32>
    %425 = arith.mulf %409, %417 : vector<8x128xf32>
    %426 = arith.addf %424, %425 : vector<8x128xf32>
    %427 = math.tanh %426 : vector<8x128xf32>
    %428 = arith.mulf %423, %427 : vector<8x128xf32>
    %429 = arith.truncf %428 : vector<8x128xf32> to vector<8x128xbf16>
    %430 = arith.index_cast %395 : i32 to index
    %c0_138 = arith.constant 0 : index
    %c0_139 = arith.constant 0 : index
    %431 = vector.load %arg13[%430, %c0_138, %c0_139] : memref<8x8x128xbf16, #tpu.memory_space<vmem>>, vector<1x8x128xbf16>
    %432 = vector.shape_cast %431 : vector<1x8x128xbf16> to vector<8x128xbf16>
    %433 = vector.shape_cast %429 : vector<8x128xbf16> to vector<1x8x128xbf16>
    tpu.vector_store %arg13[%430, %c0_138, %c0_139], %433 {strides = array<i32>} : memref<8x8x128xbf16, #tpu.memory_space<vmem>>, vector<1x8x128xbf16>,
    %c6_i32 = arith.constant 6 : i32
    %c0_i32_140 = arith.constant 0 : i32
    %434 = arith.subi %c6_i32, %c0_i32_140 : i32
    %435 = arith.index_cast %434 : i32 to index
    %c0_141 = arith.constant 0 : index
    %c0_142 = arith.constant 0 : index
    %436 = vector.load %arg12[%435, %c0_141, %c0_142] : memref<8x8x512xbf16, #tpu.memory_space<vmem>>, vector<1x8x512xbf16>
    %437 = vector.shape_cast %436 : vector<1x8x512xbf16> to vector<8x512xbf16>
    %438 = arith.extf %437 : vector<8x512xbf16> to vector<8x512xf32>
    %439 = arith.addf %438, %19 : vector<8x512xf32>
    %440 = arith.truncf %394 : vector<8x128xf32> to vector<8x128xbf16>
    %c0_143 = arith.constant 0 : index
    %c0_144 = arith.constant 0 : index
    %441 = vector.load %arg5[%c0_143, %c0_144] : memref<128x512xbf16, #tpu.memory_space<vmem>>, vector<128x512xbf16>
    %cst_145 = arith.constant dense<0.000000e+00> : vector<8x512xf32>
    %442 = tpu.matmul %440, %441, %cst_145 {dimension_numbers = #tpu.dot_dimension_numbers<[1], [0], [0], [1], [0, 0, 1, 1], [], []>} : vector<8x128xbf16>, vector<128x512xbf16>, vector<8x512xf32> -> vector<8x512xf32>
    %443 = arith.addf %439, %442 : vector<8x512xf32>
    %444 = vector.extract_strided_slice %443 {offsets = [0, 0], sizes = [8, 128], strides = [1, 1]} : vector<8x512xf32> to vector<8x128xf32>
    %445 = arith.negf %444 : vector<8x128xf32>
    %446 = math.exp %445 : vector<8x128xf32>
    %cst_146 = arith.constant 1.000000e+00 : f32
    %447 = vector.broadcast %cst_146 : f32 to vector<8x128xf32>
    %448 = arith.addf %447, %446 : vector<8x128xf32>
    %449 = arith.divf %447, %448 : vector<8x128xf32>
    %450 = vector.extract_strided_slice %443 {offsets = [0, 128], sizes = [8, 128], strides = [1, 1]} : vector<8x512xf32> to vector<8x128xf32>
    %451 = arith.negf %450 : vector<8x128xf32>
    %452 = math.exp %451 : vector<8x128xf32>
    %cst_147 = arith.constant 1.000000e+00 : f32
    %453 = vector.broadcast %cst_147 : f32 to vector<8x128xf32>
    %454 = arith.addf %453, %452 : vector<8x128xf32>
    %455 = arith.divf %453, %454 : vector<8x128xf32>
    %456 = vector.extract_strided_slice %443 {offsets = [0, 256], sizes = [8, 128], strides = [1, 1]} : vector<8x512xf32> to vector<8x128xf32>
    %457 = math.tanh %456 : vector<8x128xf32>
    %458 = vector.extract_strided_slice %443 {offsets = [0, 384], sizes = [8, 128], strides = [1, 1]} : vector<8x512xf32> to vector<8x128xf32>
    %459 = arith.negf %458 : vector<8x128xf32>
    %460 = math.exp %459 : vector<8x128xf32>
    %cst_148 = arith.constant 1.000000e+00 : f32
    %461 = vector.broadcast %cst_148 : f32 to vector<8x128xf32>
    %462 = arith.addf %461, %460 : vector<8x128xf32>
    %463 = arith.divf %461, %462 : vector<8x128xf32>
    %464 = arith.mulf %455, %392 : vector<8x128xf32>
    %465 = arith.mulf %449, %457 : vector<8x128xf32>
    %466 = arith.addf %464, %465 : vector<8x128xf32>
    %467 = math.tanh %466 : vector<8x128xf32>
    %468 = arith.mulf %463, %467 : vector<8x128xf32>
    %c1_i32_149 = arith.constant 1 : i32
    %469 = arith.subi %c6_i32, %c1_i32_149 : i32
    %470 = arith.truncf %394 : vector<8x128xf32> to vector<8x128xbf16>
    %c0_150 = arith.constant 0 : index
    %c0_151 = arith.constant 0 : index
    %471 = vector.load %arg7[%c0_150, %c0_151] : memref<128x512xbf16, #tpu.memory_space<vmem>>, vector<128x512xbf16>
    %cst_152 = arith.constant dense<0.000000e+00> : vector<8x512xf32>
    %472 = tpu.matmul %470, %471, %cst_152 {dimension_numbers = #tpu.dot_dimension_numbers<[1], [0], [0], [1], [0, 0, 1, 1], [], []>} : vector<8x128xbf16>, vector<128x512xbf16>, vector<8x512xf32> -> vector<8x512xf32>
    %473 = arith.addf %472, %22 : vector<8x512xf32>
    %474 = arith.truncf %428 : vector<8x128xf32> to vector<8x128xbf16>
    %c0_153 = arith.constant 0 : index
    %c0_154 = arith.constant 0 : index
    %475 = vector.load %arg6[%c0_153, %c0_154] : memref<128x512xbf16, #tpu.memory_space<vmem>>, vector<128x512xbf16>
    %cst_155 = arith.constant dense<0.000000e+00> : vector<8x512xf32>
    %476 = tpu.matmul %474, %475, %cst_155 {dimension_numbers = #tpu.dot_dimension_numbers<[1], [0], [0], [1], [0, 0, 1, 1], [], []>} : vector<8x128xbf16>, vector<128x512xbf16>, vector<8x512xf32> -> vector<8x512xf32>
    %477 = arith.addf %473, %476 : vector<8x512xf32>
    %478 = vector.extract_strided_slice %477 {offsets = [0, 0], sizes = [8, 128], strides = [1, 1]} : vector<8x512xf32> to vector<8x128xf32>
    %479 = arith.negf %478 : vector<8x128xf32>
    %480 = math.exp %479 : vector<8x128xf32>
    %cst_156 = arith.constant 1.000000e+00 : f32
    %481 = vector.broadcast %cst_156 : f32 to vector<8x128xf32>
    %482 = arith.addf %481, %480 : vector<8x128xf32>
    %483 = arith.divf %481, %482 : vector<8x128xf32>
    %484 = vector.extract_strided_slice %477 {offsets = [0, 128], sizes = [8, 128], strides = [1, 1]} : vector<8x512xf32> to vector<8x128xf32>
    %485 = arith.negf %484 : vector<8x128xf32>
    %486 = math.exp %485 : vector<8x128xf32>
    %cst_157 = arith.constant 1.000000e+00 : f32
    %487 = vector.broadcast %cst_157 : f32 to vector<8x128xf32>
    %488 = arith.addf %487, %486 : vector<8x128xf32>
    %489 = arith.divf %487, %488 : vector<8x128xf32>
    %490 = vector.extract_strided_slice %477 {offsets = [0, 256], sizes = [8, 128], strides = [1, 1]} : vector<8x512xf32> to vector<8x128xf32>
    %491 = math.tanh %490 : vector<8x128xf32>
    %492 = vector.extract_strided_slice %477 {offsets = [0, 384], sizes = [8, 128], strides = [1, 1]} : vector<8x512xf32> to vector<8x128xf32>
    %493 = arith.negf %492 : vector<8x128xf32>
    %494 = math.exp %493 : vector<8x128xf32>
    %cst_158 = arith.constant 1.000000e+00 : f32
    %495 = vector.broadcast %cst_158 : f32 to vector<8x128xf32>
    %496 = arith.addf %495, %494 : vector<8x128xf32>
    %497 = arith.divf %495, %496 : vector<8x128xf32>
    %498 = arith.mulf %489, %426 : vector<8x128xf32>
    %499 = arith.mulf %483, %491 : vector<8x128xf32>
    %500 = arith.addf %498, %499 : vector<8x128xf32>
    %501 = math.tanh %500 : vector<8x128xf32>
    %502 = arith.mulf %497, %501 : vector<8x128xf32>
    %503 = arith.truncf %502 : vector<8x128xf32> to vector<8x128xbf16>
    %504 = arith.index_cast %469 : i32 to index
    %c0_159 = arith.constant 0 : index
    %c0_160 = arith.constant 0 : index
    %505 = vector.load %arg13[%504, %c0_159, %c0_160] : memref<8x8x128xbf16, #tpu.memory_space<vmem>>, vector<1x8x128xbf16>
    %506 = vector.shape_cast %505 : vector<1x8x128xbf16> to vector<8x128xbf16>
    %507 = vector.shape_cast %503 : vector<8x128xbf16> to vector<1x8x128xbf16>
    tpu.vector_store %arg13[%504, %c0_159, %c0_160], %507 {strides = array<i32>} : memref<8x8x128xbf16, #tpu.memory_space<vmem>>, vector<1x8x128xbf16>,
    %c7_i32 = arith.constant 7 : i32
    %c0_i32_161 = arith.constant 0 : i32
    %508 = arith.subi %c7_i32, %c0_i32_161 : i32
    %509 = arith.index_cast %508 : i32 to index
    %c0_162 = arith.constant 0 : index
    %c0_163 = arith.constant 0 : index
    %510 = vector.load %arg12[%509, %c0_162, %c0_163] : memref<8x8x512xbf16, #tpu.memory_space<vmem>>, vector<1x8x512xbf16>
    %511 = vector.shape_cast %510 : vector<1x8x512xbf16> to vector<8x512xbf16>
    %512 = arith.extf %511 : vector<8x512xbf16> to vector<8x512xf32>
    %513 = arith.addf %512, %19 : vector<8x512xf32>
    %514 = arith.truncf %468 : vector<8x128xf32> to vector<8x128xbf16>
    %c0_164 = arith.constant 0 : index
    %c0_165 = arith.constant 0 : index
    %515 = vector.load %arg5[%c0_164, %c0_165] : memref<128x512xbf16, #tpu.memory_space<vmem>>, vector<128x512xbf16>
    %cst_166 = arith.constant dense<0.000000e+00> : vector<8x512xf32>
    %516 = tpu.matmul %514, %515, %cst_166 {dimension_numbers = #tpu.dot_dimension_numbers<[1], [0], [0], [1], [0, 0, 1, 1], [], []>} : vector<8x128xbf16>, vector<128x512xbf16>, vector<8x512xf32> -> vector<8x512xf32>
    %517 = arith.addf %513, %516 : vector<8x512xf32>
    %518 = vector.extract_strided_slice %517 {offsets = [0, 0], sizes = [8, 128], strides = [1, 1]} : vector<8x512xf32> to vector<8x128xf32>
    %519 = arith.negf %518 : vector<8x128xf32>
    %520 = math.exp %519 : vector<8x128xf32>
    %cst_167 = arith.constant 1.000000e+00 : f32
    %521 = vector.broadcast %cst_167 : f32 to vector<8x128xf32>
    %522 = arith.addf %521, %520 : vector<8x128xf32>
    %523 = arith.divf %521, %522 : vector<8x128xf32>
    %524 = vector.extract_strided_slice %517 {offsets = [0, 128], sizes = [8, 128], strides = [1, 1]} : vector<8x512xf32> to vector<8x128xf32>
    %525 = arith.negf %524 : vector<8x128xf32>
    %526 = math.exp %525 : vector<8x128xf32>
    %cst_168 = arith.constant 1.000000e+00 : f32
    %527 = vector.broadcast %cst_168 : f32 to vector<8x128xf32>
    %528 = arith.addf %527, %526 : vector<8x128xf32>
    %529 = arith.divf %527, %528 : vector<8x128xf32>
    %530 = vector.extract_strided_slice %517 {offsets = [0, 256], sizes = [8, 128], strides = [1, 1]} : vector<8x512xf32> to vector<8x128xf32>
    %531 = math.tanh %530 : vector<8x128xf32>
    %532 = vector.extract_strided_slice %517 {offsets = [0, 384], sizes = [8, 128], strides = [1, 1]} : vector<8x512xf32> to vector<8x128xf32>
    %533 = arith.negf %532 : vector<8x128xf32>
    %534 = math.exp %533 : vector<8x128xf32>
    %cst_169 = arith.constant 1.000000e+00 : f32
    %535 = vector.broadcast %cst_169 : f32 to vector<8x128xf32>
    %536 = arith.addf %535, %534 : vector<8x128xf32>
    %537 = arith.divf %535, %536 : vector<8x128xf32>
    %538 = arith.mulf %529, %466 : vector<8x128xf32>
    %539 = arith.mulf %523, %531 : vector<8x128xf32>
    %540 = arith.addf %538, %539 : vector<8x128xf32>
    %541 = math.tanh %540 : vector<8x128xf32>
    %542 = arith.mulf %537, %541 : vector<8x128xf32>
    %c1_i32_170 = arith.constant 1 : i32
    %543 = arith.subi %c7_i32, %c1_i32_170 : i32
    %544 = arith.truncf %468 : vector<8x128xf32> to vector<8x128xbf16>
    %c0_171 = arith.constant 0 : index
    %c0_172 = arith.constant 0 : index
    %545 = vector.load %arg7[%c0_171, %c0_172] : memref<128x512xbf16, #tpu.memory_space<vmem>>, vector<128x512xbf16>
    %cst_173 = arith.constant dense<0.000000e+00> : vector<8x512xf32>
    %546 = tpu.matmul %544, %545, %cst_173 {dimension_numbers = #tpu.dot_dimension_numbers<[1], [0], [0], [1], [0, 0, 1, 1], [], []>} : vector<8x128xbf16>, vector<128x512xbf16>, vector<8x512xf32> -> vector<8x512xf32>
    %547 = arith.addf %546, %22 : vector<8x512xf32>
    %548 = arith.truncf %502 : vector<8x128xf32> to vector<8x128xbf16>
    %c0_174 = arith.constant 0 : index
    %c0_175 = arith.constant 0 : index
    %549 = vector.load %arg6[%c0_174, %c0_175] : memref<128x512xbf16, #tpu.memory_space<vmem>>, vector<128x512xbf16>
    %cst_176 = arith.constant dense<0.000000e+00> : vector<8x512xf32>
    %550 = tpu.matmul %548, %549, %cst_176 {dimension_numbers = #tpu.dot_dimension_numbers<[1], [0], [0], [1], [0, 0, 1, 1], [], []>} : vector<8x128xbf16>, vector<128x512xbf16>, vector<8x512xf32> -> vector<8x512xf32>
    %551 = arith.addf %547, %550 : vector<8x512xf32>
    %552 = vector.extract_strided_slice %551 {offsets = [0, 0], sizes = [8, 128], strides = [1, 1]} : vector<8x512xf32> to vector<8x128xf32>
    %553 = arith.negf %552 : vector<8x128xf32>
    %554 = math.exp %553 : vector<8x128xf32>
    %cst_177 = arith.constant 1.000000e+00 : f32
    %555 = vector.broadcast %cst_177 : f32 to vector<8x128xf32>
    %556 = arith.addf %555, %554 : vector<8x128xf32>
    %557 = arith.divf %555, %556 : vector<8x128xf32>
    %558 = vector.extract_strided_slice %551 {offsets = [0, 128], sizes = [8, 128], strides = [1, 1]} : vector<8x512xf32> to vector<8x128xf32>
    %559 = arith.negf %558 : vector<8x128xf32>
    %560 = math.exp %559 : vector<8x128xf32>
    %cst_178 = arith.constant 1.000000e+00 : f32
    %561 = vector.broadcast %cst_178 : f32 to vector<8x128xf32>
    %562 = arith.addf %561, %560 : vector<8x128xf32>
    %563 = arith.divf %561, %562 : vector<8x128xf32>
    %564 = vector.extract_strided_slice %551 {offsets = [0, 256], sizes = [8, 128], strides = [1, 1]} : vector<8x512xf32> to vector<8x128xf32>
    %565 = math.tanh %564 : vector<8x128xf32>
    %566 = vector.extract_strided_slice %551 {offsets = [0, 384], sizes = [8, 128], strides = [1, 1]} : vector<8x512xf32> to vector<8x128xf32>
    %567 = arith.negf %566 : vector<8x128xf32>
    %568 = math.exp %567 : vector<8x128xf32>
    %cst_179 = arith.constant 1.000000e+00 : f32
    %569 = vector.broadcast %cst_179 : f32 to vector<8x128xf32>
    %570 = arith.addf %569, %568 : vector<8x128xf32>
    %571 = arith.divf %569, %570 : vector<8x128xf32>
    %572 = arith.mulf %563, %500 : vector<8x128xf32>
    %573 = arith.mulf %557, %565 : vector<8x128xf32>
    %574 = arith.addf %572, %573 : vector<8x128xf32>
    %575 = math.tanh %574 : vector<8x128xf32>
    %576 = arith.mulf %571, %575 : vector<8x128xf32>
    %577 = arith.truncf %576 : vector<8x128xf32> to vector<8x128xbf16>
    %578 = arith.index_cast %543 : i32 to index
    %c0_180 = arith.constant 0 : index
    %c0_181 = arith.constant 0 : index
    %579 = vector.load %arg13[%578, %c0_180, %c0_181] : memref<8x8x128xbf16, #tpu.memory_space<vmem>>, vector<1x8x128xbf16>
    %580 = vector.shape_cast %579 : vector<1x8x128xbf16> to vector<8x128xbf16>
    %581 = vector.shape_cast %577 : vector<8x128xbf16> to vector<1x8x128xbf16>
    tpu.vector_store %arg13[%578, %c0_180, %c0_181], %581 {strides = array<i32>} : memref<8x8x128xbf16, #tpu.memory_space<vmem>>, vector<1x8x128xbf16>,
    %c7_i32_182 = arith.constant 7 : i32
    %582 = arith.truncf %542 : vector<8x128xf32> to vector<8x128xbf16>
    %c0_183 = arith.constant 0 : index
    %c0_184 = arith.constant 0 : index
    %583 = vector.load %arg7[%c0_183, %c0_184] : memref<128x512xbf16, #tpu.memory_space<vmem>>, vector<128x512xbf16>
    %cst_185 = arith.constant dense<0.000000e+00> : vector<8x512xf32>
    %584 = tpu.matmul %582, %583, %cst_185 {dimension_numbers = #tpu.dot_dimension_numbers<[1], [0], [0], [1], [0, 0, 1, 1], [], []>} : vector<8x128xbf16>, vector<128x512xbf16>, vector<8x512xf32> -> vector<8x512xf32>
    %585 = arith.addf %584, %22 : vector<8x512xf32>
    %586 = arith.truncf %576 : vector<8x128xf32> to vector<8x128xbf16>
    %c0_186 = arith.constant 0 : index
    %c0_187 = arith.constant 0 : index
    %587 = vector.load %arg6[%c0_186, %c0_187] : memref<128x512xbf16, #tpu.memory_space<vmem>>, vector<128x512xbf16>
    %cst_188 = arith.constant dense<0.000000e+00> : vector<8x512xf32>
    %588 = tpu.matmul %586, %587, %cst_188 {dimension_numbers = #tpu.dot_dimension_numbers<[1], [0], [0], [1], [0, 0, 1, 1], [], []>} : vector<8x128xbf16>, vector<128x512xbf16>, vector<8x512xf32> -> vector<8x512xf32>
    %589 = arith.addf %585, %588 : vector<8x512xf32>
    %590 = vector.extract_strided_slice %589 {offsets = [0, 0], sizes = [8, 128], strides = [1, 1]} : vector<8x512xf32> to vector<8x128xf32>
    %591 = arith.negf %590 : vector<8x128xf32>
    %592 = math.exp %591 : vector<8x128xf32>
    %cst_189 = arith.constant 1.000000e+00 : f32
    %593 = vector.broadcast %cst_189 : f32 to vector<8x128xf32>
    %594 = arith.addf %593, %592 : vector<8x128xf32>
    %595 = arith.divf %593, %594 : vector<8x128xf32>
    %596 = vector.extract_strided_slice %589 {offsets = [0, 128], sizes = [8, 128], strides = [1, 1]} : vector<8x512xf32> to vector<8x128xf32>
    %597 = arith.negf %596 : vector<8x128xf32>
    %598 = math.exp %597 : vector<8x128xf32>
    %cst_190 = arith.constant 1.000000e+00 : f32
    %599 = vector.broadcast %cst_190 : f32 to vector<8x128xf32>
    %600 = arith.addf %599, %598 : vector<8x128xf32>
    %601 = arith.divf %599, %600 : vector<8x128xf32>
    %602 = vector.extract_strided_slice %589 {offsets = [0, 256], sizes = [8, 128], strides = [1, 1]} : vector<8x512xf32> to vector<8x128xf32>
    %603 = math.tanh %602 : vector<8x128xf32>
    %604 = vector.extract_strided_slice %589 {offsets = [0, 384], sizes = [8, 128], strides = [1, 1]} : vector<8x512xf32> to vector<8x128xf32>
    %605 = arith.negf %604 : vector<8x128xf32>
    %606 = math.exp %605 : vector<8x128xf32>
    %cst_191 = arith.constant 1.000000e+00 : f32
    %607 = vector.broadcast %cst_191 : f32 to vector<8x128xf32>
    %608 = arith.addf %607, %606 : vector<8x128xf32>
    %609 = arith.divf %607, %608 : vector<8x128xf32>
    %610 = arith.mulf %601, %574 : vector<8x128xf32>
    %611 = arith.mulf %595, %603 : vector<8x128xf32>
    %612 = arith.addf %610, %611 : vector<8x128xf32>
    %613 = math.tanh %612 : vector<8x128xf32>
    %614 = arith.mulf %609, %613 : vector<8x128xf32>
    %615 = arith.truncf %614 : vector<8x128xf32> to vector<8x128xbf16>
    %c7 = arith.constant 7 : index
    %c0_192 = arith.constant 0 : index
    %c0_193 = arith.constant 0 : index
    %616 = vector.load %arg13[%c7, %c0_192, %c0_193] : memref<8x8x128xbf16, #tpu.memory_space<vmem>>, vector<1x8x128xbf16>
    %617 = vector.shape_cast %616 : vector<1x8x128xbf16> to vector<8x128xbf16>
    %618 = vector.shape_cast %615 : vector<8x128xbf16> to vector<1x8x128xbf16>
    tpu.vector_store %arg13[%c7, %c0_192, %c0_193], %618 {strides = array<i32>} : memref<8x8x128xbf16, #tpu.memory_space<vmem>>, vector<1x8x128xbf16>,
    %c0_194 = arith.constant 0 : index
    %c0_195 = arith.constant 0 : index
    %c0_196 = arith.constant 0 : index
    %619 = vector.load %arg14[%c0_194, %c0_195, %c0_196] : memref<2x8x128xf32, #tpu.memory_space<vmem>>, vector<1x8x128xf32>
    %620 = vector.shape_cast %619 : vector<1x8x128xf32> to vector<8x128xf32>
    %621 = vector.shape_cast %542 : vector<8x128xf32> to vector<1x8x128xf32>
    tpu.vector_store %arg14[%c0_194, %c0_195, %c0_196], %621 {strides = array<i32>} : memref<2x8x128xf32, #tpu.memory_space<vmem>>, vector<1x8x128xf32>,
    %c0_197 = arith.constant 0 : index
    %c0_198 = arith.constant 0 : index
    %c0_199 = arith.constant 0 : index
    %622 = vector.load %arg15[%c0_197, %c0_198, %c0_199] : memref<2x8x128xf32, #tpu.memory_space<vmem>>, vector<1x8x128xf32>
    %623 = vector.shape_cast %622 : vector<1x8x128xf32> to vector<8x128xf32>
    %624 = vector.shape_cast %540 : vector<8x128xf32> to vector<1x8x128xf32>
    tpu.vector_store %arg15[%c0_197, %c0_198, %c0_199], %624 {strides = array<i32>} : memref<2x8x128xf32, #tpu.memory_space<vmem>>, vector<1x8x128xf32>,
    %c1_200 = arith.constant 1 : index
    %c0_201 = arith.constant 0 : index
    %c0_202 = arith.constant 0 : index
    %625 = vector.load %arg14[%c1_200, %c0_201, %c0_202] : memref<2x8x128xf32, #tpu.memory_space<vmem>>, vector<1x8x128xf32>
    %626 = vector.shape_cast %625 : vector<1x8x128xf32> to vector<8x128xf32>
    %627 = vector.shape_cast %614 : vector<8x128xf32> to vector<1x8x128xf32>
    tpu.vector_store %arg14[%c1_200, %c0_201, %c0_202], %627 {strides = array<i32>} : memref<2x8x128xf32, #tpu.memory_space<vmem>>, vector<1x8x128xf32>,
    %c1_203 = arith.constant 1 : index
    %c0_204 = arith.constant 0 : index
    %c0_205 = arith.constant 0 : index
    %628 = vector.load %arg15[%c1_203, %c0_204, %c0_205] : memref<2x8x128xf32, #tpu.memory_space<vmem>>, vector<1x8x128xf32>
    %629 = vector.shape_cast %628 : vector<1x8x128xf32> to vector<8x128xf32>
    %630 = vector.shape_cast %612 : vector<8x128xf32> to vector<1x8x128xf32>
    tpu.vector_store %arg15[%c1_203, %c0_204, %c0_205], %630 {strides = array<i32>} : memref<2x8x128xf32, #tpu.memory_space<vmem>>, vector<1x8x128xf32>,
    %c0_206 = arith.constant 0 : index
    %c0_207 = arith.constant 0 : index
    %c0_208 = arith.constant 0 : index
    %631 = vector.load %arg13[%c0_206, %c0_207, %c0_208] : memref<8x8x128xbf16, #tpu.memory_space<vmem>>, vector<8x8x128xbf16>
    %632 = vector.shape_cast %631 : vector<8x8x128xbf16> to vector<64x128xbf16>
    %c0_209 = arith.constant 0 : index
    %c0_210 = arith.constant 0 : index
    %633 = vector.load %arg9[%c0_209, %c0_210] : memref<128x128xbf16, #tpu.memory_space<vmem>>, vector<128x128xbf16>
    %cst_211 = arith.constant dense<0.000000e+00> : vector<64x128xf32>
    %634 = tpu.matmul %632, %633, %cst_211 {dimension_numbers = #tpu.dot_dimension_numbers<[1], [0], [0], [1], [0, 0, 1, 1], [], []>} : vector<64x128xbf16>, vector<128x128xbf16>, vector<64x128xf32> -> vector<64x128xf32>
    %c0_212 = arith.constant 0 : index
    %c0_213 = arith.constant 0 : index
    %635 = vector.load %arg10[%c0_212, %c0_213] : memref<1x128xf32, #tpu.memory_space<vmem>>, vector<1x128xf32>
    %636 = vector.broadcast %635 : vector<1x128xf32> to vector<64x128xf32>
    %637 = arith.addf %634, %636 : vector<64x128xf32>
    %638 = vector.shape_cast %637 : vector<64x128xf32> to vector<8x8x128xf32>
    %c0_214 = arith.constant 0 : index
    %c0_215 = arith.constant 0 : index
    %c0_216 = arith.constant 0 : index
    %639 = vector.load %arg11[%c0_214, %c0_215, %c0_216] : memref<8x8x128xf32, #tpu.memory_space<vmem>>, vector<8x8x128xf32>
    tpu.vector_store %arg11[%c0_214, %c0_215, %c0_216], %638 {strides = array<i32>} : memref<8x8x128xf32, #tpu.memory_space<vmem>>, vector<8x8x128xf32>,
    return
  }
  func.func @transform_0(%arg0: i32, %arg1: i32) -> (i32, i32, i32, i32) {
    %c0_i32 = arith.constant 0 : i32
    %c0_i32_0 = arith.constant 0 : i32
    %c0_i32_1 = arith.constant 0 : i32
    return %arg1, %arg0, %c0_i32, %c0_i32_0 : i32, i32, i32, i32
  }
  func.func @transform_1(%arg0: i32, %arg1: i32) -> (i32, i32) {
    %c0_i32 = arith.constant 0 : i32
    %c0_i32_0 = arith.constant 0 : i32
    %c0_i32_1 = arith.constant 0 : i32
    return %c0_i32, %c0_i32_0 : i32, i32
  }
  func.func @transform_2(%arg0: i32, %arg1: i32) -> (i32, i32) {
    %c0_i32 = arith.constant 0 : i32
    %c0_i32_0 = arith.constant 0 : i32
    %c0_i32_1 = arith.constant 0 : i32
    return %c0_i32, %c0_i32_0 : i32, i32
  }
  func.func @transform_3(%arg0: i32, %arg1: i32) -> (i32, i32) {
    %c0_i32 = arith.constant 0 : i32
    %c0_i32_0 = arith.constant 0 : i32
    %c0_i32_1 = arith.constant 0 : i32
    return %c0_i32, %c0_i32_0 : i32, i32
  }
  func.func @transform_4(%arg0: i32, %arg1: i32) -> (i32, i32) {
    %c0_i32 = arith.constant 0 : i32
    %c0_i32_0 = arith.constant 0 : i32
    %c0_i32_1 = arith.constant 0 : i32
    return %c0_i32, %c0_i32_0 : i32, i32
  }
  func.func @transform_5(%arg0: i32, %arg1: i32) -> (i32, i32) {
    %c0_i32 = arith.constant 0 : i32
    %c0_i32_0 = arith.constant 0 : i32
    %c0_i32_1 = arith.constant 0 : i32
    return %c0_i32, %c0_i32_0 : i32, i32
  }
  func.func @transform_6(%arg0: i32, %arg1: i32) -> (i32, i32) {
    %c0_i32 = arith.constant 0 : i32
    %c0_i32_0 = arith.constant 0 : i32
    %c0_i32_1 = arith.constant 0 : i32
    return %c0_i32, %c0_i32_0 : i32, i32
  }
  func.func @transform_7(%arg0: i32, %arg1: i32) -> (i32, i32) {
    %c0_i32 = arith.constant 0 : i32
    %c0_i32_0 = arith.constant 0 : i32
    %c0_i32_1 = arith.constant 0 : i32
    return %c0_i32, %c0_i32_0 : i32, i32
  }
  func.func @transform_8(%arg0: i32, %arg1: i32) -> (i32, i32) {
    %c0_i32 = arith.constant 0 : i32
    %c0_i32_0 = arith.constant 0 : i32
    %c0_i32_1 = arith.constant 0 : i32
    return %c0_i32, %c0_i32_0 : i32, i32
  }
  func.func @transform_9(%arg0: i32, %arg1: i32) -> (i32, i32, i32) {
    %c0_i32 = arith.constant 0 : i32
    %c0_i32_0 = arith.constant 0 : i32
    return %arg1, %arg0, %c0_i32 : i32, i32, i32
  }
}

</mosaic_0001>

<llo_original>
// kernel: next_character_lstm_forward.1
$region0: #{next_character_lstm_forward.1}
  #allocation0 [shape = 'u32[]', space=smem, size = 0x4, offset = 0x4, fixed_abs, tag = 'smem constant byte address 0x4 - core index']
  #allocation1 [shape = 'u32[144,128]{1,0:T(1,128)}', space=vmem, size = 0x12000, scoped, tag = 'internal scratch']
  #allocation2 [shape = 'bf16[8,8,512]{2,1,0:T(8,128)(2,1)}', space=vmem, size = 0x10000, scoped, tag = 'scratch operand']
  #allocation3 [shape = 'bf16[8,8,128]{2,1,0:T(8,128)(2,1)}', space=vmem, size = 0x4000, scoped, tag = 'scratch operand']
  #allocation4 [shape = 'f32[2,8,128]{2,1,0:T(8,128)}', space=vmem, size = 0x2000, scoped, tag = 'scratch operand']
  #allocation5 [shape = 'f32[2,8,128]{2,1,0:T(8,128)}', space=vmem, size = 0x2000, scoped, tag = 'scratch operand']
  %s0 = inlined_call_operand.vmem [shape: s32[1,1,64,1], index: 0, kind: input, shape index: {}]
  %s1 = inlined_call_operand.hbm [shape: bf16[128,512], index: 1, kind: input, shape index: {}]
  %s2 = inlined_call_operand.vmem [shape: f32[1,512], index: 2, kind: input, shape index: {}]
  %s3 = inlined_call_operand.hbm [shape: bf16[128,512], index: 3, kind: input, shape index: {}]
  %s4 = inlined_call_operand.hbm [shape: bf16[128,512], index: 4, kind: input, shape index: {}]
  %s5 = inlined_call_operand.hbm [shape: bf16[128,512], index: 5, kind: input, shape index: {}]
  %s6 = inlined_call_operand.vmem [shape: f32[1,512], index: 6, kind: input, shape index: {}]
  %s7 = inlined_call_operand.vmem [shape: bf16[128,128], index: 7, kind: input, shape index: {}]
  %s8 = inlined_call_operand.vmem [shape: f32[1,128], index: 8, kind: input, shape index: {}]
  %s9 = inlined_call_operand.vmem [shape: f32[8,8,128], index: 9, kind: output, shape index: {}]
  %s10 = sld [smem:[#allocation0]]
  $region66: #{next_character_lstm_forward.1} parent=0
    _
  %s12 = ssub.s32 1, %s10
  %s13 = scalar_select 0, %s12, %s10
  $region1: #{next_character_lstm_forward.1} parent=0
    #allocation6 [shape = 'u8[131072]{0}', space=vmem, size = 0x20000, scoped, tag = 'input window, operand 1, single buffered']
    #allocation7 [shape = 's32[1]{0}', space=sflag, size = 0x4, scoped, tag = 'scoped memory for next_character_lstm_forward.1']
    #allocation8 [shape = 'u8[131072]{0}', space=vmem, size = 0x20000, scoped, tag = 'input window, operand 3, single buffered']
    #allocation9 [shape = 's32[1]{0}', space=sflag, size = 0x4, scoped, tag = 'scoped memory for next_character_lstm_forward.1']
    #allocation10 [shape = 'u8[131072]{0}', space=vmem, size = 0x20000, scoped, tag = 'input window, operand 4, single buffered']
    #allocation11 [shape = 'u8[131072]{0}', space=vmem, size = 0x20000, scoped, tag = 'input window, operand 5, single buffered']
    #allocation12 [shape = 's32[1]{0}', space=sflag, size = 0x4, scoped, tag = 'scoped memory for next_character_lstm_forward.1']
    %14 = vsyncpa [#allocation7], 0
    %15 = vsyncpa [#allocation9], 0
    %16 = vsyncpa [#allocation12], 0
    // Predicated region
    $region2: #{next_character_lstm_forward.1} parent=1 // pred_check
      _
    $region3: #{next_character_lstm_forward.1} parent=1 // pred_check_branch
      %18 = sbr.rel (0) target = $region5
    $region4: #{next_character_lstm_forward.1} parent=1 // pred_region
      _
    $region5: #{next_character_lstm_forward.1} parent=1 // pred_fallthru
      _
    // Predicated region
    $region6: #{next_character_lstm_forward.1} parent=1 // pred_check
      _
    $region7: #{next_character_lstm_forward.1} parent=1 // pred_check_branch
      %20 = sbr.rel (0) target = $region9
    $region8: #{next_character_lstm_forward.1} parent=1 // pred_region
      %s22 = ssub.s32 4096, 4096
      %23 = vsyncadd [#allocation7], %s22
      %s24 = sshll.u32 [#allocation6], 4
      %s25 = int_to_ptr.vmem [resolvable:$true] %s24
      %30 = dma.hbm_to_vmem [thread:$0]  %s1, 4096, %s25, [#allocation7], 256, 256, 16
    $region9: #{next_character_lstm_forward.1} parent=1 // pred_fallthru
      _
    // Predicated region
    $region10: #{next_character_lstm_forward.1} parent=1 // pred_check
      _
    $region11: #{next_character_lstm_forward.1} parent=1 // pred_check_branch
      %32 = sbr.rel (0) target = $region13
    $region12: #{next_character_lstm_forward.1} parent=1 // pred_region
      _
    $region13: #{next_character_lstm_forward.1} parent=1 // pred_fallthru
      _
    // Predicated region
    $region14: #{next_character_lstm_forward.1} parent=1 // pred_check
      _
    $region15: #{next_character_lstm_forward.1} parent=1 // pred_check_branch
      %34 = sbr.rel (0) target = $region17
    $region16: #{next_character_lstm_forward.1} parent=1 // pred_region
      %s36 = ssub.s32 4096, 4096
      %37 = vsyncadd [#allocation9], %s36
      %s38 = sshll.u32 [#allocation8], 4
      %s39 = int_to_ptr.vmem [resolvable:$true] %s38
      %44 = dma.hbm_to_vmem [thread:$0]  %s3, 4096, %s39, [#allocation9], 256, 256, 16
    $region17: #{next_character_lstm_forward.1} parent=1 // pred_fallthru
      _
    // Predicated region
    $region18: #{next_character_lstm_forward.1} parent=1 // pred_check
      _
    $region19: #{next_character_lstm_forward.1} parent=1 // pred_check_branch
      %46 = sbr.rel (0) target = $region21
    $region20: #{next_character_lstm_forward.1} parent=1 // pred_region
      %s48 = ssub.s32 4096, 4096
      %49 = vsyncadd [#allocation9], %s48
      %s50 = sshll.u32 [#allocation10], 4
      %s51 = int_to_ptr.vmem [resolvable:$true] %s50
      %56 = dma.hbm_to_vmem [thread:$0]  %s4, 4096, %s51, [#allocation9], 256, 256, 16
    $region21: #{next_character_lstm_forward.1} parent=1 // pred_fallthru
      _
    // Predicated region
    $region22: #{next_character_lstm_forward.1} parent=1 // pred_check
      _
    $region23: #{next_character_lstm_forward.1} parent=1 // pred_check_branch
      %58 = sbr.rel (0) target = $region25
    $region24: #{next_character_lstm_forward.1} parent=1 // pred_region
      %s60 = ssub.s32 4096, 4096
      %61 = vsyncadd [#allocation12], %s60
      %s62 = sshll.u32 [#allocation11], 4
      %s63 = int_to_ptr.vmem [resolvable:$true] %s62
      %68 = dma.hbm_to_vmem [thread:$0]  %s5, 4096, %s63, [#allocation12], 256, 256, 16
    $region25: #{next_character_lstm_forward.1} parent=1 // pred_fallthru
      _
    // Predicated region
    $region26: #{next_character_lstm_forward.1} parent=1 // pred_check
      _
    $region27: #{next_character_lstm_forward.1} parent=1 // pred_check_branch
      %70 = sbr.rel (0) target = $region29
    $region28: #{next_character_lstm_forward.1} parent=1 // pred_region
      _
    $region29: #{next_character_lstm_forward.1} parent=1 // pred_fallthru
      _
    // Predicated region
    $region30: #{next_character_lstm_forward.1} parent=1 // pred_check
      _
    $region31: #{next_character_lstm_forward.1} parent=1 // pred_check_branch
      %72 = sbr.rel (0) target = $region33
    $region32: #{next_character_lstm_forward.1} parent=1 // pred_region
      _
    $region33: #{next_character_lstm_forward.1} parent=1 // pred_fallthru
      _
    // Predicated region
    $region34: #{next_character_lstm_forward.1} parent=1 // pred_check
      _
    $region35: #{next_character_lstm_forward.1} parent=1 // pred_check_branch
      %74 = sbr.rel (0) target = $region37
    $region36: #{next_character_lstm_forward.1} parent=1 // pred_region
      _
    $region37: #{next_character_lstm_forward.1} parent=1 // pred_fallthru
      _
    // Predicated region
    $region38: #{next_character_lstm_forward.1} parent=1 // pred_check
      _
    $region39: #{next_character_lstm_forward.1} parent=1 // pred_check_branch
      %76 = sbr.rel (0) target = $region41
    $region40: #{next_character_lstm_forward.1} parent=1 // pred_region
      %77 = dma.done [#allocation7], 4096
    $region41: #{next_character_lstm_forward.1} parent=1 // pred_fallthru
      _
    // Predicated region
    $region42: #{next_character_lstm_forward.1} parent=1 // pred_check
      _
    $region43: #{next_character_lstm_forward.1} parent=1 // pred_check_branch
      %79 = sbr.rel (0) target = $region45
    $region44: #{next_character_lstm_forward.1} parent=1 // pred_region
      %80 = dma.done [#allocation9], 4096
    $region45: #{next_character_lstm_forward.1} parent=1 // pred_fallthru
      _
    // Predicated region
    $region46: #{next_character_lstm_forward.1} parent=1 // pred_check
      _
    $region47: #{next_character_lstm_forward.1} parent=1 // pred_check_branch
      %82 = sbr.rel (0) target = $region49
    $region48: #{next_character_lstm_forward.1} parent=1 // pred_region
      %83 = dma.done [#allocation9], 4096
    $region49: #{next_character_lstm_forward.1} parent=1 // pred_fallthru
      _
    // Predicated region
    $region50: #{next_character_lstm_forward.1} parent=1 // pred_check
      _
    $region51: #{next_character_lstm_forward.1} parent=1 // pred_check_branch
      %85 = sbr.rel (0) target = $region53
    $region52: #{next_character_lstm_forward.1} parent=1 // pred_region
      %86 = dma.done [#allocation12], 4096
    $region53: #{next_character_lstm_forward.1} parent=1 // pred_fallthru
      _
    %p88 = scmp.eq.s32.totalorder 0, 0
    // Predicated region
    $region54: #{next_character_lstm_forward.1} parent=1 // pred_check
      %p89 = pneg %p88
    $region55: #{next_character_lstm_forward.1} parent=1 // pred_check_branch
      %91 = sbr.rel (%p89) target = $region57
    $region56: #{next_character_lstm_forward.1} parent=1 // pred_region
      %92 = vst [vmem:[#allocation4] sm:$0xff] 0.0
      %93 = vst [vmem:[#allocation4 + $0x8] sm:$0xff] 0.0
      %94 = vst [vmem:[#allocation5] sm:$0xff] 0.0
      %95 = vst [vmem:[#allocation5 + $0x8] sm:$0xff] 0.0
    $region57: #{next_character_lstm_forward.1} parent=1 // pred_fallthru
      _
    %v96 = vld [vmem:[%s0] sm:$0xff]
    %v97 = vld [vmem:[%s0 + $0x8] sm:$0xff]
    %v98 = vld [vmem:[%s0 + $0x10] sm:$0xff]
    %v99 = vld [vmem:[%s0 + $0x18] sm:$0xff]
    %v100 = vld [vmem:[%s0 + $0x20] sm:$0xff]
    %v101 = vld [vmem:[%s0 + $0x28] sm:$0xff]
    %v102 = vld [vmem:[%s0 + $0x30] sm:$0xff]
    %v103 = vld [vmem:[%s0 + $0x38] sm:$0xff]
    %v104 = vlaneseq
    %v105 = vand.u32 %v104, 127
    %106 = vset.pattern.permute.xlu0 0
    %107 = vperm.xlu0 %106, %v96
    %v108 = vpop.permute.xlu0 %107
    %109 = vset.pattern.permute.xlu0 0
    %110 = vperm.xlu0 %109, %v97
    %v111 = vpop.permute.xlu0 %110
    %112 = vset.pattern.permute.xlu0 0
    %113 = vperm.xlu0 %112, %v98
    %v114 = vpop.permute.xlu0 %113
    %115 = vset.pattern.permute.xlu0 0
    %116 = vperm.xlu0 %115, %v99
    %v117 = vpop.permute.xlu0 %116
    %118 = vset.pattern.permute.xlu0 0
    %119 = vperm.xlu0 %118, %v100
    %v120 = vpop.permute.xlu0 %119
    %121 = vset.pattern.permute.xlu0 0
    %122 = vperm.xlu0 %121, %v101
    %v123 = vpop.permute.xlu0 %122
    %124 = vset.pattern.permute.xlu0 0
    %125 = vperm.xlu0 %124, %v102
    %v126 = vpop.permute.xlu0 %125
    %127 = vset.pattern.permute.xlu0 0
    %128 = vperm.xlu0 %127, %v103
    %v129 = vpop.permute.xlu0 %128
    %vm130 = vcmp.eq.s32.totalorder %v105, %v108
    %vm131 = vcmp.eq.s32.totalorder %v105, %v111
    %vm132 = vcmp.eq.s32.totalorder %v105, %v114
    %vm133 = vcmp.eq.s32.totalorder %v105, %v117
    %vm134 = vcmp.eq.s32.totalorder %v105, %v120
    %vm135 = vcmp.eq.s32.totalorder %v105, %v123
    %vm136 = vcmp.eq.s32.totalorder %v105, %v126
    %vm137 = vcmp.eq.s32.totalorder %v105, %v129
    %v138 = vsel %vm130, 1.0, 0.0
    %v139 = vsel %vm131, 1.0, 0.0
    %v140 = vsel %vm132, 1.0, 0.0
    %v141 = vsel %vm133, 1.0, 0.0
    %v142 = vsel %vm134, 1.0, 0.0
    %v143 = vsel %vm135, 1.0, 0.0
    %v144 = vsel %vm136, 1.0, 0.0
    %v145 = vsel %vm137, 1.0, 0.0
    %v146 = vpack.c.bf16 %v139, %v138
    %v147 = vpack.c.bf16 %v141, %v140
    %v148 = vpack.c.bf16 %v143, %v142
    %v149 = vpack.c.bf16 %v145, %v144
    %v150 = vld [vmem:[#allocation6] sm:$0xff]
    %v151 = vld [vmem:[#allocation6 + $0x8] sm:$0xff]
    %v152 = vld [vmem:[#allocation6 + $0x10] sm:$0xff]
    %v153 = vld [vmem:[#allocation6 + $0x18] sm:$0xff]
    %v154 = vld [vmem:[#allocation6 + $0x20] sm:$0xff]
    %v155 = vld [vmem:[#allocation6 + $0x28] sm:$0xff]
    %v156 = vld [vmem:[#allocation6 + $0x30] sm:$0xff]
    %v157 = vld [vmem:[#allocation6 + $0x38] sm:$0xff]
    %v158 = vld [vmem:[#allocation6 + $0x40] sm:$0xff]
    %v159 = vld [vmem:[#allocation6 + $0x48] sm:$0xff]
    %v160 = vld [vmem:[#allocation6 + $0x50] sm:$0xff]
    %v161 = vld [vmem:[#allocation6 + $0x58] sm:$0xff]
    %v162 = vld [vmem:[#allocation6 + $0x60] sm:$0xff]
    %v163 = vld [vmem:[#allocation6 + $0x68] sm:$0xff]
    %v164 = vld [vmem:[#allocation6 + $0x70] sm:$0xff]
    %v165 = vld [vmem:[#allocation6 + $0x78] sm:$0xff]
    %v166 = vld [vmem:[#allocation6 + $0x80] sm:$0xff]
    %v167 = vld [vmem:[#allocation6 + $0x88] sm:$0xff]
    %v168 = vld [vmem:[#allocation6 + $0x90] sm:$0xff]
    %v169 = vld [vmem:[#allocation6 + $0x98] sm:$0xff]
    %v170 = vld [vmem:[#allocation6 + $0xa0] sm:$0xff]
    %v171 = vld [vmem:[#allocation6 + $0xa8] sm:$0xff]
    %v172 = vld [vmem:[#allocation6 + $0xb0] sm:$0xff]
    %v173 = vld [vmem:[#allocation6 + $0xb8] sm:$0xff]
    %v174 = vld [vmem:[#allocation6 + $0xc0] sm:$0xff]
    %v175 = vld [vmem:[#allocation6 + $0xc8] sm:$0xff]
    %v176 = vld [vmem:[#allocation6 + $0xd0] sm:$0xff]
    %v177 = vld [vmem:[#allocation6 + $0xd8] sm:$0xff]
    %v178 = vld [vmem:[#allocation6 + $0xe0] sm:$0xff]
    %v179 = vld [vmem:[#allocation6 + $0xe8] sm:$0xff]
    %v180 = vld [vmem:[#allocation6 + $0xf0] sm:$0xff]
    %v181 = vld [vmem:[#allocation6 + $0xf8] sm:$0xff]
    %v214 = vunpack.c.l.b16 %v150
    %v215 = vunpack.c.h.b16 %v150
    %v216 = vunpack.c.l.b16 %v151
    %v217 = vunpack.c.h.b16 %v151
    %v218 = vunpack.c.l.b16 %v152
    %v219 = vunpack.c.h.b16 %v152
    %v220 = vunpack.c.l.b16 %v153
    %v221 = vunpack.c.h.b16 %v153
    %v222 = vunpack.c.l.b16 %v154
    %v223 = vunpack.c.h.b16 %v154
    %v224 = vunpack.c.l.b16 %v155
    %v225 = vunpack.c.h.b16 %v155
    %v226 = vunpack.c.l.b16 %v156
    %v227 = vunpack.c.h.b16 %v156
    %v228 = vunpack.c.l.b16 %v157
    %v229 = vunpack.c.h.b16 %v157
    %v230 = vunpack.c.l.b16 %v158
    %v231 = vunpack.c.h.b16 %v158
    %v232 = vunpack.c.l.b16 %v159
    %v233 = vunpack.c.h.b16 %v159
    %v234 = vunpack.c.l.b16 %v160
    %v235 = vunpack.c.h.b16 %v160
    %v236 = vunpack.c.l.b16 %v161
    %v237 = vunpack.c.h.b16 %v161
    %v238 = vunpack.c.l.b16 %v162
    %v239 = vunpack.c.h.b16 %v162
    %v240 = vunpack.c.l.b16 %v163
    %v241 = vunpack.c.h.b16 %v163
    %v242 = vunpack.c.l.b16 %v164
    %v243 = vunpack.c.h.b16 %v164
    %v244 = vunpack.c.l.b16 %v165
    %v245 = vunpack.c.h.b16 %v165
    %v246 = vunpack.c.l.b16 %v166
    %v247 = vunpack.c.h.b16 %v166
    %v248 = vunpack.c.l.b16 %v167
    %v249 = vunpack.c.h.b16 %v167
    %v250 = vunpack.c.l.b16 %v168
    %v251 = vunpack.c.h.b16 %v168
    %v252 = vunpack.c.l.b16 %v169
    %v253 = vunpack.c.h.b16 %v169
    %v254 = vunpack.c.l.b16 %v170
    %v255 = vunpack.c.h.b16 %v170
    %v256 = vunpack.c.l.b16 %v171
    %v257 = vunpack.c.h.b16 %v171
    %v258 = vunpack.c.l.b16 %v172
    %v259 = vunpack.c.h.b16 %v172
    %v260 = vunpack.c.l.b16 %v173
    %v261 = vunpack.c.h.b16 %v173
    %v262 = vunpack.c.l.b16 %v174
    %v263 = vunpack.c.h.b16 %v174
    %v264 = vunpack.c.l.b16 %v175
    %v265 = vunpack.c.h.b16 %v175
    %v266 = vunpack.c.l.b16 %v176
    %v267 = vunpack.c.h.b16 %v176
    %v268 = vunpack.c.l.b16 %v177
    %v269 = vunpack.c.h.b16 %v177
    %v270 = vunpack.c.l.b16 %v178
    %v271 = vunpack.c.h.b16 %v178
    %v272 = vunpack.c.l.b16 %v179
    %v273 = vunpack.c.h.b16 %v179
    %v274 = vunpack.c.l.b16 %v180
    %v275 = vunpack.c.h.b16 %v180
    %v276 = vunpack.c.l.b16 %v181
    %v277 = vunpack.c.h.b16 %v181
    %v278 = vpack.c.b16 %v218, %v214
    %v279 = vpack.c.b16 %v219, %v215
    %v280 = vpack.c.b16 %v220, %v216
    %v281 = vpack.c.b16 %v221, %v217
    %v282 = vpack.c.b16 %v226, %v222
    %v283 = vpack.c.b16 %v227, %v223
    %v284 = vpack.c.b16 %v228, %v224
    %v285 = vpack.c.b16 %v229, %v225
    %v286 = vpack.c.b16 %v234, %v230
    %v287 = vpack.c.b16 %v235, %v231
    %v288 = vpack.c.b16 %v236, %v232
    %v289 = vpack.c.b16 %v237, %v233
    %v290 = vpack.c.b16 %v242, %v238
    %v291 = vpack.c.b16 %v243, %v239
    %v292 = vpack.c.b16 %v244, %v240
    %v293 = vpack.c.b16 %v245, %v241
    %v294 = vpack.c.b16 %v250, %v246
    %v295 = vpack.c.b16 %v251, %v247
    %v296 = vpack.c.b16 %v252, %v248
    %v297 = vpack.c.b16 %v253, %v249
    %v298 = vpack.c.b16 %v258, %v254
    %v299 = vpack.c.b16 %v259, %v255
    %v300 = vpack.c.b16 %v260, %v256
    %v301 = vpack.c.b16 %v261, %v257
    %v302 = vpack.c.b16 %v266, %v262
    %v303 = vpack.c.b16 %v267, %v263
    %v304 = vpack.c.b16 %v268, %v264
    %v305 = vpack.c.b16 %v269, %v265
    %v306 = vpack.c.b16 %v274, %v270
    %v307 = vpack.c.b16 %v275, %v271
    %v308 = vpack.c.b16 %v276, %v272
    %v309 = vpack.c.b16 %v277, %v273
    %342 = vmatprep.subr.bf16.mxu0 %v279
    %343 = vmatpush1.bf16.msra.mxu0 %v278
    %344 = vmatprep.subr.bf16.mxu0 %v283
    %345 = vmatpush1.bf16.msra.mxu0 %v282
    %346 = vmatprep.subr.bf16.mxu0 %v287
    %347 = vmatpush1.bf16.msra.mxu0 %v286
    %348 = vmatprep.subr.bf16.mxu0 %v291
    %349 = vmatpush1.bf16.msra.mxu0 %v290
    %350 = vmatprep.subr.bf16.mxu0 %v295
    %351 = vmatpush1.bf16.msra.mxu0 %v294
    %352 = vmatprep.subr.bf16.mxu0 %v299
    %353 = vmatpush1.bf16.msra.mxu0 %v298
    %354 = vmatprep.subr.bf16.mxu0 %v303
    %355 = vmatpush1.bf16.msra.mxu0 %v302
    %356 = vmatprep.subr.bf16.mxu0 %v307
    %357 = vmatpush1.bf16.msra.mxu0 %v306
    %358 = vmatprep.subr.bf16.mxu0 0
    %359 = vmatpush1.bf16.msra.mxu0 0
    %360 = vmatprep.subr.bf16.mxu0 0
    %361 = vmatpush1.bf16.msra.mxu0 0
    %362 = vmatprep.subr.bf16.mxu0 0
    %363 = vmatpush1.bf16.msra.mxu0 0
    %364 = vmatprep.subr.bf16.mxu0 0
    %365 = vmatpush1.bf16.msra.mxu0 0
    %366 = vmatprep.subr.bf16.mxu0 0
    %367 = vmatpush1.bf16.msra.mxu0 0
    %368 = vmatprep.subr.bf16.mxu0 0
    %369 = vmatpush1.bf16.msra.mxu0 0
    %370 = vmatprep.subr.bf16.mxu0 0
    %371 = vmatpush1.bf16.msra.mxu0 0
    %372 = vmatprep.subr.bf16.mxu0 0
    %373 = vmatpush1.bf16.msra.mxu0 0
    %374 = vmatprep.mubr.bf16.mxu0 0
    %375 = vmatmul.mubr.bf16.gmra.mrb[0].mxu0 %v146
    %v376 = vpop.f32.mrb[0].mxu0
    %v377 = vadd.f32 0.0, %v376
    %v378 = vpop.f32.mrb[0].mxu0
    %v379 = vadd.f32 0.0, %v378
    %v380 = vpop.f32.mrb[0].mxu0
    %v381 = vadd.f32 0.0, %v380
    %v382 = vpop.f32.mrb[0].mxu0
    %v383 = vadd.f32 0.0, %v382
    %384 = vmatprep.mubr.bf16.mxu0 0
    %385 = vmatmul.mubr.bf16.gmra.mrb[0].mxu0 %v147
    %v386 = vpop.f32.mrb[0].mxu0
    %v387 = vadd.f32 0.0, %v386
    %v388 = vpop.f32.mrb[0].mxu0
    %v389 = vadd.f32 0.0, %v388
    %v390 = vpop.f32.mrb[0].mxu0
    %v391 = vadd.f32 0.0, %v390
    %v392 = vpop.f32.mrb[0].mxu0
    %v393 = vadd.f32 0.0, %v392
    %394 = vmatprep.mubr.bf16.mxu0 0
    %395 = vmatmul.mubr.bf16.gmra.mrb[0].mxu0 %v148
    %v396 = vpop.f32.mrb[0].mxu0
    %v397 = vadd.f32 0.0, %v396
    %v398 = vpop.f32.mrb[0].mxu0
    %v399 = vadd.f32 0.0, %v398
    %v400 = vpop.f32.mrb[0].mxu0
    %v401 = vadd.f32 0.0, %v400
    %v402 = vpop.f32.mrb[0].mxu0
    %v403 = vadd.f32 0.0, %v402
    %404 = vmatprep.mubr.bf16.mxu0 0
    %405 = vmatmul.mubr.bf16.gmra.mrb[0].mxu0 %v149
    %v406 = vpop.f32.mrb[0].mxu0
    %v407 = vadd.f32 0.0, %v406
    %v408 = vpop.f32.mrb[0].mxu0
    %v409 = vadd.f32 0.0, %v408
    %v410 = vpop.f32.mrb[0].mxu0
    %v411 = vadd.f32 0.0, %v410
    %v412 = vpop.f32.mrb[0].mxu0
    %v413 = vadd.f32 0.0, %v412
    %414 = vdwg.mxu0
    %415 = vmatprep.subr.bf16.mxu0 %v281
    %416 = vmatpush1.bf16.msra.mxu0 %v280
    %417 = vmatprep.subr.bf16.mxu0 %v285
    %418 = vmatpush1.bf16.msra.mxu0 %v284
    %419 = vmatprep.subr.bf16.mxu0 %v289
    %420 = vmatpush1.bf16.msra.mxu0 %v288
    %421 = vmatprep.subr.bf16.mxu0 %v293
    %422 = vmatpush1.bf16.msra.mxu0 %v292
    %423 = vmatprep.subr.bf16.mxu0 %v297
    %424 = vmatpush1.bf16.msra.mxu0 %v296
    %425 = vmatprep.subr.bf16.mxu0 %v301
    %426 = vmatpush1.bf16.msra.mxu0 %v300
    %427 = vmatprep.subr.bf16.mxu0 %v305
    %428 = vmatpush1.bf16.msra.mxu0 %v304
    %429 = vmatprep.subr.bf16.mxu0 %v309
    %430 = vmatpush1.bf16.msra.mxu0 %v308
    %431 = vmatprep.subr.bf16.mxu0 0
    %432 = vmatpush1.bf16.msra.mxu0 0
    %433 = vmatprep.subr.bf16.mxu0 0
    %434 = vmatpush1.bf16.msra.mxu0 0
    %435 = vmatprep.subr.bf16.mxu0 0
    %436 = vmatpush1.bf16.msra.mxu0 0
    %437 = vmatprep.subr.bf16.mxu0 0
    %438 = vmatpush1.bf16.msra.mxu0 0
    %439 = vmatprep.subr.bf16.mxu0 0
    %440 = vmatpush1.bf16.msra.mxu0 0
    %441 = vmatprep.subr.bf16.mxu0 0
    %442 = vmatpush1.bf16.msra.mxu0 0
    %443 = vmatprep.subr.bf16.mxu0 0
    %444 = vmatpush1.bf16.msra.mxu0 0
    %445 = vmatprep.subr.bf16.mxu0 0
    %446 = vmatpush1.bf16.msra.mxu0 0
    %447 = vmatprep.mubr.bf16.mxu0 0
    %448 = vmatmul.mubr.bf16.gmra.mrb[0].mxu0 %v146
    %v449 = vpop.f32.mrb[0].mxu0
    %v450 = vadd.f32 0.0, %v449
    %v451 = vpop.f32.mrb[0].mxu0
    %v452 = vadd.f32 0.0, %v451
    %v453 = vpop.f32.mrb[0].mxu0
    %v454 = vadd.f32 0.0, %v453
    %v455 = vpop.f32.mrb[0].mxu0
    %v456 = vadd.f32 0.0, %v455
    %457 = vmatprep.mubr.bf16.mxu0 0
    %458 = vmatmul.mubr.bf16.gmra.mrb[0].mxu0 %v147
    %v459 = vpop.f32.mrb[0].mxu0
    %v460 = vadd.f32 0.0, %v459
    %v461 = vpop.f32.mrb[0].mxu0
    %v462 = vadd.f32 0.0, %v461
    %v463 = vpop.f32.mrb[0].mxu0
    %v464 = vadd.f32 0.0, %v463
    %v465 = vpop.f32.mrb[0].mxu0
    %v466 = vadd.f32 0.0, %v465
    %467 = vmatprep.mubr.bf16.mxu0 0
    %468 = vmatmul.mubr.bf16.gmra.mrb[0].mxu0 %v148
    %v469 = vpop.f32.mrb[0].mxu0
    %v470 = vadd.f32 0.0, %v469
    %v471 = vpop.f32.mrb[0].mxu0
    %v472 = vadd.f32 0.0, %v471
    %v473 = vpop.f32.mrb[0].mxu0
    %v474 = vadd.f32 0.0, %v473
    %v475 = vpop.f32.mrb[0].mxu0
    %v476 = vadd.f32 0.0, %v475
    %477 = vmatprep.mubr.bf16.mxu0 0
    %478 = vmatmul.mubr.bf16.gmra.mrb[0].mxu0 %v149
    %v479 = vpop.f32.mrb[0].mxu0
    %v480 = vadd.f32 0.0, %v479
    %v481 = vpop.f32.mrb[0].mxu0
    %v482 = vadd.f32 0.0, %v481
    %v483 = vpop.f32.mrb[0].mxu0
    %v484 = vadd.f32 0.0, %v483
    %v485 = vpop.f32.mrb[0].mxu0
    %v486 = vadd.f32 0.0, %v485
    %487 = vdwg.mxu0
    %v488 = vpack.c.bf16 %v377, %v377
    %v489 = vpack.c.bf16 %v379, %v379
    %v490 = vpack.c.bf16 %v450, %v450
    %v491 = vpack.c.bf16 %v452, %v452
    %v492 = vpack.c.bf16 %v381, %v381
    %v493 = vpack.c.bf16 %v383, %v383
    %v494 = vpack.c.bf16 %v454, %v454
    %v495 = vpack.c.bf16 %v456, %v456
    %v496 = vpack.c.bf16 %v387, %v387
    %v497 = vpack.c.bf16 %v389, %v389
    %v498 = vpack.c.bf16 %v460, %v460
    %v499 = vpack.c.bf16 %v462, %v462
    %v500 = vpack.c.bf16 %v391, %v391
    %v501 = vpack.c.bf16 %v393, %v393
    %v502 = vpack.c.bf16 %v464, %v464
    %v503 = vpack.c.bf16 %v466, %v466
    %v504 = vpack.c.bf16 %v397, %v397
    %v505 = vpack.c.bf16 %v399, %v399
    %v506 = vpack.c.bf16 %v470, %v470
    %v507 = vpack.c.bf16 %v472, %v472
    %v508 = vpack.c.bf16 %v401, %v401
    %v509 = vpack.c.bf16 %v403, %v403
    %v510 = vpack.c.bf16 %v474, %v474
    %v511 = vpack.c.bf16 %v476, %v476
    %v512 = vpack.c.bf16 %v407, %v407
    %v513 = vpack.c.bf16 %v409, %v409
    %v514 = vpack.c.bf16 %v480, %v480
    %v515 = vpack.c.bf16 %v482, %v482
    %v516 = vpack.c.bf16 %v411, %v411
    %v517 = vpack.c.bf16 %v413, %v413
    %v518 = vpack.c.bf16 %v484, %v484
    %v519 = vpack.c.bf16 %v486, %v486
    %v552 = vunpack.c.l.b16 %v488
    %v553 = vunpack.c.l.b16 %v489
    %v554 = vunpack.c.l.b16 %v490
    %v555 = vunpack.c.l.b16 %v491
    %v556 = vunpack.c.l.b16 %v492
    %v557 = vunpack.c.l.b16 %v493
    %v558 = vunpack.c.l.b16 %v494
    %v559 = vunpack.c.l.b16 %v495
    %v560 = vunpack.c.l.b16 %v496
    %v561 = vunpack.c.l.b16 %v497
    %v562 = vunpack.c.l.b16 %v498
    %v563 = vunpack.c.l.b16 %v499
    %v564 = vunpack.c.l.b16 %v500
    %v565 = vunpack.c.l.b16 %v501
    %v566 = vunpack.c.l.b16 %v502
    %v567 = vunpack.c.l.b16 %v503
    %v568 = vunpack.c.l.b16 %v504
    %v569 = vunpack.c.l.b16 %v505
    %v570 = vunpack.c.l.b16 %v506
    %v571 = vunpack.c.l.b16 %v507
    %v572 = vunpack.c.l.b16 %v508
    %v573 = vunpack.c.l.b16 %v509
    %v574 = vunpack.c.l.b16 %v510
    %v575 = vunpack.c.l.b16 %v511
    %v576 = vunpack.c.l.b16 %v512
    %v577 = vunpack.c.l.b16 %v513
    %v578 = vunpack.c.l.b16 %v514
    %v579 = vunpack.c.l.b16 %v515
    %v580 = vunpack.c.l.b16 %v516
    %v581 = vunpack.c.l.b16 %v517
    %v582 = vunpack.c.l.b16 %v518
    %v583 = vunpack.c.l.b16 %v519
    %v584 = vpack.c.b16 %v553, %v552
    %v585 = vpack.c.b16 %v555, %v554
    %v586 = vpack.c.b16 %v557, %v556
    %v587 = vpack.c.b16 %v559, %v558
    %v588 = vpack.c.b16 %v561, %v560
    %v589 = vpack.c.b16 %v563, %v562
    %v590 = vpack.c.b16 %v565, %v564
    %v591 = vpack.c.b16 %v567, %v566
    %v592 = vpack.c.b16 %v569, %v568
    %v593 = vpack.c.b16 %v571, %v570
    %v594 = vpack.c.b16 %v573, %v572
    %v595 = vpack.c.b16 %v575, %v574
    %v596 = vpack.c.b16 %v577, %v576
    %v597 = vpack.c.b16 %v579, %v578
    %v598 = vpack.c.b16 %v581, %v580
    %v599 = vpack.c.b16 %v583, %v582
    %616 = vst [vmem:[#allocation2] sm:$0xff] %v584
    %617 = vst [vmem:[#allocation2 + $0x8] sm:$0xff] %v585
    %618 = vst [vmem:[#allocation2 + $0x10] sm:$0xff] %v586
    %619 = vst [vmem:[#allocation2 + $0x18] sm:$0xff] %v587
    %620 = vst [vmem:[#allocation2 + $0x20] sm:$0xff] %v588
    %621 = vst [vmem:[#allocation2 + $0x28] sm:$0xff] %v589
    %622 = vst [vmem:[#allocation2 + $0x30] sm:$0xff] %v590
    %623 = vst [vmem:[#allocation2 + $0x38] sm:$0xff] %v591
    %624 = vst [vmem:[#allocation2 + $0x40] sm:$0xff] %v592
    %625 = vst [vmem:[#allocation2 + $0x48] sm:$0xff] %v593
    %626 = vst [vmem:[#allocation2 + $0x50] sm:$0xff] %v594
    %627 = vst [vmem:[#allocation2 + $0x58] sm:$0xff] %v595
    %628 = vst [vmem:[#allocation2 + $0x60] sm:$0xff] %v596
    %629 = vst [vmem:[#allocation2 + $0x68] sm:$0xff] %v597
    %630 = vst [vmem:[#allocation2 + $0x70] sm:$0xff] %v598
    %631 = vst [vmem:[#allocation2 + $0x78] sm:$0xff] %v599
    %v632 = vld [vmem:[%s2] sm:$0xf]
    %v634 = vlaneseq
    %v635 = vshrl.u32 %v634, 7
    %v636 = vsub.s32 0, %v635
    %v637 = vrot.slane %v632, %v636
    %v638 = vlaneseq
    %v639 = vshrl.u32 %v638, 7
    %v640 = vsub.s32 1, %v639
    %v641 = vrot.slane %v632, %v640
    %v642 = vlaneseq
    %v643 = vshrl.u32 %v642, 7
    %v644 = vsub.s32 2, %v643
    %v645 = vrot.slane %v632, %v644
    %v646 = vlaneseq
    %v647 = vshrl.u32 %v646, 7
    %v648 = vsub.s32 3, %v647
    %v649 = vrot.slane %v632, %v648
    %v654 = vld [vmem:[%s6] sm:$0xf]
    %v656 = vlaneseq
    %v657 = vshrl.u32 %v656, 7
    %v658 = vsub.s32 0, %v657
    %v659 = vrot.slane %v654, %v658
    %v660 = vlaneseq
    %v661 = vshrl.u32 %v660, 7
    %v662 = vsub.s32 1, %v661
    %v663 = vrot.slane %v654, %v662
    %v664 = vlaneseq
    %v665 = vshrl.u32 %v664, 7
    %v666 = vsub.s32 2, %v665
    %v667 = vrot.slane %v654, %v666
    %v668 = vlaneseq
    %v669 = vshrl.u32 %v668, 7
    %v670 = vsub.s32 3, %v669
    %v671 = vrot.slane %v654, %v670
    %v676 = vld [vmem:[#allocation4] sm:$0xff]
    %v677 = vld [vmem:[#allocation5] sm:$0xff]
    %s678 = scalar_lea.vmem [#allocation4], 8
    %v679 = vld [vmem:[%s678] sm:$0xff]
    %s680 = scalar_lea.vmem [#allocation5], 8
    %v681 = vld [vmem:[%s680] sm:$0xff]
    %v682 = vld [vmem:[#allocation2] sm:$0xff]
    %v683 = vld [vmem:[#allocation2 + $0x8] sm:$0xff]
    %v684 = vunpack.c.l.bf16 %v682
    %v685 = vunpack.c.h.bf16 %v682
    %v686 = vunpack.c.l.bf16 %v683
    %v687 = vunpack.c.h.bf16 %v683
    %v688 = vadd.f32 %v684, %v637
    %v689 = vadd.f32 %v685, %v641
    %v690 = vadd.f32 %v686, %v645
    %v691 = vadd.f32 %v687, %v649
    %v692 = vpack.c.bf16 %v676, %v676
    %v693 = vld [vmem:[#allocation8] sm:$0xff]
    %v694 = vld [vmem:[#allocation8 + $0x8] sm:$0xff]
    %v695 = vld [vmem:[#allocation8 + $0x10] sm:$0xff]
    %v696 = vld [vmem:[#allocation8 + $0x18] sm:$0xff]
    %v697 = vld [vmem:[#allocation8 + $0x20] sm:$0xff]
    %v698 = vld [vmem:[#allocation8 + $0x28] sm:$0xff]
    %v699 = vld [vmem:[#allocation8 + $0x30] sm:$0xff]
    %v700 = vld [vmem:[#allocation8 + $0x38] sm:$0xff]
    %v701 = vld [vmem:[#allocation8 + $0x40] sm:$0xff]
    %v702 = vld [vmem:[#allocation8 + $0x48] sm:$0xff]
    %v703 = vld [vmem:[#allocation8 + $0x50] sm:$0xff]
    %v704 = vld [vmem:[#allocation8 + $0x58] sm:$0xff]
    %v705 = vld [vmem:[#allocation8 + $0x60] sm:$0xff]
    %v706 = vld [vmem:[#allocation8 + $0x68] sm:$0xff]
    %v707 = vld [vmem:[#allocation8 + $0x70] sm:$0xff]
    %v708 = vld [vmem:[#allocation8 + $0x78] sm:$0xff]
    %v709 = vld [vmem:[#allocation8 + $0x80] sm:$0xff]
    %v710 = vld [vmem:[#allocation8 + $0x88] sm:$0xff]
    %v711 = vld [vmem:[#allocation8 + $0x90] sm:$0xff]
    %v712 = vld [vmem:[#allocation8 + $0x98] sm:$0xff]
    %v713 = vld [vmem:[#allocation8 + $0xa0] sm:$0xff]
    %v714 = vld [vmem:[#allocation8 + $0xa8] sm:$0xff]
    %v715 = vld [vmem:[#allocation8 + $0xb0] sm:$0xff]
    %v716 = vld [vmem:[#allocation8 + $0xb8] sm:$0xff]
    %v717 = vld [vmem:[#allocation8 + $0xc0] sm:$0xff]
    %v718 = vld [vmem:[#allocation8 + $0xc8] sm:$0xff]
    %v719 = vld [vmem:[#allocation8 + $0xd0] sm:$0xff]
    %v720 = vld [vmem:[#allocation8 + $0xd8] sm:$0xff]
    %v721 = vld [vmem:[#allocation8 + $0xe0] sm:$0xff]
    %v722 = vld [vmem:[#allocation8 + $0xe8] sm:$0xff]
    %v723 = vld [vmem:[#allocation8 + $0xf0] sm:$0xff]
    %v724 = vld [vmem:[#allocation8 + $0xf8] sm:$0xff]
    %v757 = vunpack.c.l.b16 %v693
    %v758 = vunpack.c.h.b16 %v693
    %v759 = vunpack.c.l.b16 %v694
    %v760 = vunpack.c.h.b16 %v694
    %v761 = vunpack.c.l.b16 %v695
    %v762 = vunpack.c.h.b16 %v695
    %v763 = vunpack.c.l.b16 %v696
    %v764 = vunpack.c.h.b16 %v696
    %v765 = vunpack.c.l.b16 %v697
    %v766 = vunpack.c.h.b16 %v697
    %v767 = vunpack.c.l.b16 %v698
    %v768 = vunpack.c.h.b16 %v698
    %v769 = vunpack.c.l.b16 %v699
    %v770 = vunpack.c.h.b16 %v699
    %v771 = vunpack.c.l.b16 %v700
    %v772 = vunpack.c.h.b16 %v700
    %v773 = vunpack.c.l.b16 %v701
    %v774 = vunpack.c.h.b16 %v701
    %v775 = vunpack.c.l.b16 %v702
    %v776 = vunpack.c.h.b16 %v702
    %v777 = vunpack.c.l.b16 %v703
    %v778 = vunpack.c.h.b16 %v703
    %v779 = vunpack.c.l.b16 %v704
    %v780 = vunpack.c.h.b16 %v704
    %v781 = vunpack.c.l.b16 %v705
    %v782 = vunpack.c.h.b16 %v705
    %v783 = vunpack.c.l.b16 %v706
    %v784 = vunpack.c.h.b16 %v706
    %v785 = vunpack.c.l.b16 %v707
    %v786 = vunpack.c.h.b16 %v707
    %v787 = vunpack.c.l.b16 %v708
    %v788 = vunpack.c.h.b16 %v708
    %v789 = vunpack.c.l.b16 %v709
    %v790 = vunpack.c.h.b16 %v709
    %v791 = vunpack.c.l.b16 %v710
    %v792 = vunpack.c.h.b16 %v710
    %v793 = vunpack.c.l.b16 %v711
    %v794 = vunpack.c.h.b16 %v711
    %v795 = vunpack.c.l.b16 %v712
    %v796 = vunpack.c.h.b16 %v712
    %v797 = vunpack.c.l.b16 %v713
    %v798 = vunpack.c.h.b16 %v713
    %v799 = vunpack.c.l.b16 %v714
    %v800 = vunpack.c.h.b16 %v714
    %v801 = vunpack.c.l.b16 %v715
    %v802 = vunpack.c.h.b16 %v715
    %v803 = vunpack.c.l.b16 %v716
    %v804 = vunpack.c.h.b16 %v716
    %v805 = vunpack.c.l.b16 %v717
    %v806 = vunpack.c.h.b16 %v717
    %v807 = vunpack.c.l.b16 %v718
    %v808 = vunpack.c.h.b16 %v718
    %v809 = vunpack.c.l.b16 %v719
    %v810 = vunpack.c.h.b16 %v719
    %v811 = vunpack.c.l.b16 %v720
    %v812 = vunpack.c.h.b16 %v720
    %v813 = vunpack.c.l.b16 %v721
    %v814 = vunpack.c.h.b16 %v721
    %v815 = vunpack.c.l.b16 %v722
    %v816 = vunpack.c.h.b16 %v722
    %v817 = vunpack.c.l.b16 %v723
    %v818 = vunpack.c.h.b16 %v723
    %v819 = vunpack.c.l.b16 %v724
    %v820 = vunpack.c.h.b16 %v724
    %v821 = vpack.c.b16 %v761, %v757
    %v822 = vpack.c.b16 %v762, %v758
    %v823 = vpack.c.b16 %v763, %v759
    %v824 = vpack.c.b16 %v764, %v760
    %v825 = vpack.c.b16 %v769, %v765
    %v826 = vpack.c.b16 %v770, %v766
    %v827 = vpack.c.b16 %v771, %v767
    %v828 = vpack.c.b16 %v772, %v768
    %v829 = vpack.c.b16 %v777, %v773
    %v830 = vpack.c.b16 %v778, %v774
    %v831 = vpack.c.b16 %v779, %v775
    %v832 = vpack.c.b16 %v780, %v776
    %v833 = vpack.c.b16 %v785, %v781
    %v834 = vpack.c.b16 %v786, %v782
    %v835 = vpack.c.b16 %v787, %v783
    %v836 = vpack.c.b16 %v788, %v784
    %v837 = vpack.c.b16 %v793, %v789
    %v838 = vpack.c.b16 %v794, %v790
    %v839 = vpack.c.b16 %v795, %v791
    %v840 = vpack.c.b16 %v796, %v792
    %v841 = vpack.c.b16 %v801, %v797
    %v842 = vpack.c.b16 %v802, %v798
    %v843 = vpack.c.b16 %v803, %v799
    %v844 = vpack.c.b16 %v804, %v800
    %v845 = vpack.c.b16 %v809, %v805
    %v846 = vpack.c.b16 %v810, %v806
    %v847 = vpack.c.b16 %v811, %v807
    %v848 = vpack.c.b16 %v812, %v808
    %v849 = vpack.c.b16 %v817, %v813
    %v850 = vpack.c.b16 %v818, %v814
    %v851 = vpack.c.b16 %v819, %v815
    %v852 = vpack.c.b16 %v820, %v816
    %885 = vmatprep.subr.bf16.mxu0 %v822
    %886 = vmatpush1.bf16.msra.mxu0 %v821
    %887 = vmatprep.subr.bf16.mxu0 %v826
    %888 = vmatpush1.bf16.msra.mxu0 %v825
    %889 = vmatprep.subr.bf16.mxu0 %v830
    %890 = vmatpush1.bf16.msra.mxu0 %v829
    %891 = vmatprep.subr.bf16.mxu0 %v834
    %892 = vmatpush1.bf16.msra.mxu0 %v833
    %893 = vmatprep.subr.bf16.mxu0 %v838
    %894 = vmatpush1.bf16.msra.mxu0 %v837
    %895 = vmatprep.subr.bf16.mxu0 %v842
    %896 = vmatpush1.bf16.msra.mxu0 %v841
    %897 = vmatprep.subr.bf16.mxu0 %v846
    %898 = vmatpush1.bf16.msra.mxu0 %v845
    %899 = vmatprep.subr.bf16.mxu0 %v850
    %900 = vmatpush1.bf16.msra.mxu0 %v849
    %901 = vmatprep.subr.bf16.mxu0 0
    %902 = vmatpush1.bf16.msra.mxu0 0
    %903 = vmatprep.subr.bf16.mxu0 0
    %904 = vmatpush1.bf16.msra.mxu0 0
    %905 = vmatprep.subr.bf16.mxu0 0
    %906 = vmatpush1.bf16.msra.mxu0 0
    %907 = vmatprep.subr.bf16.mxu0 0
    %908 = vmatpush1.bf16.msra.mxu0 0
    %909 = vmatprep.subr.bf16.mxu0 0
    %910 = vmatpush1.bf16.msra.mxu0 0
    %911 = vmatprep.subr.bf16.mxu0 0
    %912 = vmatpush1.bf16.msra.mxu0 0
    %913 = vmatprep.subr.bf16.mxu0 0
    %914 = vmatpush1.bf16.msra.mxu0 0
    %915 = vmatprep.subr.bf16.mxu0 0
    %916 = vmatpush1.bf16.msra.mxu0 0
    %917 = vmatprep.mubr.bf16.mxu0 0
    %918 = vmatmul.mubr.bf16.gmra.mrb[0].mxu0 %v692
    %v919 = vpop.f32.mrb[0].mxu0
    %v920 = vadd.f32 0.0, %v919
    %v921 = vpop.f32.mrb[0].mxu0
    %v922 = vadd.f32 0.0, %v921
    %v923 = vpop.f32.mrb[0].mxu0
    %v924 = vpop.f32.mrb[0].mxu0
    %925 = vdwg.mxu0
    %926 = vmatprep.subr.bf16.mxu0 %v824
    %927 = vmatpush1.bf16.msra.mxu0 %v823
    %928 = vmatprep.subr.bf16.mxu0 %v828
    %929 = vmatpush1.bf16.msra.mxu0 %v827
    %930 = vmatprep.subr.bf16.mxu0 %v832
    %931 = vmatpush1.bf16.msra.mxu0 %v831
    %932 = vmatprep.subr.bf16.mxu0 %v836
    %933 = vmatpush1.bf16.msra.mxu0 %v835
    %934 = vmatprep.subr.bf16.mxu0 %v840
    %935 = vmatpush1.bf16.msra.mxu0 %v839
    %936 = vmatprep.subr.bf16.mxu0 %v844
    %937 = vmatpush1.bf16.msra.mxu0 %v843
    %938 = vmatprep.subr.bf16.mxu0 %v848
    %939 = vmatpush1.bf16.msra.mxu0 %v847
    %940 = vmatprep.subr.bf16.mxu0 %v852
    %941 = vmatpush1.bf16.msra.mxu0 %v851
    %942 = vmatprep.subr.bf16.mxu0 0
    %943 = vmatpush1.bf16.msra.mxu0 0
    %944 = vmatprep.subr.bf16.mxu0 0
    %945 = vmatpush1.bf16.msra.mxu0 0
    %946 = vmatprep.subr.bf16.mxu0 0
    %947 = vmatpush1.bf16.msra.mxu0 0
    %948 = vmatprep.subr.bf16.mxu0 0
    %949 = vmatpush1.bf16.msra.mxu0 0
    %950 = vmatprep.subr.bf16.mxu0 0
    %951 = vmatpush1.bf16.msra.mxu0 0
    %952 = vmatprep.subr.bf16.mxu0 0
    %953 = vmatpush1.bf16.msra.mxu0 0
    %954 = vmatprep.subr.bf16.mxu0 0
    %955 = vmatpush1.bf16.msra.mxu0 0
    %956 = vmatprep.subr.bf16.mxu0 0
    %957 = vmatpush1.bf16.msra.mxu0 0
    %958 = vmatprep.mubr.bf16.mxu0 0
    %959 = vmatmul.mubr.bf16.gmra.mrb[0].mxu0 %v692
    %v960 = vpop.f32.mrb[0].mxu0
    %v961 = vadd.f32 0.0, %v960
    %v962 = vpop.f32.mrb[0].mxu0
    %v963 = vadd.f32 0.0, %v962
    %v964 = vpop.f32.mrb[0].mxu0
    %v965 = vpop.f32.mrb[0].mxu0
    %966 = vdwg.mxu0
    %v967 = vadd.f32 %v688, %v920
    %v968 = vadd.f32 %v689, %v922
    %v969 = vadd.f32 %v690, %v961
    %v970 = vadd.f32 %v691, %v963
    %v971 = vxor.u32 %v967, 2147483648
    %v972 = vmul.f32 %v971, 1.442695
    %v973 = vpow.pop %v972
    %v974 = vadd.f32 %v973, 1.0
    %v975 = vrcp.pop %v974
    %v976 = vmul.f32 1.0, %v975
    %v977 = vxor.u32 %v968, 2147483648
    %v978 = vmul.f32 %v977, 1.442695
    %v979 = vpow.pop %v978
    %v980 = vadd.f32 %v979, 1.0
    %v981 = vrcp.pop %v980
    %v982 = vmul.f32 1.0, %v981
    %v983 = vtanh.pop %v969
    %v984 = vxor.u32 %v970, 2147483648
    %v985 = vmul.f32 %v984, 1.442695
    %v986 = vpow.pop %v985
    %v987 = vadd.f32 %v986, 1.0
    %v988 = vrcp.pop %v987
    %v989 = vmul.f32 1.0, %v988
    %v990 = vmul.f32 %v982, %v677
    %v991 = vmul.f32 %v976, %v983
    %v992 = vadd.f32 %v990, %v991
    %v993 = vtanh.pop %v992
    %v994 = vmul.f32 %v989, %v993
    %s995 = scalar_lea.vmem [#allocation2], 16
    %v996 = vld [vmem:[%s995] sm:$0xff]
    %v997 = vld [vmem:[%s995 + $0x8] sm:$0xff]
    %v998 = vunpack.c.l.bf16 %v996
    %v999 = vunpack.c.h.bf16 %v996
    %v1000 = vunpack.c.l.bf16 %v997
    %v1001 = vunpack.c.h.bf16 %v997
    %v1002 = vadd.f32 %v998, %v637
    %v1003 = vadd.f32 %v999, %v641
    %v1004 = vadd.f32 %v1000, %v645
    %v1005 = vadd.f32 %v1001, %v649
    %v1006 = vpack.c.bf16 %v994, %v994
    %1007 = vmatprep.subr.bf16.mxu0 %v822
    %1008 = vmatpush1.bf16.msra.mxu0 %v821
    %1009 = vmatprep.subr.bf16.mxu0 %v826
    %1010 = vmatpush1.bf16.msra.mxu0 %v825
    %1011 = vmatprep.subr.bf16.mxu0 %v830
    %1012 = vmatpush1.bf16.msra.mxu0 %v829
    %1013 = vmatprep.subr.bf16.mxu0 %v834
    %1014 = vmatpush1.bf16.msra.mxu0 %v833
    %1015 = vmatprep.subr.bf16.mxu0 %v838
    %1016 = vmatpush1.bf16.msra.mxu0 %v837
    %1017 = vmatprep.subr.bf16.mxu0 %v842
    %1018 = vmatpush1.bf16.msra.mxu0 %v841
    %1019 = vmatprep.subr.bf16.mxu0 %v846
    %1020 = vmatpush1.bf16.msra.mxu0 %v845
    %1021 = vmatprep.subr.bf16.mxu0 %v850
    %1022 = vmatpush1.bf16.msra.mxu0 %v849
    %1023 = vmatprep.subr.bf16.mxu0 0
    %1024 = vmatpush1.bf16.msra.mxu0 0
    %1025 = vmatprep.subr.bf16.mxu0 0
    %1026 = vmatpush1.bf16.msra.mxu0 0
    %1027 = vmatprep.subr.bf16.mxu0 0
    %1028 = vmatpush1.bf16.msra.mxu0 0
    %1029 = vmatprep.subr.bf16.mxu0 0
    %1030 = vmatpush1.bf16.msra.mxu0 0
    %1031 = vmatprep.subr.bf16.mxu0 0
    %1032 = vmatpush1.bf16.msra.mxu0 0
    %1033 = vmatprep.subr.bf16.mxu0 0
    %1034 = vmatpush1.bf16.msra.mxu0 0
    %1035 = vmatprep.subr.bf16.mxu0 0
    %1036 = vmatpush1.bf16.msra.mxu0 0
    %1037 = vmatprep.subr.bf16.mxu0 0
    %1038 = vmatpush1.bf16.msra.mxu0 0
    %1039 = vmatprep.mubr.bf16.mxu0 0
    %1040 = vmatmul.mubr.bf16.gmra.mrb[0].mxu0 %v1006
    %v1041 = vpop.f32.mrb[0].mxu0
    %v1042 = vadd.f32 0.0, %v1041
    %v1043 = vpop.f32.mrb[0].mxu0
    %v1044 = vadd.f32 0.0, %v1043
    %v1045 = vpop.f32.mrb[0].mxu0
    %v1046 = vpop.f32.mrb[0].mxu0
    %1047 = vdwg.mxu0
    %1048 = vmatprep.subr.bf16.mxu0 %v824
    %1049 = vmatpush1.bf16.msra.mxu0 %v823
    %1050 = vmatprep.subr.bf16.mxu0 %v828
    %1051 = vmatpush1.bf16.msra.mxu0 %v827
    %1052 = vmatprep.subr.bf16.mxu0 %v832
    %1053 = vmatpush1.bf16.msra.mxu0 %v831
    %1054 = vmatprep.subr.bf16.mxu0 %v836
    %1055 = vmatpush1.bf16.msra.mxu0 %v835
    %1056 = vmatprep.subr.bf16.mxu0 %v840
    %1057 = vmatpush1.bf16.msra.mxu0 %v839
    %1058 = vmatprep.subr.bf16.mxu0 %v844
    %1059 = vmatpush1.bf16.msra.mxu0 %v843
    %1060 = vmatprep.subr.bf16.mxu0 %v848
    %1061 = vmatpush1.bf16.msra.mxu0 %v847
    %1062 = vmatprep.subr.bf16.mxu0 %v852
    %1063 = vmatpush1.bf16.msra.mxu0 %v851
    %1064 = vmatprep.subr.bf16.mxu0 0
    %1065 = vmatpush1.bf16.msra.mxu0 0
    %1066 = vmatprep.subr.bf16.mxu0 0
    %1067 = vmatpush1.bf16.msra.mxu0 0
    %1068 = vmatprep.subr.bf16.mxu0 0
    %1069 = vmatpush1.bf16.msra.mxu0 0
    %1070 = vmatprep.subr.bf16.mxu0 0
    %1071 = vmatpush1.bf16.msra.mxu0 0
    %1072 = vmatprep.subr.bf16.mxu0 0
    %1073 = vmatpush1.bf16.msra.mxu0 0
    %1074 = vmatprep.subr.bf16.mxu0 0
    %1075 = vmatpush1.bf16.msra.mxu0 0
    %1076 = vmatprep.subr.bf16.mxu0 0
    %1077 = vmatpush1.bf16.msra.mxu0 0
    %1078 = vmatprep.subr.bf16.mxu0 0
    %1079 = vmatpush1.bf16.msra.mxu0 0
    %1080 = vmatprep.mubr.bf16.mxu0 0
    %1081 = vmatmul.mubr.bf16.gmra.mrb[0].mxu0 %v1006
    %v1082 = vpop.f32.mrb[0].mxu0
    %v1083 = vadd.f32 0.0, %v1082
    %v1084 = vpop.f32.mrb[0].mxu0
    %v1085 = vadd.f32 0.0, %v1084
    %v1086 = vpop.f32.mrb[0].mxu0
    %v1087 = vpop.f32.mrb[0].mxu0
    %1088 = vdwg.mxu0
    %v1089 = vadd.f32 %v1002, %v1042
    %v1090 = vadd.f32 %v1003, %v1044
    %v1091 = vadd.f32 %v1004, %v1083
    %v1092 = vadd.f32 %v1005, %v1085
    %v1093 = vxor.u32 %v1089, 2147483648
    %v1094 = vmul.f32 %v1093, 1.442695
    %v1095 = vpow.pop %v1094
    %v1096 = vadd.f32 %v1095, 1.0
    %v1097 = vrcp.pop %v1096
    %v1098 = vmul.f32 1.0, %v1097
    %v1099 = vxor.u32 %v1090, 2147483648
    %v1100 = vmul.f32 %v1099, 1.442695
    %v1101 = vpow.pop %v1100
    %v1102 = vadd.f32 %v1101, 1.0
    %v1103 = vrcp.pop %v1102
    %v1104 = vmul.f32 1.0, %v1103
    %v1105 = vtanh.pop %v1091
    %v1106 = vxor.u32 %v1092, 2147483648
    %v1107 = vmul.f32 %v1106, 1.442695
    %v1108 = vpow.pop %v1107
    %v1109 = vadd.f32 %v1108, 1.0
    %v1110 = vrcp.pop %v1109
    %v1111 = vmul.f32 1.0, %v1110
    %v1112 = vmul.f32 %v1104, %v992
    %v1113 = vmul.f32 %v1098, %v1105
    %v1114 = vadd.f32 %v1112, %v1113
    %v1115 = vtanh.pop %v1114
    %v1116 = vmul.f32 %v1111, %v1115
    %v1117 = vld [vmem:[#allocation11] sm:$0xff]
    %v1118 = vld [vmem:[#allocation11 + $0x8] sm:$0xff]
    %v1119 = vld [vmem:[#allocation11 + $0x10] sm:$0xff]
    %v1120 = vld [vmem:[#allocation11 + $0x18] sm:$0xff]
    %v1121 = vld [vmem:[#allocation11 + $0x20] sm:$0xff]
    %v1122 = vld [vmem:[#allocation11 + $0x28] sm:$0xff]
    %v1123 = vld [vmem:[#allocation11 + $0x30] sm:$0xff]
    %v1124 = vld [vmem:[#allocation11 + $0x38] sm:$0xff]
    %v1125 = vld [vmem:[#allocation11 + $0x40] sm:$0xff]
    %v1126 = vld [vmem:[#allocation11 + $0x48] sm:$0xff]
    %v1127 = vld [vmem:[#allocation11 + $0x50] sm:$0xff]
    %v1128 = vld [vmem:[#allocation11 + $0x58] sm:$0xff]
    %v1129 = vld [vmem:[#allocation11 + $0x60] sm:$0xff]
    %v1130 = vld [vmem:[#allocation11 + $0x68] sm:$0xff]
    %v1131 = vld [vmem:[#allocation11 + $0x70] sm:$0xff]
    %v1132 = vld [vmem:[#allocation11 + $0x78] sm:$0xff]
    %v1133 = vld [vmem:[#allocation11 + $0x80] sm:$0xff]
    %v1134 = vld [vmem:[#allocation11 + $0x88] sm:$0xff]
    %v1135 = vld [vmem:[#allocation11 + $0x90] sm:$0xff]
    %v1136 = vld [vmem:[#allocation11 + $0x98] sm:$0xff]
    %v1137 = vld [vmem:[#allocation11 + $0xa0] sm:$0xff]
    %v1138 = vld [vmem:[#allocation11 + $0xa8] sm:$0xff]
    %v1139 = vld [vmem:[#allocation11 + $0xb0] sm:$0xff]
    %v1140 = vld [vmem:[#allocation11 + $0xb8] sm:$0xff]
    %v1141 = vld [vmem:[#allocation11 + $0xc0] sm:$0xff]
    %v1142 = vld [vmem:[#allocation11 + $0xc8] sm:$0xff]
    %v1143 = vld [vmem:[#allocation11 + $0xd0] sm:$0xff]
    %v1144 = vld [vmem:[#allocation11 + $0xd8] sm:$0xff]
    %v1145 = vld [vmem:[#allocation11 + $0xe0] sm:$0xff]
    %v1146 = vld [vmem:[#allocation11 + $0xe8] sm:$0xff]
    %v1147 = vld [vmem:[#allocation11 + $0xf0] sm:$0xff]
    %v1148 = vld [vmem:[#allocation11 + $0xf8] sm:$0xff]
    %v1181 = vunpack.c.l.b16 %v1117
    %v1182 = vunpack.c.h.b16 %v1117
    %v1183 = vunpack.c.l.b16 %v1118
    %v1184 = vunpack.c.h.b16 %v1118
    %v1185 = vunpack.c.l.b16 %v1119
    %v1186 = vunpack.c.h.b16 %v1119
    %v1187 = vunpack.c.l.b16 %v1120
    %v1188 = vunpack.c.h.b16 %v1120
    %v1189 = vunpack.c.l.b16 %v1121
    %v1190 = vunpack.c.h.b16 %v1121
    %v1191 = vunpack.c.l.b16 %v1122
    %v1192 = vunpack.c.h.b16 %v1122
    %v1193 = vunpack.c.l.b16 %v1123
    %v1194 = vunpack.c.h.b16 %v1123
    %v1195 = vunpack.c.l.b16 %v1124
    %v1196 = vunpack.c.h.b16 %v1124
    %v1197 = vunpack.c.l.b16 %v1125
    %v1198 = vunpack.c.h.b16 %v1125
    %v1199 = vunpack.c.l.b16 %v1126
    %v1200 = vunpack.c.h.b16 %v1126
    %v1201 = vunpack.c.l.b16 %v1127
    %v1202 = vunpack.c.h.b16 %v1127
    %v1203 = vunpack.c.l.b16 %v1128
    %v1204 = vunpack.c.h.b16 %v1128
    %v1205 = vunpack.c.l.b16 %v1129
    %v1206 = vunpack.c.h.b16 %v1129
    %v1207 = vunpack.c.l.b16 %v1130
    %v1208 = vunpack.c.h.b16 %v1130
    %v1209 = vunpack.c.l.b16 %v1131
    %v1210 = vunpack.c.h.b16 %v1131
    %v1211 = vunpack.c.l.b16 %v1132
    %v1212 = vunpack.c.h.b16 %v1132
    %v1213 = vunpack.c.l.b16 %v1133
    %v1214 = vunpack.c.h.b16 %v1133
    %v1215 = vunpack.c.l.b16 %v1134
    %v1216 = vunpack.c.h.b16 %v1134
    %v1217 = vunpack.c.l.b16 %v1135
    %v1218 = vunpack.c.h.b16 %v1135
    %v1219 = vunpack.c.l.b16 %v1136
    %v1220 = vunpack.c.h.b16 %v1136
    %v1221 = vunpack.c.l.b16 %v1137
    %v1222 = vunpack.c.h.b16 %v1137
    %v1223 = vunpack.c.l.b16 %v1138
    %v1224 = vunpack.c.h.b16 %v1138
    %v1225 = vunpack.c.l.b16 %v1139
    %v1226 = vunpack.c.h.b16 %v1139
    %v1227 = vunpack.c.l.b16 %v1140
    %v1228 = vunpack.c.h.b16 %v1140
    %v1229 = vunpack.c.l.b16 %v1141
    %v1230 = vunpack.c.h.b16 %v1141
    %v1231 = vunpack.c.l.b16 %v1142
    %v1232 = vunpack.c.h.b16 %v1142
    %v1233 = vunpack.c.l.b16 %v1143
    %v1234 = vunpack.c.h.b16 %v1143
    %v1235 = vunpack.c.l.b16 %v1144
    %v1236 = vunpack.c.h.b16 %v1144
    %v1237 = vunpack.c.l.b16 %v1145
    %v1238 = vunpack.c.h.b16 %v1145
    %v1239 = vunpack.c.l.b16 %v1146
    %v1240 = vunpack.c.h.b16 %v1146
    %v1241 = vunpack.c.l.b16 %v1147
    %v1242 = vunpack.c.h.b16 %v1147
    %v1243 = vunpack.c.l.b16 %v1148
    %v1244 = vunpack.c.h.b16 %v1148
    %v1245 = vpack.c.b16 %v1185, %v1181
    %v1246 = vpack.c.b16 %v1186, %v1182
    %v1247 = vpack.c.b16 %v1187, %v1183
    %v1248 = vpack.c.b16 %v1188, %v1184
    %v1249 = vpack.c.b16 %v1193, %v1189
    %v1250 = vpack.c.b16 %v1194, %v1190
    %v1251 = vpack.c.b16 %v1195, %v1191
    %v1252 = vpack.c.b16 %v1196, %v1192
    %v1253 = vpack.c.b16 %v1201, %v1197
    %v1254 = vpack.c.b16 %v1202, %v1198
    %v1255 = vpack.c.b16 %v1203, %v1199
    %v1256 = vpack.c.b16 %v1204, %v1200
    %v1257 = vpack.c.b16 %v1209, %v1205
    %v1258 = vpack.c.b16 %v1210, %v1206
    %v1259 = vpack.c.b16 %v1211, %v1207
    %v1260 = vpack.c.b16 %v1212, %v1208
    %v1261 = vpack.c.b16 %v1217, %v1213
    %v1262 = vpack.c.b16 %v1218, %v1214
    %v1263 = vpack.c.b16 %v1219, %v1215
    %v1264 = vpack.c.b16 %v1220, %v1216
    %v1265 = vpack.c.b16 %v1225, %v1221
    %v1266 = vpack.c.b16 %v1226, %v1222
    %v1267 = vpack.c.b16 %v1227, %v1223
    %v1268 = vpack.c.b16 %v1228, %v1224
    %v1269 = vpack.c.b16 %v1233, %v1229
    %v1270 = vpack.c.b16 %v1234, %v1230
    %v1271 = vpack.c.b16 %v1235, %v1231
    %v1272 = vpack.c.b16 %v1236, %v1232
    %v1273 = vpack.c.b16 %v1241, %v1237
    %v1274 = vpack.c.b16 %v1242, %v1238
    %v1275 = vpack.c.b16 %v1243, %v1239
    %v1276 = vpack.c.b16 %v1244, %v1240
    %1309 = vmatprep.subr.bf16.mxu0 %v1246
    %1310 = vmatpush1.bf16.msra.mxu0 %v1245
    %1311 = vmatprep.subr.bf16.mxu0 %v1250
    %1312 = vmatpush1.bf16.msra.mxu0 %v1249
    %1313 = vmatprep.subr.bf16.mxu0 %v1254
    %1314 = vmatpush1.bf16.msra.mxu0 %v1253
    %1315 = vmatprep.subr.bf16.mxu0 %v1258
    %1316 = vmatpush1.bf16.msra.mxu0 %v1257
    %1317 = vmatprep.subr.bf16.mxu0 %v1262
    %1318 = vmatpush1.bf16.msra.mxu0 %v1261
    %1319 = vmatprep.subr.bf16.mxu0 %v1266
    %1320 = vmatpush1.bf16.msra.mxu0 %v1265
    %1321 = vmatprep.subr.bf16.mxu0 %v1270
    %1322 = vmatpush1.bf16.msra.mxu0 %v1269
    %1323 = vmatprep.subr.bf16.mxu0 %v1274
    %1324 = vmatpush1.bf16.msra.mxu0 %v1273
    %1325 = vmatprep.subr.bf16.mxu0 0
    %1326 = vmatpush1.bf16.msra.mxu0 0
    %1327 = vmatprep.subr.bf16.mxu0 0
    %1328 = vmatpush1.bf16.msra.mxu0 0
    %1329 = vmatprep.subr.bf16.mxu0 0
    %1330 = vmatpush1.bf16.msra.mxu0 0
    %1331 = vmatprep.subr.bf16.mxu0 0
    %1332 = vmatpush1.bf16.msra.mxu0 0
    %1333 = vmatprep.subr.bf16.mxu0 0
    %1334 = vmatpush1.bf16.msra.mxu0 0
    %1335 = vmatprep.subr.bf16.mxu0 0
    %1336 = vmatpush1.bf16.msra.mxu0 0
    %1337 = vmatprep.subr.bf16.mxu0 0
    %1338 = vmatpush1.bf16.msra.mxu0 0
    %1339 = vmatprep.subr.bf16.mxu0 0
    %1340 = vmatpush1.bf16.msra.mxu0 0
    %1341 = vmatprep.mubr.bf16.mxu0 0
    %1342 = vmatmul.mubr.bf16.gmra.mrb[0].mxu0 %v1006
    %v1343 = vpop.f32.mrb[0].mxu0
    %v1344 = vadd.f32 %v659, %v1343
    %v1345 = vpop.f32.mrb[0].mxu0
    %v1346 = vadd.f32 %v663, %v1345
    %v1347 = vpop.f32.mrb[0].mxu0
    %v1348 = vpop.f32.mrb[0].mxu0
    %1349 = vdwg.mxu0
    %1350 = vmatprep.subr.bf16.mxu0 %v1248
    %1351 = vmatpush1.bf16.msra.mxu0 %v1247
    %1352 = vmatprep.subr.bf16.mxu0 %v1252
    %1353 = vmatpush1.bf16.msra.mxu0 %v1251
    %1354 = vmatprep.subr.bf16.mxu0 %v1256
    %1355 = vmatpush1.bf16.msra.mxu0 %v1255
    %1356 = vmatprep.subr.bf16.mxu0 %v1260
    %1357 = vmatpush1.bf16.msra.mxu0 %v1259
    %1358 = vmatprep.subr.bf16.mxu0 %v1264
    %1359 = vmatpush1.bf16.msra.mxu0 %v1263
    %1360 = vmatprep.subr.bf16.mxu0 %v1268
    %1361 = vmatpush1.bf16.msra.mxu0 %v1267
    %1362 = vmatprep.subr.bf16.mxu0 %v1272
    %1363 = vmatpush1.bf16.msra.mxu0 %v1271
    %1364 = vmatprep.subr.bf16.mxu0 %v1276
    %1365 = vmatpush1.bf16.msra.mxu0 %v1275
    %1366 = vmatprep.subr.bf16.mxu0 0
    %1367 = vmatpush1.bf16.msra.mxu0 0
    %1368 = vmatprep.subr.bf16.mxu0 0
    %1369 = vmatpush1.bf16.msra.mxu0 0
    %1370 = vmatprep.subr.bf16.mxu0 0
    %1371 = vmatpush1.bf16.msra.mxu0 0
    %1372 = vmatprep.subr.bf16.mxu0 0
    %1373 = vmatpush1.bf16.msra.mxu0 0
    %1374 = vmatprep.subr.bf16.mxu0 0
    %1375 = vmatpush1.bf16.msra.mxu0 0
    %1376 = vmatprep.subr.bf16.mxu0 0
    %1377 = vmatpush1.bf16.msra.mxu0 0
    %1378 = vmatprep.subr.bf16.mxu0 0
    %1379 = vmatpush1.bf16.msra.mxu0 0
    %1380 = vmatprep.subr.bf16.mxu0 0
    %1381 = vmatpush1.bf16.msra.mxu0 0
    %1382 = vmatprep.mubr.bf16.mxu0 0
    %1383 = vmatmul.mubr.bf16.gmra.mrb[0].mxu0 %v1006
    %v1384 = vpop.f32.mrb[0].mxu0
    %v1385 = vadd.f32 %v667, %v1384
    %v1386 = vpop.f32.mrb[0].mxu0
    %v1387 = vadd.f32 %v671, %v1386
    %v1388 = vpop.f32.mrb[0].mxu0
    %v1389 = vpop.f32.mrb[0].mxu0
    %1390 = vdwg.mxu0
    %v1391 = vpack.c.bf16 %v679, %v679
    %v1392 = vld [vmem:[#allocation10] sm:$0xff]
    %v1393 = vld [vmem:[#allocation10 + $0x8] sm:$0xff]
    %v1394 = vld [vmem:[#allocation10 + $0x10] sm:$0xff]
    %v1395 = vld [vmem:[#allocation10 + $0x18] sm:$0xff]
    %v1396 = vld [vmem:[#allocation10 + $0x20] sm:$0xff]
    %v1397 = vld [vmem:[#allocation10 + $0x28] sm:$0xff]
    %v1398 = vld [vmem:[#allocation10 + $0x30] sm:$0xff]
    %v1399 = vld [vmem:[#allocation10 + $0x38] sm:$0xff]
    %v1400 = vld [vmem:[#allocation10 + $0x40] sm:$0xff]
    %v1401 = vld [vmem:[#allocation10 + $0x48] sm:$0xff]
    %v1402 = vld [vmem:[#allocation10 + $0x50] sm:$0xff]
    %v1403 = vld [vmem:[#allocation10 + $0x58] sm:$0xff]
    %v1404 = vld [vmem:[#allocation10 + $0x60] sm:$0xff]
    %v1405 = vld [vmem:[#allocation10 + $0x68] sm:$0xff]
    %v1406 = vld [vmem:[#allocation10 + $0x70] sm:$0xff]
    %v1407 = vld [vmem:[#allocation10 + $0x78] sm:$0xff]
    %v1408 = vld [vmem:[#allocation10 + $0x80] sm:$0xff]
    %v1409 = vld [vmem:[#allocation10 + $0x88] sm:$0xff]
    %v1410 = vld [vmem:[#allocation10 + $0x90] sm:$0xff]
    %v1411 = vld [vmem:[#allocation10 + $0x98] sm:$0xff]
    %v1412 = vld [vmem:[#allocation10 + $0xa0] sm:$0xff]
    %v1413 = vld [vmem:[#allocation10 + $0xa8] sm:$0xff]
    %v1414 = vld [vmem:[#allocation10 + $0xb0] sm:$0xff]
    %v1415 = vld [vmem:[#allocation10 + $0xb8] sm:$0xff]
    %v1416 = vld [vmem:[#allocation10 + $0xc0] sm:$0xff]
    %v1417 = vld [vmem:[#allocation10 + $0xc8] sm:$0xff]
    %v1418 = vld [vmem:[#allocation10 + $0xd0] sm:$0xff]
    %v1419 = vld [vmem:[#allocation10 + $0xd8] sm:$0xff]
    %v1420 = vld [vmem:[#allocation10 + $0xe0] sm:$0xff]
    %v1421 = vld [vmem:[#allocation10 + $0xe8] sm:$0xff]
    %v1422 = vld [vmem:[#allocation10 + $0xf0] sm:$0xff]
    %v1423 = vld [vmem:[#allocation10 + $0xf8] sm:$0xff]
    %v1456 = vunpack.c.l.b16 %v1392
    %v1457 = vunpack.c.h.b16 %v1392
    %v1458 = vunpack.c.l.b16 %v1393
    %v1459 = vunpack.c.h.b16 %v1393
    %v1460 = vunpack.c.l.b16 %v1394
    %v1461 = vunpack.c.h.b16 %v1394
    %v1462 = vunpack.c.l.b16 %v1395
    %v1463 = vunpack.c.h.b16 %v1395
    %v1464 = vunpack.c.l.b16 %v1396
    %v1465 = vunpack.c.h.b16 %v1396
    %v1466 = vunpack.c.l.b16 %v1397
    %v1467 = vunpack.c.h.b16 %v1397
    %v1468 = vunpack.c.l.b16 %v1398
    %v1469 = vunpack.c.h.b16 %v1398
    %v1470 = vunpack.c.l.b16 %v1399
    %v1471 = vunpack.c.h.b16 %v1399
    %v1472 = vunpack.c.l.b16 %v1400
    %v1473 = vunpack.c.h.b16 %v1400
    %v1474 = vunpack.c.l.b16 %v1401
    %v1475 = vunpack.c.h.b16 %v1401
    %v1476 = vunpack.c.l.b16 %v1402
    %v1477 = vunpack.c.h.b16 %v1402
    %v1478 = vunpack.c.l.b16 %v1403
    %v1479 = vunpack.c.h.b16 %v1403
    %v1480 = vunpack.c.l.b16 %v1404
    %v1481 = vunpack.c.h.b16 %v1404
    %v1482 = vunpack.c.l.b16 %v1405
    %v1483 = vunpack.c.h.b16 %v1405
    %v1484 = vunpack.c.l.b16 %v1406
    %v1485 = vunpack.c.h.b16 %v1406
    %v1486 = vunpack.c.l.b16 %v1407
    %v1487 = vunpack.c.h.b16 %v1407
    %v1488 = vunpack.c.l.b16 %v1408
    %v1489 = vunpack.c.h.b16 %v1408
    %v1490 = vunpack.c.l.b16 %v1409
    %v1491 = vunpack.c.h.b16 %v1409
    %v1492 = vunpack.c.l.b16 %v1410
    %v1493 = vunpack.c.h.b16 %v1410
    %v1494 = vunpack.c.l.b16 %v1411
    %v1495 = vunpack.c.h.b16 %v1411
    %v1496 = vunpack.c.l.b16 %v1412
    %v1497 = vunpack.c.h.b16 %v1412
    %v1498 = vunpack.c.l.b16 %v1413
    %v1499 = vunpack.c.h.b16 %v1413
    %v1500 = vunpack.c.l.b16 %v1414
    %v1501 = vunpack.c.h.b16 %v1414
    %v1502 = vunpack.c.l.b16 %v1415
    %v1503 = vunpack.c.h.b16 %v1415
    %v1504 = vunpack.c.l.b16 %v1416
    %v1505 = vunpack.c.h.b16 %v1416
    %v1506 = vunpack.c.l.b16 %v1417
    %v1507 = vunpack.c.h.b16 %v1417
    %v1508 = vunpack.c.l.b16 %v1418
    %v1509 = vunpack.c.h.b16 %v1418
    %v1510 = vunpack.c.l.b16 %v1419
    %v1511 = vunpack.c.h.b16 %v1419
    %v1512 = vunpack.c.l.b16 %v1420
    %v1513 = vunpack.c.h.b16 %v1420
    %v1514 = vunpack.c.l.b16 %v1421
    %v1515 = vunpack.c.h.b16 %v1421
    %v1516 = vunpack.c.l.b16 %v1422
    %v1517 = vunpack.c.h.b16 %v1422
    %v1518 = vunpack.c.l.b16 %v1423
    %v1519 = vunpack.c.h.b16 %v1423
    %v1520 = vpack.c.b16 %v1460, %v1456
    %v1521 = vpack.c.b16 %v1461, %v1457
    %v1522 = vpack.c.b16 %v1462, %v1458
    %v1523 = vpack.c.b16 %v1463, %v1459
    %v1524 = vpack.c.b16 %v1468, %v1464
    %v1525 = vpack.c.b16 %v1469, %v1465
    %v1526 = vpack.c.b16 %v1470, %v1466
    %v1527 = vpack.c.b16 %v1471, %v1467
    %v1528 = vpack.c.b16 %v1476, %v1472
    %v1529 = vpack.c.b16 %v1477, %v1473
    %v1530 = vpack.c.b16 %v1478, %v1474
    %v1531 = vpack.c.b16 %v1479, %v1475
    %v1532 = vpack.c.b16 %v1484, %v1480
    %v1533 = vpack.c.b16 %v1485, %v1481
    %v1534 = vpack.c.b16 %v1486, %v1482
    %v1535 = vpack.c.b16 %v1487, %v1483
    %v1536 = vpack.c.b16 %v1492, %v1488
    %v1537 = vpack.c.b16 %v1493, %v1489
    %v1538 = vpack.c.b16 %v1494, %v1490
    %v1539 = vpack.c.b16 %v1495, %v1491
    %v1540 = vpack.c.b16 %v1500, %v1496
    %v1541 = vpack.c.b16 %v1501, %v1497
    %v1542 = vpack.c.b16 %v1502, %v1498
    %v1543 = vpack.c.b16 %v1503, %v1499
    %v1544 = vpack.c.b16 %v1508, %v1504
    %v1545 = vpack.c.b16 %v1509, %v1505
    %v1546 = vpack.c.b16 %v1510, %v1506
    %v1547 = vpack.c.b16 %v1511, %v1507
    %v1548 = vpack.c.b16 %v1516, %v1512
    %v1549 = vpack.c.b16 %v1517, %v1513
    %v1550 = vpack.c.b16 %v1518, %v1514
    %v1551 = vpack.c.b16 %v1519, %v1515
    %1584 = vmatprep.subr.bf16.mxu0 %v1521
    %1585 = vmatpush1.bf16.msra.mxu0 %v1520
    %1586 = vmatprep.subr.bf16.mxu0 %v1525
    %1587 = vmatpush1.bf16.msra.mxu0 %v1524
    %1588 = vmatprep.subr.bf16.mxu0 %v1529
    %1589 = vmatpush1.bf16.msra.mxu0 %v1528
    %1590 = vmatprep.subr.bf16.mxu0 %v1533
    %1591 = vmatpush1.bf16.msra.mxu0 %v1532
    %1592 = vmatprep.subr.bf16.mxu0 %v1537
    %1593 = vmatpush1.bf16.msra.mxu0 %v1536
    %1594 = vmatprep.subr.bf16.mxu0 %v1541
    %1595 = vmatpush1.bf16.msra.mxu0 %v1540
    %1596 = vmatprep.subr.bf16.mxu0 %v1545
    %1597 = vmatpush1.bf16.msra.mxu0 %v1544
    %1598 = vmatprep.subr.bf16.mxu0 %v1549
    %1599 = vmatpush1.bf16.msra.mxu0 %v1548
    %1600 = vmatprep.subr.bf16.mxu0 0
    %1601 = vmatpush1.bf16.msra.mxu0 0
    %1602 = vmatprep.subr.bf16.mxu0 0
    %1603 = vmatpush1.bf16.msra.mxu0 0
    %1604 = vmatprep.subr.bf16.mxu0 0
    %1605 = vmatpush1.bf16.msra.mxu0 0
    %1606 = vmatprep.subr.bf16.mxu0 0
    %1607 = vmatpush1.bf16.msra.mxu0 0
    %1608 = vmatprep.subr.bf16.mxu0 0
    %1609 = vmatpush1.bf16.msra.mxu0 0
    %1610 = vmatprep.subr.bf16.mxu0 0
    %1611 = vmatpush1.bf16.msra.mxu0 0
    %1612 = vmatprep.subr.bf16.mxu0 0
    %1613 = vmatpush1.bf16.msra.mxu0 0
    %1614 = vmatprep.subr.bf16.mxu0 0
    %1615 = vmatpush1.bf16.msra.mxu0 0
    %1616 = vmatprep.mubr.bf16.mxu0 0
    %1617 = vmatmul.mubr.bf16.gmra.mrb[0].mxu0 %v1391
    %v1618 = vpop.f32.mrb[0].mxu0
    %v1619 = vadd.f32 0.0, %v1618
    %v1620 = vpop.f32.mrb[0].mxu0
    %v1621 = vadd.f32 0.0, %v1620
    %v1622 = vpop.f32.mrb[0].mxu0
    %v1623 = vpop.f32.mrb[0].mxu0
    %1624 = vdwg.mxu0
    %1625 = vmatprep.subr.bf16.mxu0 %v1523
    %1626 = vmatpush1.bf16.msra.mxu0 %v1522
    %1627 = vmatprep.subr.bf16.mxu0 %v1527
    %1628 = vmatpush1.bf16.msra.mxu0 %v1526
    %1629 = vmatprep.subr.bf16.mxu0 %v1531
    %1630 = vmatpush1.bf16.msra.mxu0 %v1530
    %1631 = vmatprep.subr.bf16.mxu0 %v1535
    %1632 = vmatpush1.bf16.msra.mxu0 %v1534
    %1633 = vmatprep.subr.bf16.mxu0 %v1539
    %1634 = vmatpush1.bf16.msra.mxu0 %v1538
    %1635 = vmatprep.subr.bf16.mxu0 %v1543
    %1636 = vmatpush1.bf16.msra.mxu0 %v1542
    %1637 = vmatprep.subr.bf16.mxu0 %v1547
    %1638 = vmatpush1.bf16.msra.mxu0 %v1546
    %1639 = vmatprep.subr.bf16.mxu0 %v1551
    %1640 = vmatpush1.bf16.msra.mxu0 %v1550
    %1641 = vmatprep.subr.bf16.mxu0 0
    %1642 = vmatpush1.bf16.msra.mxu0 0
    %1643 = vmatprep.subr.bf16.mxu0 0
    %1644 = vmatpush1.bf16.msra.mxu0 0
    %1645 = vmatprep.subr.bf16.mxu0 0
    %1646 = vmatpush1.bf16.msra.mxu0 0
    %1647 = vmatprep.subr.bf16.mxu0 0
    %1648 = vmatpush1.bf16.msra.mxu0 0
    %1649 = vmatprep.subr.bf16.mxu0 0
    %1650 = vmatpush1.bf16.msra.mxu0 0
    %1651 = vmatprep.subr.bf16.mxu0 0
    %1652 = vmatpush1.bf16.msra.mxu0 0
    %1653 = vmatprep.subr.bf16.mxu0 0
    %1654 = vmatpush1.bf16.msra.mxu0 0
    %1655 = vmatprep.subr.bf16.mxu0 0
    %1656 = vmatpush1.bf16.msra.mxu0 0
    %1657 = vmatprep.mubr.bf16.mxu0 0
    %1658 = vmatmul.mubr.bf16.gmra.mrb[0].mxu0 %v1391
    %v1659 = vpop.f32.mrb[0].mxu0
    %v1660 = vadd.f32 0.0, %v1659
    %v1661 = vpop.f32.mrb[0].mxu0
    %v1662 = vadd.f32 0.0, %v1661
    %v1663 = vpop.f32.mrb[0].mxu0
    %v1664 = vpop.f32.mrb[0].mxu0
    %1665 = vdwg.mxu0
    %v1666 = vadd.f32 %v1344, %v1619
    %v1667 = vadd.f32 %v1346, %v1621
    %v1668 = vadd.f32 %v1385, %v1660
    %v1669 = vadd.f32 %v1387, %v1662
    %v1670 = vxor.u32 %v1666, 2147483648
    %v1671 = vmul.f32 %v1670, 1.442695
    %v1672 = vpow.pop %v1671
    %v1673 = vadd.f32 %v1672, 1.0
    %v1674 = vrcp.pop %v1673
    %v1675 = vmul.f32 1.0, %v1674
    %v1676 = vxor.u32 %v1667, 2147483648
    %v1677 = vmul.f32 %v1676, 1.442695
    %v1678 = vpow.pop %v1677
    %v1679 = vadd.f32 %v1678, 1.0
    %v1680 = vrcp.pop %v1679
    %v1681 = vmul.f32 1.0, %v1680
    %v1682 = vtanh.pop %v1668
    %v1683 = vxor.u32 %v1669, 2147483648
    %v1684 = vmul.f32 %v1683, 1.442695
    %v1685 = vpow.pop %v1684
    %v1686 = vadd.f32 %v1685, 1.0
    %v1687 = vrcp.pop %v1686
    %v1688 = vmul.f32 1.0, %v1687
    %v1689 = vmul.f32 %v1681, %v681
    %v1690 = vmul.f32 %v1675, %v1682
    %v1691 = vadd.f32 %v1689, %v1690
    %v1692 = vtanh.pop %v1691
    %v1693 = vmul.f32 %v1688, %v1692
    %v1694 = vpack.c.bf16 %v1693, %v1693
    %1695 = vst [vmem:[#allocation3] sm:$0xf] %v1694
    %s1696 = scalar_lea.vmem [#allocation2], 32
    %v1697 = vld [vmem:[%s1696] sm:$0xff]
    %v1698 = vld [vmem:[%s1696 + $0x8] sm:$0xff]
    %v1699 = vunpack.c.l.bf16 %v1697
    %v1700 = vunpack.c.h.bf16 %v1697
    %v1701 = vunpack.c.l.bf16 %v1698
    %v1702 = vunpack.c.h.bf16 %v1698
    %v1703 = vadd.f32 %v1699, %v637
    %v1704 = vadd.f32 %v1700, %v641
    %v1705 = vadd.f32 %v1701, %v645
    %v1706 = vadd.f32 %v1702, %v649
    %v1707 = vpack.c.bf16 %v1116, %v1116
    %v1708 = vld [vmem:[#allocation8] sm:$0xff]
    %v1709 = vld [vmem:[#allocation8 + $0x8] sm:$0xff]
    %v1710 = vld [vmem:[#allocation8 + $0x10] sm:$0xff]
    %v1711 = vld [vmem:[#allocation8 + $0x18] sm:$0xff]
    %v1712 = vld [vmem:[#allocation8 + $0x20] sm:$0xff]
    %v1713 = vld [vmem:[#allocation8 + $0x28] sm:$0xff]
    %v1714 = vld [vmem:[#allocation8 + $0x30] sm:$0xff]
    %v1715 = vld [vmem:[#allocation8 + $0x38] sm:$0xff]
    %v1716 = vld [vmem:[#allocation8 + $0x40] sm:$0xff]
    %v1717 = vld [vmem:[#allocation8 + $0x48] sm:$0xff]
    %v1718 = vld [vmem:[#allocation8 + $0x50] sm:$0xff]
    %v1719 = vld [vmem:[#allocation8 + $0x58] sm:$0xff]
    %v1720 = vld [vmem:[#allocation8 + $0x60] sm:$0xff]
    %v1721 = vld [vmem:[#allocation8 + $0x68] sm:$0xff]
    %v1722 = vld [vmem:[#allocation8 + $0x70] sm:$0xff]
    %v1723 = vld [vmem:[#allocation8 + $0x78] sm:$0xff]
    %v1724 = vld [vmem:[#allocation8 + $0x80] sm:$0xff]
    %v1725 = vld [vmem:[#allocation8 + $0x88] sm:$0xff]
    %v1726 = vld [vmem:[#allocation8 + $0x90] sm:$0xff]
    %v1727 = vld [vmem:[#allocation8 + $0x98] sm:$0xff]
    %v1728 = vld [vmem:[#allocation8 + $0xa0] sm:$0xff]
    %v1729 = vld [vmem:[#allocation8 + $0xa8] sm:$0xff]
    %v1730 = vld [vmem:[#allocation8 + $0xb0] sm:$0xff]
    %v1731 = vld [vmem:[#allocation8 + $0xb8] sm:$0xff]
    %v1732 = vld [vmem:[#allocation8 + $0xc0] sm:$0xff]
    %v1733 = vld [vmem:[#allocation8 + $0xc8] sm:$0xff]
    %v1734 = vld [vmem:[#allocation8 + $0xd0] sm:$0xff]
    %v1735 = vld [vmem:[#allocation8 + $0xd8] sm:$0xff]
    %v1736 = vld [vmem:[#allocation8 + $0xe0] sm:$0xff]
    %v1737 = vld [vmem:[#allocation8 + $0xe8] sm:$0xff]
    %v1738 = vld [vmem:[#allocation8 + $0xf0] sm:$0xff]
    %v1739 = vld [vmem:[#allocation8 + $0xf8] sm:$0xff]
    %v1772 = vunpack.c.l.b16 %v1708
    %v1773 = vunpack.c.h.b16 %v1708
    %v1774 = vunpack.c.l.b16 %v1709
    %v1775 = vunpack.c.h.b16 %v1709
    %v1776 = vunpack.c.l.b16 %v1710
    %v1777 = vunpack.c.h.b16 %v1710
    %v1778 = vunpack.c.l.b16 %v1711
    %v1779 = vunpack.c.h.b16 %v1711
    %v1780 = vunpack.c.l.b16 %v1712
    %v1781 = vunpack.c.h.b16 %v1712
    %v1782 = vunpack.c.l.b16 %v1713
    %v1783 = vunpack.c.h.b16 %v1713
    %v1784 = vunpack.c.l.b16 %v1714
    %v1785 = vunpack.c.h.b16 %v1714
    %v1786 = vunpack.c.l.b16 %v1715
    %v1787 = vunpack.c.h.b16 %v1715
    %v1788 = vunpack.c.l.b16 %v1716
    %v1789 = vunpack.c.h.b16 %v1716
    %v1790 = vunpack.c.l.b16 %v1717
    %v1791 = vunpack.c.h.b16 %v1717
    %v1792 = vunpack.c.l.b16 %v1718
    %v1793 = vunpack.c.h.b16 %v1718
    %v1794 = vunpack.c.l.b16 %v1719
    %v1795 = vunpack.c.h.b16 %v1719
    %v1796 = vunpack.c.l.b16 %v1720
    %v1797 = vunpack.c.h.b16 %v1720
    %v1798 = vunpack.c.l.b16 %v1721
    %v1799 = vunpack.c.h.b16 %v1721
    %v1800 = vunpack.c.l.b16 %v1722
    %v1801 = vunpack.c.h.b16 %v1722
    %v1802 = vunpack.c.l.b16 %v1723
    %v1803 = vunpack.c.h.b16 %v1723
    %v1804 = vunpack.c.l.b16 %v1724
    %v1805 = vunpack.c.h.b16 %v1724
    %v1806 = vunpack.c.l.b16 %v1725
    %v1807 = vunpack.c.h.b16 %v1725
    %v1808 = vunpack.c.l.b16 %v1726
    %v1809 = vunpack.c.h.b16 %v1726
    %v1810 = vunpack.c.l.b16 %v1727
    %v1811 = vunpack.c.h.b16 %v1727
    %v1812 = vunpack.c.l.b16 %v1728
    %v1813 = vunpack.c.h.b16 %v1728
    %v1814 = vunpack.c.l.b16 %v1729
    %v1815 = vunpack.c.h.b16 %v1729
    %v1816 = vunpack.c.l.b16 %v1730
    %v1817 = vunpack.c.h.b16 %v1730
    %v1818 = vunpack.c.l.b16 %v1731
    %v1819 = vunpack.c.h.b16 %v1731
    %v1820 = vunpack.c.l.b16 %v1732
    %v1821 = vunpack.c.h.b16 %v1732
    %v1822 = vunpack.c.l.b16 %v1733
    %v1823 = vunpack.c.h.b16 %v1733
    %v1824 = vunpack.c.l.b16 %v1734
    %v1825 = vunpack.c.h.b16 %v1734
    %v1826 = vunpack.c.l.b16 %v1735
    %v1827 = vunpack.c.h.b16 %v1735
    %v1828 = vunpack.c.l.b16 %v1736
    %v1829 = vunpack.c.h.b16 %v1736
    %v1830 = vunpack.c.l.b16 %v1737
    %v1831 = vunpack.c.h.b16 %v1737
    %v1832 = vunpack.c.l.b16 %v1738
    %v1833 = vunpack.c.h.b16 %v1738
    %v1834 = vunpack.c.l.b16 %v1739
    %v1835 = vunpack.c.h.b16 %v1739
    %v1836 = vpack.c.b16 %v1776, %v1772
    %v1837 = vpack.c.b16 %v1777, %v1773
    %v1838 = vpack.c.b16 %v1778, %v1774
    %v1839 = vpack.c.b16 %v1779, %v1775
    %v1840 = vpack.c.b16 %v1784, %v1780
    %v1841 = vpack.c.b16 %v1785, %v1781
    %v1842 = vpack.c.b16 %v1786, %v1782
    %v1843 = vpack.c.b16 %v1787, %v1783
    %v1844 = vpack.c.b16 %v1792, %v1788
    %v1845 = vpack.c.b16 %v1793, %v1789
    %v1846 = vpack.c.b16 %v1794, %v1790
    %v1847 = vpack.c.b16 %v1795, %v1791
    %v1848 = vpack.c.b16 %v1800, %v1796
    %v1849 = vpack.c.b16 %v1801, %v1797
    %v1850 = vpack.c.b16 %v1802, %v1798
    %v1851 = vpack.c.b16 %v1803, %v1799
    %v1852 = vpack.c.b16 %v1808, %v1804
    %v1853 = vpack.c.b16 %v1809, %v1805
    %v1854 = vpack.c.b16 %v1810, %v1806
    %v1855 = vpack.c.b16 %v1811, %v1807
    %v1856 = vpack.c.b16 %v1816, %v1812
    %v1857 = vpack.c.b16 %v1817, %v1813
    %v1858 = vpack.c.b16 %v1818, %v1814
    %v1859 = vpack.c.b16 %v1819, %v1815
    %v1860 = vpack.c.b16 %v1824, %v1820
    %v1861 = vpack.c.b16 %v1825, %v1821
    %v1862 = vpack.c.b16 %v1826, %v1822
    %v1863 = vpack.c.b16 %v1827, %v1823
    %v1864 = vpack.c.b16 %v1832, %v1828
    %v1865 = vpack.c.b16 %v1833, %v1829
    %v1866 = vpack.c.b16 %v1834, %v1830
    %v1867 = vpack.c.b16 %v1835, %v1831
    %1900 = vmatprep.subr.bf16.mxu0 %v1837
    %1901 = vmatpush1.bf16.msra.mxu0 %v1836
    %1902 = vmatprep.subr.bf16.mxu0 %v1841
    %1903 = vmatpush1.bf16.msra.mxu0 %v1840
    %1904 = vmatprep.subr.bf16.mxu0 %v1845
    %1905 = vmatpush1.bf16.msra.mxu0 %v1844
    %1906 = vmatprep.subr.bf16.mxu0 %v1849
    %1907 = vmatpush1.bf16.msra.mxu0 %v1848
    %1908 = vmatprep.subr.bf16.mxu0 %v1853
    %1909 = vmatpush1.bf16.msra.mxu0 %v1852
    %1910 = vmatprep.subr.bf16.mxu0 %v1857
    %1911 = vmatpush1.bf16.msra.mxu0 %v1856
    %1912 = vmatprep.subr.bf16.mxu0 %v1861
    %1913 = vmatpush1.bf16.msra.mxu0 %v1860
    %1914 = vmatprep.subr.bf16.mxu0 %v1865
    %1915 = vmatpush1.bf16.msra.mxu0 %v1864
    %1916 = vmatprep.subr.bf16.mxu0 0
    %1917 = vmatpush1.bf16.msra.mxu0 0
    %1918 = vmatprep.subr.bf16.mxu0 0
    %1919 = vmatpush1.bf16.msra.mxu0 0
    %1920 = vmatprep.subr.bf16.mxu0 0
    %1921 = vmatpush1.bf16.msra.mxu0 0
    %1922 = vmatprep.subr.bf16.mxu0 0
    %1923 = vmatpush1.bf16.msra.mxu0 0
    %1924 = vmatprep.subr.bf16.mxu0 0
    %1925 = vmatpush1.bf16.msra.mxu0 0
    %1926 = vmatprep.subr.bf16.mxu0 0
    %1927 = vmatpush1.bf16.msra.mxu0 0
    %1928 = vmatprep.subr.bf16.mxu0 0
    %1929 = vmatpush1.bf16.msra.mxu0 0
    %1930 = vmatprep.subr.bf16.mxu0 0
    %1931 = vmatpush1.bf16.msra.mxu0 0
    %1932 = vmatprep.mubr.bf16.mxu0 0
    %1933 = vmatmul.mubr.bf16.gmra.mrb[0].mxu0 %v1707
    %v1934 = vpop.f32.mrb[0].mxu0
    %v1935 = vadd.f32 0.0, %v1934
    %v1936 = vpop.f32.mrb[0].mxu0
    %v1937 = vadd.f32 0.0, %v1936
    %v1938 = vpop.f32.mrb[0].mxu0
    %v1939 = vpop.f32.mrb[0].mxu0
    %1940 = vdwg.mxu0
    %1941 = vmatprep.subr.bf16.mxu0 %v1839
    %1942 = vmatpush1.bf16.msra.mxu0 %v1838
    %1943 = vmatprep.subr.bf16.mxu0 %v1843
    %1944 = vmatpush1.bf16.msra.mxu0 %v1842
    %1945 = vmatprep.subr.bf16.mxu0 %v1847
    %1946 = vmatpush1.bf16.msra.mxu0 %v1846
    %1947 = vmatprep.subr.bf16.mxu0 %v1851
    %1948 = vmatpush1.bf16.msra.mxu0 %v1850
    %1949 = vmatprep.subr.bf16.mxu0 %v1855
    %1950 = vmatpush1.bf16.msra.mxu0 %v1854
    %1951 = vmatprep.subr.bf16.mxu0 %v1859
    %1952 = vmatpush1.bf16.msra.mxu0 %v1858
    %1953 = vmatprep.subr.bf16.mxu0 %v1863
    %1954 = vmatpush1.bf16.msra.mxu0 %v1862
    %1955 = vmatprep.subr.bf16.mxu0 %v1867
    %1956 = vmatpush1.bf16.msra.mxu0 %v1866
    %1957 = vmatprep.subr.bf16.mxu0 0
    %1958 = vmatpush1.bf16.msra.mxu0 0
    %1959 = vmatprep.subr.bf16.mxu0 0
    %1960 = vmatpush1.bf16.msra.mxu0 0
    %1961 = vmatprep.subr.bf16.mxu0 0
    %1962 = vmatpush1.bf16.msra.mxu0 0
    %1963 = vmatprep.subr.bf16.mxu0 0
    %1964 = vmatpush1.bf16.msra.mxu0 0
    %1965 = vmatprep.subr.bf16.mxu0 0
    %1966 = vmatpush1.bf16.msra.mxu0 0
    %1967 = vmatprep.subr.bf16.mxu0 0
    %1968 = vmatpush1.bf16.msra.mxu0 0
    %1969 = vmatprep.subr.bf16.mxu0 0
    %1970 = vmatpush1.bf16.msra.mxu0 0
    %1971 = vmatprep.subr.bf16.mxu0 0
    %1972 = vmatpush1.bf16.msra.mxu0 0
    %1973 = vmatprep.mubr.bf16.mxu0 0
    %1974 = vmatmul.mubr.bf16.gmra.mrb[0].mxu0 %v1707
    %v1975 = vpop.f32.mrb[0].mxu0
    %v1976 = vadd.f32 0.0, %v1975
    %v1977 = vpop.f32.mrb[0].mxu0
    %v1978 = vadd.f32 0.0, %v1977
    %v1979 = vpop.f32.mrb[0].mxu0
    %v1980 = vpop.f32.mrb[0].mxu0
    %1981 = vdwg.mxu0
    %v1982 = vadd.f32 %v1703, %v1935
    %v1983 = vadd.f32 %v1704, %v1937
    %v1984 = vadd.f32 %v1705, %v1976
    %v1985 = vadd.f32 %v1706, %v1978
    %v1986 = vxor.u32 %v1982, 2147483648
    %v1987 = vmul.f32 %v1986, 1.442695
    %v1988 = vpow.pop %v1987
    %v1989 = vadd.f32 %v1988, 1.0
    %v1990 = vrcp.pop %v1989
    %v1991 = vmul.f32 1.0, %v1990
    %v1992 = vxor.u32 %v1983, 2147483648
    %v1993 = vmul.f32 %v1992, 1.442695
    %v1994 = vpow.pop %v1993
    %v1995 = vadd.f32 %v1994, 1.0
    %v1996 = vrcp.pop %v1995
    %v1997 = vmul.f32 1.0, %v1996
    %v1998 = vtanh.pop %v1984
    %v1999 = vxor.u32 %v1985, 2147483648
    %v2000 = vmul.f32 %v1999, 1.442695
    %v2001 = vpow.pop %v2000
    %v2002 = vadd.f32 %v2001, 1.0
    %v2003 = vrcp.pop %v2002
    %v2004 = vmul.f32 1.0, %v2003
    %v2005 = vmul.f32 %v1997, %v1114
    %v2006 = vmul.f32 %v1991, %v1998
    %v2007 = vadd.f32 %v2005, %v2006
    %v2008 = vtanh.pop %v2007
    %v2009 = vmul.f32 %v2004, %v2008
    %v2010 = vld [vmem:[#allocation11] sm:$0xff]
    %v2011 = vld [vmem:[#allocation11 + $0x8] sm:$0xff]
    %v2012 = vld [vmem:[#allocation11 + $0x10] sm:$0xff]
    %v2013 = vld [vmem:[#allocation11 + $0x18] sm:$0xff]
    %v2014 = vld [vmem:[#allocation11 + $0x20] sm:$0xff]
    %v2015 = vld [vmem:[#allocation11 + $0x28] sm:$0xff]
    %v2016 = vld [vmem:[#allocation11 + $0x30] sm:$0xff]
    %v2017 = vld [vmem:[#allocation11 + $0x38] sm:$0xff]
    %v2018 = vld [vmem:[#allocation11 + $0x40] sm:$0xff]
    %v2019 = vld [vmem:[#allocation11 + $0x48] sm:$0xff]
    %v2020 = vld [vmem:[#allocation11 + $0x50] sm:$0xff]
    %v2021 = vld [vmem:[#allocation11 + $0x58] sm:$0xff]
    %v2022 = vld [vmem:[#allocation11 + $0x60] sm:$0xff]
    %v2023 = vld [vmem:[#allocation11 + $0x68] sm:$0xff]
    %v2024 = vld [vmem:[#allocation11 + $0x70] sm:$0xff]
    %v2025 = vld [vmem:[#allocation11 + $0x78] sm:$0xff]
    %v2026 = vld [vmem:[#allocation11 + $0x80] sm:$0xff]
    %v2027 = vld [vmem:[#allocation11 + $0x88] sm:$0xff]
    %v2028 = vld [vmem:[#allocation11 + $0x90] sm:$0xff]
    %v2029 = vld [vmem:[#allocation11 + $0x98] sm:$0xff]
    %v2030 = vld [vmem:[#allocation11 + $0xa0] sm:$0xff]
    %v2031 = vld [vmem:[#allocation11 + $0xa8] sm:$0xff]
    %v2032 = vld [vmem:[#allocation11 + $0xb0] sm:$0xff]
    %v2033 = vld [vmem:[#allocation11 + $0xb8] sm:$0xff]
    %v2034 = vld [vmem:[#allocation11 + $0xc0] sm:$0xff]
    %v2035 = vld [vmem:[#allocation11 + $0xc8] sm:$0xff]
    %v2036 = vld [vmem:[#allocation11 + $0xd0] sm:$0xff]
    %v2037 = vld [vmem:[#allocation11 + $0xd8] sm:$0xff]
    %v2038 = vld [vmem:[#allocation11 + $0xe0] sm:$0xff]
    %v2039 = vld [vmem:[#allocation11 + $0xe8] sm:$0xff]
    %v2040 = vld [vmem:[#allocation11 + $0xf0] sm:$0xff]
    %v2041 = vld [vmem:[#allocation11 + $0xf8] sm:$0xff]
    %v2074 = vunpack.c.l.b16 %v2010
    %v2075 = vunpack.c.h.b16 %v2010
    %v2076 = vunpack.c.l.b16 %v2011
    %v2077 = vunpack.c.h.b16 %v2011
    %v2078 = vunpack.c.l.b16 %v2012
    %v2079 = vunpack.c.h.b16 %v2012
    %v2080 = vunpack.c.l.b16 %v2013
    %v2081 = vunpack.c.h.b16 %v2013
    %v2082 = vunpack.c.l.b16 %v2014
    %v2083 = vunpack.c.h.b16 %v2014
    %v2084 = vunpack.c.l.b16 %v2015
    %v2085 = vunpack.c.h.b16 %v2015
    %v2086 = vunpack.c.l.b16 %v2016
    %v2087 = vunpack.c.h.b16 %v2016
    %v2088 = vunpack.c.l.b16 %v2017
    %v2089 = vunpack.c.h.b16 %v2017
    %v2090 = vunpack.c.l.b16 %v2018
    %v2091 = vunpack.c.h.b16 %v2018
    %v2092 = vunpack.c.l.b16 %v2019
    %v2093 = vunpack.c.h.b16 %v2019
    %v2094 = vunpack.c.l.b16 %v2020
    %v2095 = vunpack.c.h.b16 %v2020
    %v2096 = vunpack.c.l.b16 %v2021
    %v2097 = vunpack.c.h.b16 %v2021
    %v2098 = vunpack.c.l.b16 %v2022
    %v2099 = vunpack.c.h.b16 %v2022
    %v2100 = vunpack.c.l.b16 %v2023
    %v2101 = vunpack.c.h.b16 %v2023
    %v2102 = vunpack.c.l.b16 %v2024
    %v2103 = vunpack.c.h.b16 %v2024
    %v2104 = vunpack.c.l.b16 %v2025
    %v2105 = vunpack.c.h.b16 %v2025
    %v2106 = vunpack.c.l.b16 %v2026
    %v2107 = vunpack.c.h.b16 %v2026
    %v2108 = vunpack.c.l.b16 %v2027
    %v2109 = vunpack.c.h.b16 %v2027
    %v2110 = vunpack.c.l.b16 %v2028
    %v2111 = vunpack.c.h.b16 %v2028
    %v2112 = vunpack.c.l.b16 %v2029
    %v2113 = vunpack.c.h.b16 %v2029
    %v2114 = vunpack.c.l.b16 %v2030
    %v2115 = vunpack.c.h.b16 %v2030
    %v2116 = vunpack.c.l.b16 %v2031
    %v2117 = vunpack.c.h.b16 %v2031
    %v2118 = vunpack.c.l.b16 %v2032
    %v2119 = vunpack.c.h.b16 %v2032
    %v2120 = vunpack.c.l.b16 %v2033
    %v2121 = vunpack.c.h.b16 %v2033
    %v2122 = vunpack.c.l.b16 %v2034
    %v2123 = vunpack.c.h.b16 %v2034
    %v2124 = vunpack.c.l.b16 %v2035
    %v2125 = vunpack.c.h.b16 %v2035
    %v2126 = vunpack.c.l.b16 %v2036
    %v2127 = vunpack.c.h.b16 %v2036
    %v2128 = vunpack.c.l.b16 %v2037
    %v2129 = vunpack.c.h.b16 %v2037
    %v2130 = vunpack.c.l.b16 %v2038
    %v2131 = vunpack.c.h.b16 %v2038
    %v2132 = vunpack.c.l.b16 %v2039
    %v2133 = vunpack.c.h.b16 %v2039
    %v2134 = vunpack.c.l.b16 %v2040
    %v2135 = vunpack.c.h.b16 %v2040
    %v2136 = vunpack.c.l.b16 %v2041
    %v2137 = vunpack.c.h.b16 %v2041
    %v2138 = vpack.c.b16 %v2078, %v2074
    %v2139 = vpack.c.b16 %v2079, %v2075
    %v2140 = vpack.c.b16 %v2080, %v2076
    %v2141 = vpack.c.b16 %v2081, %v2077
    %v2142 = vpack.c.b16 %v2086, %v2082
    %v2143 = vpack.c.b16 %v2087, %v2083
    %v2144 = vpack.c.b16 %v2088, %v2084
    %v2145 = vpack.c.b16 %v2089, %v2085
    %v2146 = vpack.c.b16 %v2094, %v2090
    %v2147 = vpack.c.b16 %v2095, %v2091
    %v2148 = vpack.c.b16 %v2096, %v2092
    %v2149 = vpack.c.b16 %v2097, %v2093
    %v2150 = vpack.c.b16 %v2102, %v2098
    %v2151 = vpack.c.b16 %v2103, %v2099
    %v2152 = vpack.c.b16 %v2104, %v2100
    %v2153 = vpack.c.b16 %v2105, %v2101
    %v2154 = vpack.c.b16 %v2110, %v2106
    %v2155 = vpack.c.b16 %v2111, %v2107
    %v2156 = vpack.c.b16 %v2112, %v2108
    %v2157 = vpack.c.b16 %v2113, %v2109
    %v2158 = vpack.c.b16 %v2118, %v2114
    %v2159 = vpack.c.b16 %v2119, %v2115
    %v2160 = vpack.c.b16 %v2120, %v2116
    %v2161 = vpack.c.b16 %v2121, %v2117
    %v2162 = vpack.c.b16 %v2126, %v2122
    %v2163 = vpack.c.b16 %v2127, %v2123
    %v2164 = vpack.c.b16 %v2128, %v2124
    %v2165 = vpack.c.b16 %v2129, %v2125
    %v2166 = vpack.c.b16 %v2134, %v2130
    %v2167 = vpack.c.b16 %v2135, %v2131
    %v2168 = vpack.c.b16 %v2136, %v2132
    %v2169 = vpack.c.b16 %v2137, %v2133
    %2202 = vmatprep.subr.bf16.mxu0 %v2139
    %2203 = vmatpush1.bf16.msra.mxu0 %v2138
    %2204 = vmatprep.subr.bf16.mxu0 %v2143
    %2205 = vmatpush1.bf16.msra.mxu0 %v2142
    %2206 = vmatprep.subr.bf16.mxu0 %v2147
    %2207 = vmatpush1.bf16.msra.mxu0 %v2146
    %2208 = vmatprep.subr.bf16.mxu0 %v2151
    %2209 = vmatpush1.bf16.msra.mxu0 %v2150
    %2210 = vmatprep.subr.bf16.mxu0 %v2155
    %2211 = vmatpush1.bf16.msra.mxu0 %v2154
    %2212 = vmatprep.subr.bf16.mxu0 %v2159
    %2213 = vmatpush1.bf16.msra.mxu0 %v2158
    %2214 = vmatprep.subr.bf16.mxu0 %v2163
    %2215 = vmatpush1.bf16.msra.mxu0 %v2162
    %2216 = vmatprep.subr.bf16.mxu0 %v2167
    %2217 = vmatpush1.bf16.msra.mxu0 %v2166
    %2218 = vmatprep.subr.bf16.mxu0 0
    %2219 = vmatpush1.bf16.msra.mxu0 0
    %2220 = vmatprep.subr.bf16.mxu0 0
    %2221 = vmatpush1.bf16.msra.mxu0 0
    %2222 = vmatprep.subr.bf16.mxu0 0
    %2223 = vmatpush1.bf16.msra.mxu0 0
    %2224 = vmatprep.subr.bf16.mxu0 0
    %2225 = vmatpush1.bf16.msra.mxu0 0
    %2226 = vmatprep.subr.bf16.mxu0 0
    %2227 = vmatpush1.bf16.msra.mxu0 0
    %2228 = vmatprep.subr.bf16.mxu0 0
    %2229 = vmatpush1.bf16.msra.mxu0 0
    %2230 = vmatprep.subr.bf16.mxu0 0
    %2231 = vmatpush1.bf16.msra.mxu0 0
    %2232 = vmatprep.subr.bf16.mxu0 0
    %2233 = vmatpush1.bf16.msra.mxu0 0
    %2234 = vmatprep.mubr.bf16.mxu0 0
    %2235 = vmatmul.mubr.bf16.gmra.mrb[0].mxu0 %v1707
    %v2236 = vpop.f32.mrb[0].mxu0
    %v2237 = vadd.f32 %v659, %v2236
    %v2238 = vpop.f32.mrb[0].mxu0
    %v2239 = vadd.f32 %v663, %v2238
    %v2240 = vpop.f32.mrb[0].mxu0
    %v2241 = vpop.f32.mrb[0].mxu0
    %2242 = vdwg.mxu0
    %2243 = vmatprep.subr.bf16.mxu0 %v2141
    %2244 = vmatpush1.bf16.msra.mxu0 %v2140
    %2245 = vmatprep.subr.bf16.mxu0 %v2145
    %2246 = vmatpush1.bf16.msra.mxu0 %v2144
    %2247 = vmatprep.subr.bf16.mxu0 %v2149
    %2248 = vmatpush1.bf16.msra.mxu0 %v2148
    %2249 = vmatprep.subr.bf16.mxu0 %v2153
    %2250 = vmatpush1.bf16.msra.mxu0 %v2152
    %2251 = vmatprep.subr.bf16.mxu0 %v2157
    %2252 = vmatpush1.bf16.msra.mxu0 %v2156
    %2253 = vmatprep.subr.bf16.mxu0 %v2161
    %2254 = vmatpush1.bf16.msra.mxu0 %v2160
    %2255 = vmatprep.subr.bf16.mxu0 %v2165
    %2256 = vmatpush1.bf16.msra.mxu0 %v2164
    %2257 = vmatprep.subr.bf16.mxu0 %v2169
    %2258 = vmatpush1.bf16.msra.mxu0 %v2168
    %2259 = vmatprep.subr.bf16.mxu0 0
    %2260 = vmatpush1.bf16.msra.mxu0 0
    %2261 = vmatprep.subr.bf16.mxu0 0
    %2262 = vmatpush1.bf16.msra.mxu0 0
    %2263 = vmatprep.subr.bf16.mxu0 0
    %2264 = vmatpush1.bf16.msra.mxu0 0
    %2265 = vmatprep.subr.bf16.mxu0 0
    %2266 = vmatpush1.bf16.msra.mxu0 0
    %2267 = vmatprep.subr.bf16.mxu0 0
    %2268 = vmatpush1.bf16.msra.mxu0 0
    %2269 = vmatprep.subr.bf16.mxu0 0
    %2270 = vmatpush1.bf16.msra.mxu0 0
    %2271 = vmatprep.subr.bf16.mxu0 0
    %2272 = vmatpush1.bf16.msra.mxu0 0
    %2273 = vmatprep.subr.bf16.mxu0 0
    %2274 = vmatpush1.bf16.msra.mxu0 0
    %2275 = vmatprep.mubr.bf16.mxu0 0
    %2276 = vmatmul.mubr.bf16.gmra.mrb[0].mxu0 %v1707
    %v2277 = vpop.f32.mrb[0].mxu0
    %v2278 = vadd.f32 %v667, %v2277
    %v2279 = vpop.f32.mrb[0].mxu0
    %v2280 = vadd.f32 %v671, %v2279
    %v2281 = vpop.f32.mrb[0].mxu0
    %v2282 = vpop.f32.mrb[0].mxu0
    %2283 = vdwg.mxu0
    %v2284 = vld [vmem:[#allocation10] sm:$0xff]
    %v2285 = vld [vmem:[#allocation10 + $0x8] sm:$0xff]
    %v2286 = vld [vmem:[#allocation10 + $0x10] sm:$0xff]
    %v2287 = vld [vmem:[#allocation10 + $0x18] sm:$0xff]
    %v2288 = vld [vmem:[#allocation10 + $0x20] sm:$0xff]
    %v2289 = vld [vmem:[#allocation10 + $0x28] sm:$0xff]
    %v2290 = vld [vmem:[#allocation10 + $0x30] sm:$0xff]
    %v2291 = vld [vmem:[#allocation10 + $0x38] sm:$0xff]
    %v2292 = vld [vmem:[#allocation10 + $0x40] sm:$0xff]
    %v2293 = vld [vmem:[#allocation10 + $0x48] sm:$0xff]
    %v2294 = vld [vmem:[#allocation10 + $0x50] sm:$0xff]
    %v2295 = vld [vmem:[#allocation10 + $0x58] sm:$0xff]
    %v2296 = vld [vmem:[#allocation10 + $0x60] sm:$0xff]
    %v2297 = vld [vmem:[#allocation10 + $0x68] sm:$0xff]
    %v2298 = vld [vmem:[#allocation10 + $0x70] sm:$0xff]
    %v2299 = vld [vmem:[#allocation10 + $0x78] sm:$0xff]
    %v2300 = vld [vmem:[#allocation10 + $0x80] sm:$0xff]
    %v2301 = vld [vmem:[#allocation10 + $0x88] sm:$0xff]
    %v2302 = vld [vmem:[#allocation10 + $0x90] sm:$0xff]
    %v2303 = vld [vmem:[#allocation10 + $0x98] sm:$0xff]
    %v2304 = vld [vmem:[#allocation10 + $0xa0] sm:$0xff]
    %v2305 = vld [vmem:[#allocation10 + $0xa8] sm:$0xff]
    %v2306 = vld [vmem:[#allocation10 + $0xb0] sm:$0xff]
    %v2307 = vld [vmem:[#allocation10 + $0xb8] sm:$0xff]
    %v2308 = vld [vmem:[#allocation10 + $0xc0] sm:$0xff]
    %v2309 = vld [vmem:[#allocation10 + $0xc8] sm:$0xff]
    %v2310 = vld [vmem:[#allocation10 + $0xd0] sm:$0xff]
    %v2311 = vld [vmem:[#allocation10 + $0xd8] sm:$0xff]
    %v2312 = vld [vmem:[#allocation10 + $0xe0] sm:$0xff]
    %v2313 = vld [vmem:[#allocation10 + $0xe8] sm:$0xff]
    %v2314 = vld [vmem:[#allocation10 + $0xf0] sm:$0xff]
    %v2315 = vld [vmem:[#allocation10 + $0xf8] sm:$0xff]
    %v2348 = vunpack.c.l.b16 %v2284
    %v2349 = vunpack.c.h.b16 %v2284
    %v2350 = vunpack.c.l.b16 %v2285
    %v2351 = vunpack.c.h.b16 %v2285
    %v2352 = vunpack.c.l.b16 %v2286
    %v2353 = vunpack.c.h.b16 %v2286
    %v2354 = vunpack.c.l.b16 %v2287
    %v2355 = vunpack.c.h.b16 %v2287
    %v2356 = vunpack.c.l.b16 %v2288
    %v2357 = vunpack.c.h.b16 %v2288
    %v2358 = vunpack.c.l.b16 %v2289
    %v2359 = vunpack.c.h.b16 %v2289
    %v2360 = vunpack.c.l.b16 %v2290
    %v2361 = vunpack.c.h.b16 %v2290
    %v2362 = vunpack.c.l.b16 %v2291
    %v2363 = vunpack.c.h.b16 %v2291
    %v2364 = vunpack.c.l.b16 %v2292
    %v2365 = vunpack.c.h.b16 %v2292
    %v2366 = vunpack.c.l.b16 %v2293
    %v2367 = vunpack.c.h.b16 %v2293
    %v2368 = vunpack.c.l.b16 %v2294
    %v2369 = vunpack.c.h.b16 %v2294
    %v2370 = vunpack.c.l.b16 %v2295
    %v2371 = vunpack.c.h.b16 %v2295
    %v2372 = vunpack.c.l.b16 %v2296
    %v2373 = vunpack.c.h.b16 %v2296
    %v2374 = vunpack.c.l.b16 %v2297
    %v2375 = vunpack.c.h.b16 %v2297
    %v2376 = vunpack.c.l.b16 %v2298
    %v2377 = vunpack.c.h.b16 %v2298
    %v2378 = vunpack.c.l.b16 %v2299
    %v2379 = vunpack.c.h.b16 %v2299
    %v2380 = vunpack.c.l.b16 %v2300
    %v2381 = vunpack.c.h.b16 %v2300
    %v2382 = vunpack.c.l.b16 %v2301
    %v2383 = vunpack.c.h.b16 %v2301
    %v2384 = vunpack.c.l.b16 %v2302
    %v2385 = vunpack.c.h.b16 %v2302
    %v2386 = vunpack.c.l.b16 %v2303
    %v2387 = vunpack.c.h.b16 %v2303
    %v2388 = vunpack.c.l.b16 %v2304
    %v2389 = vunpack.c.h.b16 %v2304
    %v2390 = vunpack.c.l.b16 %v2305
    %v2391 = vunpack.c.h.b16 %v2305
    %v2392 = vunpack.c.l.b16 %v2306
    %v2393 = vunpack.c.h.b16 %v2306
    %v2394 = vunpack.c.l.b16 %v2307
    %v2395 = vunpack.c.h.b16 %v2307
    %v2396 = vunpack.c.l.b16 %v2308
    %v2397 = vunpack.c.h.b16 %v2308
    %v2398 = vunpack.c.l.b16 %v2309
    %v2399 = vunpack.c.h.b16 %v2309
    %v2400 = vunpack.c.l.b16 %v2310
    %v2401 = vunpack.c.h.b16 %v2310
    %v2402 = vunpack.c.l.b16 %v2311
    %v2403 = vunpack.c.h.b16 %v2311
    %v2404 = vunpack.c.l.b16 %v2312
    %v2405 = vunpack.c.h.b16 %v2312
    %v2406 = vunpack.c.l.b16 %v2313
    %v2407 = vunpack.c.h.b16 %v2313
    %v2408 = vunpack.c.l.b16 %v2314
    %v2409 = vunpack.c.h.b16 %v2314
    %v2410 = vunpack.c.l.b16 %v2315
    %v2411 = vunpack.c.h.b16 %v2315
    %v2412 = vpack.c.b16 %v2352, %v2348
    %v2413 = vpack.c.b16 %v2353, %v2349
    %v2414 = vpack.c.b16 %v2354, %v2350
    %v2415 = vpack.c.b16 %v2355, %v2351
    %v2416 = vpack.c.b16 %v2360, %v2356
    %v2417 = vpack.c.b16 %v2361, %v2357
    %v2418 = vpack.c.b16 %v2362, %v2358
    %v2419 = vpack.c.b16 %v2363, %v2359
    %v2420 = vpack.c.b16 %v2368, %v2364
    %v2421 = vpack.c.b16 %v2369, %v2365
    %v2422 = vpack.c.b16 %v2370, %v2366
    %v2423 = vpack.c.b16 %v2371, %v2367
    %v2424 = vpack.c.b16 %v2376, %v2372
    %v2425 = vpack.c.b16 %v2377, %v2373
    %v2426 = vpack.c.b16 %v2378, %v2374
    %v2427 = vpack.c.b16 %v2379, %v2375
    %v2428 = vpack.c.b16 %v2384, %v2380
    %v2429 = vpack.c.b16 %v2385, %v2381
    %v2430 = vpack.c.b16 %v2386, %v2382
    %v2431 = vpack.c.b16 %v2387, %v2383
    %v2432 = vpack.c.b16 %v2392, %v2388
    %v2433 = vpack.c.b16 %v2393, %v2389
    %v2434 = vpack.c.b16 %v2394, %v2390
    %v2435 = vpack.c.b16 %v2395, %v2391
    %v2436 = vpack.c.b16 %v2400, %v2396
    %v2437 = vpack.c.b16 %v2401, %v2397
    %v2438 = vpack.c.b16 %v2402, %v2398
    %v2439 = vpack.c.b16 %v2403, %v2399
    %v2440 = vpack.c.b16 %v2408, %v2404
    %v2441 = vpack.c.b16 %v2409, %v2405
    %v2442 = vpack.c.b16 %v2410, %v2406
    %v2443 = vpack.c.b16 %v2411, %v2407
    %2476 = vmatprep.subr.bf16.mxu0 %v2413
    %2477 = vmatpush1.bf16.msra.mxu0 %v2412
    %2478 = vmatprep.subr.bf16.mxu0 %v2417
    %2479 = vmatpush1.bf16.msra.mxu0 %v2416
    %2480 = vmatprep.subr.bf16.mxu0 %v2421
    %2481 = vmatpush1.bf16.msra.mxu0 %v2420
    %2482 = vmatprep.subr.bf16.mxu0 %v2425
    %2483 = vmatpush1.bf16.msra.mxu0 %v2424
    %2484 = vmatprep.subr.bf16.mxu0 %v2429
    %2485 = vmatpush1.bf16.msra.mxu0 %v2428
    %2486 = vmatprep.subr.bf16.mxu0 %v2433
    %2487 = vmatpush1.bf16.msra.mxu0 %v2432
    %2488 = vmatprep.subr.bf16.mxu0 %v2437
    %2489 = vmatpush1.bf16.msra.mxu0 %v2436
    %2490 = vmatprep.subr.bf16.mxu0 %v2441
    %2491 = vmatpush1.bf16.msra.mxu0 %v2440
    %2492 = vmatprep.subr.bf16.mxu0 0
    %2493 = vmatpush1.bf16.msra.mxu0 0
    %2494 = vmatprep.subr.bf16.mxu0 0
    %2495 = vmatpush1.bf16.msra.mxu0 0
    %2496 = vmatprep.subr.bf16.mxu0 0
    %2497 = vmatpush1.bf16.msra.mxu0 0
    %2498 = vmatprep.subr.bf16.mxu0 0
    %2499 = vmatpush1.bf16.msra.mxu0 0
    %2500 = vmatprep.subr.bf16.mxu0 0
    %2501 = vmatpush1.bf16.msra.mxu0 0
    %2502 = vmatprep.subr.bf16.mxu0 0
    %2503 = vmatpush1.bf16.msra.mxu0 0
    %2504 = vmatprep.subr.bf16.mxu0 0
    %2505 = vmatpush1.bf16.msra.mxu0 0
    %2506 = vmatprep.subr.bf16.mxu0 0
    %2507 = vmatpush1.bf16.msra.mxu0 0
    %2508 = vmatprep.mubr.bf16.mxu0 0
    %2509 = vmatmul.mubr.bf16.gmra.mrb[0].mxu0 %v1694
    %v2510 = vpop.f32.mrb[0].mxu0
    %v2511 = vadd.f32 0.0, %v2510
    %v2512 = vpop.f32.mrb[0].mxu0
    %v2513 = vadd.f32 0.0, %v2512
    %v2514 = vpop.f32.mrb[0].mxu0
    %v2515 = vpop.f32.mrb[0].mxu0
    %2516 = vdwg.mxu0
    %2517 = vmatprep.subr.bf16.mxu0 %v2415
    %2518 = vmatpush1.bf16.msra.mxu0 %v2414
    %2519 = vmatprep.subr.bf16.mxu0 %v2419
    %2520 = vmatpush1.bf16.msra.mxu0 %v2418
    %2521 = vmatprep.subr.bf16.mxu0 %v2423
    %2522 = vmatpush1.bf16.msra.mxu0 %v2422
    %2523 = vmatprep.subr.bf16.mxu0 %v2427
    %2524 = vmatpush1.bf16.msra.mxu0 %v2426
    %2525 = vmatprep.subr.bf16.mxu0 %v2431
    %2526 = vmatpush1.bf16.msra.mxu0 %v2430
    %2527 = vmatprep.subr.bf16.mxu0 %v2435
    %2528 = vmatpush1.bf16.msra.mxu0 %v2434
    %2529 = vmatprep.subr.bf16.mxu0 %v2439
    %2530 = vmatpush1.bf16.msra.mxu0 %v2438
    %2531 = vmatprep.subr.bf16.mxu0 %v2443
    %2532 = vmatpush1.bf16.msra.mxu0 %v2442
    %2533 = vmatprep.subr.bf16.mxu0 0
    %2534 = vmatpush1.bf16.msra.mxu0 0
    %2535 = vmatprep.subr.bf16.mxu0 0
    %2536 = vmatpush1.bf16.msra.mxu0 0
    %2537 = vmatprep.subr.bf16.mxu0 0
    %2538 = vmatpush1.bf16.msra.mxu0 0
    %2539 = vmatprep.subr.bf16.mxu0 0
    %2540 = vmatpush1.bf16.msra.mxu0 0
    %2541 = vmatprep.subr.bf16.mxu0 0
    %2542 = vmatpush1.bf16.msra.mxu0 0
    %2543 = vmatprep.subr.bf16.mxu0 0
    %2544 = vmatpush1.bf16.msra.mxu0 0
    %2545 = vmatprep.subr.bf16.mxu0 0
    %2546 = vmatpush1.bf16.msra.mxu0 0
    %2547 = vmatprep.subr.bf16.mxu0 0
    %2548 = vmatpush1.bf16.msra.mxu0 0
    %2549 = vmatprep.mubr.bf16.mxu0 0
    %2550 = vmatmul.mubr.bf16.gmra.mrb[0].mxu0 %v1694
    %v2551 = vpop.f32.mrb[0].mxu0
    %v2552 = vadd.f32 0.0, %v2551
    %v2553 = vpop.f32.mrb[0].mxu0
    %v2554 = vadd.f32 0.0, %v2553
    %v2555 = vpop.f32.mrb[0].mxu0
    %v2556 = vpop.f32.mrb[0].mxu0
    %2557 = vdwg.mxu0
    %v2558 = vadd.f32 %v2237, %v2511
    %v2559 = vadd.f32 %v2239, %v2513
    %v2560 = vadd.f32 %v2278, %v2552
    %v2561 = vadd.f32 %v2280, %v2554
    %v2562 = vxor.u32 %v2558, 2147483648
    %v2563 = vmul.f32 %v2562, 1.442695
    %v2564 = vpow.pop %v2563
    %v2565 = vadd.f32 %v2564, 1.0
    %v2566 = vrcp.pop %v2565
    %v2567 = vmul.f32 1.0, %v2566
    %v2568 = vxor.u32 %v2559, 2147483648
    %v2569 = vmul.f32 %v2568, 1.442695
    %v2570 = vpow.pop %v2569
    %v2571 = vadd.f32 %v2570, 1.0
    %v2572 = vrcp.pop %v2571
    %v2573 = vmul.f32 1.0, %v2572
    %v2574 = vtanh.pop %v2560
    %v2575 = vxor.u32 %v2561, 2147483648
    %v2576 = vmul.f32 %v2575, 1.442695
    %v2577 = vpow.pop %v2576
    %v2578 = vadd.f32 %v2577, 1.0
    %v2579 = vrcp.pop %v2578
    %v2580 = vmul.f32 1.0, %v2579
    %v2581 = vmul.f32 %v2573, %v1691
    %v2582 = vmul.f32 %v2567, %v2574
    %v2583 = vadd.f32 %v2581, %v2582
    %v2584 = vtanh.pop %v2583
    %v2585 = vmul.f32 %v2580, %v2584
    %v2586 = vpack.c.bf16 %v2585, %v2585
    %s2587 = scalar_lea.vmem [#allocation3], 4
    %2588 = vst [vmem:[%s2587] sm:$0xf] %v2586
    %s2589 = scalar_lea.vmem [#allocation2], 48
    %v2590 = vld [vmem:[%s2589] sm:$0xff]
    %v2591 = vld [vmem:[%s2589 + $0x8] sm:$0xff]
    %v2592 = vunpack.c.l.bf16 %v2590
    %v2593 = vunpack.c.h.bf16 %v2590
    %v2594 = vunpack.c.l.bf16 %v2591
    %v2595 = vunpack.c.h.bf16 %v2591
    %v2596 = vadd.f32 %v2592, %v637
    %v2597 = vadd.f32 %v2593, %v641
    %v2598 = vadd.f32 %v2594, %v645
    %v2599 = vadd.f32 %v2595, %v649
    %v2600 = vpack.c.bf16 %v2009, %v2009
    %v2601 = vld [vmem:[#allocation8] sm:$0xff]
    %v2602 = vld [vmem:[#allocation8 + $0x8] sm:$0xff]
    %v2603 = vld [vmem:[#allocation8 + $0x10] sm:$0xff]
    %v2604 = vld [vmem:[#allocation8 + $0x18] sm:$0xff]
    %v2605 = vld [vmem:[#allocation8 + $0x20] sm:$0xff]
    %v2606 = vld [vmem:[#allocation8 + $0x28] sm:$0xff]
    %v2607 = vld [vmem:[#allocation8 + $0x30] sm:$0xff]
    %v2608 = vld [vmem:[#allocation8 + $0x38] sm:$0xff]
    %v2609 = vld [vmem:[#allocation8 + $0x40] sm:$0xff]
    %v2610 = vld [vmem:[#allocation8 + $0x48] sm:$0xff]
    %v2611 = vld [vmem:[#allocation8 + $0x50] sm:$0xff]
    %v2612 = vld [vmem:[#allocation8 + $0x58] sm:$0xff]
    %v2613 = vld [vmem:[#allocation8 + $0x60] sm:$0xff]
    %v2614 = vld [vmem:[#allocation8 + $0x68] sm:$0xff]
    %v2615 = vld [vmem:[#allocation8 + $0x70] sm:$0xff]
    %v2616 = vld [vmem:[#allocation8 + $0x78] sm:$0xff]
    %v2617 = vld [vmem:[#allocation8 + $0x80] sm:$0xff]
    %v2618 = vld [vmem:[#allocation8 + $0x88] sm:$0xff]
    %v2619 = vld [vmem:[#allocation8 + $0x90] sm:$0xff]
    %v2620 = vld [vmem:[#allocation8 + $0x98] sm:$0xff]
    %v2621 = vld [vmem:[#allocation8 + $0xa0] sm:$0xff]
    %v2622 = vld [vmem:[#allocation8 + $0xa8] sm:$0xff]
    %v2623 = vld [vmem:[#allocation8 + $0xb0] sm:$0xff]
    %v2624 = vld [vmem:[#allocation8 + $0xb8] sm:$0xff]
    %v2625 = vld [vmem:[#allocation8 + $0xc0] sm:$0xff]
    %v2626 = vld [vmem:[#allocation8 + $0xc8] sm:$0xff]
    %v2627 = vld [vmem:[#allocation8 + $0xd0] sm:$0xff]
    %v2628 = vld [vmem:[#allocation8 + $0xd8] sm:$0xff]
    %v2629 = vld [vmem:[#allocation8 + $0xe0] sm:$0xff]
    %v2630 = vld [vmem:[#allocation8 + $0xe8] sm:$0xff]
    %v2631 = vld [vmem:[#allocation8 + $0xf0] sm:$0xff]
    %v2632 = vld [vmem:[#allocation8 + $0xf8] sm:$0xff]
    %v2665 = vunpack.c.l.b16 %v2601
    %v2666 = vunpack.c.h.b16 %v2601
    %v2667 = vunpack.c.l.b16 %v2602
    %v2668 = vunpack.c.h.b16 %v2602
    %v2669 = vunpack.c.l.b16 %v2603
    %v2670 = vunpack.c.h.b16 %v2603
    %v2671 = vunpack.c.l.b16 %v2604
    %v2672 = vunpack.c.h.b16 %v2604
    %v2673 = vunpack.c.l.b16 %v2605
    %v2674 = vunpack.c.h.b16 %v2605
    %v2675 = vunpack.c.l.b16 %v2606
    %v2676 = vunpack.c.h.b16 %v2606
    %v2677 = vunpack.c.l.b16 %v2607
    %v2678 = vunpack.c.h.b16 %v2607
    %v2679 = vunpack.c.l.b16 %v2608
    %v2680 = vunpack.c.h.b16 %v2608
    %v2681 = vunpack.c.l.b16 %v2609
    %v2682 = vunpack.c.h.b16 %v2609
    %v2683 = vunpack.c.l.b16 %v2610
    %v2684 = vunpack.c.h.b16 %v2610
    %v2685 = vunpack.c.l.b16 %v2611
    %v2686 = vunpack.c.h.b16 %v2611
    %v2687 = vunpack.c.l.b16 %v2612
    %v2688 = vunpack.c.h.b16 %v2612
    %v2689 = vunpack.c.l.b16 %v2613
    %v2690 = vunpack.c.h.b16 %v2613
    %v2691 = vunpack.c.l.b16 %v2614
    %v2692 = vunpack.c.h.b16 %v2614
    %v2693 = vunpack.c.l.b16 %v2615
    %v2694 = vunpack.c.h.b16 %v2615
    %v2695 = vunpack.c.l.b16 %v2616
    %v2696 = vunpack.c.h.b16 %v2616
    %v2697 = vunpack.c.l.b16 %v2617
    %v2698 = vunpack.c.h.b16 %v2617
    %v2699 = vunpack.c.l.b16 %v2618
    %v2700 = vunpack.c.h.b16 %v2618
    %v2701 = vunpack.c.l.b16 %v2619
    %v2702 = vunpack.c.h.b16 %v2619
    %v2703 = vunpack.c.l.b16 %v2620
    %v2704 = vunpack.c.h.b16 %v2620
    %v2705 = vunpack.c.l.b16 %v2621
    %v2706 = vunpack.c.h.b16 %v2621
    %v2707 = vunpack.c.l.b16 %v2622
    %v2708 = vunpack.c.h.b16 %v2622
    %v2709 = vunpack.c.l.b16 %v2623
    %v2710 = vunpack.c.h.b16 %v2623
    %v2711 = vunpack.c.l.b16 %v2624
    %v2712 = vunpack.c.h.b16 %v2624
    %v2713 = vunpack.c.l.b16 %v2625
    %v2714 = vunpack.c.h.b16 %v2625
    %v2715 = vunpack.c.l.b16 %v2626
    %v2716 = vunpack.c.h.b16 %v2626
    %v2717 = vunpack.c.l.b16 %v2627
    %v2718 = vunpack.c.h.b16 %v2627
    %v2719 = vunpack.c.l.b16 %v2628
    %v2720 = vunpack.c.h.b16 %v2628
    %v2721 = vunpack.c.l.b16 %v2629
    %v2722 = vunpack.c.h.b16 %v2629
    %v2723 = vunpack.c.l.b16 %v2630
    %v2724 = vunpack.c.h.b16 %v2630
    %v2725 = vunpack.c.l.b16 %v2631
    %v2726 = vunpack.c.h.b16 %v2631
    %v2727 = vunpack.c.l.b16 %v2632
    %v2728 = vunpack.c.h.b16 %v2632
    %v2729 = vpack.c.b16 %v2669, %v2665
    %v2730 = vpack.c.b16 %v2670, %v2666
    %v2731 = vpack.c.b16 %v2671, %v2667
    %v2732 = vpack.c.b16 %v2672, %v2668
    %v2733 = vpack.c.b16 %v2677, %v2673
    %v2734 = vpack.c.b16 %v2678, %v2674
    %v2735 = vpack.c.b16 %v2679, %v2675
    %v2736 = vpack.c.b16 %v2680, %v2676
    %v2737 = vpack.c.b16 %v2685, %v2681
    %v2738 = vpack.c.b16 %v2686, %v2682
    %v2739 = vpack.c.b16 %v2687, %v2683
    %v2740 = vpack.c.b16 %v2688, %v2684
    %v2741 = vpack.c.b16 %v2693, %v2689
    %v2742 = vpack.c.b16 %v2694, %v2690
    %v2743 = vpack.c.b16 %v2695, %v2691
    %v2744 = vpack.c.b16 %v2696, %v2692
    %v2745 = vpack.c.b16 %v2701, %v2697
    %v2746 = vpack.c.b16 %v2702, %v2698
    %v2747 = vpack.c.b16 %v2703, %v2699
    %v2748 = vpack.c.b16 %v2704, %v2700
    %v2749 = vpack.c.b16 %v2709, %v2705
    %v2750 = vpack.c.b16 %v2710, %v2706
    %v2751 = vpack.c.b16 %v2711, %v2707
    %v2752 = vpack.c.b16 %v2712, %v2708
    %v2753 = vpack.c.b16 %v2717, %v2713
    %v2754 = vpack.c.b16 %v2718, %v2714
    %v2755 = vpack.c.b16 %v2719, %v2715
    %v2756 = vpack.c.b16 %v2720, %v2716
    %v2757 = vpack.c.b16 %v2725, %v2721
    %v2758 = vpack.c.b16 %v2726, %v2722
    %v2759 = vpack.c.b16 %v2727, %v2723
    %v2760 = vpack.c.b16 %v2728, %v2724
    %2793 = vmatprep.subr.bf16.mxu0 %v2730
    %2794 = vmatpush1.bf16.msra.mxu0 %v2729
    %2795 = vmatprep.subr.bf16.mxu0 %v2734
    %2796 = vmatpush1.bf16.msra.mxu0 %v2733
    %2797 = vmatprep.subr.bf16.mxu0 %v2738
    %2798 = vmatpush1.bf16.msra.mxu0 %v2737
    %2799 = vmatprep.subr.bf16.mxu0 %v2742
    %2800 = vmatpush1.bf16.msra.mxu0 %v2741
    %2801 = vmatprep.subr.bf16.mxu0 %v2746
    %2802 = vmatpush1.bf16.msra.mxu0 %v2745
    %2803 = vmatprep.subr.bf16.mxu0 %v2750
    %2804 = vmatpush1.bf16.msra.mxu0 %v2749
    %2805 = vmatprep.subr.bf16.mxu0 %v2754
    %2806 = vmatpush1.bf16.msra.mxu0 %v2753
    %2807 = vmatprep.subr.bf16.mxu0 %v2758
    %2808 = vmatpush1.bf16.msra.mxu0 %v2757
    %2809 = vmatprep.subr.bf16.mxu0 0
    %2810 = vmatpush1.bf16.msra.mxu0 0
    %2811 = vmatprep.subr.bf16.mxu0 0
    %2812 = vmatpush1.bf16.msra.mxu0 0
    %2813 = vmatprep.subr.bf16.mxu0 0
    %2814 = vmatpush1.bf16.msra.mxu0 0
    %2815 = vmatprep.subr.bf16.mxu0 0
    %2816 = vmatpush1.bf16.msra.mxu0 0
    %2817 = vmatprep.subr.bf16.mxu0 0
    %2818 = vmatpush1.bf16.msra.mxu0 0
    %2819 = vmatprep.subr.bf16.mxu0 0
    %2820 = vmatpush1.bf16.msra.mxu0 0
    %2821 = vmatprep.subr.bf16.mxu0 0
    %2822 = vmatpush1.bf16.msra.mxu0 0
    %2823 = vmatprep.subr.bf16.mxu0 0
    %2824 = vmatpush1.bf16.msra.mxu0 0
    %2825 = vmatprep.mubr.bf16.mxu0 0
    %2826 = vmatmul.mubr.bf16.gmra.mrb[0].mxu0 %v2600
    %v2827 = vpop.f32.mrb[0].mxu0
    %v2828 = vadd.f32 0.0, %v2827
    %v2829 = vpop.f32.mrb[0].mxu0
    %v2830 = vadd.f32 0.0, %v2829
    %v2831 = vpop.f32.mrb[0].mxu0
    %v2832 = vpop.f32.mrb[0].mxu0
    %2833 = vdwg.mxu0
    %2834 = vmatprep.subr.bf16.mxu0 %v2732
    %2835 = vmatpush1.bf16.msra.mxu0 %v2731
    %2836 = vmatprep.subr.bf16.mxu0 %v2736
    %2837 = vmatpush1.bf16.msra.mxu0 %v2735
    %2838 = vmatprep.subr.bf16.mxu0 %v2740
    %2839 = vmatpush1.bf16.msra.mxu0 %v2739
    %2840 = vmatprep.subr.bf16.mxu0 %v2744
    %2841 = vmatpush1.bf16.msra.mxu0 %v2743
    %2842 = vmatprep.subr.bf16.mxu0 %v2748
    %2843 = vmatpush1.bf16.msra.mxu0 %v2747
    %2844 = vmatprep.subr.bf16.mxu0 %v2752
    %2845 = vmatpush1.bf16.msra.mxu0 %v2751
    %2846 = vmatprep.subr.bf16.mxu0 %v2756
    %2847 = vmatpush1.bf16.msra.mxu0 %v2755
    %2848 = vmatprep.subr.bf16.mxu0 %v2760
    %2849 = vmatpush1.bf16.msra.mxu0 %v2759
    %2850 = vmatprep.subr.bf16.mxu0 0
    %2851 = vmatpush1.bf16.msra.mxu0 0
    %2852 = vmatprep.subr.bf16.mxu0 0
    %2853 = vmatpush1.bf16.msra.mxu0 0
    %2854 = vmatprep.subr.bf16.mxu0 0
    %2855 = vmatpush1.bf16.msra.mxu0 0
    %2856 = vmatprep.subr.bf16.mxu0 0
    %2857 = vmatpush1.bf16.msra.mxu0 0
    %2858 = vmatprep.subr.bf16.mxu0 0
    %2859 = vmatpush1.bf16.msra.mxu0 0
    %2860 = vmatprep.subr.bf16.mxu0 0
    %2861 = vmatpush1.bf16.msra.mxu0 0
    %2862 = vmatprep.subr.bf16.mxu0 0
    %2863 = vmatpush1.bf16.msra.mxu0 0
    %2864 = vmatprep.subr.bf16.mxu0 0
    %2865 = vmatpush1.bf16.msra.mxu0 0
    %2866 = vmatprep.mubr.bf16.mxu0 0
    %2867 = vmatmul.mubr.bf16.gmra.mrb[0].mxu0 %v2600
    %v2868 = vpop.f32.mrb[0].mxu0
    %v2869 = vadd.f32 0.0, %v2868
    %v2870 = vpop.f32.mrb[0].mxu0
    %v2871 = vadd.f32 0.0, %v2870
    %v2872 = vpop.f32.mrb[0].mxu0
    %v2873 = vpop.f32.mrb[0].mxu0
    %2874 = vdwg.mxu0
    %v2875 = vadd.f32 %v2596, %v2828
    %v2876 = vadd.f32 %v2597, %v2830
    %v2877 = vadd.f32 %v2598, %v2869
    %v2878 = vadd.f32 %v2599, %v2871
    %v2879 = vxor.u32 %v2875, 2147483648
    %v2880 = vmul.f32 %v2879, 1.442695
    %v2881 = vpow.pop %v2880
    %v2882 = vadd.f32 %v2881, 1.0
    %v2883 = vrcp.pop %v2882
    %v2884 = vmul.f32 1.0, %v2883
    %v2885 = vxor.u32 %v2876, 2147483648
    %v2886 = vmul.f32 %v2885, 1.442695
    %v2887 = vpow.pop %v2886
    %v2888 = vadd.f32 %v2887, 1.0
    %v2889 = vrcp.pop %v2888
    %v2890 = vmul.f32 1.0, %v2889
    %v2891 = vtanh.pop %v2877
    %v2892 = vxor.u32 %v2878, 2147483648
    %v2893 = vmul.f32 %v2892, 1.442695
    %v2894 = vpow.pop %v2893
    %v2895 = vadd.f32 %v2894, 1.0
    %v2896 = vrcp.pop %v2895
    %v2897 = vmul.f32 1.0, %v2896
    %v2898 = vmul.f32 %v2890, %v2007
    %v2899 = vmul.f32 %v2884, %v2891
    %v2900 = vadd.f32 %v2898, %v2899
    %v2901 = vtanh.pop %v2900
    %v2902 = vmul.f32 %v2897, %v2901
    %v2903 = vld [vmem:[#allocation11] sm:$0xff]
    %v2904 = vld [vmem:[#allocation11 + $0x8] sm:$0xff]
    %v2905 = vld [vmem:[#allocation11 + $0x10] sm:$0xff]
    %v2906 = vld [vmem:[#allocation11 + $0x18] sm:$0xff]
    %v2907 = vld [vmem:[#allocation11 + $0x20] sm:$0xff]
    %v2908 = vld [vmem:[#allocation11 + $0x28] sm:$0xff]
    %v2909 = vld [vmem:[#allocation11 + $0x30] sm:$0xff]
    %v2910 = vld [vmem:[#allocation11 + $0x38] sm:$0xff]
    %v2911 = vld [vmem:[#allocation11 + $0x40] sm:$0xff]
    %v2912 = vld [vmem:[#allocation11 + $0x48] sm:$0xff]
    %v2913 = vld [vmem:[#allocation11 + $0x50] sm:$0xff]
    %v2914 = vld [vmem:[#allocation11 + $0x58] sm:$0xff]
    %v2915 = vld [vmem:[#allocation11 + $0x60] sm:$0xff]
    %v2916 = vld [vmem:[#allocation11 + $0x68] sm:$0xff]
    %v2917 = vld [vmem:[#allocation11 + $0x70] sm:$0xff]
    %v2918 = vld [vmem:[#allocation11 + $0x78] sm:$0xff]
    %v2919 = vld [vmem:[#allocation11 + $0x80] sm:$0xff]
    %v2920 = vld [vmem:[#allocation11 + $0x88] sm:$0xff]
    %v2921 = vld [vmem:[#allocation11 + $0x90] sm:$0xff]
    %v2922 = vld [vmem:[#allocation11 + $0x98] sm:$0xff]
    %v2923 = vld [vmem:[#allocation11 + $0xa0] sm:$0xff]
    %v2924 = vld [vmem:[#allocation11 + $0xa8] sm:$0xff]
    %v2925 = vld [vmem:[#allocation11 + $0xb0] sm:$0xff]
    %v2926 = vld [vmem:[#allocation11 + $0xb8] sm:$0xff]
    %v2927 = vld [vmem:[#allocation11 + $0xc0] sm:$0xff]
    %v2928 = vld [vmem:[#allocation11 + $0xc8] sm:$0xff]
    %v2929 = vld [vmem:[#allocation11 + $0xd0] sm:$0xff]
    %v2930 = vld [vmem:[#allocation11 + $0xd8] sm:$0xff]
    %v2931 = vld [vmem:[#allocation11 + $0xe0] sm:$0xff]
    %v2932 = vld [vmem:[#allocation11 + $0xe8] sm:$0xff]
    %v2933 = vld [vmem:[#allocation11 + $0xf0] sm:$0xff]
    %v2934 = vld [vmem:[#allocation11 + $0xf8] sm:$0xff]
    %v2967 = vunpack.c.l.b16 %v2903
    %v2968 = vunpack.c.h.b16 %v2903
    %v2969 = vunpack.c.l.b16 %v2904
    %v2970 = vunpack.c.h.b16 %v2904
    %v2971 = vunpack.c.l.b16 %v2905
    %v2972 = vunpack.c.h.b16 %v2905
    %v2973 = vunpack.c.l.b16 %v2906
    %v2974 = vunpack.c.h.b16 %v2906
    %v2975 = vunpack.c.l.b16 %v2907
    %v2976 = vunpack.c.h.b16 %v2907
    %v2977 = vunpack.c.l.b16 %v2908
    %v2978 = vunpack.c.h.b16 %v2908
    %v2979 = vunpack.c.l.b16 %v2909
    %v2980 = vunpack.c.h.b16 %v2909
    %v2981 = vunpack.c.l.b16 %v2910
    %v2982 = vunpack.c.h.b16 %v2910
    %v2983 = vunpack.c.l.b16 %v2911
    %v2984 = vunpack.c.h.b16 %v2911
    %v2985 = vunpack.c.l.b16 %v2912
    %v2986 = vunpack.c.h.b16 %v2912
    %v2987 = vunpack.c.l.b16 %v2913
    %v2988 = vunpack.c.h.b16 %v2913
    %v2989 = vunpack.c.l.b16 %v2914
    %v2990 = vunpack.c.h.b16 %v2914
    %v2991 = vunpack.c.l.b16 %v2915
    %v2992 = vunpack.c.h.b16 %v2915
    %v2993 = vunpack.c.l.b16 %v2916
    %v2994 = vunpack.c.h.b16 %v2916
    %v2995 = vunpack.c.l.b16 %v2917
    %v2996 = vunpack.c.h.b16 %v2917
    %v2997 = vunpack.c.l.b16 %v2918
    %v2998 = vunpack.c.h.b16 %v2918
    %v2999 = vunpack.c.l.b16 %v2919
    %v3000 = vunpack.c.h.b16 %v2919
    %v3001 = vunpack.c.l.b16 %v2920
    %v3002 = vunpack.c.h.b16 %v2920
    %v3003 = vunpack.c.l.b16 %v2921
    %v3004 = vunpack.c.h.b16 %v2921
    %v3005 = vunpack.c.l.b16 %v2922
    %v3006 = vunpack.c.h.b16 %v2922
    %v3007 = vunpack.c.l.b16 %v2923
    %v3008 = vunpack.c.h.b16 %v2923
    %v3009 = vunpack.c.l.b16 %v2924
    %v3010 = vunpack.c.h.b16 %v2924
    %v3011 = vunpack.c.l.b16 %v2925
    %v3012 = vunpack.c.h.b16 %v2925
    %v3013 = vunpack.c.l.b16 %v2926
    %v3014 = vunpack.c.h.b16 %v2926
    %v3015 = vunpack.c.l.b16 %v2927
    %v3016 = vunpack.c.h.b16 %v2927
    %v3017 = vunpack.c.l.b16 %v2928
    %v3018 = vunpack.c.h.b16 %v2928
    %v3019 = vunpack.c.l.b16 %v2929
    %v3020 = vunpack.c.h.b16 %v2929
    %v3021 = vunpack.c.l.b16 %v2930
    %v3022 = vunpack.c.h.b16 %v2930
    %v3023 = vunpack.c.l.b16 %v2931
    %v3024 = vunpack.c.h.b16 %v2931
    %v3025 = vunpack.c.l.b16 %v2932
    %v3026 = vunpack.c.h.b16 %v2932
    %v3027 = vunpack.c.l.b16 %v2933
    %v3028 = vunpack.c.h.b16 %v2933
    %v3029 = vunpack.c.l.b16 %v2934
    %v3030 = vunpack.c.h.b16 %v2934
    %v3031 = vpack.c.b16 %v2971, %v2967
    %v3032 = vpack.c.b16 %v2972, %v2968
    %v3033 = vpack.c.b16 %v2973, %v2969
    %v3034 = vpack.c.b16 %v2974, %v2970
    %v3035 = vpack.c.b16 %v2979, %v2975
    %v3036 = vpack.c.b16 %v2980, %v2976
    %v3037 = vpack.c.b16 %v2981, %v2977
    %v3038 = vpack.c.b16 %v2982, %v2978
    %v3039 = vpack.c.b16 %v2987, %v2983
    %v3040 = vpack.c.b16 %v2988, %v2984
    %v3041 = vpack.c.b16 %v2989, %v2985
    %v3042 = vpack.c.b16 %v2990, %v2986
    %v3043 = vpack.c.b16 %v2995, %v2991
    %v3044 = vpack.c.b16 %v2996, %v2992
    %v3045 = vpack.c.b16 %v2997, %v2993
    %v3046 = vpack.c.b16 %v2998, %v2994
    %v3047 = vpack.c.b16 %v3003, %v2999
    %v3048 = vpack.c.b16 %v3004, %v3000
    %v3049 = vpack.c.b16 %v3005, %v3001
    %v3050 = vpack.c.b16 %v3006, %v3002
    %v3051 = vpack.c.b16 %v3011, %v3007
    %v3052 = vpack.c.b16 %v3012, %v3008
    %v3053 = vpack.c.b16 %v3013, %v3009
    %v3054 = vpack.c.b16 %v3014, %v3010
    %v3055 = vpack.c.b16 %v3019, %v3015
    %v3056 = vpack.c.b16 %v3020, %v3016
    %v3057 = vpack.c.b16 %v3021, %v3017
    %v3058 = vpack.c.b16 %v3022, %v3018
    %v3059 = vpack.c.b16 %v3027, %v3023
    %v3060 = vpack.c.b16 %v3028, %v3024
    %v3061 = vpack.c.b16 %v3029, %v3025
    %v3062 = vpack.c.b16 %v3030, %v3026
    %3095 = vmatprep.subr.bf16.mxu0 %v3032
    %3096 = vmatpush1.bf16.msra.mxu0 %v3031
    %3097 = vmatprep.subr.bf16.mxu0 %v3036
    %3098 = vmatpush1.bf16.msra.mxu0 %v3035
    %3099 = vmatprep.subr.bf16.mxu0 %v3040
    %3100 = vmatpush1.bf16.msra.mxu0 %v3039
    %3101 = vmatprep.subr.bf16.mxu0 %v3044
    %3102 = vmatpush1.bf16.msra.mxu0 %v3043
    %3103 = vmatprep.subr.bf16.mxu0 %v3048
    %3104 = vmatpush1.bf16.msra.mxu0 %v3047
    %3105 = vmatprep.subr.bf16.mxu0 %v3052
    %3106 = vmatpush1.bf16.msra.mxu0 %v3051
    %3107 = vmatprep.subr.bf16.mxu0 %v3056
    %3108 = vmatpush1.bf16.msra.mxu0 %v3055
    %3109 = vmatprep.subr.bf16.mxu0 %v3060
    %3110 = vmatpush1.bf16.msra.mxu0 %v3059
    %3111 = vmatprep.subr.bf16.mxu0 0
    %3112 = vmatpush1.bf16.msra.mxu0 0
    %3113 = vmatprep.subr.bf16.mxu0 0
    %3114 = vmatpush1.bf16.msra.mxu0 0
    %3115 = vmatprep.subr.bf16.mxu0 0
    %3116 = vmatpush1.bf16.msra.mxu0 0
    %3117 = vmatprep.subr.bf16.mxu0 0
    %3118 = vmatpush1.bf16.msra.mxu0 0
    %3119 = vmatprep.subr.bf16.mxu0 0
    %3120 = vmatpush1.bf16.msra.mxu0 0
    %3121 = vmatprep.subr.bf16.mxu0 0
    %3122 = vmatpush1.bf16.msra.mxu0 0
    %3123 = vmatprep.subr.bf16.mxu0 0
    %3124 = vmatpush1.bf16.msra.mxu0 0
    %3125 = vmatprep.subr.bf16.mxu0 0
    %3126 = vmatpush1.bf16.msra.mxu0 0
    %3127 = vmatprep.mubr.bf16.mxu0 0
    %3128 = vmatmul.mubr.bf16.gmra.mrb[0].mxu0 %v2600
    %v3129 = vpop.f32.mrb[0].mxu0
    %v3130 = vadd.f32 %v659, %v3129
    %v3131 = vpop.f32.mrb[0].mxu0
    %v3132 = vadd.f32 %v663, %v3131
    %v3133 = vpop.f32.mrb[0].mxu0
    %v3134 = vpop.f32.mrb[0].mxu0
    %3135 = vdwg.mxu0
    %3136 = vmatprep.subr.bf16.mxu0 %v3034
    %3137 = vmatpush1.bf16.msra.mxu0 %v3033
    %3138 = vmatprep.subr.bf16.mxu0 %v3038
    %3139 = vmatpush1.bf16.msra.mxu0 %v3037
    %3140 = vmatprep.subr.bf16.mxu0 %v3042
    %3141 = vmatpush1.bf16.msra.mxu0 %v3041
    %3142 = vmatprep.subr.bf16.mxu0 %v3046
    %3143 = vmatpush1.bf16.msra.mxu0 %v3045
    %3144 = vmatprep.subr.bf16.mxu0 %v3050
    %3145 = vmatpush1.bf16.msra.mxu0 %v3049
    %3146 = vmatprep.subr.bf16.mxu0 %v3054
    %3147 = vmatpush1.bf16.msra.mxu0 %v3053
    %3148 = vmatprep.subr.bf16.mxu0 %v3058
    %3149 = vmatpush1.bf16.msra.mxu0 %v3057
    %3150 = vmatprep.subr.bf16.mxu0 %v3062
    %3151 = vmatpush1.bf16.msra.mxu0 %v3061
    %3152 = vmatprep.subr.bf16.mxu0 0
    %3153 = vmatpush1.bf16.msra.mxu0 0
    %3154 = vmatprep.subr.bf16.mxu0 0
    %3155 = vmatpush1.bf16.msra.mxu0 0
    %3156 = vmatprep.subr.bf16.mxu0 0
    %3157 = vmatpush1.bf16.msra.mxu0 0
    %3158 = vmatprep.subr.bf16.mxu0 0
    %3159 = vmatpush1.bf16.msra.mxu0 0
    %3160 = vmatprep.subr.bf16.mxu0 0
    %3161 = vmatpush1.bf16.msra.mxu0 0
    %3162 = vmatprep.subr.bf16.mxu0 0
    %3163 = vmatpush1.bf16.msra.mxu0 0
    %3164 = vmatprep.subr.bf16.mxu0 0
    %3165 = vmatpush1.bf16.msra.mxu0 0
    %3166 = vmatprep.subr.bf16.mxu0 0
    %3167 = vmatpush1.bf16.msra.mxu0 0
    %3168 = vmatprep.mubr.bf16.mxu0 0
    %3169 = vmatmul.mubr.bf16.gmra.mrb[0].mxu0 %v2600
    %v3170 = vpop.f32.mrb[0].mxu0
    %v3171 = vadd.f32 %v667, %v3170
    %v3172 = vpop.f32.mrb[0].mxu0
    %v3173 = vadd.f32 %v671, %v3172
    %v3174 = vpop.f32.mrb[0].mxu0
    %v3175 = vpop.f32.mrb[0].mxu0
    %3176 = vdwg.mxu0
    %v3177 = vld [vmem:[#allocation10] sm:$0xff]
    %v3178 = vld [vmem:[#allocation10 + $0x8] sm:$0xff]
    %v3179 = vld [vmem:[#allocation10 + $0x10] sm:$0xff]
    %v3180 = vld [vmem:[#allocation10 + $0x18] sm:$0xff]
    %v3181 = vld [vmem:[#allocation10 + $0x20] sm:$0xff]
    %v3182 = vld [vmem:[#allocation10 + $0x28] sm:$0xff]
    %v3183 = vld [vmem:[#allocation10 + $0x30] sm:$0xff]
    %v3184 = vld [vmem:[#allocation10 + $0x38] sm:$0xff]
    %v3185 = vld [vmem:[#allocation10 + $0x40] sm:$0xff]
    %v3186 = vld [vmem:[#allocation10 + $0x48] sm:$0xff]
    %v3187 = vld [vmem:[#allocation10 + $0x50] sm:$0xff]
    %v3188 = vld [vmem:[#allocation10 + $0x58] sm:$0xff]
    %v3189 = vld [vmem:[#allocation10 + $0x60] sm:$0xff]
    %v3190 = vld [vmem:[#allocation10 + $0x68] sm:$0xff]
    %v3191 = vld [vmem:[#allocation10 + $0x70] sm:$0xff]
    %v3192 = vld [vmem:[#allocation10 + $0x78] sm:$0xff]
    %v3193 = vld [vmem:[#allocation10 + $0x80] sm:$0xff]
    %v3194 = vld [vmem:[#allocation10 + $0x88] sm:$0xff]
    %v3195 = vld [vmem:[#allocation10 + $0x90] sm:$0xff]
    %v3196 = vld [vmem:[#allocation10 + $0x98] sm:$0xff]
    %v3197 = vld [vmem:[#allocation10 + $0xa0] sm:$0xff]
    %v3198 = vld [vmem:[#allocation10 + $0xa8] sm:$0xff]
    %v3199 = vld [vmem:[#allocation10 + $0xb0] sm:$0xff]
    %v3200 = vld [vmem:[#allocation10 + $0xb8] sm:$0xff]
    %v3201 = vld [vmem:[#allocation10 + $0xc0] sm:$0xff]
    %v3202 = vld [vmem:[#allocation10 + $0xc8] sm:$0xff]
    %v3203 = vld [vmem:[#allocation10 + $0xd0] sm:$0xff]
    %v3204 = vld [vmem:[#allocation10 + $0xd8] sm:$0xff]
    %v3205 = vld [vmem:[#allocation10 + $0xe0] sm:$0xff]
    %v3206 = vld [vmem:[#allocation10 + $0xe8] sm:$0xff]
    %v3207 = vld [vmem:[#allocation10 + $0xf0] sm:$0xff]
    %v3208 = vld [vmem:[#allocation10 + $0xf8] sm:$0xff]
    %v3241 = vunpack.c.l.b16 %v3177
    %v3242 = vunpack.c.h.b16 %v3177
    %v3243 = vunpack.c.l.b16 %v3178
    %v3244 = vunpack.c.h.b16 %v3178
    %v3245 = vunpack.c.l.b16 %v3179
    %v3246 = vunpack.c.h.b16 %v3179
    %v3247 = vunpack.c.l.b16 %v3180
    %v3248 = vunpack.c.h.b16 %v3180
    %v3249 = vunpack.c.l.b16 %v3181
    %v3250 = vunpack.c.h.b16 %v3181
    %v3251 = vunpack.c.l.b16 %v3182
    %v3252 = vunpack.c.h.b16 %v3182
    %v3253 = vunpack.c.l.b16 %v3183
    %v3254 = vunpack.c.h.b16 %v3183
    %v3255 = vunpack.c.l.b16 %v3184
    %v3256 = vunpack.c.h.b16 %v3184
    %v3257 = vunpack.c.l.b16 %v3185
    %v3258 = vunpack.c.h.b16 %v3185
    %v3259 = vunpack.c.l.b16 %v3186
    %v3260 = vunpack.c.h.b16 %v3186
    %v3261 = vunpack.c.l.b16 %v3187
    %v3262 = vunpack.c.h.b16 %v3187
    %v3263 = vunpack.c.l.b16 %v3188
    %v3264 = vunpack.c.h.b16 %v3188
    %v3265 = vunpack.c.l.b16 %v3189
    %v3266 = vunpack.c.h.b16 %v3189
    %v3267 = vunpack.c.l.b16 %v3190
    %v3268 = vunpack.c.h.b16 %v3190
    %v3269 = vunpack.c.l.b16 %v3191
    %v3270 = vunpack.c.h.b16 %v3191
    %v3271 = vunpack.c.l.b16 %v3192
    %v3272 = vunpack.c.h.b16 %v3192
    %v3273 = vunpack.c.l.b16 %v3193
    %v3274 = vunpack.c.h.b16 %v3193
    %v3275 = vunpack.c.l.b16 %v3194
    %v3276 = vunpack.c.h.b16 %v3194
    %v3277 = vunpack.c.l.b16 %v3195
    %v3278 = vunpack.c.h.b16 %v3195
    %v3279 = vunpack.c.l.b16 %v3196
    %v3280 = vunpack.c.h.b16 %v3196
    %v3281 = vunpack.c.l.b16 %v3197
    %v3282 = vunpack.c.h.b16 %v3197
    %v3283 = vunpack.c.l.b16 %v3198
    %v3284 = vunpack.c.h.b16 %v3198
    %v3285 = vunpack.c.l.b16 %v3199
    %v3286 = vunpack.c.h.b16 %v3199
    %v3287 = vunpack.c.l.b16 %v3200
    %v3288 = vunpack.c.h.b16 %v3200
    %v3289 = vunpack.c.l.b16 %v3201
    %v3290 = vunpack.c.h.b16 %v3201
    %v3291 = vunpack.c.l.b16 %v3202
    %v3292 = vunpack.c.h.b16 %v3202
    %v3293 = vunpack.c.l.b16 %v3203
    %v3294 = vunpack.c.h.b16 %v3203
    %v3295 = vunpack.c.l.b16 %v3204
    %v3296 = vunpack.c.h.b16 %v3204
    %v3297 = vunpack.c.l.b16 %v3205
    %v3298 = vunpack.c.h.b16 %v3205
    %v3299 = vunpack.c.l.b16 %v3206
    %v3300 = vunpack.c.h.b16 %v3206
    %v3301 = vunpack.c.l.b16 %v3207
    %v3302 = vunpack.c.h.b16 %v3207
    %v3303 = vunpack.c.l.b16 %v3208
    %v3304 = vunpack.c.h.b16 %v3208
    %v3305 = vpack.c.b16 %v3245, %v3241
    %v3306 = vpack.c.b16 %v3246, %v3242
    %v3307 = vpack.c.b16 %v3247, %v3243
    %v3308 = vpack.c.b16 %v3248, %v3244
    %v3309 = vpack.c.b16 %v3253, %v3249
    %v3310 = vpack.c.b16 %v3254, %v3250
    %v3311 = vpack.c.b16 %v3255, %v3251
    %v3312 = vpack.c.b16 %v3256, %v3252
    %v3313 = vpack.c.b16 %v3261, %v3257
    %v3314 = vpack.c.b16 %v3262, %v3258
    %v3315 = vpack.c.b16 %v3263, %v3259
    %v3316 = vpack.c.b16 %v3264, %v3260
    %v3317 = vpack.c.b16 %v3269, %v3265
    %v3318 = vpack.c.b16 %v3270, %v3266
    %v3319 = vpack.c.b16 %v3271, %v3267
    %v3320 = vpack.c.b16 %v3272, %v3268
    %v3321 = vpack.c.b16 %v3277, %v3273
    %v3322 = vpack.c.b16 %v3278, %v3274
    %v3323 = vpack.c.b16 %v3279, %v3275
    %v3324 = vpack.c.b16 %v3280, %v3276
    %v3325 = vpack.c.b16 %v3285, %v3281
    %v3326 = vpack.c.b16 %v3286, %v3282
    %v3327 = vpack.c.b16 %v3287, %v3283
    %v3328 = vpack.c.b16 %v3288, %v3284
    %v3329 = vpack.c.b16 %v3293, %v3289
    %v3330 = vpack.c.b16 %v3294, %v3290
    %v3331 = vpack.c.b16 %v3295, %v3291
    %v3332 = vpack.c.b16 %v3296, %v3292
    %v3333 = vpack.c.b16 %v3301, %v3297
    %v3334 = vpack.c.b16 %v3302, %v3298
    %v3335 = vpack.c.b16 %v3303, %v3299
    %v3336 = vpack.c.b16 %v3304, %v3300
    %3369 = vmatprep.subr.bf16.mxu0 %v3306
    %3370 = vmatpush1.bf16.msra.mxu0 %v3305
    %3371 = vmatprep.subr.bf16.mxu0 %v3310
    %3372 = vmatpush1.bf16.msra.mxu0 %v3309
    %3373 = vmatprep.subr.bf16.mxu0 %v3314
    %3374 = vmatpush1.bf16.msra.mxu0 %v3313
    %3375 = vmatprep.subr.bf16.mxu0 %v3318
    %3376 = vmatpush1.bf16.msra.mxu0 %v3317
    %3377 = vmatprep.subr.bf16.mxu0 %v3322
    %3378 = vmatpush1.bf16.msra.mxu0 %v3321
    %3379 = vmatprep.subr.bf16.mxu0 %v3326
    %3380 = vmatpush1.bf16.msra.mxu0 %v3325
    %3381 = vmatprep.subr.bf16.mxu0 %v3330
    %3382 = vmatpush1.bf16.msra.mxu0 %v3329
    %3383 = vmatprep.subr.bf16.mxu0 %v3334
    %3384 = vmatpush1.bf16.msra.mxu0 %v3333
    %3385 = vmatprep.subr.bf16.mxu0 0
    %3386 = vmatpush1.bf16.msra.mxu0 0
    %3387 = vmatprep.subr.bf16.mxu0 0
    %3388 = vmatpush1.bf16.msra.mxu0 0
    %3389 = vmatprep.subr.bf16.mxu0 0
    %3390 = vmatpush1.bf16.msra.mxu0 0
    %3391 = vmatprep.subr.bf16.mxu0 0
    %3392 = vmatpush1.bf16.msra.mxu0 0
    %3393 = vmatprep.subr.bf16.mxu0 0
    %3394 = vmatpush1.bf16.msra.mxu0 0
    %3395 = vmatprep.subr.bf16.mxu0 0
    %3396 = vmatpush1.bf16.msra.mxu0 0
    %3397 = vmatprep.subr.bf16.mxu0 0
    %3398 = vmatpush1.bf16.msra.mxu0 0
    %3399 = vmatprep.subr.bf16.mxu0 0
    %3400 = vmatpush1.bf16.msra.mxu0 0
    %3401 = vmatprep.mubr.bf16.mxu0 0
    %3402 = vmatmul.mubr.bf16.gmra.mrb[0].mxu0 %v2586
    %v3403 = vpop.f32.mrb[0].mxu0
    %v3404 = vadd.f32 0.0, %v3403
    %v3405 = vpop.f32.mrb[0].mxu0
    %v3406 = vadd.f32 0.0, %v3405
    %v3407 = vpop.f32.mrb[0].mxu0
    %v3408 = vpop.f32.mrb[0].mxu0
    %3409 = vdwg.mxu0
    %3410 = vmatprep.subr.bf16.mxu0 %v3308
    %3411 = vmatpush1.bf16.msra.mxu0 %v3307
    %3412 = vmatprep.subr.bf16.mxu0 %v3312
    %3413 = vmatpush1.bf16.msra.mxu0 %v3311
    %3414 = vmatprep.subr.bf16.mxu0 %v3316
    %3415 = vmatpush1.bf16.msra.mxu0 %v3315
    %3416 = vmatprep.subr.bf16.mxu0 %v3320
    %3417 = vmatpush1.bf16.msra.mxu0 %v3319
    %3418 = vmatprep.subr.bf16.mxu0 %v3324
    %3419 = vmatpush1.bf16.msra.mxu0 %v3323
    %3420 = vmatprep.subr.bf16.mxu0 %v3328
    %3421 = vmatpush1.bf16.msra.mxu0 %v3327
    %3422 = vmatprep.subr.bf16.mxu0 %v3332
    %3423 = vmatpush1.bf16.msra.mxu0 %v3331
    %3424 = vmatprep.subr.bf16.mxu0 %v3336
    %3425 = vmatpush1.bf16.msra.mxu0 %v3335
    %3426 = vmatprep.subr.bf16.mxu0 0
    %3427 = vmatpush1.bf16.msra.mxu0 0
    %3428 = vmatprep.subr.bf16.mxu0 0
    %3429 = vmatpush1.bf16.msra.mxu0 0
    %3430 = vmatprep.subr.bf16.mxu0 0
    %3431 = vmatpush1.bf16.msra.mxu0 0
    %3432 = vmatprep.subr.bf16.mxu0 0
    %3433 = vmatpush1.bf16.msra.mxu0 0
    %3434 = vmatprep.subr.bf16.mxu0 0
    %3435 = vmatpush1.bf16.msra.mxu0 0
    %3436 = vmatprep.subr.bf16.mxu0 0
    %3437 = vmatpush1.bf16.msra.mxu0 0
    %3438 = vmatprep.subr.bf16.mxu0 0
    %3439 = vmatpush1.bf16.msra.mxu0 0
    %3440 = vmatprep.subr.bf16.mxu0 0
    %3441 = vmatpush1.bf16.msra.mxu0 0
    %3442 = vmatprep.mubr.bf16.mxu0 0
    %3443 = vmatmul.mubr.bf16.gmra.mrb[0].mxu0 %v2586
    %v3444 = vpop.f32.mrb[0].mxu0
    %v3445 = vadd.f32 0.0, %v3444
    %v3446 = vpop.f32.mrb[0].mxu0
    %v3447 = vadd.f32 0.0, %v3446
    %v3448 = vpop.f32.mrb[0].mxu0
    %v3449 = vpop.f32.mrb[0].mxu0
    %3450 = vdwg.mxu0
    %v3451 = vadd.f32 %v3130, %v3404
    %v3452 = vadd.f32 %v3132, %v3406
    %v3453 = vadd.f32 %v3171, %v3445
    %v3454 = vadd.f32 %v3173, %v3447
    %v3455 = vxor.u32 %v3451, 2147483648
    %v3456 = vmul.f32 %v3455, 1.442695
    %v3457 = vpow.pop %v3456
    %v3458 = vadd.f32 %v3457, 1.0
    %v3459 = vrcp.pop %v3458
    %v3460 = vmul.f32 1.0, %v3459
    %v3461 = vxor.u32 %v3452, 2147483648
    %v3462 = vmul.f32 %v3461, 1.442695
    %v3463 = vpow.pop %v3462
    %v3464 = vadd.f32 %v3463, 1.0
    %v3465 = vrcp.pop %v3464
    %v3466 = vmul.f32 1.0, %v3465
    %v3467 = vtanh.pop %v3453
    %v3468 = vxor.u32 %v3454, 2147483648
    %v3469 = vmul.f32 %v3468, 1.442695
    %v3470 = vpow.pop %v3469
    %v3471 = vadd.f32 %v3470, 1.0
    %v3472 = vrcp.pop %v3471
    %v3473 = vmul.f32 1.0, %v3472
    %v3474 = vmul.f32 %v3466, %v2583
    %v3475 = vmul.f32 %v3460, %v3467
    %v3476 = vadd.f32 %v3474, %v3475
    %v3477 = vtanh.pop %v3476
    %v3478 = vmul.f32 %v3473, %v3477
    %v3479 = vpack.c.bf16 %v3478, %v3478
    %s3480 = scalar_lea.vmem [#allocation3], 8
    %3481 = vst [vmem:[%s3480] sm:$0xf] %v3479
    %s3482 = scalar_lea.vmem [#allocation2], 64
    %v3483 = vld [vmem:[%s3482] sm:$0xff]
    %v3484 = vld [vmem:[%s3482 + $0x8] sm:$0xff]
    %v3485 = vunpack.c.l.bf16 %v3483
    %v3486 = vunpack.c.h.bf16 %v3483
    %v3487 = vunpack.c.l.bf16 %v3484
    %v3488 = vunpack.c.h.bf16 %v3484
    %v3489 = vadd.f32 %v3485, %v637
    %v3490 = vadd.f32 %v3486, %v641
    %v3491 = vadd.f32 %v3487, %v645
    %v3492 = vadd.f32 %v3488, %v649
    %v3493 = vpack.c.bf16 %v2902, %v2902
    %v3494 = vld [vmem:[#allocation8] sm:$0xff]
    %v3495 = vld [vmem:[#allocation8 + $0x8] sm:$0xff]
    %v3496 = vld [vmem:[#allocation8 + $0x10] sm:$0xff]
    %v3497 = vld [vmem:[#allocation8 + $0x18] sm:$0xff]
    %v3498 = vld [vmem:[#allocation8 + $0x20] sm:$0xff]
    %v3499 = vld [vmem:[#allocation8 + $0x28] sm:$0xff]
    %v3500 = vld [vmem:[#allocation8 + $0x30] sm:$0xff]
    %v3501 = vld [vmem:[#allocation8 + $0x38] sm:$0xff]
    %v3502 = vld [vmem:[#allocation8 + $0x40] sm:$0xff]
    %v3503 = vld [vmem:[#allocation8 + $0x48] sm:$0xff]
    %v3504 = vld [vmem:[#allocation8 + $0x50] sm:$0xff]
    %v3505 = vld [vmem:[#allocation8 + $0x58] sm:$0xff]
    %v3506 = vld [vmem:[#allocation8 + $0x60] sm:$0xff]
    %v3507 = vld [vmem:[#allocation8 + $0x68] sm:$0xff]
    %v3508 = vld [vmem:[#allocation8 + $0x70] sm:$0xff]
    %v3509 = vld [vmem:[#allocation8 + $0x78] sm:$0xff]
    %v3510 = vld [vmem:[#allocation8 + $0x80] sm:$0xff]
    %v3511 = vld [vmem:[#allocation8 + $0x88] sm:$0xff]
    %v3512 = vld [vmem:[#allocation8 + $0x90] sm:$0xff]
    %v3513 = vld [vmem:[#allocation8 + $0x98] sm:$0xff]
    %v3514 = vld [vmem:[#allocation8 + $0xa0] sm:$0xff]
    %v3515 = vld [vmem:[#allocation8 + $0xa8] sm:$0xff]
    %v3516 = vld [vmem:[#allocation8 + $0xb0] sm:$0xff]
    %v3517 = vld [vmem:[#allocation8 + $0xb8] sm:$0xff]
    %v3518 = vld [vmem:[#allocation8 + $0xc0] sm:$0xff]
    %v3519 = vld [vmem:[#allocation8 + $0xc8] sm:$0xff]
    %v3520 = vld [vmem:[#allocation8 + $0xd0] sm:$0xff]
    %v3521 = vld [vmem:[#allocation8 + $0xd8] sm:$0xff]
    %v3522 = vld [vmem:[#allocation8 + $0xe0] sm:$0xff]
    %v3523 = vld [vmem:[#allocation8 + $0xe8] sm:$0xff]
    %v3524 = vld [vmem:[#allocation8 + $0xf0] sm:$0xff]
    %v3525 = vld [vmem:[#allocation8 + $0xf8] sm:$0xff]
    %v3558 = vunpack.c.l.b16 %v3494
    %v3559 = vunpack.c.h.b16 %v3494
    %v3560 = vunpack.c.l.b16 %v3495
    %v3561 = vunpack.c.h.b16 %v3495
    %v3562 = vunpack.c.l.b16 %v3496
    %v3563 = vunpack.c.h.b16 %v3496
    %v3564 = vunpack.c.l.b16 %v3497
    %v3565 = vunpack.c.h.b16 %v3497
    %v3566 = vunpack.c.l.b16 %v3498
    %v3567 = vunpack.c.h.b16 %v3498
    %v3568 = vunpack.c.l.b16 %v3499
    %v3569 = vunpack.c.h.b16 %v3499
    %v3570 = vunpack.c.l.b16 %v3500
    %v3571 = vunpack.c.h.b16 %v3500
    %v3572 = vunpack.c.l.b16 %v3501
    %v3573 = vunpack.c.h.b16 %v3501
    %v3574 = vunpack.c.l.b16 %v3502
    %v3575 = vunpack.c.h.b16 %v3502
    %v3576 = vunpack.c.l.b16 %v3503
    %v3577 = vunpack.c.h.b16 %v3503
    %v3578 = vunpack.c.l.b16 %v3504
    %v3579 = vunpack.c.h.b16 %v3504
    %v3580 = vunpack.c.l.b16 %v3505
    %v3581 = vunpack.c.h.b16 %v3505
    %v3582 = vunpack.c.l.b16 %v3506
    %v3583 = vunpack.c.h.b16 %v3506
    %v3584 = vunpack.c.l.b16 %v3507
    %v3585 = vunpack.c.h.b16 %v3507
    %v3586 = vunpack.c.l.b16 %v3508
    %v3587 = vunpack.c.h.b16 %v3508
    %v3588 = vunpack.c.l.b16 %v3509
    %v3589 = vunpack.c.h.b16 %v3509
    %v3590 = vunpack.c.l.b16 %v3510
    %v3591 = vunpack.c.h.b16 %v3510
    %v3592 = vunpack.c.l.b16 %v3511
    %v3593 = vunpack.c.h.b16 %v3511
    %v3594 = vunpack.c.l.b16 %v3512
    %v3595 = vunpack.c.h.b16 %v3512
    %v3596 = vunpack.c.l.b16 %v3513
    %v3597 = vunpack.c.h.b16 %v3513
    %v3598 = vunpack.c.l.b16 %v3514
    %v3599 = vunpack.c.h.b16 %v3514
    %v3600 = vunpack.c.l.b16 %v3515
    %v3601 = vunpack.c.h.b16 %v3515
    %v3602 = vunpack.c.l.b16 %v3516
    %v3603 = vunpack.c.h.b16 %v3516
    %v3604 = vunpack.c.l.b16 %v3517
    %v3605 = vunpack.c.h.b16 %v3517
    %v3606 = vunpack.c.l.b16 %v3518
    %v3607 = vunpack.c.h.b16 %v3518
    %v3608 = vunpack.c.l.b16 %v3519
    %v3609 = vunpack.c.h.b16 %v3519
    %v3610 = vunpack.c.l.b16 %v3520
    %v3611 = vunpack.c.h.b16 %v3520
    %v3612 = vunpack.c.l.b16 %v3521
    %v3613 = vunpack.c.h.b16 %v3521
    %v3614 = vunpack.c.l.b16 %v3522
    %v3615 = vunpack.c.h.b16 %v3522
    %v3616 = vunpack.c.l.b16 %v3523
    %v3617 = vunpack.c.h.b16 %v3523
    %v3618 = vunpack.c.l.b16 %v3524
    %v3619 = vunpack.c.h.b16 %v3524
    %v3620 = vunpack.c.l.b16 %v3525
    %v3621 = vunpack.c.h.b16 %v3525
    %v3622 = vpack.c.b16 %v3562, %v3558
    %v3623 = vpack.c.b16 %v3563, %v3559
    %v3624 = vpack.c.b16 %v3564, %v3560
    %v3625 = vpack.c.b16 %v3565, %v3561
    %v3626 = vpack.c.b16 %v3570, %v3566
    %v3627 = vpack.c.b16 %v3571, %v3567
    %v3628 = vpack.c.b16 %v3572, %v3568
    %v3629 = vpack.c.b16 %v3573, %v3569
    %v3630 = vpack.c.b16 %v3578, %v3574
    %v3631 = vpack.c.b16 %v3579, %v3575
    %v3632 = vpack.c.b16 %v3580, %v3576
    %v3633 = vpack.c.b16 %v3581, %v3577
    %v3634 = vpack.c.b16 %v3586, %v3582
    %v3635 = vpack.c.b16 %v3587, %v3583
    %v3636 = vpack.c.b16 %v3588, %v3584
    %v3637 = vpack.c.b16 %v3589, %v3585
    %v3638 = vpack.c.b16 %v3594, %v3590
    %v3639 = vpack.c.b16 %v3595, %v3591
    %v3640 = vpack.c.b16 %v3596, %v3592
    %v3641 = vpack.c.b16 %v3597, %v3593
    %v3642 = vpack.c.b16 %v3602, %v3598
    %v3643 = vpack.c.b16 %v3603, %v3599
    %v3644 = vpack.c.b16 %v3604, %v3600
    %v3645 = vpack.c.b16 %v3605, %v3601
    %v3646 = vpack.c.b16 %v3610, %v3606
    %v3647 = vpack.c.b16 %v3611, %v3607
    %v3648 = vpack.c.b16 %v3612, %v3608
    %v3649 = vpack.c.b16 %v3613, %v3609
    %v3650 = vpack.c.b16 %v3618, %v3614
    %v3651 = vpack.c.b16 %v3619, %v3615
    %v3652 = vpack.c.b16 %v3620, %v3616
    %v3653 = vpack.c.b16 %v3621, %v3617
    %3686 = vmatprep.subr.bf16.mxu0 %v3623
    %3687 = vmatpush1.bf16.msra.mxu0 %v3622
    %3688 = vmatprep.subr.bf16.mxu0 %v3627
    %3689 = vmatpush1.bf16.msra.mxu0 %v3626
    %3690 = vmatprep.subr.bf16.mxu0 %v3631
    %3691 = vmatpush1.bf16.msra.mxu0 %v3630
    %3692 = vmatprep.subr.bf16.mxu0 %v3635
    %3693 = vmatpush1.bf16.msra.mxu0 %v3634
    %3694 = vmatprep.subr.bf16.mxu0 %v3639
    %3695 = vmatpush1.bf16.msra.mxu0 %v3638
    %3696 = vmatprep.subr.bf16.mxu0 %v3643
    %3697 = vmatpush1.bf16.msra.mxu0 %v3642
    %3698 = vmatprep.subr.bf16.mxu0 %v3647
    %3699 = vmatpush1.bf16.msra.mxu0 %v3646
    %3700 = vmatprep.subr.bf16.mxu0 %v3651
    %3701 = vmatpush1.bf16.msra.mxu0 %v3650
    %3702 = vmatprep.subr.bf16.mxu0 0
    %3703 = vmatpush1.bf16.msra.mxu0 0
    %3704 = vmatprep.subr.bf16.mxu0 0
    %3705 = vmatpush1.bf16.msra.mxu0 0
    %3706 = vmatprep.subr.bf16.mxu0 0
    %3707 = vmatpush1.bf16.msra.mxu0 0
    %3708 = vmatprep.subr.bf16.mxu0 0
    %3709 = vmatpush1.bf16.msra.mxu0 0
    %3710 = vmatprep.subr.bf16.mxu0 0
    %3711 = vmatpush1.bf16.msra.mxu0 0
    %3712 = vmatprep.subr.bf16.mxu0 0
    %3713 = vmatpush1.bf16.msra.mxu0 0
    %3714 = vmatprep.subr.bf16.mxu0 0
    %3715 = vmatpush1.bf16.msra.mxu0 0
    %3716 = vmatprep.subr.bf16.mxu0 0
    %3717 = vmatpush1.bf16.msra.mxu0 0
    %3718 = vmatprep.mubr.bf16.mxu0 0
    %3719 = vmatmul.mubr.bf16.gmra.mrb[0].mxu0 %v3493
    %v3720 = vpop.f32.mrb[0].mxu0
    %v3721 = vadd.f32 0.0, %v3720
    %v3722 = vpop.f32.mrb[0].mxu0
    %v3723 = vadd.f32 0.0, %v3722
    %v3724 = vpop.f32.mrb[0].mxu0
    %v3725 = vpop.f32.mrb[0].mxu0
    %3726 = vdwg.mxu0
    %3727 = vmatprep.subr.bf16.mxu0 %v3625
    %3728 = vmatpush1.bf16.msra.mxu0 %v3624
    %3729 = vmatprep.subr.bf16.mxu0 %v3629
    %3730 = vmatpush1.bf16.msra.mxu0 %v3628
    %3731 = vmatprep.subr.bf16.mxu0 %v3633
    %3732 = vmatpush1.bf16.msra.mxu0 %v3632
    %3733 = vmatprep.subr.bf16.mxu0 %v3637
    %3734 = vmatpush1.bf16.msra.mxu0 %v3636
    %3735 = vmatprep.subr.bf16.mxu0 %v3641
    %3736 = vmatpush1.bf16.msra.mxu0 %v3640
    %3737 = vmatprep.subr.bf16.mxu0 %v3645
    %3738 = vmatpush1.bf16.msra.mxu0 %v3644
    %3739 = vmatprep.subr.bf16.mxu0 %v3649
    %3740 = vmatpush1.bf16.msra.mxu0 %v3648
    %3741 = vmatprep.subr.bf16.mxu0 %v3653
    %3742 = vmatpush1.bf16.msra.mxu0 %v3652
    %3743 = vmatprep.subr.bf16.mxu0 0
    %3744 = vmatpush1.bf16.msra.mxu0 0
    %3745 = vmatprep.subr.bf16.mxu0 0
    %3746 = vmatpush1.bf16.msra.mxu0 0
    %3747 = vmatprep.subr.bf16.mxu0 0
    %3748 = vmatpush1.bf16.msra.mxu0 0
    %3749 = vmatprep.subr.bf16.mxu0 0
    %3750 = vmatpush1.bf16.msra.mxu0 0
    %3751 = vmatprep.subr.bf16.mxu0 0
    %3752 = vmatpush1.bf16.msra.mxu0 0
    %3753 = vmatprep.subr.bf16.mxu0 0
    %3754 = vmatpush1.bf16.msra.mxu0 0
    %3755 = vmatprep.subr.bf16.mxu0 0
    %3756 = vmatpush1.bf16.msra.mxu0 0
    %3757 = vmatprep.subr.bf16.mxu0 0
    %3758 = vmatpush1.bf16.msra.mxu0 0
    %3759 = vmatprep.mubr.bf16.mxu0 0
    %3760 = vmatmul.mubr.bf16.gmra.mrb[0].mxu0 %v3493
    %v3761 = vpop.f32.mrb[0].mxu0
    %v3762 = vadd.f32 0.0, %v3761
    %v3763 = vpop.f32.mrb[0].mxu0
    %v3764 = vadd.f32 0.0, %v3763
    %v3765 = vpop.f32.mrb[0].mxu0
    %v3766 = vpop.f32.mrb[0].mxu0
    %3767 = vdwg.mxu0
    %v3768 = vadd.f32 %v3489, %v3721
    %v3769 = vadd.f32 %v3490, %v3723
    %v3770 = vadd.f32 %v3491, %v3762
    %v3771 = vadd.f32 %v3492, %v3764
    %v3772 = vxor.u32 %v3768, 2147483648
    %v3773 = vmul.f32 %v3772, 1.442695
    %v3774 = vpow.pop %v3773
    %v3775 = vadd.f32 %v3774, 1.0
    %v3776 = vrcp.pop %v3775
    %v3777 = vmul.f32 1.0, %v3776
    %v3778 = vxor.u32 %v3769, 2147483648
    %v3779 = vmul.f32 %v3778, 1.442695
    %v3780 = vpow.pop %v3779
    %v3781 = vadd.f32 %v3780, 1.0
    %v3782 = vrcp.pop %v3781
    %v3783 = vmul.f32 1.0, %v3782
    %v3784 = vtanh.pop %v3770
    %v3785 = vxor.u32 %v3771, 2147483648
    %v3786 = vmul.f32 %v3785, 1.442695
    %v3787 = vpow.pop %v3786
    %v3788 = vadd.f32 %v3787, 1.0
    %v3789 = vrcp.pop %v3788
    %v3790 = vmul.f32 1.0, %v3789
    %v3791 = vmul.f32 %v3783, %v2900
    %v3792 = vmul.f32 %v3777, %v3784
    %v3793 = vadd.f32 %v3791, %v3792
    %v3794 = vtanh.pop %v3793
    %v3795 = vmul.f32 %v3790, %v3794
    %v3796 = vld [vmem:[#allocation11] sm:$0xff]
    %v3797 = vld [vmem:[#allocation11 + $0x8] sm:$0xff]
    %v3798 = vld [vmem:[#allocation11 + $0x10] sm:$0xff]
    %v3799 = vld [vmem:[#allocation11 + $0x18] sm:$0xff]
    %v3800 = vld [vmem:[#allocation11 + $0x20] sm:$0xff]
    %v3801 = vld [vmem:[#allocation11 + $0x28] sm:$0xff]
    %v3802 = vld [vmem:[#allocation11 + $0x30] sm:$0xff]
    %v3803 = vld [vmem:[#allocation11 + $0x38] sm:$0xff]
    %v3804 = vld [vmem:[#allocation11 + $0x40] sm:$0xff]
    %v3805 = vld [vmem:[#allocation11 + $0x48] sm:$0xff]
    %v3806 = vld [vmem:[#allocation11 + $0x50] sm:$0xff]
    %v3807 = vld [vmem:[#allocation11 + $0x58] sm:$0xff]
    %v3808 = vld [vmem:[#allocation11 + $0x60] sm:$0xff]
    %v3809 = vld [vmem:[#allocation11 + $0x68] sm:$0xff]
    %v3810 = vld [vmem:[#allocation11 + $0x70] sm:$0xff]
    %v3811 = vld [vmem:[#allocation11 + $0x78] sm:$0xff]
    %v3812 = vld [vmem:[#allocation11 + $0x80] sm:$0xff]
    %v3813 = vld [vmem:[#allocation11 + $0x88] sm:$0xff]
    %v3814 = vld [vmem:[#allocation11 + $0x90] sm:$0xff]
    %v3815 = vld [vmem:[#allocation11 + $0x98] sm:$0xff]
    %v3816 = vld [vmem:[#allocation11 + $0xa0] sm:$0xff]
    %v3817 = vld [vmem:[#allocation11 + $0xa8] sm:$0xff]
    %v3818 = vld [vmem:[#allocation11 + $0xb0] sm:$0xff]
    %v3819 = vld [vmem:[#allocation11 + $0xb8] sm:$0xff]
    %v3820 = vld [vmem:[#allocation11 + $0xc0] sm:$0xff]
    %v3821 = vld [vmem:[#allocation11 + $0xc8] sm:$0xff]
    %v3822 = vld [vmem:[#allocation11 + $0xd0] sm:$0xff]
    %v3823 = vld [vmem:[#allocation11 + $0xd8] sm:$0xff]
    %v3824 = vld [vmem:[#allocation11 + $0xe0] sm:$0xff]
    %v3825 = vld [vmem:[#allocation11 + $0xe8] sm:$0xff]
    %v3826 = vld [vmem:[#allocation11 + $0xf0] sm:$0xff]
    %v3827 = vld [vmem:[#allocation11 + $0xf8] sm:$0xff]
    %v3860 = vunpack.c.l.b16 %v3796
    %v3861 = vunpack.c.h.b16 %v3796
    %v3862 = vunpack.c.l.b16 %v3797
    %v3863 = vunpack.c.h.b16 %v3797
    %v3864 = vunpack.c.l.b16 %v3798
    %v3865 = vunpack.c.h.b16 %v3798
    %v3866 = vunpack.c.l.b16 %v3799
    %v3867 = vunpack.c.h.b16 %v3799
    %v3868 = vunpack.c.l.b16 %v3800
    %v3869 = vunpack.c.h.b16 %v3800
    %v3870 = vunpack.c.l.b16 %v3801
    %v3871 = vunpack.c.h.b16 %v3801
    %v3872 = vunpack.c.l.b16 %v3802
    %v3873 = vunpack.c.h.b16 %v3802
    %v3874 = vunpack.c.l.b16 %v3803
    %v3875 = vunpack.c.h.b16 %v3803
    %v3876 = vunpack.c.l.b16 %v3804
    %v3877 = vunpack.c.h.b16 %v3804
    %v3878 = vunpack.c.l.b16 %v3805
    %v3879 = vunpack.c.h.b16 %v3805
    %v3880 = vunpack.c.l.b16 %v3806
    %v3881 = vunpack.c.h.b16 %v3806
    %v3882 = vunpack.c.l.b16 %v3807
    %v3883 = vunpack.c.h.b16 %v3807
    %v3884 = vunpack.c.l.b16 %v3808
    %v3885 = vunpack.c.h.b16 %v3808
    %v3886 = vunpack.c.l.b16 %v3809
    %v3887 = vunpack.c.h.b16 %v3809
    %v3888 = vunpack.c.l.b16 %v3810
    %v3889 = vunpack.c.h.b16 %v3810
    %v3890 = vunpack.c.l.b16 %v3811
    %v3891 = vunpack.c.h.b16 %v3811
    %v3892 = vunpack.c.l.b16 %v3812
    %v3893 = vunpack.c.h.b16 %v3812
    %v3894 = vunpack.c.l.b16 %v3813
    %v3895 = vunpack.c.h.b16 %v3813
    %v3896 = vunpack.c.l.b16 %v3814
    %v3897 = vunpack.c.h.b16 %v3814
    %v3898 = vunpack.c.l.b16 %v3815
    %v3899 = vunpack.c.h.b16 %v3815
    %v3900 = vunpack.c.l.b16 %v3816
    %v3901 = vunpack.c.h.b16 %v3816
    %v3902 = vunpack.c.l.b16 %v3817
    %v3903 = vunpack.c.h.b16 %v3817
    %v3904 = vunpack.c.l.b16 %v3818
    %v3905 = vunpack.c.h.b16 %v3818
    %v3906 = vunpack.c.l.b16 %v3819
    %v3907 = vunpack.c.h.b16 %v3819
    %v3908 = vunpack.c.l.b16 %v3820
    %v3909 = vunpack.c.h.b16 %v3820
    %v3910 = vunpack.c.l.b16 %v3821
    %v3911 = vunpack.c.h.b16 %v3821
    %v3912 = vunpack.c.l.b16 %v3822
    %v3913 = vunpack.c.h.b16 %v3822
    %v3914 = vunpack.c.l.b16 %v3823
    %v3915 = vunpack.c.h.b16 %v3823
    %v3916 = vunpack.c.l.b16 %v3824
    %v3917 = vunpack.c.h.b16 %v3824
    %v3918 = vunpack.c.l.b16 %v3825
    %v3919 = vunpack.c.h.b16 %v3825
    %v3920 = vunpack.c.l.b16 %v3826
    %v3921 = vunpack.c.h.b16 %v3826
    %v3922 = vunpack.c.l.b16 %v3827
    %v3923 = vunpack.c.h.b16 %v3827
    %v3924 = vpack.c.b16 %v3864, %v3860
    %v3925 = vpack.c.b16 %v3865, %v3861
    %v3926 = vpack.c.b16 %v3866, %v3862
    %v3927 = vpack.c.b16 %v3867, %v3863
    %v3928 = vpack.c.b16 %v3872, %v3868
    %v3929 = vpack.c.b16 %v3873, %v3869
    %v3930 = vpack.c.b16 %v3874, %v3870
    %v3931 = vpack.c.b16 %v3875, %v3871
    %v3932 = vpack.c.b16 %v3880, %v3876
    %v3933 = vpack.c.b16 %v3881, %v3877
    %v3934 = vpack.c.b16 %v3882, %v3878
    %v3935 = vpack.c.b16 %v3883, %v3879
    %v3936 = vpack.c.b16 %v3888, %v3884
    %v3937 = vpack.c.b16 %v3889, %v3885
    %v3938 = vpack.c.b16 %v3890, %v3886
    %v3939 = vpack.c.b16 %v3891, %v3887
    %v3940 = vpack.c.b16 %v3896, %v3892
    %v3941 = vpack.c.b16 %v3897, %v3893
    %v3942 = vpack.c.b16 %v3898, %v3894
    %v3943 = vpack.c.b16 %v3899, %v3895
    %v3944 = vpack.c.b16 %v3904, %v3900
    %v3945 = vpack.c.b16 %v3905, %v3901
    %v3946 = vpack.c.b16 %v3906, %v3902
    %v3947 = vpack.c.b16 %v3907, %v3903
    %v3948 = vpack.c.b16 %v3912, %v3908
    %v3949 = vpack.c.b16 %v3913, %v3909
    %v3950 = vpack.c.b16 %v3914, %v3910
    %v3951 = vpack.c.b16 %v3915, %v3911
    %v3952 = vpack.c.b16 %v3920, %v3916
    %v3953 = vpack.c.b16 %v3921, %v3917
    %v3954 = vpack.c.b16 %v3922, %v3918
    %v3955 = vpack.c.b16 %v3923, %v3919
    %3988 = vmatprep.subr.bf16.mxu0 %v3925
    %3989 = vmatpush1.bf16.msra.mxu0 %v3924
    %3990 = vmatprep.subr.bf16.mxu0 %v3929
    %3991 = vmatpush1.bf16.msra.mxu0 %v3928
    %3992 = vmatprep.subr.bf16.mxu0 %v3933
    %3993 = vmatpush1.bf16.msra.mxu0 %v3932
    %3994 = vmatprep.subr.bf16.mxu0 %v3937
    %3995 = vmatpush1.bf16.msra.mxu0 %v3936
    %3996 = vmatprep.subr.bf16.mxu0 %v3941
    %3997 = vmatpush1.bf16.msra.mxu0 %v3940
    %3998 = vmatprep.subr.bf16.mxu0 %v3945
    %3999 = vmatpush1.bf16.msra.mxu0 %v3944
    %4000 = vmatprep.subr.bf16.mxu0 %v3949
    %4001 = vmatpush1.bf16.msra.mxu0 %v3948
    %4002 = vmatprep.subr.bf16.mxu0 %v3953
    %4003 = vmatpush1.bf16.msra.mxu0 %v3952
    %4004 = vmatprep.subr.bf16.mxu0 0
    %4005 = vmatpush1.bf16.msra.mxu0 0
    %4006 = vmatprep.subr.bf16.mxu0 0
    %4007 = vmatpush1.bf16.msra.mxu0 0
    %4008 = vmatprep.subr.bf16.mxu0 0
    %4009 = vmatpush1.bf16.msra.mxu0 0
    %4010 = vmatprep.subr.bf16.mxu0 0
    %4011 = vmatpush1.bf16.msra.mxu0 0
    %4012 = vmatprep.subr.bf16.mxu0 0
    %4013 = vmatpush1.bf16.msra.mxu0 0
    %4014 = vmatprep.subr.bf16.mxu0 0
    %4015 = vmatpush1.bf16.msra.mxu0 0
    %4016 = vmatprep.subr.bf16.mxu0 0
    %4017 = vmatpush1.bf16.msra.mxu0 0
    %4018 = vmatprep.subr.bf16.mxu0 0
    %4019 = vmatpush1.bf16.msra.mxu0 0
    %4020 = vmatprep.mubr.bf16.mxu0 0
    %4021 = vmatmul.mubr.bf16.gmra.mrb[0].mxu0 %v3493
    %v4022 = vpop.f32.mrb[0].mxu0
    %v4023 = vadd.f32 %v659, %v4022
    %v4024 = vpop.f32.mrb[0].mxu0
    %v4025 = vadd.f32 %v663, %v4024
    %v4026 = vpop.f32.mrb[0].mxu0
    %v4027 = vpop.f32.mrb[0].mxu0
    %4028 = vdwg.mxu0
    %4029 = vmatprep.subr.bf16.mxu0 %v3927
    %4030 = vmatpush1.bf16.msra.mxu0 %v3926
    %4031 = vmatprep.subr.bf16.mxu0 %v3931
    %4032 = vmatpush1.bf16.msra.mxu0 %v3930
    %4033 = vmatprep.subr.bf16.mxu0 %v3935
    %4034 = vmatpush1.bf16.msra.mxu0 %v3934
    %4035 = vmatprep.subr.bf16.mxu0 %v3939
    %4036 = vmatpush1.bf16.msra.mxu0 %v3938
    %4037 = vmatprep.subr.bf16.mxu0 %v3943
    %4038 = vmatpush1.bf16.msra.mxu0 %v3942
    %4039 = vmatprep.subr.bf16.mxu0 %v3947
    %4040 = vmatpush1.bf16.msra.mxu0 %v3946
    %4041 = vmatprep.subr.bf16.mxu0 %v3951
    %4042 = vmatpush1.bf16.msra.mxu0 %v3950
    %4043 = vmatprep.subr.bf16.mxu0 %v3955
    %4044 = vmatpush1.bf16.msra.mxu0 %v3954
    %4045 = vmatprep.subr.bf16.mxu0 0
    %4046 = vmatpush1.bf16.msra.mxu0 0
    %4047 = vmatprep.subr.bf16.mxu0 0
    %4048 = vmatpush1.bf16.msra.mxu0 0
    %4049 = vmatprep.subr.bf16.mxu0 0
    %4050 = vmatpush1.bf16.msra.mxu0 0
    %4051 = vmatprep.subr.bf16.mxu0 0
    %4052 = vmatpush1.bf16.msra.mxu0 0
    %4053 = vmatprep.subr.bf16.mxu0 0
    %4054 = vmatpush1.bf16.msra.mxu0 0
    %4055 = vmatprep.subr.bf16.mxu0 0
    %4056 = vmatpush1.bf16.msra.mxu0 0
    %4057 = vmatprep.subr.bf16.mxu0 0
    %4058 = vmatpush1.bf16.msra.mxu0 0
    %4059 = vmatprep.subr.bf16.mxu0 0
    %4060 = vmatpush1.bf16.msra.mxu0 0
    %4061 = vmatprep.mubr.bf16.mxu0 0
    %4062 = vmatmul.mubr.bf16.gmra.mrb[0].mxu0 %v3493
    %v4063 = vpop.f32.mrb[0].mxu0
    %v4064 = vadd.f32 %v667, %v4063
    %v4065 = vpop.f32.mrb[0].mxu0
    %v4066 = vadd.f32 %v671, %v4065
    %v4067 = vpop.f32.mrb[0].mxu0
    %v4068 = vpop.f32.mrb[0].mxu0
    %4069 = vdwg.mxu0
    %v4070 = vld [vmem:[#allocation10] sm:$0xff]
    %v4071 = vld [vmem:[#allocation10 + $0x8] sm:$0xff]
    %v4072 = vld [vmem:[#allocation10 + $0x10] sm:$0xff]
    %v4073 = vld [vmem:[#allocation10 + $0x18] sm:$0xff]
    %v4074 = vld [vmem:[#allocation10 + $0x20] sm:$0xff]
    %v4075 = vld [vmem:[#allocation10 + $0x28] sm:$0xff]
    %v4076 = vld [vmem:[#allocation10 + $0x30] sm:$0xff]
    %v4077 = vld [vmem:[#allocation10 + $0x38] sm:$0xff]
    %v4078 = vld [vmem:[#allocation10 + $0x40] sm:$0xff]
    %v4079 = vld [vmem:[#allocation10 + $0x48] sm:$0xff]
    %v4080 = vld [vmem:[#allocation10 + $0x50] sm:$0xff]
    %v4081 = vld [vmem:[#allocation10 + $0x58] sm:$0xff]
    %v4082 = vld [vmem:[#allocation10 + $0x60] sm:$0xff]
    %v4083 = vld [vmem:[#allocation10 + $0x68] sm:$0xff]
    %v4084 = vld [vmem:[#allocation10 + $0x70] sm:$0xff]
    %v4085 = vld [vmem:[#allocation10 + $0x78] sm:$0xff]
    %v4086 = vld [vmem:[#allocation10 + $0x80] sm:$0xff]
    %v4087 = vld [vmem:[#allocation10 + $0x88] sm:$0xff]
    %v4088 = vld [vmem:[#allocation10 + $0x90] sm:$0xff]
    %v4089 = vld [vmem:[#allocation10 + $0x98] sm:$0xff]
    %v4090 = vld [vmem:[#allocation10 + $0xa0] sm:$0xff]
    %v4091 = vld [vmem:[#allocation10 + $0xa8] sm:$0xff]
    %v4092 = vld [vmem:[#allocation10 + $0xb0] sm:$0xff]
    %v4093 = vld [vmem:[#allocation10 + $0xb8] sm:$0xff]
    %v4094 = vld [vmem:[#allocation10 + $0xc0] sm:$0xff]
    %v4095 = vld [vmem:[#allocation10 + $0xc8] sm:$0xff]
    %v4096 = vld [vmem:[#allocation10 + $0xd0] sm:$0xff]
    %v4097 = vld [vmem:[#allocation10 + $0xd8] sm:$0xff]
    %v4098 = vld [vmem:[#allocation10 + $0xe0] sm:$0xff]
    %v4099 = vld [vmem:[#allocation10 + $0xe8] sm:$0xff]
    %v4100 = vld [vmem:[#allocation10 + $0xf0] sm:$0xff]
    %v4101 = vld [vmem:[#allocation10 + $0xf8] sm:$0xff]
    %v4134 = vunpack.c.l.b16 %v4070
    %v4135 = vunpack.c.h.b16 %v4070
    %v4136 = vunpack.c.l.b16 %v4071
    %v4137 = vunpack.c.h.b16 %v4071
    %v4138 = vunpack.c.l.b16 %v4072
    %v4139 = vunpack.c.h.b16 %v4072
    %v4140 = vunpack.c.l.b16 %v4073
    %v4141 = vunpack.c.h.b16 %v4073
    %v4142 = vunpack.c.l.b16 %v4074
    %v4143 = vunpack.c.h.b16 %v4074
    %v4144 = vunpack.c.l.b16 %v4075
    %v4145 = vunpack.c.h.b16 %v4075
    %v4146 = vunpack.c.l.b16 %v4076
    %v4147 = vunpack.c.h.b16 %v4076
    %v4148 = vunpack.c.l.b16 %v4077
    %v4149 = vunpack.c.h.b16 %v4077
    %v4150 = vunpack.c.l.b16 %v4078
    %v4151 = vunpack.c.h.b16 %v4078
    %v4152 = vunpack.c.l.b16 %v4079
    %v4153 = vunpack.c.h.b16 %v4079
    %v4154 = vunpack.c.l.b16 %v4080
    %v4155 = vunpack.c.h.b16 %v4080
    %v4156 = vunpack.c.l.b16 %v4081
    %v4157 = vunpack.c.h.b16 %v4081
    %v4158 = vunpack.c.l.b16 %v4082
    %v4159 = vunpack.c.h.b16 %v4082
    %v4160 = vunpack.c.l.b16 %v4083
    %v4161 = vunpack.c.h.b16 %v4083
    %v4162 = vunpack.c.l.b16 %v4084
    %v4163 = vunpack.c.h.b16 %v4084
    %v4164 = vunpack.c.l.b16 %v4085
    %v4165 = vunpack.c.h.b16 %v4085
    %v4166 = vunpack.c.l.b16 %v4086
    %v4167 = vunpack.c.h.b16 %v4086
    %v4168 = vunpack.c.l.b16 %v4087
    %v4169 = vunpack.c.h.b16 %v4087
    %v4170 = vunpack.c.l.b16 %v4088
    %v4171 = vunpack.c.h.b16 %v4088
    %v4172 = vunpack.c.l.b16 %v4089
    %v4173 = vunpack.c.h.b16 %v4089
    %v4174 = vunpack.c.l.b16 %v4090
    %v4175 = vunpack.c.h.b16 %v4090
    %v4176 = vunpack.c.l.b16 %v4091
    %v4177 = vunpack.c.h.b16 %v4091
    %v4178 = vunpack.c.l.b16 %v4092
    %v4179 = vunpack.c.h.b16 %v4092
    %v4180 = vunpack.c.l.b16 %v4093
    %v4181 = vunpack.c.h.b16 %v4093
    %v4182 = vunpack.c.l.b16 %v4094
    %v4183 = vunpack.c.h.b16 %v4094
    %v4184 = vunpack.c.l.b16 %v4095
    %v4185 = vunpack.c.h.b16 %v4095
    %v4186 = vunpack.c.l.b16 %v4096
    %v4187 = vunpack.c.h.b16 %v4096
    %v4188 = vunpack.c.l.b16 %v4097
    %v4189 = vunpack.c.h.b16 %v4097
    %v4190 = vunpack.c.l.b16 %v4098
    %v4191 = vunpack.c.h.b16 %v4098
    %v4192 = vunpack.c.l.b16 %v4099
    %v4193 = vunpack.c.h.b16 %v4099
    %v4194 = vunpack.c.l.b16 %v4100
    %v4195 = vunpack.c.h.b16 %v4100
    %v4196 = vunpack.c.l.b16 %v4101
    %v4197 = vunpack.c.h.b16 %v4101
    %v4198 = vpack.c.b16 %v4138, %v4134
    %v4199 = vpack.c.b16 %v4139, %v4135
    %v4200 = vpack.c.b16 %v4140, %v4136
    %v4201 = vpack.c.b16 %v4141, %v4137
    %v4202 = vpack.c.b16 %v4146, %v4142
    %v4203 = vpack.c.b16 %v4147, %v4143
    %v4204 = vpack.c.b16 %v4148, %v4144
    %v4205 = vpack.c.b16 %v4149, %v4145
    %v4206 = vpack.c.b16 %v4154, %v4150
    %v4207 = vpack.c.b16 %v4155, %v4151
    %v4208 = vpack.c.b16 %v4156, %v4152
    %v4209 = vpack.c.b16 %v4157, %v4153
    %v4210 = vpack.c.b16 %v4162, %v4158
    %v4211 = vpack.c.b16 %v4163, %v4159
    %v4212 = vpack.c.b16 %v4164, %v4160
    %v4213 = vpack.c.b16 %v4165, %v4161
    %v4214 = vpack.c.b16 %v4170, %v4166
    %v4215 = vpack.c.b16 %v4171, %v4167
    %v4216 = vpack.c.b16 %v4172, %v4168
    %v4217 = vpack.c.b16 %v4173, %v4169
    %v4218 = vpack.c.b16 %v4178, %v4174
    %v4219 = vpack.c.b16 %v4179, %v4175
    %v4220 = vpack.c.b16 %v4180, %v4176
    %v4221 = vpack.c.b16 %v4181, %v4177
    %v4222 = vpack.c.b16 %v4186, %v4182
    %v4223 = vpack.c.b16 %v4187, %v4183
    %v4224 = vpack.c.b16 %v4188, %v4184
    %v4225 = vpack.c.b16 %v4189, %v4185
    %v4226 = vpack.c.b16 %v4194, %v4190
    %v4227 = vpack.c.b16 %v4195, %v4191
    %v4228 = vpack.c.b16 %v4196, %v4192
    %v4229 = vpack.c.b16 %v4197, %v4193
    %4262 = vmatprep.subr.bf16.mxu0 %v4199
    %4263 = vmatpush1.bf16.msra.mxu0 %v4198
    %4264 = vmatprep.subr.bf16.mxu0 %v4203
    %4265 = vmatpush1.bf16.msra.mxu0 %v4202
    %4266 = vmatprep.subr.bf16.mxu0 %v4207
    %4267 = vmatpush1.bf16.msra.mxu0 %v4206
    %4268 = vmatprep.subr.bf16.mxu0 %v4211
    %4269 = vmatpush1.bf16.msra.mxu0 %v4210
    %4270 = vmatprep.subr.bf16.mxu0 %v4215
    %4271 = vmatpush1.bf16.msra.mxu0 %v4214
    %4272 = vmatprep.subr.bf16.mxu0 %v4219
    %4273 = vmatpush1.bf16.msra.mxu0 %v4218
    %4274 = vmatprep.subr.bf16.mxu0 %v4223
    %4275 = vmatpush1.bf16.msra.mxu0 %v4222
    %4276 = vmatprep.subr.bf16.mxu0 %v4227
    %4277 = vmatpush1.bf16.msra.mxu0 %v4226
    %4278 = vmatprep.subr.bf16.mxu0 0
    %4279 = vmatpush1.bf16.msra.mxu0 0
    %4280 = vmatprep.subr.bf16.mxu0 0
    %4281 = vmatpush1.bf16.msra.mxu0 0
    %4282 = vmatprep.subr.bf16.mxu0 0
    %4283 = vmatpush1.bf16.msra.mxu0 0
    %4284 = vmatprep.subr.bf16.mxu0 0
    %4285 = vmatpush1.bf16.msra.mxu0 0
    %4286 = vmatprep.subr.bf16.mxu0 0
    %4287 = vmatpush1.bf16.msra.mxu0 0
    %4288 = vmatprep.subr.bf16.mxu0 0
    %4289 = vmatpush1.bf16.msra.mxu0 0
    %4290 = vmatprep.subr.bf16.mxu0 0
    %4291 = vmatpush1.bf16.msra.mxu0 0
    %4292 = vmatprep.subr.bf16.mxu0 0
    %4293 = vmatpush1.bf16.msra.mxu0 0
    %4294 = vmatprep.mubr.bf16.mxu0 0
    %4295 = vmatmul.mubr.bf16.gmra.mrb[0].mxu0 %v3479
    %v4296 = vpop.f32.mrb[0].mxu0
    %v4297 = vadd.f32 0.0, %v4296
    %v4298 = vpop.f32.mrb[0].mxu0
    %v4299 = vadd.f32 0.0, %v4298
    %v4300 = vpop.f32.mrb[0].mxu0
    %v4301 = vpop.f32.mrb[0].mxu0
    %4302 = vdwg.mxu0
    %4303 = vmatprep.subr.bf16.mxu0 %v4201
    %4304 = vmatpush1.bf16.msra.mxu0 %v4200
    %4305 = vmatprep.subr.bf16.mxu0 %v4205
    %4306 = vmatpush1.bf16.msra.mxu0 %v4204
    %4307 = vmatprep.subr.bf16.mxu0 %v4209
    %4308 = vmatpush1.bf16.msra.mxu0 %v4208
    %4309 = vmatprep.subr.bf16.mxu0 %v4213
    %4310 = vmatpush1.bf16.msra.mxu0 %v4212
    %4311 = vmatprep.subr.bf16.mxu0 %v4217
    %4312 = vmatpush1.bf16.msra.mxu0 %v4216
    %4313 = vmatprep.subr.bf16.mxu0 %v4221
    %4314 = vmatpush1.bf16.msra.mxu0 %v4220
    %4315 = vmatprep.subr.bf16.mxu0 %v4225
    %4316 = vmatpush1.bf16.msra.mxu0 %v4224
    %4317 = vmatprep.subr.bf16.mxu0 %v4229
    %4318 = vmatpush1.bf16.msra.mxu0 %v4228
    %4319 = vmatprep.subr.bf16.mxu0 0
    %4320 = vmatpush1.bf16.msra.mxu0 0
    %4321 = vmatprep.subr.bf16.mxu0 0
    %4322 = vmatpush1.bf16.msra.mxu0 0
    %4323 = vmatprep.subr.bf16.mxu0 0
    %4324 = vmatpush1.bf16.msra.mxu0 0
    %4325 = vmatprep.subr.bf16.mxu0 0
    %4326 = vmatpush1.bf16.msra.mxu0 0
    %4327 = vmatprep.subr.bf16.mxu0 0
    %4328 = vmatpush1.bf16.msra.mxu0 0
    %4329 = vmatprep.subr.bf16.mxu0 0
    %4330 = vmatpush1.bf16.msra.mxu0 0
    %4331 = vmatprep.subr.bf16.mxu0 0
    %4332 = vmatpush1.bf16.msra.mxu0 0
    %4333 = vmatprep.subr.bf16.mxu0 0
    %4334 = vmatpush1.bf16.msra.mxu0 0
    %4335 = vmatprep.mubr.bf16.mxu0 0
    %4336 = vmatmul.mubr.bf16.gmra.mrb[0].mxu0 %v3479
    %v4337 = vpop.f32.mrb[0].mxu0
    %v4338 = vadd.f32 0.0, %v4337
    %v4339 = vpop.f32.mrb[0].mxu0
    %v4340 = vadd.f32 0.0, %v4339
    %v4341 = vpop.f32.mrb[0].mxu0
    %v4342 = vpop.f32.mrb[0].mxu0
    %4343 = vdwg.mxu0
    %v4344 = vadd.f32 %v4023, %v4297
    %v4345 = vadd.f32 %v4025, %v4299
    %v4346 = vadd.f32 %v4064, %v4338
    %v4347 = vadd.f32 %v4066, %v4340
    %v4348 = vxor.u32 %v4344, 2147483648
    %v4349 = vmul.f32 %v4348, 1.442695
    %v4350 = vpow.pop %v4349
    %v4351 = vadd.f32 %v4350, 1.0
    %v4352 = vrcp.pop %v4351
    %v4353 = vmul.f32 1.0, %v4352
    %v4354 = vxor.u32 %v4345, 2147483648
    %v4355 = vmul.f32 %v4354, 1.442695
    %v4356 = vpow.pop %v4355
    %v4357 = vadd.f32 %v4356, 1.0
    %v4358 = vrcp.pop %v4357
    %v4359 = vmul.f32 1.0, %v4358
    %v4360 = vtanh.pop %v4346
    %v4361 = vxor.u32 %v4347, 2147483648
    %v4362 = vmul.f32 %v4361, 1.442695
    %v4363 = vpow.pop %v4362
    %v4364 = vadd.f32 %v4363, 1.0
    %v4365 = vrcp.pop %v4364
    %v4366 = vmul.f32 1.0, %v4365
    %v4367 = vmul.f32 %v4359, %v3476
    %v4368 = vmul.f32 %v4353, %v4360
    %v4369 = vadd.f32 %v4367, %v4368
    %v4370 = vtanh.pop %v4369
    %v4371 = vmul.f32 %v4366, %v4370
    %v4372 = vpack.c.bf16 %v4371, %v4371
    %s4373 = scalar_lea.vmem [#allocation3], 12
    %4374 = vst [vmem:[%s4373] sm:$0xf] %v4372
    %s4375 = scalar_lea.vmem [#allocation2], 80
    %v4376 = vld [vmem:[%s4375] sm:$0xff]
    %v4377 = vld [vmem:[%s4375 + $0x8] sm:$0xff]
    %v4378 = vunpack.c.l.bf16 %v4376
    %v4379 = vunpack.c.h.bf16 %v4376
    %v4380 = vunpack.c.l.bf16 %v4377
    %v4381 = vunpack.c.h.bf16 %v4377
    %v4382 = vadd.f32 %v4378, %v637
    %v4383 = vadd.f32 %v4379, %v641
    %v4384 = vadd.f32 %v4380, %v645
    %v4385 = vadd.f32 %v4381, %v649
    %v4386 = vpack.c.bf16 %v3795, %v3795
    %v4387 = vld [vmem:[#allocation8] sm:$0xff]
    %v4388 = vld [vmem:[#allocation8 + $0x8] sm:$0xff]
    %v4389 = vld [vmem:[#allocation8 + $0x10] sm:$0xff]
    %v4390 = vld [vmem:[#allocation8 + $0x18] sm:$0xff]
    %v4391 = vld [vmem:[#allocation8 + $0x20] sm:$0xff]
    %v4392 = vld [vmem:[#allocation8 + $0x28] sm:$0xff]
    %v4393 = vld [vmem:[#allocation8 + $0x30] sm:$0xff]
    %v4394 = vld [vmem:[#allocation8 + $0x38] sm:$0xff]
    %v4395 = vld [vmem:[#allocation8 + $0x40] sm:$0xff]
    %v4396 = vld [vmem:[#allocation8 + $0x48] sm:$0xff]
    %v4397 = vld [vmem:[#allocation8 + $0x50] sm:$0xff]
    %v4398 = vld [vmem:[#allocation8 + $0x58] sm:$0xff]
    %v4399 = vld [vmem:[#allocation8 + $0x60] sm:$0xff]
    %v4400 = vld [vmem:[#allocation8 + $0x68] sm:$0xff]
    %v4401 = vld [vmem:[#allocation8 + $0x70] sm:$0xff]
    %v4402 = vld [vmem:[#allocation8 + $0x78] sm:$0xff]
    %v4403 = vld [vmem:[#allocation8 + $0x80] sm:$0xff]
    %v4404 = vld [vmem:[#allocation8 + $0x88] sm:$0xff]
    %v4405 = vld [vmem:[#allocation8 + $0x90] sm:$0xff]
    %v4406 = vld [vmem:[#allocation8 + $0x98] sm:$0xff]
    %v4407 = vld [vmem:[#allocation8 + $0xa0] sm:$0xff]
    %v4408 = vld [vmem:[#allocation8 + $0xa8] sm:$0xff]
    %v4409 = vld [vmem:[#allocation8 + $0xb0] sm:$0xff]
    %v4410 = vld [vmem:[#allocation8 + $0xb8] sm:$0xff]
    %v4411 = vld [vmem:[#allocation8 + $0xc0] sm:$0xff]
    %v4412 = vld [vmem:[#allocation8 + $0xc8] sm:$0xff]
    %v4413 = vld [vmem:[#allocation8 + $0xd0] sm:$0xff]
    %v4414 = vld [vmem:[#allocation8 + $0xd8] sm:$0xff]
    %v4415 = vld [vmem:[#allocation8 + $0xe0] sm:$0xff]
    %v4416 = vld [vmem:[#allocation8 + $0xe8] sm:$0xff]
    %v4417 = vld [vmem:[#allocation8 + $0xf0] sm:$0xff]
    %v4418 = vld [vmem:[#allocation8 + $0xf8] sm:$0xff]
    %v4451 = vunpack.c.l.b16 %v4387
    %v4452 = vunpack.c.h.b16 %v4387
    %v4453 = vunpack.c.l.b16 %v4388
    %v4454 = vunpack.c.h.b16 %v4388
    %v4455 = vunpack.c.l.b16 %v4389
    %v4456 = vunpack.c.h.b16 %v4389
    %v4457 = vunpack.c.l.b16 %v4390
    %v4458 = vunpack.c.h.b16 %v4390
    %v4459 = vunpack.c.l.b16 %v4391
    %v4460 = vunpack.c.h.b16 %v4391
    %v4461 = vunpack.c.l.b16 %v4392
    %v4462 = vunpack.c.h.b16 %v4392
    %v4463 = vunpack.c.l.b16 %v4393
    %v4464 = vunpack.c.h.b16 %v4393
    %v4465 = vunpack.c.l.b16 %v4394
    %v4466 = vunpack.c.h.b16 %v4394
    %v4467 = vunpack.c.l.b16 %v4395
    %v4468 = vunpack.c.h.b16 %v4395
    %v4469 = vunpack.c.l.b16 %v4396
    %v4470 = vunpack.c.h.b16 %v4396
    %v4471 = vunpack.c.l.b16 %v4397
    %v4472 = vunpack.c.h.b16 %v4397
    %v4473 = vunpack.c.l.b16 %v4398
    %v4474 = vunpack.c.h.b16 %v4398
    %v4475 = vunpack.c.l.b16 %v4399
    %v4476 = vunpack.c.h.b16 %v4399
    %v4477 = vunpack.c.l.b16 %v4400
    %v4478 = vunpack.c.h.b16 %v4400
    %v4479 = vunpack.c.l.b16 %v4401
    %v4480 = vunpack.c.h.b16 %v4401
    %v4481 = vunpack.c.l.b16 %v4402
    %v4482 = vunpack.c.h.b16 %v4402
    %v4483 = vunpack.c.l.b16 %v4403
    %v4484 = vunpack.c.h.b16 %v4403
    %v4485 = vunpack.c.l.b16 %v4404
    %v4486 = vunpack.c.h.b16 %v4404
    %v4487 = vunpack.c.l.b16 %v4405
    %v4488 = vunpack.c.h.b16 %v4405
    %v4489 = vunpack.c.l.b16 %v4406
    %v4490 = vunpack.c.h.b16 %v4406
    %v4491 = vunpack.c.l.b16 %v4407
    %v4492 = vunpack.c.h.b16 %v4407
    %v4493 = vunpack.c.l.b16 %v4408
    %v4494 = vunpack.c.h.b16 %v4408
    %v4495 = vunpack.c.l.b16 %v4409
    %v4496 = vunpack.c.h.b16 %v4409
    %v4497 = vunpack.c.l.b16 %v4410
    %v4498 = vunpack.c.h.b16 %v4410
    %v4499 = vunpack.c.l.b16 %v4411
    %v4500 = vunpack.c.h.b16 %v4411
    %v4501 = vunpack.c.l.b16 %v4412
    %v4502 = vunpack.c.h.b16 %v4412
    %v4503 = vunpack.c.l.b16 %v4413
    %v4504 = vunpack.c.h.b16 %v4413
    %v4505 = vunpack.c.l.b16 %v4414
    %v4506 = vunpack.c.h.b16 %v4414
    %v4507 = vunpack.c.l.b16 %v4415
    %v4508 = vunpack.c.h.b16 %v4415
    %v4509 = vunpack.c.l.b16 %v4416
    %v4510 = vunpack.c.h.b16 %v4416
    %v4511 = vunpack.c.l.b16 %v4417
    %v4512 = vunpack.c.h.b16 %v4417
    %v4513 = vunpack.c.l.b16 %v4418
    %v4514 = vunpack.c.h.b16 %v4418
    %v4515 = vpack.c.b16 %v4455, %v4451
    %v4516 = vpack.c.b16 %v4456, %v4452
    %v4517 = vpack.c.b16 %v4457, %v4453
    %v4518 = vpack.c.b16 %v4458, %v4454
    %v4519 = vpack.c.b16 %v4463, %v4459
    %v4520 = vpack.c.b16 %v4464, %v4460
    %v4521 = vpack.c.b16 %v4465, %v4461
    %v4522 = vpack.c.b16 %v4466, %v4462
    %v4523 = vpack.c.b16 %v4471, %v4467
    %v4524 = vpack.c.b16 %v4472, %v4468
    %v4525 = vpack.c.b16 %v4473, %v4469
    %v4526 = vpack.c.b16 %v4474, %v4470
    %v4527 = vpack.c.b16 %v4479, %v4475
    %v4528 = vpack.c.b16 %v4480, %v4476
    %v4529 = vpack.c.b16 %v4481, %v4477
    %v4530 = vpack.c.b16 %v4482, %v4478
    %v4531 = vpack.c.b16 %v4487, %v4483
    %v4532 = vpack.c.b16 %v4488, %v4484
    %v4533 = vpack.c.b16 %v4489, %v4485
    %v4534 = vpack.c.b16 %v4490, %v4486
    %v4535 = vpack.c.b16 %v4495, %v4491
    %v4536 = vpack.c.b16 %v4496, %v4492
    %v4537 = vpack.c.b16 %v4497, %v4493
    %v4538 = vpack.c.b16 %v4498, %v4494
    %v4539 = vpack.c.b16 %v4503, %v4499
    %v4540 = vpack.c.b16 %v4504, %v4500
    %v4541 = vpack.c.b16 %v4505, %v4501
    %v4542 = vpack.c.b16 %v4506, %v4502
    %v4543 = vpack.c.b16 %v4511, %v4507
    %v4544 = vpack.c.b16 %v4512, %v4508
    %v4545 = vpack.c.b16 %v4513, %v4509
    %v4546 = vpack.c.b16 %v4514, %v4510
    %4579 = vmatprep.subr.bf16.mxu0 %v4516
    %4580 = vmatpush1.bf16.msra.mxu0 %v4515
    %4581 = vmatprep.subr.bf16.mxu0 %v4520
    %4582 = vmatpush1.bf16.msra.mxu0 %v4519
    %4583 = vmatprep.subr.bf16.mxu0 %v4524
    %4584 = vmatpush1.bf16.msra.mxu0 %v4523
    %4585 = vmatprep.subr.bf16.mxu0 %v4528
    %4586 = vmatpush1.bf16.msra.mxu0 %v4527
    %4587 = vmatprep.subr.bf16.mxu0 %v4532
    %4588 = vmatpush1.bf16.msra.mxu0 %v4531
    %4589 = vmatprep.subr.bf16.mxu0 %v4536
    %4590 = vmatpush1.bf16.msra.mxu0 %v4535
    %4591 = vmatprep.subr.bf16.mxu0 %v4540
    %4592 = vmatpush1.bf16.msra.mxu0 %v4539
    %4593 = vmatprep.subr.bf16.mxu0 %v4544
    %4594 = vmatpush1.bf16.msra.mxu0 %v4543
    %4595 = vmatprep.subr.bf16.mxu0 0
    %4596 = vmatpush1.bf16.msra.mxu0 0
    %4597 = vmatprep.subr.bf16.mxu0 0
    %4598 = vmatpush1.bf16.msra.mxu0 0
    %4599 = vmatprep.subr.bf16.mxu0 0
    %4600 = vmatpush1.bf16.msra.mxu0 0
    %4601 = vmatprep.subr.bf16.mxu0 0
    %4602 = vmatpush1.bf16.msra.mxu0 0
    %4603 = vmatprep.subr.bf16.mxu0 0
    %4604 = vmatpush1.bf16.msra.mxu0 0
    %4605 = vmatprep.subr.bf16.mxu0 0
    %4606 = vmatpush1.bf16.msra.mxu0 0
    %4607 = vmatprep.subr.bf16.mxu0 0
    %4608 = vmatpush1.bf16.msra.mxu0 0
    %4609 = vmatprep.subr.bf16.mxu0 0
    %4610 = vmatpush1.bf16.msra.mxu0 0
    %4611 = vmatprep.mubr.bf16.mxu0 0
    %4612 = vmatmul.mubr.bf16.gmra.mrb[0].mxu0 %v4386
    %v4613 = vpop.f32.mrb[0].mxu0
    %v4614 = vadd.f32 0.0, %v4613
    %v4615 = vpop.f32.mrb[0].mxu0
    %v4616 = vadd.f32 0.0, %v4615
    %v4617 = vpop.f32.mrb[0].mxu0
    %v4618 = vpop.f32.mrb[0].mxu0
    %4619 = vdwg.mxu0
    %4620 = vmatprep.subr.bf16.mxu0 %v4518
    %4621 = vmatpush1.bf16.msra.mxu0 %v4517
    %4622 = vmatprep.subr.bf16.mxu0 %v4522
    %4623 = vmatpush1.bf16.msra.mxu0 %v4521
    %4624 = vmatprep.subr.bf16.mxu0 %v4526
    %4625 = vmatpush1.bf16.msra.mxu0 %v4525
    %4626 = vmatprep.subr.bf16.mxu0 %v4530
    %4627 = vmatpush1.bf16.msra.mxu0 %v4529
    %4628 = vmatprep.subr.bf16.mxu0 %v4534
    %4629 = vmatpush1.bf16.msra.mxu0 %v4533
    %4630 = vmatprep.subr.bf16.mxu0 %v4538
    %4631 = vmatpush1.bf16.msra.mxu0 %v4537
    %4632 = vmatprep.subr.bf16.mxu0 %v4542
    %4633 = vmatpush1.bf16.msra.mxu0 %v4541
    %4634 = vmatprep.subr.bf16.mxu0 %v4546
    %4635 = vmatpush1.bf16.msra.mxu0 %v4545
    %4636 = vmatprep.subr.bf16.mxu0 0
    %4637 = vmatpush1.bf16.msra.mxu0 0
    %4638 = vmatprep.subr.bf16.mxu0 0
    %4639 = vmatpush1.bf16.msra.mxu0 0
    %4640 = vmatprep.subr.bf16.mxu0 0
    %4641 = vmatpush1.bf16.msra.mxu0 0
    %4642 = vmatprep.subr.bf16.mxu0 0
    %4643 = vmatpush1.bf16.msra.mxu0 0
    %4644 = vmatprep.subr.bf16.mxu0 0
    %4645 = vmatpush1.bf16.msra.mxu0 0
    %4646 = vmatprep.subr.bf16.mxu0 0
    %4647 = vmatpush1.bf16.msra.mxu0 0
    %4648 = vmatprep.subr.bf16.mxu0 0
    %4649 = vmatpush1.bf16.msra.mxu0 0
    %4650 = vmatprep.subr.bf16.mxu0 0
    %4651 = vmatpush1.bf16.msra.mxu0 0
    %4652 = vmatprep.mubr.bf16.mxu0 0
    %4653 = vmatmul.mubr.bf16.gmra.mrb[0].mxu0 %v4386
    %v4654 = vpop.f32.mrb[0].mxu0
    %v4655 = vadd.f32 0.0, %v4654
    %v4656 = vpop.f32.mrb[0].mxu0
    %v4657 = vadd.f32 0.0, %v4656
    %v4658 = vpop.f32.mrb[0].mxu0
    %v4659 = vpop.f32.mrb[0].mxu0
    %4660 = vdwg.mxu0
    %v4661 = vadd.f32 %v4382, %v4614
    %v4662 = vadd.f32 %v4383, %v4616
    %v4663 = vadd.f32 %v4384, %v4655
    %v4664 = vadd.f32 %v4385, %v4657
    %v4665 = vxor.u32 %v4661, 2147483648
    %v4666 = vmul.f32 %v4665, 1.442695
    %v4667 = vpow.pop %v4666
    %v4668 = vadd.f32 %v4667, 1.0
    %v4669 = vrcp.pop %v4668
    %v4670 = vmul.f32 1.0, %v4669
    %v4671 = vxor.u32 %v4662, 2147483648
    %v4672 = vmul.f32 %v4671, 1.442695
    %v4673 = vpow.pop %v4672
    %v4674 = vadd.f32 %v4673, 1.0
    %v4675 = vrcp.pop %v4674
    %v4676 = vmul.f32 1.0, %v4675
    %v4677 = vtanh.pop %v4663
    %v4678 = vxor.u32 %v4664, 2147483648
    %v4679 = vmul.f32 %v4678, 1.442695
    %v4680 = vpow.pop %v4679
    %v4681 = vadd.f32 %v4680, 1.0
    %v4682 = vrcp.pop %v4681
    %v4683 = vmul.f32 1.0, %v4682
    %v4684 = vmul.f32 %v4676, %v3793
    %v4685 = vmul.f32 %v4670, %v4677
    %v4686 = vadd.f32 %v4684, %v4685
    %v4687 = vtanh.pop %v4686
    %v4688 = vmul.f32 %v4683, %v4687
    %v4689 = vld [vmem:[#allocation11] sm:$0xff]
    %v4690 = vld [vmem:[#allocation11 + $0x8] sm:$0xff]
    %v4691 = vld [vmem:[#allocation11 + $0x10] sm:$0xff]
    %v4692 = vld [vmem:[#allocation11 + $0x18] sm:$0xff]
    %v4693 = vld [vmem:[#allocation11 + $0x20] sm:$0xff]
    %v4694 = vld [vmem:[#allocation11 + $0x28] sm:$0xff]
    %v4695 = vld [vmem:[#allocation11 + $0x30] sm:$0xff]
    %v4696 = vld [vmem:[#allocation11 + $0x38] sm:$0xff]
    %v4697 = vld [vmem:[#allocation11 + $0x40] sm:$0xff]
    %v4698 = vld [vmem:[#allocation11 + $0x48] sm:$0xff]
    %v4699 = vld [vmem:[#allocation11 + $0x50] sm:$0xff]
    %v4700 = vld [vmem:[#allocation11 + $0x58] sm:$0xff]
    %v4701 = vld [vmem:[#allocation11 + $0x60] sm:$0xff]
    %v4702 = vld [vmem:[#allocation11 + $0x68] sm:$0xff]
    %v4703 = vld [vmem:[#allocation11 + $0x70] sm:$0xff]
    %v4704 = vld [vmem:[#allocation11 + $0x78] sm:$0xff]
    %v4705 = vld [vmem:[#allocation11 + $0x80] sm:$0xff]
    %v4706 = vld [vmem:[#allocation11 + $0x88] sm:$0xff]
    %v4707 = vld [vmem:[#allocation11 + $0x90] sm:$0xff]
    %v4708 = vld [vmem:[#allocation11 + $0x98] sm:$0xff]
    %v4709 = vld [vmem:[#allocation11 + $0xa0] sm:$0xff]
    %v4710 = vld [vmem:[#allocation11 + $0xa8] sm:$0xff]
    %v4711 = vld [vmem:[#allocation11 + $0xb0] sm:$0xff]
    %v4712 = vld [vmem:[#allocation11 + $0xb8] sm:$0xff]
    %v4713 = vld [vmem:[#allocation11 + $0xc0] sm:$0xff]
    %v4714 = vld [vmem:[#allocation11 + $0xc8] sm:$0xff]
    %v4715 = vld [vmem:[#allocation11 + $0xd0] sm:$0xff]
    %v4716 = vld [vmem:[#allocation11 + $0xd8] sm:$0xff]
    %v4717 = vld [vmem:[#allocation11 + $0xe0] sm:$0xff]
    %v4718 = vld [vmem:[#allocation11 + $0xe8] sm:$0xff]
    %v4719 = vld [vmem:[#allocation11 + $0xf0] sm:$0xff]
    %v4720 = vld [vmem:[#allocation11 + $0xf8] sm:$0xff]
    %v4753 = vunpack.c.l.b16 %v4689
    %v4754 = vunpack.c.h.b16 %v4689
    %v4755 = vunpack.c.l.b16 %v4690
    %v4756 = vunpack.c.h.b16 %v4690
    %v4757 = vunpack.c.l.b16 %v4691
    %v4758 = vunpack.c.h.b16 %v4691
    %v4759 = vunpack.c.l.b16 %v4692
    %v4760 = vunpack.c.h.b16 %v4692
    %v4761 = vunpack.c.l.b16 %v4693
    %v4762 = vunpack.c.h.b16 %v4693
    %v4763 = vunpack.c.l.b16 %v4694
    %v4764 = vunpack.c.h.b16 %v4694
    %v4765 = vunpack.c.l.b16 %v4695
    %v4766 = vunpack.c.h.b16 %v4695
    %v4767 = vunpack.c.l.b16 %v4696
    %v4768 = vunpack.c.h.b16 %v4696
    %v4769 = vunpack.c.l.b16 %v4697
    %v4770 = vunpack.c.h.b16 %v4697
    %v4771 = vunpack.c.l.b16 %v4698
    %v4772 = vunpack.c.h.b16 %v4698
    %v4773 = vunpack.c.l.b16 %v4699
    %v4774 = vunpack.c.h.b16 %v4699
    %v4775 = vunpack.c.l.b16 %v4700
    %v4776 = vunpack.c.h.b16 %v4700
    %v4777 = vunpack.c.l.b16 %v4701
    %v4778 = vunpack.c.h.b16 %v4701
    %v4779 = vunpack.c.l.b16 %v4702
    %v4780 = vunpack.c.h.b16 %v4702
    %v4781 = vunpack.c.l.b16 %v4703
    %v4782 = vunpack.c.h.b16 %v4703
    %v4783 = vunpack.c.l.b16 %v4704
    %v4784 = vunpack.c.h.b16 %v4704
    %v4785 = vunpack.c.l.b16 %v4705
    %v4786 = vunpack.c.h.b16 %v4705
    %v4787 = vunpack.c.l.b16 %v4706
    %v4788 = vunpack.c.h.b16 %v4706
    %v4789 = vunpack.c.l.b16 %v4707
    %v4790 = vunpack.c.h.b16 %v4707
    %v4791 = vunpack.c.l.b16 %v4708
    %v4792 = vunpack.c.h.b16 %v4708
    %v4793 = vunpack.c.l.b16 %v4709
    %v4794 = vunpack.c.h.b16 %v4709
    %v4795 = vunpack.c.l.b16 %v4710
    %v4796 = vunpack.c.h.b16 %v4710
    %v4797 = vunpack.c.l.b16 %v4711
    %v4798 = vunpack.c.h.b16 %v4711
    %v4799 = vunpack.c.l.b16 %v4712
    %v4800 = vunpack.c.h.b16 %v4712
    %v4801 = vunpack.c.l.b16 %v4713
    %v4802 = vunpack.c.h.b16 %v4713
    %v4803 = vunpack.c.l.b16 %v4714
    %v4804 = vunpack.c.h.b16 %v4714
    %v4805 = vunpack.c.l.b16 %v4715
    %v4806 = vunpack.c.h.b16 %v4715
    %v4807 = vunpack.c.l.b16 %v4716
    %v4808 = vunpack.c.h.b16 %v4716
    %v4809 = vunpack.c.l.b16 %v4717
    %v4810 = vunpack.c.h.b16 %v4717
    %v4811 = vunpack.c.l.b16 %v4718
    %v4812 = vunpack.c.h.b16 %v4718
    %v4813 = vunpack.c.l.b16 %v4719
    %v4814 = vunpack.c.h.b16 %v4719
    %v4815 = vunpack.c.l.b16 %v4720
    %v4816 = vunpack.c.h.b16 %v4720
    %v4817 = vpack.c.b16 %v4757, %v4753
    %v4818 = vpack.c.b16 %v4758, %v4754
    %v4819 = vpack.c.b16 %v4759, %v4755
    %v4820 = vpack.c.b16 %v4760, %v4756
    %v4821 = vpack.c.b16 %v4765, %v4761
    %v4822 = vpack.c.b16 %v4766, %v4762
    %v4823 = vpack.c.b16 %v4767, %v4763
    %v4824 = vpack.c.b16 %v4768, %v4764
    %v4825 = vpack.c.b16 %v4773, %v4769
    %v4826 = vpack.c.b16 %v4774, %v4770
    %v4827 = vpack.c.b16 %v4775, %v4771
    %v4828 = vpack.c.b16 %v4776, %v4772
    %v4829 = vpack.c.b16 %v4781, %v4777
    %v4830 = vpack.c.b16 %v4782, %v4778
    %v4831 = vpack.c.b16 %v4783, %v4779
    %v4832 = vpack.c.b16 %v4784, %v4780
    %v4833 = vpack.c.b16 %v4789, %v4785
    %v4834 = vpack.c.b16 %v4790, %v4786
    %v4835 = vpack.c.b16 %v4791, %v4787
    %v4836 = vpack.c.b16 %v4792, %v4788
    %v4837 = vpack.c.b16 %v4797, %v4793
    %v4838 = vpack.c.b16 %v4798, %v4794
    %v4839 = vpack.c.b16 %v4799, %v4795
    %v4840 = vpack.c.b16 %v4800, %v4796
    %v4841 = vpack.c.b16 %v4805, %v4801
    %v4842 = vpack.c.b16 %v4806, %v4802
    %v4843 = vpack.c.b16 %v4807, %v4803
    %v4844 = vpack.c.b16 %v4808, %v4804
    %v4845 = vpack.c.b16 %v4813, %v4809
    %v4846 = vpack.c.b16 %v4814, %v4810
    %v4847 = vpack.c.b16 %v4815, %v4811
    %v4848 = vpack.c.b16 %v4816, %v4812
    %4881 = vmatprep.subr.bf16.mxu0 %v4818
    %4882 = vmatpush1.bf16.msra.mxu0 %v4817
    %4883 = vmatprep.subr.bf16.mxu0 %v4822
    %4884 = vmatpush1.bf16.msra.mxu0 %v4821
    %4885 = vmatprep.subr.bf16.mxu0 %v4826
    %4886 = vmatpush1.bf16.msra.mxu0 %v4825
    %4887 = vmatprep.subr.bf16.mxu0 %v4830
    %4888 = vmatpush1.bf16.msra.mxu0 %v4829
    %4889 = vmatprep.subr.bf16.mxu0 %v4834
    %4890 = vmatpush1.bf16.msra.mxu0 %v4833
    %4891 = vmatprep.subr.bf16.mxu0 %v4838
    %4892 = vmatpush1.bf16.msra.mxu0 %v4837
    %4893 = vmatprep.subr.bf16.mxu0 %v4842
    %4894 = vmatpush1.bf16.msra.mxu0 %v4841
    %4895 = vmatprep.subr.bf16.mxu0 %v4846
    %4896 = vmatpush1.bf16.msra.mxu0 %v4845
    %4897 = vmatprep.subr.bf16.mxu0 0
    %4898 = vmatpush1.bf16.msra.mxu0 0
    %4899 = vmatprep.subr.bf16.mxu0 0
    %4900 = vmatpush1.bf16.msra.mxu0 0
    %4901 = vmatprep.subr.bf16.mxu0 0
    %4902 = vmatpush1.bf16.msra.mxu0 0
    %4903 = vmatprep.subr.bf16.mxu0 0
    %4904 = vmatpush1.bf16.msra.mxu0 0
    %4905 = vmatprep.subr.bf16.mxu0 0
    %4906 = vmatpush1.bf16.msra.mxu0 0
    %4907 = vmatprep.subr.bf16.mxu0 0
    %4908 = vmatpush1.bf16.msra.mxu0 0
    %4909 = vmatprep.subr.bf16.mxu0 0
    %4910 = vmatpush1.bf16.msra.mxu0 0
    %4911 = vmatprep.subr.bf16.mxu0 0
    %4912 = vmatpush1.bf16.msra.mxu0 0
    %4913 = vmatprep.mubr.bf16.mxu0 0
    %4914 = vmatmul.mubr.bf16.gmra.mrb[0].mxu0 %v4386
    %v4915 = vpop.f32.mrb[0].mxu0
    %v4916 = vadd.f32 %v659, %v4915
    %v4917 = vpop.f32.mrb[0].mxu0
    %v4918 = vadd.f32 %v663, %v4917
    %v4919 = vpop.f32.mrb[0].mxu0
    %v4920 = vpop.f32.mrb[0].mxu0
    %4921 = vdwg.mxu0
    %4922 = vmatprep.subr.bf16.mxu0 %v4820
    %4923 = vmatpush1.bf16.msra.mxu0 %v4819
    %4924 = vmatprep.subr.bf16.mxu0 %v4824
    %4925 = vmatpush1.bf16.msra.mxu0 %v4823
    %4926 = vmatprep.subr.bf16.mxu0 %v4828
    %4927 = vmatpush1.bf16.msra.mxu0 %v4827
    %4928 = vmatprep.subr.bf16.mxu0 %v4832
    %4929 = vmatpush1.bf16.msra.mxu0 %v4831
    %4930 = vmatprep.subr.bf16.mxu0 %v4836
    %4931 = vmatpush1.bf16.msra.mxu0 %v4835
    %4932 = vmatprep.subr.bf16.mxu0 %v4840
    %4933 = vmatpush1.bf16.msra.mxu0 %v4839
    %4934 = vmatprep.subr.bf16.mxu0 %v4844
    %4935 = vmatpush1.bf16.msra.mxu0 %v4843
    %4936 = vmatprep.subr.bf16.mxu0 %v4848
    %4937 = vmatpush1.bf16.msra.mxu0 %v4847
    %4938 = vmatprep.subr.bf16.mxu0 0
    %4939 = vmatpush1.bf16.msra.mxu0 0
    %4940 = vmatprep.subr.bf16.mxu0 0
    %4941 = vmatpush1.bf16.msra.mxu0 0
    %4942 = vmatprep.subr.bf16.mxu0 0
    %4943 = vmatpush1.bf16.msra.mxu0 0
    %4944 = vmatprep.subr.bf16.mxu0 0
    %4945 = vmatpush1.bf16.msra.mxu0 0
    %4946 = vmatprep.subr.bf16.mxu0 0
    %4947 = vmatpush1.bf16.msra.mxu0 0
    %4948 = vmatprep.subr.bf16.mxu0 0
    %4949 = vmatpush1.bf16.msra.mxu0 0
    %4950 = vmatprep.subr.bf16.mxu0 0
    %4951 = vmatpush1.bf16.msra.mxu0 0
    %4952 = vmatprep.subr.bf16.mxu0 0
    %4953 = vmatpush1.bf16.msra.mxu0 0
    %4954 = vmatprep.mubr.bf16.mxu0 0
    %4955 = vmatmul.mubr.bf16.gmra.mrb[0].mxu0 %v4386
    %v4956 = vpop.f32.mrb[0].mxu0
    %v4957 = vadd.f32 %v667, %v4956
    %v4958 = vpop.f32.mrb[0].mxu0
    %v4959 = vadd.f32 %v671, %v4958
    %v4960 = vpop.f32.mrb[0].mxu0
    %v4961 = vpop.f32.mrb[0].mxu0
    %4962 = vdwg.mxu0
    %v4963 = vld [vmem:[#allocation10] sm:$0xff]
    %v4964 = vld [vmem:[#allocation10 + $0x8] sm:$0xff]
    %v4965 = vld [vmem:[#allocation10 + $0x10] sm:$0xff]
    %v4966 = vld [vmem:[#allocation10 + $0x18] sm:$0xff]
    %v4967 = vld [vmem:[#allocation10 + $0x20] sm:$0xff]
    %v4968 = vld [vmem:[#allocation10 + $0x28] sm:$0xff]
    %v4969 = vld [vmem:[#allocation10 + $0x30] sm:$0xff]
    %v4970 = vld [vmem:[#allocation10 + $0x38] sm:$0xff]
    %v4971 = vld [vmem:[#allocation10 + $0x40] sm:$0xff]
    %v4972 = vld [vmem:[#allocation10 + $0x48] sm:$0xff]
    %v4973 = vld [vmem:[#allocation10 + $0x50] sm:$0xff]
    %v4974 = vld [vmem:[#allocation10 + $0x58] sm:$0xff]
    %v4975 = vld [vmem:[#allocation10 + $0x60] sm:$0xff]
    %v4976 = vld [vmem:[#allocation10 + $0x68] sm:$0xff]
    %v4977 = vld [vmem:[#allocation10 + $0x70] sm:$0xff]
    %v4978 = vld [vmem:[#allocation10 + $0x78] sm:$0xff]
    %v4979 = vld [vmem:[#allocation10 + $0x80] sm:$0xff]
    %v4980 = vld [vmem:[#allocation10 + $0x88] sm:$0xff]
    %v4981 = vld [vmem:[#allocation10 + $0x90] sm:$0xff]
    %v4982 = vld [vmem:[#allocation10 + $0x98] sm:$0xff]
    %v4983 = vld [vmem:[#allocation10 + $0xa0] sm:$0xff]
    %v4984 = vld [vmem:[#allocation10 + $0xa8] sm:$0xff]
    %v4985 = vld [vmem:[#allocation10 + $0xb0] sm:$0xff]
    %v4986 = vld [vmem:[#allocation10 + $0xb8] sm:$0xff]
    %v4987 = vld [vmem:[#allocation10 + $0xc0] sm:$0xff]
    %v4988 = vld [vmem:[#allocation10 + $0xc8] sm:$0xff]
    %v4989 = vld [vmem:[#allocation10 + $0xd0] sm:$0xff]
    %v4990 = vld [vmem:[#allocation10 + $0xd8] sm:$0xff]
    %v4991 = vld [vmem:[#allocation10 + $0xe0] sm:$0xff]
    %v4992 = vld [vmem:[#allocation10 + $0xe8] sm:$0xff]
    %v4993 = vld [vmem:[#allocation10 + $0xf0] sm:$0xff]
    %v4994 = vld [vmem:[#allocation10 + $0xf8] sm:$0xff]
    %v5027 = vunpack.c.l.b16 %v4963
    %v5028 = vunpack.c.h.b16 %v4963
    %v5029 = vunpack.c.l.b16 %v4964
    %v5030 = vunpack.c.h.b16 %v4964
    %v5031 = vunpack.c.l.b16 %v4965
    %v5032 = vunpack.c.h.b16 %v4965
    %v5033 = vunpack.c.l.b16 %v4966
    %v5034 = vunpack.c.h.b16 %v4966
    %v5035 = vunpack.c.l.b16 %v4967
    %v5036 = vunpack.c.h.b16 %v4967
    %v5037 = vunpack.c.l.b16 %v4968
    %v5038 = vunpack.c.h.b16 %v4968
    %v5039 = vunpack.c.l.b16 %v4969
    %v5040 = vunpack.c.h.b16 %v4969
    %v5041 = vunpack.c.l.b16 %v4970
    %v5042 = vunpack.c.h.b16 %v4970
    %v5043 = vunpack.c.l.b16 %v4971
    %v5044 = vunpack.c.h.b16 %v4971
    %v5045 = vunpack.c.l.b16 %v4972
    %v5046 = vunpack.c.h.b16 %v4972
    %v5047 = vunpack.c.l.b16 %v4973
    %v5048 = vunpack.c.h.b16 %v4973
    %v5049 = vunpack.c.l.b16 %v4974
    %v5050 = vunpack.c.h.b16 %v4974
    %v5051 = vunpack.c.l.b16 %v4975
    %v5052 = vunpack.c.h.b16 %v4975
    %v5053 = vunpack.c.l.b16 %v4976
    %v5054 = vunpack.c.h.b16 %v4976
    %v5055 = vunpack.c.l.b16 %v4977
    %v5056 = vunpack.c.h.b16 %v4977
    %v5057 = vunpack.c.l.b16 %v4978
    %v5058 = vunpack.c.h.b16 %v4978
    %v5059 = vunpack.c.l.b16 %v4979
    %v5060 = vunpack.c.h.b16 %v4979
    %v5061 = vunpack.c.l.b16 %v4980
    %v5062 = vunpack.c.h.b16 %v4980
    %v5063 = vunpack.c.l.b16 %v4981
    %v5064 = vunpack.c.h.b16 %v4981
    %v5065 = vunpack.c.l.b16 %v4982
    %v5066 = vunpack.c.h.b16 %v4982
    %v5067 = vunpack.c.l.b16 %v4983
    %v5068 = vunpack.c.h.b16 %v4983
    %v5069 = vunpack.c.l.b16 %v4984
    %v5070 = vunpack.c.h.b16 %v4984
    %v5071 = vunpack.c.l.b16 %v4985
    %v5072 = vunpack.c.h.b16 %v4985
    %v5073 = vunpack.c.l.b16 %v4986
    %v5074 = vunpack.c.h.b16 %v4986
    %v5075 = vunpack.c.l.b16 %v4987
    %v5076 = vunpack.c.h.b16 %v4987
    %v5077 = vunpack.c.l.b16 %v4988
    %v5078 = vunpack.c.h.b16 %v4988
    %v5079 = vunpack.c.l.b16 %v4989
    %v5080 = vunpack.c.h.b16 %v4989
    %v5081 = vunpack.c.l.b16 %v4990
    %v5082 = vunpack.c.h.b16 %v4990
    %v5083 = vunpack.c.l.b16 %v4991
    %v5084 = vunpack.c.h.b16 %v4991
    %v5085 = vunpack.c.l.b16 %v4992
    %v5086 = vunpack.c.h.b16 %v4992
    %v5087 = vunpack.c.l.b16 %v4993
    %v5088 = vunpack.c.h.b16 %v4993
    %v5089 = vunpack.c.l.b16 %v4994
    %v5090 = vunpack.c.h.b16 %v4994
    %v5091 = vpack.c.b16 %v5031, %v5027
    %v5092 = vpack.c.b16 %v5032, %v5028
    %v5093 = vpack.c.b16 %v5033, %v5029
    %v5094 = vpack.c.b16 %v5034, %v5030
    %v5095 = vpack.c.b16 %v5039, %v5035
    %v5096 = vpack.c.b16 %v5040, %v5036
    %v5097 = vpack.c.b16 %v5041, %v5037
    %v5098 = vpack.c.b16 %v5042, %v5038
    %v5099 = vpack.c.b16 %v5047, %v5043
    %v5100 = vpack.c.b16 %v5048, %v5044
    %v5101 = vpack.c.b16 %v5049, %v5045
    %v5102 = vpack.c.b16 %v5050, %v5046
    %v5103 = vpack.c.b16 %v5055, %v5051
    %v5104 = vpack.c.b16 %v5056, %v5052
    %v5105 = vpack.c.b16 %v5057, %v5053
    %v5106 = vpack.c.b16 %v5058, %v5054
    %v5107 = vpack.c.b16 %v5063, %v5059
    %v5108 = vpack.c.b16 %v5064, %v5060
    %v5109 = vpack.c.b16 %v5065, %v5061
    %v5110 = vpack.c.b16 %v5066, %v5062
    %v5111 = vpack.c.b16 %v5071, %v5067
    %v5112 = vpack.c.b16 %v5072, %v5068
    %v5113 = vpack.c.b16 %v5073, %v5069
    %v5114 = vpack.c.b16 %v5074, %v5070
    %v5115 = vpack.c.b16 %v5079, %v5075
    %v5116 = vpack.c.b16 %v5080, %v5076
    %v5117 = vpack.c.b16 %v5081, %v5077
    %v5118 = vpack.c.b16 %v5082, %v5078
    %v5119 = vpack.c.b16 %v5087, %v5083
    %v5120 = vpack.c.b16 %v5088, %v5084
    %v5121 = vpack.c.b16 %v5089, %v5085
    %v5122 = vpack.c.b16 %v5090, %v5086
    %5155 = vmatprep.subr.bf16.mxu0 %v5092
    %5156 = vmatpush1.bf16.msra.mxu0 %v5091
    %5157 = vmatprep.subr.bf16.mxu0 %v5096
    %5158 = vmatpush1.bf16.msra.mxu0 %v5095
    %5159 = vmatprep.subr.bf16.mxu0 %v5100
    %5160 = vmatpush1.bf16.msra.mxu0 %v5099
    %5161 = vmatprep.subr.bf16.mxu0 %v5104
    %5162 = vmatpush1.bf16.msra.mxu0 %v5103
    %5163 = vmatprep.subr.bf16.mxu0 %v5108
    %5164 = vmatpush1.bf16.msra.mxu0 %v5107
    %5165 = vmatprep.subr.bf16.mxu0 %v5112
    %5166 = vmatpush1.bf16.msra.mxu0 %v5111
    %5167 = vmatprep.subr.bf16.mxu0 %v5116
    %5168 = vmatpush1.bf16.msra.mxu0 %v5115
    %5169 = vmatprep.subr.bf16.mxu0 %v5120
    %5170 = vmatpush1.bf16.msra.mxu0 %v5119
    %5171 = vmatprep.subr.bf16.mxu0 0
    %5172 = vmatpush1.bf16.msra.mxu0 0
    %5173 = vmatprep.subr.bf16.mxu0 0
    %5174 = vmatpush1.bf16.msra.mxu0 0
    %5175 = vmatprep.subr.bf16.mxu0 0
    %5176 = vmatpush1.bf16.msra.mxu0 0
    %5177 = vmatprep.subr.bf16.mxu0 0
    %5178 = vmatpush1.bf16.msra.mxu0 0
    %5179 = vmatprep.subr.bf16.mxu0 0
    %5180 = vmatpush1.bf16.msra.mxu0 0
    %5181 = vmatprep.subr.bf16.mxu0 0
    %5182 = vmatpush1.bf16.msra.mxu0 0
    %5183 = vmatprep.subr.bf16.mxu0 0
    %5184 = vmatpush1.bf16.msra.mxu0 0
    %5185 = vmatprep.subr.bf16.mxu0 0
    %5186 = vmatpush1.bf16.msra.mxu0 0
    %5187 = vmatprep.mubr.bf16.mxu0 0
    %5188 = vmatmul.mubr.bf16.gmra.mrb[0].mxu0 %v4372
    %v5189 = vpop.f32.mrb[0].mxu0
    %v5190 = vadd.f32 0.0, %v5189
    %v5191 = vpop.f32.mrb[0].mxu0
    %v5192 = vadd.f32 0.0, %v5191
    %v5193 = vpop.f32.mrb[0].mxu0
    %v5194 = vpop.f32.mrb[0].mxu0
    %5195 = vdwg.mxu0
    %5196 = vmatprep.subr.bf16.mxu0 %v5094
    %5197 = vmatpush1.bf16.msra.mxu0 %v5093
    %5198 = vmatprep.subr.bf16.mxu0 %v5098
    %5199 = vmatpush1.bf16.msra.mxu0 %v5097
    %5200 = vmatprep.subr.bf16.mxu0 %v5102
    %5201 = vmatpush1.bf16.msra.mxu0 %v5101
    %5202 = vmatprep.subr.bf16.mxu0 %v5106
    %5203 = vmatpush1.bf16.msra.mxu0 %v5105
    %5204 = vmatprep.subr.bf16.mxu0 %v5110
    %5205 = vmatpush1.bf16.msra.mxu0 %v5109
    %5206 = vmatprep.subr.bf16.mxu0 %v5114
    %5207 = vmatpush1.bf16.msra.mxu0 %v5113
    %5208 = vmatprep.subr.bf16.mxu0 %v5118
    %5209 = vmatpush1.bf16.msra.mxu0 %v5117
    %5210 = vmatprep.subr.bf16.mxu0 %v5122
    %5211 = vmatpush1.bf16.msra.mxu0 %v5121
    %5212 = vmatprep.subr.bf16.mxu0 0
    %5213 = vmatpush1.bf16.msra.mxu0 0
    %5214 = vmatprep.subr.bf16.mxu0 0
    %5215 = vmatpush1.bf16.msra.mxu0 0
    %5216 = vmatprep.subr.bf16.mxu0 0
    %5217 = vmatpush1.bf16.msra.mxu0 0
    %5218 = vmatprep.subr.bf16.mxu0 0
    %5219 = vmatpush1.bf16.msra.mxu0 0
    %5220 = vmatprep.subr.bf16.mxu0 0
    %5221 = vmatpush1.bf16.msra.mxu0 0
    %5222 = vmatprep.subr.bf16.mxu0 0
    %5223 = vmatpush1.bf16.msra.mxu0 0
    %5224 = vmatprep.subr.bf16.mxu0 0
    %5225 = vmatpush1.bf16.msra.mxu0 0
    %5226 = vmatprep.subr.bf16.mxu0 0
    %5227 = vmatpush1.bf16.msra.mxu0 0
    %5228 = vmatprep.mubr.bf16.mxu0 0
    %5229 = vmatmul.mubr.bf16.gmra.mrb[0].mxu0 %v4372
    %v5230 = vpop.f32.mrb[0].mxu0
    %v5231 = vadd.f32 0.0, %v5230
    %v5232 = vpop.f32.mrb[0].mxu0
    %v5233 = vadd.f32 0.0, %v5232
    %v5234 = vpop.f32.mrb[0].mxu0
    %v5235 = vpop.f32.mrb[0].mxu0
    %5236 = vdwg.mxu0
    %v5237 = vadd.f32 %v4916, %v5190
    %v5238 = vadd.f32 %v4918, %v5192
    %v5239 = vadd.f32 %v4957, %v5231
    %v5240 = vadd.f32 %v4959, %v5233
    %v5241 = vxor.u32 %v5237, 2147483648
    %v5242 = vmul.f32 %v5241, 1.442695
    %v5243 = vpow.pop %v5242
    %v5244 = vadd.f32 %v5243, 1.0
    %v5245 = vrcp.pop %v5244
    %v5246 = vmul.f32 1.0, %v5245
    %v5247 = vxor.u32 %v5238, 2147483648
    %v5248 = vmul.f32 %v5247, 1.442695
    %v5249 = vpow.pop %v5248
    %v5250 = vadd.f32 %v5249, 1.0
    %v5251 = vrcp.pop %v5250
    %v5252 = vmul.f32 1.0, %v5251
    %v5253 = vtanh.pop %v5239
    %v5254 = vxor.u32 %v5240, 2147483648
    %v5255 = vmul.f32 %v5254, 1.442695
    %v5256 = vpow.pop %v5255
    %v5257 = vadd.f32 %v5256, 1.0
    %v5258 = vrcp.pop %v5257
    %v5259 = vmul.f32 1.0, %v5258
    %v5260 = vmul.f32 %v5252, %v4369
    %v5261 = vmul.f32 %v5246, %v5253
    %v5262 = vadd.f32 %v5260, %v5261
    %v5263 = vtanh.pop %v5262
    %v5264 = vmul.f32 %v5259, %v5263
    %v5265 = vpack.c.bf16 %v5264, %v5264
    %s5266 = scalar_lea.vmem [#allocation3], 16
    %5267 = vst [vmem:[%s5266] sm:$0xf] %v5265
    %s5268 = scalar_lea.vmem [#allocation2], 96
    %v5269 = vld [vmem:[%s5268] sm:$0xff]
    %v5270 = vld [vmem:[%s5268 + $0x8] sm:$0xff]
    %v5271 = vunpack.c.l.bf16 %v5269
    %v5272 = vunpack.c.h.bf16 %v5269
    %v5273 = vunpack.c.l.bf16 %v5270
    %v5274 = vunpack.c.h.bf16 %v5270
    %v5275 = vadd.f32 %v5271, %v637
    %v5276 = vadd.f32 %v5272, %v641
    %v5277 = vadd.f32 %v5273, %v645
    %v5278 = vadd.f32 %v5274, %v649
    %v5279 = vpack.c.bf16 %v4688, %v4688
    %v5280 = vld [vmem:[#allocation8] sm:$0xff]
    %v5281 = vld [vmem:[#allocation8 + $0x8] sm:$0xff]
    %v5282 = vld [vmem:[#allocation8 + $0x10] sm:$0xff]
    %v5283 = vld [vmem:[#allocation8 + $0x18] sm:$0xff]
    %v5284 = vld [vmem:[#allocation8 + $0x20] sm:$0xff]
    %v5285 = vld [vmem:[#allocation8 + $0x28] sm:$0xff]
    %v5286 = vld [vmem:[#allocation8 + $0x30] sm:$0xff]
    %v5287 = vld [vmem:[#allocation8 + $0x38] sm:$0xff]
    %v5288 = vld [vmem:[#allocation8 + $0x40] sm:$0xff]
    %v5289 = vld [vmem:[#allocation8 + $0x48] sm:$0xff]
    %v5290 = vld [vmem:[#allocation8 + $0x50] sm:$0xff]
    %v5291 = vld [vmem:[#allocation8 + $0x58] sm:$0xff]
    %v5292 = vld [vmem:[#allocation8 + $0x60] sm:$0xff]
    %v5293 = vld [vmem:[#allocation8 + $0x68] sm:$0xff]
    %v5294 = vld [vmem:[#allocation8 + $0x70] sm:$0xff]
    %v5295 = vld [vmem:[#allocation8 + $0x78] sm:$0xff]
    %v5296 = vld [vmem:[#allocation8 + $0x80] sm:$0xff]
    %v5297 = vld [vmem:[#allocation8 + $0x88] sm:$0xff]
    %v5298 = vld [vmem:[#allocation8 + $0x90] sm:$0xff]
    %v5299 = vld [vmem:[#allocation8 + $0x98] sm:$0xff]
    %v5300 = vld [vmem:[#allocation8 + $0xa0] sm:$0xff]
    %v5301 = vld [vmem:[#allocation8 + $0xa8] sm:$0xff]
    %v5302 = vld [vmem:[#allocation8 + $0xb0] sm:$0xff]
    %v5303 = vld [vmem:[#allocation8 + $0xb8] sm:$0xff]
    %v5304 = vld [vmem:[#allocation8 + $0xc0] sm:$0xff]
    %v5305 = vld [vmem:[#allocation8 + $0xc8] sm:$0xff]
    %v5306 = vld [vmem:[#allocation8 + $0xd0] sm:$0xff]
    %v5307 = vld [vmem:[#allocation8 + $0xd8] sm:$0xff]
    %v5308 = vld [vmem:[#allocation8 + $0xe0] sm:$0xff]
    %v5309 = vld [vmem:[#allocation8 + $0xe8] sm:$0xff]
    %v5310 = vld [vmem:[#allocation8 + $0xf0] sm:$0xff]
    %v5311 = vld [vmem:[#allocation8 + $0xf8] sm:$0xff]
    %v5344 = vunpack.c.l.b16 %v5280
    %v5345 = vunpack.c.h.b16 %v5280
    %v5346 = vunpack.c.l.b16 %v5281
    %v5347 = vunpack.c.h.b16 %v5281
    %v5348 = vunpack.c.l.b16 %v5282
    %v5349 = vunpack.c.h.b16 %v5282
    %v5350 = vunpack.c.l.b16 %v5283
    %v5351 = vunpack.c.h.b16 %v5283
    %v5352 = vunpack.c.l.b16 %v5284
    %v5353 = vunpack.c.h.b16 %v5284
    %v5354 = vunpack.c.l.b16 %v5285
    %v5355 = vunpack.c.h.b16 %v5285
    %v5356 = vunpack.c.l.b16 %v5286
    %v5357 = vunpack.c.h.b16 %v5286
    %v5358 = vunpack.c.l.b16 %v5287
    %v5359 = vunpack.c.h.b16 %v5287
    %v5360 = vunpack.c.l.b16 %v5288
    %v5361 = vunpack.c.h.b16 %v5288
    %v5362 = vunpack.c.l.b16 %v5289
    %v5363 = vunpack.c.h.b16 %v5289
    %v5364 = vunpack.c.l.b16 %v5290
    %v5365 = vunpack.c.h.b16 %v5290
    %v5366 = vunpack.c.l.b16 %v5291
    %v5367 = vunpack.c.h.b16 %v5291
    %v5368 = vunpack.c.l.b16 %v5292
    %v5369 = vunpack.c.h.b16 %v5292
    %v5370 = vunpack.c.l.b16 %v5293
    %v5371 = vunpack.c.h.b16 %v5293
    %v5372 = vunpack.c.l.b16 %v5294
    %v5373 = vunpack.c.h.b16 %v5294
    %v5374 = vunpack.c.l.b16 %v5295
    %v5375 = vunpack.c.h.b16 %v5295
    %v5376 = vunpack.c.l.b16 %v5296
    %v5377 = vunpack.c.h.b16 %v5296
    %v5378 = vunpack.c.l.b16 %v5297
    %v5379 = vunpack.c.h.b16 %v5297
    %v5380 = vunpack.c.l.b16 %v5298
    %v5381 = vunpack.c.h.b16 %v5298
    %v5382 = vunpack.c.l.b16 %v5299
    %v5383 = vunpack.c.h.b16 %v5299
    %v5384 = vunpack.c.l.b16 %v5300
    %v5385 = vunpack.c.h.b16 %v5300
    %v5386 = vunpack.c.l.b16 %v5301
    %v5387 = vunpack.c.h.b16 %v5301
    %v5388 = vunpack.c.l.b16 %v5302
    %v5389 = vunpack.c.h.b16 %v5302
    %v5390 = vunpack.c.l.b16 %v5303
    %v5391 = vunpack.c.h.b16 %v5303
    %v5392 = vunpack.c.l.b16 %v5304
    %v5393 = vunpack.c.h.b16 %v5304
    %v5394 = vunpack.c.l.b16 %v5305
    %v5395 = vunpack.c.h.b16 %v5305
    %v5396 = vunpack.c.l.b16 %v5306
    %v5397 = vunpack.c.h.b16 %v5306
    %v5398 = vunpack.c.l.b16 %v5307
    %v5399 = vunpack.c.h.b16 %v5307
    %v5400 = vunpack.c.l.b16 %v5308
    %v5401 = vunpack.c.h.b16 %v5308
    %v5402 = vunpack.c.l.b16 %v5309
    %v5403 = vunpack.c.h.b16 %v5309
    %v5404 = vunpack.c.l.b16 %v5310
    %v5405 = vunpack.c.h.b16 %v5310
    %v5406 = vunpack.c.l.b16 %v5311
    %v5407 = vunpack.c.h.b16 %v5311
    %v5408 = vpack.c.b16 %v5348, %v5344
    %v5409 = vpack.c.b16 %v5349, %v5345
    %v5410 = vpack.c.b16 %v5350, %v5346
    %v5411 = vpack.c.b16 %v5351, %v5347
    %v5412 = vpack.c.b16 %v5356, %v5352
    %v5413 = vpack.c.b16 %v5357, %v5353
    %v5414 = vpack.c.b16 %v5358, %v5354
    %v5415 = vpack.c.b16 %v5359, %v5355
    %v5416 = vpack.c.b16 %v5364, %v5360
    %v5417 = vpack.c.b16 %v5365, %v5361
    %v5418 = vpack.c.b16 %v5366, %v5362
    %v5419 = vpack.c.b16 %v5367, %v5363
    %v5420 = vpack.c.b16 %v5372, %v5368
    %v5421 = vpack.c.b16 %v5373, %v5369
    %v5422 = vpack.c.b16 %v5374, %v5370
    %v5423 = vpack.c.b16 %v5375, %v5371
    %v5424 = vpack.c.b16 %v5380, %v5376
    %v5425 = vpack.c.b16 %v5381, %v5377
    %v5426 = vpack.c.b16 %v5382, %v5378
    %v5427 = vpack.c.b16 %v5383, %v5379
    %v5428 = vpack.c.b16 %v5388, %v5384
    %v5429 = vpack.c.b16 %v5389, %v5385
    %v5430 = vpack.c.b16 %v5390, %v5386
    %v5431 = vpack.c.b16 %v5391, %v5387
    %v5432 = vpack.c.b16 %v5396, %v5392
    %v5433 = vpack.c.b16 %v5397, %v5393
    %v5434 = vpack.c.b16 %v5398, %v5394
    %v5435 = vpack.c.b16 %v5399, %v5395
    %v5436 = vpack.c.b16 %v5404, %v5400
    %v5437 = vpack.c.b16 %v5405, %v5401
    %v5438 = vpack.c.b16 %v5406, %v5402
    %v5439 = vpack.c.b16 %v5407, %v5403
    %5472 = vmatprep.subr.bf16.mxu0 %v5409
    %5473 = vmatpush1.bf16.msra.mxu0 %v5408
    %5474 = vmatprep.subr.bf16.mxu0 %v5413
    %5475 = vmatpush1.bf16.msra.mxu0 %v5412
    %5476 = vmatprep.subr.bf16.mxu0 %v5417
    %5477 = vmatpush1.bf16.msra.mxu0 %v5416
    %5478 = vmatprep.subr.bf16.mxu0 %v5421
    %5479 = vmatpush1.bf16.msra.mxu0 %v5420
    %5480 = vmatprep.subr.bf16.mxu0 %v5425
    %5481 = vmatpush1.bf16.msra.mxu0 %v5424
    %5482 = vmatprep.subr.bf16.mxu0 %v5429
    %5483 = vmatpush1.bf16.msra.mxu0 %v5428
    %5484 = vmatprep.subr.bf16.mxu0 %v5433
    %5485 = vmatpush1.bf16.msra.mxu0 %v5432
    %5486 = vmatprep.subr.bf16.mxu0 %v5437
    %5487 = vmatpush1.bf16.msra.mxu0 %v5436
    %5488 = vmatprep.subr.bf16.mxu0 0
    %5489 = vmatpush1.bf16.msra.mxu0 0
    %5490 = vmatprep.subr.bf16.mxu0 0
    %5491 = vmatpush1.bf16.msra.mxu0 0
    %5492 = vmatprep.subr.bf16.mxu0 0
    %5493 = vmatpush1.bf16.msra.mxu0 0
    %5494 = vmatprep.subr.bf16.mxu0 0
    %5495 = vmatpush1.bf16.msra.mxu0 0
    %5496 = vmatprep.subr.bf16.mxu0 0
    %5497 = vmatpush1.bf16.msra.mxu0 0
    %5498 = vmatprep.subr.bf16.mxu0 0
    %5499 = vmatpush1.bf16.msra.mxu0 0
    %5500 = vmatprep.subr.bf16.mxu0 0
    %5501 = vmatpush1.bf16.msra.mxu0 0
    %5502 = vmatprep.subr.bf16.mxu0 0
    %5503 = vmatpush1.bf16.msra.mxu0 0
    %5504 = vmatprep.mubr.bf16.mxu0 0
    %5505 = vmatmul.mubr.bf16.gmra.mrb[0].mxu0 %v5279
    %v5506 = vpop.f32.mrb[0].mxu0
    %v5507 = vadd.f32 0.0, %v5506
    %v5508 = vpop.f32.mrb[0].mxu0
    %v5509 = vadd.f32 0.0, %v5508
    %v5510 = vpop.f32.mrb[0].mxu0
    %v5511 = vpop.f32.mrb[0].mxu0
    %5512 = vdwg.mxu0
    %5513 = vmatprep.subr.bf16.mxu0 %v5411
    %5514 = vmatpush1.bf16.msra.mxu0 %v5410
    %5515 = vmatprep.subr.bf16.mxu0 %v5415
    %5516 = vmatpush1.bf16.msra.mxu0 %v5414
    %5517 = vmatprep.subr.bf16.mxu0 %v5419
    %5518 = vmatpush1.bf16.msra.mxu0 %v5418
    %5519 = vmatprep.subr.bf16.mxu0 %v5423
    %5520 = vmatpush1.bf16.msra.mxu0 %v5422
    %5521 = vmatprep.subr.bf16.mxu0 %v5427
    %5522 = vmatpush1.bf16.msra.mxu0 %v5426
    %5523 = vmatprep.subr.bf16.mxu0 %v5431
    %5524 = vmatpush1.bf16.msra.mxu0 %v5430
    %5525 = vmatprep.subr.bf16.mxu0 %v5435
    %5526 = vmatpush1.bf16.msra.mxu0 %v5434
    %5527 = vmatprep.subr.bf16.mxu0 %v5439
    %5528 = vmatpush1.bf16.msra.mxu0 %v5438
    %5529 = vmatprep.subr.bf16.mxu0 0
    %5530 = vmatpush1.bf16.msra.mxu0 0
    %5531 = vmatprep.subr.bf16.mxu0 0
    %5532 = vmatpush1.bf16.msra.mxu0 0
    %5533 = vmatprep.subr.bf16.mxu0 0
    %5534 = vmatpush1.bf16.msra.mxu0 0
    %5535 = vmatprep.subr.bf16.mxu0 0
    %5536 = vmatpush1.bf16.msra.mxu0 0
    %5537 = vmatprep.subr.bf16.mxu0 0
    %5538 = vmatpush1.bf16.msra.mxu0 0
    %5539 = vmatprep.subr.bf16.mxu0 0
    %5540 = vmatpush1.bf16.msra.mxu0 0
    %5541 = vmatprep.subr.bf16.mxu0 0
    %5542 = vmatpush1.bf16.msra.mxu0 0
    %5543 = vmatprep.subr.bf16.mxu0 0
    %5544 = vmatpush1.bf16.msra.mxu0 0
    %5545 = vmatprep.mubr.bf16.mxu0 0
    %5546 = vmatmul.mubr.bf16.gmra.mrb[0].mxu0 %v5279
    %v5547 = vpop.f32.mrb[0].mxu0
    %v5548 = vadd.f32 0.0, %v5547
    %v5549 = vpop.f32.mrb[0].mxu0
    %v5550 = vadd.f32 0.0, %v5549
    %v5551 = vpop.f32.mrb[0].mxu0
    %v5552 = vpop.f32.mrb[0].mxu0
    %5553 = vdwg.mxu0
    %v5554 = vadd.f32 %v5275, %v5507
    %v5555 = vadd.f32 %v5276, %v5509
    %v5556 = vadd.f32 %v5277, %v5548
    %v5557 = vadd.f32 %v5278, %v5550
    %v5558 = vxor.u32 %v5554, 2147483648
    %v5559 = vmul.f32 %v5558, 1.442695
    %v5560 = vpow.pop %v5559
    %v5561 = vadd.f32 %v5560, 1.0
    %v5562 = vrcp.pop %v5561
    %v5563 = vmul.f32 1.0, %v5562
    %v5564 = vxor.u32 %v5555, 2147483648
    %v5565 = vmul.f32 %v5564, 1.442695
    %v5566 = vpow.pop %v5565
    %v5567 = vadd.f32 %v5566, 1.0
    %v5568 = vrcp.pop %v5567
    %v5569 = vmul.f32 1.0, %v5568
    %v5570 = vtanh.pop %v5556
    %v5571 = vxor.u32 %v5557, 2147483648
    %v5572 = vmul.f32 %v5571, 1.442695
    %v5573 = vpow.pop %v5572
    %v5574 = vadd.f32 %v5573, 1.0
    %v5575 = vrcp.pop %v5574
    %v5576 = vmul.f32 1.0, %v5575
    %v5577 = vmul.f32 %v5569, %v4686
    %v5578 = vmul.f32 %v5563, %v5570
    %v5579 = vadd.f32 %v5577, %v5578
    %v5580 = vtanh.pop %v5579
    %v5581 = vmul.f32 %v5576, %v5580
    %v5582 = vld [vmem:[#allocation11] sm:$0xff]
    %v5583 = vld [vmem:[#allocation11 + $0x8] sm:$0xff]
    %v5584 = vld [vmem:[#allocation11 + $0x10] sm:$0xff]
    %v5585 = vld [vmem:[#allocation11 + $0x18] sm:$0xff]
    %v5586 = vld [vmem:[#allocation11 + $0x20] sm:$0xff]
    %v5587 = vld [vmem:[#allocation11 + $0x28] sm:$0xff]
    %v5588 = vld [vmem:[#allocation11 + $0x30] sm:$0xff]
    %v5589 = vld [vmem:[#allocation11 + $0x38] sm:$0xff]
    %v5590 = vld [vmem:[#allocation11 + $0x40] sm:$0xff]
    %v5591 = vld [vmem:[#allocation11 + $0x48] sm:$0xff]
    %v5592 = vld [vmem:[#allocation11 + $0x50] sm:$0xff]
    %v5593 = vld [vmem:[#allocation11 + $0x58] sm:$0xff]
    %v5594 = vld [vmem:[#allocation11 + $0x60] sm:$0xff]
    %v5595 = vld [vmem:[#allocation11 + $0x68] sm:$0xff]
    %v5596 = vld [vmem:[#allocation11 + $0x70] sm:$0xff]
    %v5597 = vld [vmem:[#allocation11 + $0x78] sm:$0xff]
    %v5598 = vld [vmem:[#allocation11 + $0x80] sm:$0xff]
    %v5599 = vld [vmem:[#allocation11 + $0x88] sm:$0xff]
    %v5600 = vld [vmem:[#allocation11 + $0x90] sm:$0xff]
    %v5601 = vld [vmem:[#allocation11 + $0x98] sm:$0xff]
    %v5602 = vld [vmem:[#allocation11 + $0xa0] sm:$0xff]
    %v5603 = vld [vmem:[#allocation11 + $0xa8] sm:$0xff]
    %v5604 = vld [vmem:[#allocation11 + $0xb0] sm:$0xff]
    %v5605 = vld [vmem:[#allocation11 + $0xb8] sm:$0xff]
    %v5606 = vld [vmem:[#allocation11 + $0xc0] sm:$0xff]
    %v5607 = vld [vmem:[#allocation11 + $0xc8] sm:$0xff]
    %v5608 = vld [vmem:[#allocation11 + $0xd0] sm:$0xff]
    %v5609 = vld [vmem:[#allocation11 + $0xd8] sm:$0xff]
    %v5610 = vld [vmem:[#allocation11 + $0xe0] sm:$0xff]
    %v5611 = vld [vmem:[#allocation11 + $0xe8] sm:$0xff]
    %v5612 = vld [vmem:[#allocation11 + $0xf0] sm:$0xff]
    %v5613 = vld [vmem:[#allocation11 + $0xf8] sm:$0xff]
    %v5646 = vunpack.c.l.b16 %v5582
    %v5647 = vunpack.c.h.b16 %v5582
    %v5648 = vunpack.c.l.b16 %v5583
    %v5649 = vunpack.c.h.b16 %v5583
    %v5650 = vunpack.c.l.b16 %v5584
    %v5651 = vunpack.c.h.b16 %v5584
    %v5652 = vunpack.c.l.b16 %v5585
    %v5653 = vunpack.c.h.b16 %v5585
    %v5654 = vunpack.c.l.b16 %v5586
    %v5655 = vunpack.c.h.b16 %v5586
    %v5656 = vunpack.c.l.b16 %v5587
    %v5657 = vunpack.c.h.b16 %v5587
    %v5658 = vunpack.c.l.b16 %v5588
    %v5659 = vunpack.c.h.b16 %v5588
    %v5660 = vunpack.c.l.b16 %v5589
    %v5661 = vunpack.c.h.b16 %v5589
    %v5662 = vunpack.c.l.b16 %v5590
    %v5663 = vunpack.c.h.b16 %v5590
    %v5664 = vunpack.c.l.b16 %v5591
    %v5665 = vunpack.c.h.b16 %v5591
    %v5666 = vunpack.c.l.b16 %v5592
    %v5667 = vunpack.c.h.b16 %v5592
    %v5668 = vunpack.c.l.b16 %v5593
    %v5669 = vunpack.c.h.b16 %v5593
    %v5670 = vunpack.c.l.b16 %v5594
    %v5671 = vunpack.c.h.b16 %v5594
    %v5672 = vunpack.c.l.b16 %v5595
    %v5673 = vunpack.c.h.b16 %v5595
    %v5674 = vunpack.c.l.b16 %v5596
    %v5675 = vunpack.c.h.b16 %v5596
    %v5676 = vunpack.c.l.b16 %v5597
    %v5677 = vunpack.c.h.b16 %v5597
    %v5678 = vunpack.c.l.b16 %v5598
    %v5679 = vunpack.c.h.b16 %v5598
    %v5680 = vunpack.c.l.b16 %v5599
    %v5681 = vunpack.c.h.b16 %v5599
    %v5682 = vunpack.c.l.b16 %v5600
    %v5683 = vunpack.c.h.b16 %v5600
    %v5684 = vunpack.c.l.b16 %v5601
    %v5685 = vunpack.c.h.b16 %v5601
    %v5686 = vunpack.c.l.b16 %v5602
    %v5687 = vunpack.c.h.b16 %v5602
    %v5688 = vunpack.c.l.b16 %v5603
    %v5689 = vunpack.c.h.b16 %v5603
    %v5690 = vunpack.c.l.b16 %v5604
    %v5691 = vunpack.c.h.b16 %v5604
    %v5692 = vunpack.c.l.b16 %v5605
    %v5693 = vunpack.c.h.b16 %v5605
    %v5694 = vunpack.c.l.b16 %v5606
    %v5695 = vunpack.c.h.b16 %v5606
    %v5696 = vunpack.c.l.b16 %v5607
    %v5697 = vunpack.c.h.b16 %v5607
    %v5698 = vunpack.c.l.b16 %v5608
    %v5699 = vunpack.c.h.b16 %v5608
    %v5700 = vunpack.c.l.b16 %v5609
    %v5701 = vunpack.c.h.b16 %v5609
    %v5702 = vunpack.c.l.b16 %v5610
    %v5703 = vunpack.c.h.b16 %v5610
    %v5704 = vunpack.c.l.b16 %v5611
    %v5705 = vunpack.c.h.b16 %v5611
    %v5706 = vunpack.c.l.b16 %v5612
    %v5707 = vunpack.c.h.b16 %v5612
    %v5708 = vunpack.c.l.b16 %v5613
    %v5709 = vunpack.c.h.b16 %v5613
    %v5710 = vpack.c.b16 %v5650, %v5646
    %v5711 = vpack.c.b16 %v5651, %v5647
    %v5712 = vpack.c.b16 %v5652, %v5648
    %v5713 = vpack.c.b16 %v5653, %v5649
    %v5714 = vpack.c.b16 %v5658, %v5654
    %v5715 = vpack.c.b16 %v5659, %v5655
    %v5716 = vpack.c.b16 %v5660, %v5656
    %v5717 = vpack.c.b16 %v5661, %v5657
    %v5718 = vpack.c.b16 %v5666, %v5662
    %v5719 = vpack.c.b16 %v5667, %v5663
    %v5720 = vpack.c.b16 %v5668, %v5664
    %v5721 = vpack.c.b16 %v5669, %v5665
    %v5722 = vpack.c.b16 %v5674, %v5670
    %v5723 = vpack.c.b16 %v5675, %v5671
    %v5724 = vpack.c.b16 %v5676, %v5672
    %v5725 = vpack.c.b16 %v5677, %v5673
    %v5726 = vpack.c.b16 %v5682, %v5678
    %v5727 = vpack.c.b16 %v5683, %v5679
    %v5728 = vpack.c.b16 %v5684, %v5680
    %v5729 = vpack.c.b16 %v5685, %v5681
    %v5730 = vpack.c.b16 %v5690, %v5686
    %v5731 = vpack.c.b16 %v5691, %v5687
    %v5732 = vpack.c.b16 %v5692, %v5688
    %v5733 = vpack.c.b16 %v5693, %v5689
    %v5734 = vpack.c.b16 %v5698, %v5694
    %v5735 = vpack.c.b16 %v5699, %v5695
    %v5736 = vpack.c.b16 %v5700, %v5696
    %v5737 = vpack.c.b16 %v5701, %v5697
    %v5738 = vpack.c.b16 %v5706, %v5702
    %v5739 = vpack.c.b16 %v5707, %v5703
    %v5740 = vpack.c.b16 %v5708, %v5704
    %v5741 = vpack.c.b16 %v5709, %v5705
    %5774 = vmatprep.subr.bf16.mxu0 %v5711
    %5775 = vmatpush1.bf16.msra.mxu0 %v5710
    %5776 = vmatprep.subr.bf16.mxu0 %v5715
    %5777 = vmatpush1.bf16.msra.mxu0 %v5714
    %5778 = vmatprep.subr.bf16.mxu0 %v5719
    %5779 = vmatpush1.bf16.msra.mxu0 %v5718
    %5780 = vmatprep.subr.bf16.mxu0 %v5723
    %5781 = vmatpush1.bf16.msra.mxu0 %v5722
    %5782 = vmatprep.subr.bf16.mxu0 %v5727
    %5783 = vmatpush1.bf16.msra.mxu0 %v5726
    %5784 = vmatprep.subr.bf16.mxu0 %v5731
    %5785 = vmatpush1.bf16.msra.mxu0 %v5730
    %5786 = vmatprep.subr.bf16.mxu0 %v5735
    %5787 = vmatpush1.bf16.msra.mxu0 %v5734
    %5788 = vmatprep.subr.bf16.mxu0 %v5739
    %5789 = vmatpush1.bf16.msra.mxu0 %v5738
    %5790 = vmatprep.subr.bf16.mxu0 0
    %5791 = vmatpush1.bf16.msra.mxu0 0
    %5792 = vmatprep.subr.bf16.mxu0 0
    %5793 = vmatpush1.bf16.msra.mxu0 0
    %5794 = vmatprep.subr.bf16.mxu0 0
    %5795 = vmatpush1.bf16.msra.mxu0 0
    %5796 = vmatprep.subr.bf16.mxu0 0
    %5797 = vmatpush1.bf16.msra.mxu0 0
    %5798 = vmatprep.subr.bf16.mxu0 0
    %5799 = vmatpush1.bf16.msra.mxu0 0
    %5800 = vmatprep.subr.bf16.mxu0 0
    %5801 = vmatpush1.bf16.msra.mxu0 0
    %5802 = vmatprep.subr.bf16.mxu0 0
    %5803 = vmatpush1.bf16.msra.mxu0 0
    %5804 = vmatprep.subr.bf16.mxu0 0
    %5805 = vmatpush1.bf16.msra.mxu0 0
    %5806 = vmatprep.mubr.bf16.mxu0 0
    %5807 = vmatmul.mubr.bf16.gmra.mrb[0].mxu0 %v5279
    %v5808 = vpop.f32.mrb[0].mxu0
    %v5809 = vadd.f32 %v659, %v5808
    %v5810 = vpop.f32.mrb[0].mxu0
    %v5811 = vadd.f32 %v663, %v5810
    %v5812 = vpop.f32.mrb[0].mxu0
    %v5813 = vpop.f32.mrb[0].mxu0
    %5814 = vdwg.mxu0
    %5815 = vmatprep.subr.bf16.mxu0 %v5713
    %5816 = vmatpush1.bf16.msra.mxu0 %v5712
    %5817 = vmatprep.subr.bf16.mxu0 %v5717
    %5818 = vmatpush1.bf16.msra.mxu0 %v5716
    %5819 = vmatprep.subr.bf16.mxu0 %v5721
    %5820 = vmatpush1.bf16.msra.mxu0 %v5720
    %5821 = vmatprep.subr.bf16.mxu0 %v5725
    %5822 = vmatpush1.bf16.msra.mxu0 %v5724
    %5823 = vmatprep.subr.bf16.mxu0 %v5729
    %5824 = vmatpush1.bf16.msra.mxu0 %v5728
    %5825 = vmatprep.subr.bf16.mxu0 %v5733
    %5826 = vmatpush1.bf16.msra.mxu0 %v5732
    %5827 = vmatprep.subr.bf16.mxu0 %v5737
    %5828 = vmatpush1.bf16.msra.mxu0 %v5736
    %5829 = vmatprep.subr.bf16.mxu0 %v5741
    %5830 = vmatpush1.bf16.msra.mxu0 %v5740
    %5831 = vmatprep.subr.bf16.mxu0 0
    %5832 = vmatpush1.bf16.msra.mxu0 0
    %5833 = vmatprep.subr.bf16.mxu0 0
    %5834 = vmatpush1.bf16.msra.mxu0 0
    %5835 = vmatprep.subr.bf16.mxu0 0
    %5836 = vmatpush1.bf16.msra.mxu0 0
    %5837 = vmatprep.subr.bf16.mxu0 0
    %5838 = vmatpush1.bf16.msra.mxu0 0
    %5839 = vmatprep.subr.bf16.mxu0 0
    %5840 = vmatpush1.bf16.msra.mxu0 0
    %5841 = vmatprep.subr.bf16.mxu0 0
    %5842 = vmatpush1.bf16.msra.mxu0 0
    %5843 = vmatprep.subr.bf16.mxu0 0
    %5844 = vmatpush1.bf16.msra.mxu0 0
    %5845 = vmatprep.subr.bf16.mxu0 0
    %5846 = vmatpush1.bf16.msra.mxu0 0
    %5847 = vmatprep.mubr.bf16.mxu0 0
    %5848 = vmatmul.mubr.bf16.gmra.mrb[0].mxu0 %v5279
    %v5849 = vpop.f32.mrb[0].mxu0
    %v5850 = vadd.f32 %v667, %v5849
    %v5851 = vpop.f32.mrb[0].mxu0
    %v5852 = vadd.f32 %v671, %v5851
    %v5853 = vpop.f32.mrb[0].mxu0
    %v5854 = vpop.f32.mrb[0].mxu0
    %5855 = vdwg.mxu0
    %v5856 = vld [vmem:[#allocation10] sm:$0xff]
    %v5857 = vld [vmem:[#allocation10 + $0x8] sm:$0xff]
    %v5858 = vld [vmem:[#allocation10 + $0x10] sm:$0xff]
    %v5859 = vld [vmem:[#allocation10 + $0x18] sm:$0xff]
    %v5860 = vld [vmem:[#allocation10 + $0x20] sm:$0xff]
    %v5861 = vld [vmem:[#allocation10 + $0x28] sm:$0xff]
    %v5862 = vld [vmem:[#allocation10 + $0x30] sm:$0xff]
    %v5863 = vld [vmem:[#allocation10 + $0x38] sm:$0xff]
    %v5864 = vld [vmem:[#allocation10 + $0x40] sm:$0xff]
    %v5865 = vld [vmem:[#allocation10 + $0x48] sm:$0xff]
    %v5866 = vld [vmem:[#allocation10 + $0x50] sm:$0xff]
    %v5867 = vld [vmem:[#allocation10 + $0x58] sm:$0xff]
    %v5868 = vld [vmem:[#allocation10 + $0x60] sm:$0xff]
    %v5869 = vld [vmem:[#allocation10 + $0x68] sm:$0xff]
    %v5870 = vld [vmem:[#allocation10 + $0x70] sm:$0xff]
    %v5871 = vld [vmem:[#allocation10 + $0x78] sm:$0xff]
    %v5872 = vld [vmem:[#allocation10 + $0x80] sm:$0xff]
    %v5873 = vld [vmem:[#allocation10 + $0x88] sm:$0xff]
    %v5874 = vld [vmem:[#allocation10 + $0x90] sm:$0xff]
    %v5875 = vld [vmem:[#allocation10 + $0x98] sm:$0xff]
    %v5876 = vld [vmem:[#allocation10 + $0xa0] sm:$0xff]
    %v5877 = vld [vmem:[#allocation10 + $0xa8] sm:$0xff]
    %v5878 = vld [vmem:[#allocation10 + $0xb0] sm:$0xff]
    %v5879 = vld [vmem:[#allocation10 + $0xb8] sm:$0xff]
    %v5880 = vld [vmem:[#allocation10 + $0xc0] sm:$0xff]
    %v5881 = vld [vmem:[#allocation10 + $0xc8] sm:$0xff]
    %v5882 = vld [vmem:[#allocation10 + $0xd0] sm:$0xff]
    %v5883 = vld [vmem:[#allocation10 + $0xd8] sm:$0xff]
    %v5884 = vld [vmem:[#allocation10 + $0xe0] sm:$0xff]
    %v5885 = vld [vmem:[#allocation10 + $0xe8] sm:$0xff]
    %v5886 = vld [vmem:[#allocation10 + $0xf0] sm:$0xff]
    %v5887 = vld [vmem:[#allocation10 + $0xf8] sm:$0xff]
    %v5920 = vunpack.c.l.b16 %v5856
    %v5921 = vunpack.c.h.b16 %v5856
    %v5922 = vunpack.c.l.b16 %v5857
    %v5923 = vunpack.c.h.b16 %v5857
    %v5924 = vunpack.c.l.b16 %v5858
    %v5925 = vunpack.c.h.b16 %v5858
    %v5926 = vunpack.c.l.b16 %v5859
    %v5927 = vunpack.c.h.b16 %v5859
    %v5928 = vunpack.c.l.b16 %v5860
    %v5929 = vunpack.c.h.b16 %v5860
    %v5930 = vunpack.c.l.b16 %v5861
    %v5931 = vunpack.c.h.b16 %v5861
    %v5932 = vunpack.c.l.b16 %v5862
    %v5933 = vunpack.c.h.b16 %v5862
    %v5934 = vunpack.c.l.b16 %v5863
    %v5935 = vunpack.c.h.b16 %v5863
    %v5936 = vunpack.c.l.b16 %v5864
    %v5937 = vunpack.c.h.b16 %v5864
    %v5938 = vunpack.c.l.b16 %v5865
    %v5939 = vunpack.c.h.b16 %v5865
    %v5940 = vunpack.c.l.b16 %v5866
    %v5941 = vunpack.c.h.b16 %v5866
    %v5942 = vunpack.c.l.b16 %v5867
    %v5943 = vunpack.c.h.b16 %v5867
    %v5944 = vunpack.c.l.b16 %v5868
    %v5945 = vunpack.c.h.b16 %v5868
    %v5946 = vunpack.c.l.b16 %v5869
    %v5947 = vunpack.c.h.b16 %v5869
    %v5948 = vunpack.c.l.b16 %v5870
    %v5949 = vunpack.c.h.b16 %v5870
    %v5950 = vunpack.c.l.b16 %v5871
    %v5951 = vunpack.c.h.b16 %v5871
    %v5952 = vunpack.c.l.b16 %v5872
    %v5953 = vunpack.c.h.b16 %v5872
    %v5954 = vunpack.c.l.b16 %v5873
    %v5955 = vunpack.c.h.b16 %v5873
    %v5956 = vunpack.c.l.b16 %v5874
    %v5957 = vunpack.c.h.b16 %v5874
    %v5958 = vunpack.c.l.b16 %v5875
    %v5959 = vunpack.c.h.b16 %v5875
    %v5960 = vunpack.c.l.b16 %v5876
    %v5961 = vunpack.c.h.b16 %v5876
    %v5962 = vunpack.c.l.b16 %v5877
    %v5963 = vunpack.c.h.b16 %v5877
    %v5964 = vunpack.c.l.b16 %v5878
    %v5965 = vunpack.c.h.b16 %v5878
    %v5966 = vunpack.c.l.b16 %v5879
    %v5967 = vunpack.c.h.b16 %v5879
    %v5968 = vunpack.c.l.b16 %v5880
    %v5969 = vunpack.c.h.b16 %v5880
    %v5970 = vunpack.c.l.b16 %v5881
    %v5971 = vunpack.c.h.b16 %v5881
    %v5972 = vunpack.c.l.b16 %v5882
    %v5973 = vunpack.c.h.b16 %v5882
    %v5974 = vunpack.c.l.b16 %v5883
    %v5975 = vunpack.c.h.b16 %v5883
    %v5976 = vunpack.c.l.b16 %v5884
    %v5977 = vunpack.c.h.b16 %v5884
    %v5978 = vunpack.c.l.b16 %v5885
    %v5979 = vunpack.c.h.b16 %v5885
    %v5980 = vunpack.c.l.b16 %v5886
    %v5981 = vunpack.c.h.b16 %v5886
    %v5982 = vunpack.c.l.b16 %v5887
    %v5983 = vunpack.c.h.b16 %v5887
    %v5984 = vpack.c.b16 %v5924, %v5920
    %v5985 = vpack.c.b16 %v5925, %v5921
    %v5986 = vpack.c.b16 %v5926, %v5922
    %v5987 = vpack.c.b16 %v5927, %v5923
    %v5988 = vpack.c.b16 %v5932, %v5928
    %v5989 = vpack.c.b16 %v5933, %v5929
    %v5990 = vpack.c.b16 %v5934, %v5930
    %v5991 = vpack.c.b16 %v5935, %v5931
    %v5992 = vpack.c.b16 %v5940, %v5936
    %v5993 = vpack.c.b16 %v5941, %v5937
    %v5994 = vpack.c.b16 %v5942, %v5938
    %v5995 = vpack.c.b16 %v5943, %v5939
    %v5996 = vpack.c.b16 %v5948, %v5944
    %v5997 = vpack.c.b16 %v5949, %v5945
    %v5998 = vpack.c.b16 %v5950, %v5946
    %v5999 = vpack.c.b16 %v5951, %v5947
    %v6000 = vpack.c.b16 %v5956, %v5952
    %v6001 = vpack.c.b16 %v5957, %v5953
    %v6002 = vpack.c.b16 %v5958, %v5954
    %v6003 = vpack.c.b16 %v5959, %v5955
    %v6004 = vpack.c.b16 %v5964, %v5960
    %v6005 = vpack.c.b16 %v5965, %v5961
    %v6006 = vpack.c.b16 %v5966, %v5962
    %v6007 = vpack.c.b16 %v5967, %v5963
    %v6008 = vpack.c.b16 %v5972, %v5968
    %v6009 = vpack.c.b16 %v5973, %v5969
    %v6010 = vpack.c.b16 %v5974, %v5970
    %v6011 = vpack.c.b16 %v5975, %v5971
    %v6012 = vpack.c.b16 %v5980, %v5976
    %v6013 = vpack.c.b16 %v5981, %v5977
    %v6014 = vpack.c.b16 %v5982, %v5978
    %v6015 = vpack.c.b16 %v5983, %v5979
    %6048 = vmatprep.subr.bf16.mxu0 %v5985
    %6049 = vmatpush1.bf16.msra.mxu0 %v5984
    %6050 = vmatprep.subr.bf16.mxu0 %v5989
    %6051 = vmatpush1.bf16.msra.mxu0 %v5988
    %6052 = vmatprep.subr.bf16.mxu0 %v5993
    %6053 = vmatpush1.bf16.msra.mxu0 %v5992
    %6054 = vmatprep.subr.bf16.mxu0 %v5997
    %6055 = vmatpush1.bf16.msra.mxu0 %v5996
    %6056 = vmatprep.subr.bf16.mxu0 %v6001
    %6057 = vmatpush1.bf16.msra.mxu0 %v6000
    %6058 = vmatprep.subr.bf16.mxu0 %v6005
    %6059 = vmatpush1.bf16.msra.mxu0 %v6004
    %6060 = vmatprep.subr.bf16.mxu0 %v6009
    %6061 = vmatpush1.bf16.msra.mxu0 %v6008
    %6062 = vmatprep.subr.bf16.mxu0 %v6013
    %6063 = vmatpush1.bf16.msra.mxu0 %v6012
    %6064 = vmatprep.subr.bf16.mxu0 0
    %6065 = vmatpush1.bf16.msra.mxu0 0
    %6066 = vmatprep.subr.bf16.mxu0 0
    %6067 = vmatpush1.bf16.msra.mxu0 0
    %6068 = vmatprep.subr.bf16.mxu0 0
    %6069 = vmatpush1.bf16.msra.mxu0 0
    %6070 = vmatprep.subr.bf16.mxu0 0
    %6071 = vmatpush1.bf16.msra.mxu0 0
    %6072 = vmatprep.subr.bf16.mxu0 0
    %6073 = vmatpush1.bf16.msra.mxu0 0
    %6074 = vmatprep.subr.bf16.mxu0 0
    %6075 = vmatpush1.bf16.msra.mxu0 0
    %6076 = vmatprep.subr.bf16.mxu0 0
    %6077 = vmatpush1.bf16.msra.mxu0 0
    %6078 = vmatprep.subr.bf16.mxu0 0
    %6079 = vmatpush1.bf16.msra.mxu0 0
    %6080 = vmatprep.mubr.bf16.mxu0 0
    %6081 = vmatmul.mubr.bf16.gmra.mrb[0].mxu0 %v5265
    %v6082 = vpop.f32.mrb[0].mxu0
    %v6083 = vadd.f32 0.0, %v6082
    %v6084 = vpop.f32.mrb[0].mxu0
    %v6085 = vadd.f32 0.0, %v6084
    %v6086 = vpop.f32.mrb[0].mxu0
    %v6087 = vpop.f32.mrb[0].mxu0
    %6088 = vdwg.mxu0
    %6089 = vmatprep.subr.bf16.mxu0 %v5987
    %6090 = vmatpush1.bf16.msra.mxu0 %v5986
    %6091 = vmatprep.subr.bf16.mxu0 %v5991
    %6092 = vmatpush1.bf16.msra.mxu0 %v5990
    %6093 = vmatprep.subr.bf16.mxu0 %v5995
    %6094 = vmatpush1.bf16.msra.mxu0 %v5994
    %6095 = vmatprep.subr.bf16.mxu0 %v5999
    %6096 = vmatpush1.bf16.msra.mxu0 %v5998
    %6097 = vmatprep.subr.bf16.mxu0 %v6003
    %6098 = vmatpush1.bf16.msra.mxu0 %v6002
    %6099 = vmatprep.subr.bf16.mxu0 %v6007
    %6100 = vmatpush1.bf16.msra.mxu0 %v6006
    %6101 = vmatprep.subr.bf16.mxu0 %v6011
    %6102 = vmatpush1.bf16.msra.mxu0 %v6010
    %6103 = vmatprep.subr.bf16.mxu0 %v6015
    %6104 = vmatpush1.bf16.msra.mxu0 %v6014
    %6105 = vmatprep.subr.bf16.mxu0 0
    %6106 = vmatpush1.bf16.msra.mxu0 0
    %6107 = vmatprep.subr.bf16.mxu0 0
    %6108 = vmatpush1.bf16.msra.mxu0 0
    %6109 = vmatprep.subr.bf16.mxu0 0
    %6110 = vmatpush1.bf16.msra.mxu0 0
    %6111 = vmatprep.subr.bf16.mxu0 0
    %6112 = vmatpush1.bf16.msra.mxu0 0
    %6113 = vmatprep.subr.bf16.mxu0 0
    %6114 = vmatpush1.bf16.msra.mxu0 0
    %6115 = vmatprep.subr.bf16.mxu0 0
    %6116 = vmatpush1.bf16.msra.mxu0 0
    %6117 = vmatprep.subr.bf16.mxu0 0
    %6118 = vmatpush1.bf16.msra.mxu0 0
    %6119 = vmatprep.subr.bf16.mxu0 0
    %6120 = vmatpush1.bf16.msra.mxu0 0
    %6121 = vmatprep.mubr.bf16.mxu0 0
    %6122 = vmatmul.mubr.bf16.gmra.mrb[0].mxu0 %v5265
    %v6123 = vpop.f32.mrb[0].mxu0
    %v6124 = vadd.f32 0.0, %v6123
    %v6125 = vpop.f32.mrb[0].mxu0
    %v6126 = vadd.f32 0.0, %v6125
    %v6127 = vpop.f32.mrb[0].mxu0
    %v6128 = vpop.f32.mrb[0].mxu0
    %6129 = vdwg.mxu0
    %v6130 = vadd.f32 %v5809, %v6083
    %v6131 = vadd.f32 %v5811, %v6085
    %v6132 = vadd.f32 %v5850, %v6124
    %v6133 = vadd.f32 %v5852, %v6126
    %v6134 = vxor.u32 %v6130, 2147483648
    %v6135 = vmul.f32 %v6134, 1.442695
    %v6136 = vpow.pop %v6135
    %v6137 = vadd.f32 %v6136, 1.0
    %v6138 = vrcp.pop %v6137
    %v6139 = vmul.f32 1.0, %v6138
    %v6140 = vxor.u32 %v6131, 2147483648
    %v6141 = vmul.f32 %v6140, 1.442695
    %v6142 = vpow.pop %v6141
    %v6143 = vadd.f32 %v6142, 1.0
    %v6144 = vrcp.pop %v6143
    %v6145 = vmul.f32 1.0, %v6144
    %v6146 = vtanh.pop %v6132
    %v6147 = vxor.u32 %v6133, 2147483648
    %v6148 = vmul.f32 %v6147, 1.442695
    %v6149 = vpow.pop %v6148
    %v6150 = vadd.f32 %v6149, 1.0
    %v6151 = vrcp.pop %v6150
    %v6152 = vmul.f32 1.0, %v6151
    %v6153 = vmul.f32 %v6145, %v5262
    %v6154 = vmul.f32 %v6139, %v6146
    %v6155 = vadd.f32 %v6153, %v6154
    %v6156 = vtanh.pop %v6155
    %v6157 = vmul.f32 %v6152, %v6156
    %v6158 = vpack.c.bf16 %v6157, %v6157
    %s6159 = scalar_lea.vmem [#allocation3], 20
    %6160 = vst [vmem:[%s6159] sm:$0xf] %v6158
    %s6161 = scalar_lea.vmem [#allocation2], 112
    %v6162 = vld [vmem:[%s6161] sm:$0xff]
    %v6163 = vld [vmem:[%s6161 + $0x8] sm:$0xff]
    %v6164 = vunpack.c.l.bf16 %v6162
    %v6165 = vunpack.c.h.bf16 %v6162
    %v6166 = vunpack.c.l.bf16 %v6163
    %v6167 = vunpack.c.h.bf16 %v6163
    %v6168 = vadd.f32 %v6164, %v637
    %v6169 = vadd.f32 %v6165, %v641
    %v6170 = vadd.f32 %v6166, %v645
    %v6171 = vadd.f32 %v6167, %v649
    %v6172 = vpack.c.bf16 %v5581, %v5581
    %v6173 = vld [vmem:[#allocation8] sm:$0xff]
    %v6174 = vld [vmem:[#allocation8 + $0x8] sm:$0xff]
    %v6175 = vld [vmem:[#allocation8 + $0x10] sm:$0xff]
    %v6176 = vld [vmem:[#allocation8 + $0x18] sm:$0xff]
    %v6177 = vld [vmem:[#allocation8 + $0x20] sm:$0xff]
    %v6178 = vld [vmem:[#allocation8 + $0x28] sm:$0xff]
    %v6179 = vld [vmem:[#allocation8 + $0x30] sm:$0xff]
    %v6180 = vld [vmem:[#allocation8 + $0x38] sm:$0xff]
    %v6181 = vld [vmem:[#allocation8 + $0x40] sm:$0xff]
    %v6182 = vld [vmem:[#allocation8 + $0x48] sm:$0xff]
    %v6183 = vld [vmem:[#allocation8 + $0x50] sm:$0xff]
    %v6184 = vld [vmem:[#allocation8 + $0x58] sm:$0xff]
    %v6185 = vld [vmem:[#allocation8 + $0x60] sm:$0xff]
    %v6186 = vld [vmem:[#allocation8 + $0x68] sm:$0xff]
    %v6187 = vld [vmem:[#allocation8 + $0x70] sm:$0xff]
    %v6188 = vld [vmem:[#allocation8 + $0x78] sm:$0xff]
    %v6189 = vld [vmem:[#allocation8 + $0x80] sm:$0xff]
    %v6190 = vld [vmem:[#allocation8 + $0x88] sm:$0xff]
    %v6191 = vld [vmem:[#allocation8 + $0x90] sm:$0xff]
    %v6192 = vld [vmem:[#allocation8 + $0x98] sm:$0xff]
    %v6193 = vld [vmem:[#allocation8 + $0xa0] sm:$0xff]
    %v6194 = vld [vmem:[#allocation8 + $0xa8] sm:$0xff]
    %v6195 = vld [vmem:[#allocation8 + $0xb0] sm:$0xff]
    %v6196 = vld [vmem:[#allocation8 + $0xb8] sm:$0xff]
    %v6197 = vld [vmem:[#allocation8 + $0xc0] sm:$0xff]
    %v6198 = vld [vmem:[#allocation8 + $0xc8] sm:$0xff]
    %v6199 = vld [vmem:[#allocation8 + $0xd0] sm:$0xff]
    %v6200 = vld [vmem:[#allocation8 + $0xd8] sm:$0xff]
    %v6201 = vld [vmem:[#allocation8 + $0xe0] sm:$0xff]
    %v6202 = vld [vmem:[#allocation8 + $0xe8] sm:$0xff]
    %v6203 = vld [vmem:[#allocation8 + $0xf0] sm:$0xff]
    %v6204 = vld [vmem:[#allocation8 + $0xf8] sm:$0xff]
    %v6237 = vunpack.c.l.b16 %v6173
    %v6238 = vunpack.c.h.b16 %v6173
    %v6239 = vunpack.c.l.b16 %v6174
    %v6240 = vunpack.c.h.b16 %v6174
    %v6241 = vunpack.c.l.b16 %v6175
    %v6242 = vunpack.c.h.b16 %v6175
    %v6243 = vunpack.c.l.b16 %v6176
    %v6244 = vunpack.c.h.b16 %v6176
    %v6245 = vunpack.c.l.b16 %v6177
    %v6246 = vunpack.c.h.b16 %v6177
    %v6247 = vunpack.c.l.b16 %v6178
    %v6248 = vunpack.c.h.b16 %v6178
    %v6249 = vunpack.c.l.b16 %v6179
    %v6250 = vunpack.c.h.b16 %v6179
    %v6251 = vunpack.c.l.b16 %v6180
    %v6252 = vunpack.c.h.b16 %v6180
    %v6253 = vunpack.c.l.b16 %v6181
    %v6254 = vunpack.c.h.b16 %v6181
    %v6255 = vunpack.c.l.b16 %v6182
    %v6256 = vunpack.c.h.b16 %v6182
    %v6257 = vunpack.c.l.b16 %v6183
    %v6258 = vunpack.c.h.b16 %v6183
    %v6259 = vunpack.c.l.b16 %v6184
    %v6260 = vunpack.c.h.b16 %v6184
    %v6261 = vunpack.c.l.b16 %v6185
    %v6262 = vunpack.c.h.b16 %v6185
    %v6263 = vunpack.c.l.b16 %v6186
    %v6264 = vunpack.c.h.b16 %v6186
    %v6265 = vunpack.c.l.b16 %v6187
    %v6266 = vunpack.c.h.b16 %v6187
    %v6267 = vunpack.c.l.b16 %v6188
    %v6268 = vunpack.c.h.b16 %v6188
    %v6269 = vunpack.c.l.b16 %v6189
    %v6270 = vunpack.c.h.b16 %v6189
    %v6271 = vunpack.c.l.b16 %v6190
    %v6272 = vunpack.c.h.b16 %v6190
    %v6273 = vunpack.c.l.b16 %v6191
    %v6274 = vunpack.c.h.b16 %v6191
    %v6275 = vunpack.c.l.b16 %v6192
    %v6276 = vunpack.c.h.b16 %v6192
    %v6277 = vunpack.c.l.b16 %v6193
    %v6278 = vunpack.c.h.b16 %v6193
    %v6279 = vunpack.c.l.b16 %v6194
    %v6280 = vunpack.c.h.b16 %v6194
    %v6281 = vunpack.c.l.b16 %v6195
    %v6282 = vunpack.c.h.b16 %v6195
    %v6283 = vunpack.c.l.b16 %v6196
    %v6284 = vunpack.c.h.b16 %v6196
    %v6285 = vunpack.c.l.b16 %v6197
    %v6286 = vunpack.c.h.b16 %v6197
    %v6287 = vunpack.c.l.b16 %v6198
    %v6288 = vunpack.c.h.b16 %v6198
    %v6289 = vunpack.c.l.b16 %v6199
    %v6290 = vunpack.c.h.b16 %v6199
    %v6291 = vunpack.c.l.b16 %v6200
    %v6292 = vunpack.c.h.b16 %v6200
    %v6293 = vunpack.c.l.b16 %v6201
    %v6294 = vunpack.c.h.b16 %v6201
    %v6295 = vunpack.c.l.b16 %v6202
    %v6296 = vunpack.c.h.b16 %v6202
    %v6297 = vunpack.c.l.b16 %v6203
    %v6298 = vunpack.c.h.b16 %v6203
    %v6299 = vunpack.c.l.b16 %v6204
    %v6300 = vunpack.c.h.b16 %v6204
    %v6301 = vpack.c.b16 %v6241, %v6237
    %v6302 = vpack.c.b16 %v6242, %v6238
    %v6303 = vpack.c.b16 %v6243, %v6239
    %v6304 = vpack.c.b16 %v6244, %v6240
    %v6305 = vpack.c.b16 %v6249, %v6245
    %v6306 = vpack.c.b16 %v6250, %v6246
    %v6307 = vpack.c.b16 %v6251, %v6247
    %v6308 = vpack.c.b16 %v6252, %v6248
    %v6309 = vpack.c.b16 %v6257, %v6253
    %v6310 = vpack.c.b16 %v6258, %v6254
    %v6311 = vpack.c.b16 %v6259, %v6255
    %v6312 = vpack.c.b16 %v6260, %v6256
    %v6313 = vpack.c.b16 %v6265, %v6261
    %v6314 = vpack.c.b16 %v6266, %v6262
    %v6315 = vpack.c.b16 %v6267, %v6263
    %v6316 = vpack.c.b16 %v6268, %v6264
    %v6317 = vpack.c.b16 %v6273, %v6269
    %v6318 = vpack.c.b16 %v6274, %v6270
    %v6319 = vpack.c.b16 %v6275, %v6271
    %v6320 = vpack.c.b16 %v6276, %v6272
    %v6321 = vpack.c.b16 %v6281, %v6277
    %v6322 = vpack.c.b16 %v6282, %v6278
    %v6323 = vpack.c.b16 %v6283, %v6279
    %v6324 = vpack.c.b16 %v6284, %v6280
    %v6325 = vpack.c.b16 %v6289, %v6285
    %v6326 = vpack.c.b16 %v6290, %v6286
    %v6327 = vpack.c.b16 %v6291, %v6287
    %v6328 = vpack.c.b16 %v6292, %v6288
    %v6329 = vpack.c.b16 %v6297, %v6293
    %v6330 = vpack.c.b16 %v6298, %v6294
    %v6331 = vpack.c.b16 %v6299, %v6295
    %v6332 = vpack.c.b16 %v6300, %v6296
    %6365 = vmatprep.subr.bf16.mxu0 %v6302
    %6366 = vmatpush1.bf16.msra.mxu0 %v6301
    %6367 = vmatprep.subr.bf16.mxu0 %v6306
    %6368 = vmatpush1.bf16.msra.mxu0 %v6305
    %6369 = vmatprep.subr.bf16.mxu0 %v6310
    %6370 = vmatpush1.bf16.msra.mxu0 %v6309
    %6371 = vmatprep.subr.bf16.mxu0 %v6314
    %6372 = vmatpush1.bf16.msra.mxu0 %v6313
    %6373 = vmatprep.subr.bf16.mxu0 %v6318
    %6374 = vmatpush1.bf16.msra.mxu0 %v6317
    %6375 = vmatprep.subr.bf16.mxu0 %v6322
    %6376 = vmatpush1.bf16.msra.mxu0 %v6321
    %6377 = vmatprep.subr.bf16.mxu0 %v6326
    %6378 = vmatpush1.bf16.msra.mxu0 %v6325
    %6379 = vmatprep.subr.bf16.mxu0 %v6330
    %6380 = vmatpush1.bf16.msra.mxu0 %v6329
    %6381 = vmatprep.subr.bf16.mxu0 0
    %6382 = vmatpush1.bf16.msra.mxu0 0
    %6383 = vmatprep.subr.bf16.mxu0 0
    %6384 = vmatpush1.bf16.msra.mxu0 0
    %6385 = vmatprep.subr.bf16.mxu0 0
    %6386 = vmatpush1.bf16.msra.mxu0 0
    %6387 = vmatprep.subr.bf16.mxu0 0
    %6388 = vmatpush1.bf16.msra.mxu0 0
    %6389 = vmatprep.subr.bf16.mxu0 0
    %6390 = vmatpush1.bf16.msra.mxu0 0
    %6391 = vmatprep.subr.bf16.mxu0 0
    %6392 = vmatpush1.bf16.msra.mxu0 0
    %6393 = vmatprep.subr.bf16.mxu0 0
    %6394 = vmatpush1.bf16.msra.mxu0 0
    %6395 = vmatprep.subr.bf16.mxu0 0
    %6396 = vmatpush1.bf16.msra.mxu0 0
    %6397 = vmatprep.mubr.bf16.mxu0 0
    %6398 = vmatmul.mubr.bf16.gmra.mrb[0].mxu0 %v6172
    %v6399 = vpop.f32.mrb[0].mxu0
    %v6400 = vadd.f32 0.0, %v6399
    %v6401 = vpop.f32.mrb[0].mxu0
    %v6402 = vadd.f32 0.0, %v6401
    %v6403 = vpop.f32.mrb[0].mxu0
    %v6404 = vpop.f32.mrb[0].mxu0
    %6405 = vdwg.mxu0
    %6406 = vmatprep.subr.bf16.mxu0 %v6304
    %6407 = vmatpush1.bf16.msra.mxu0 %v6303
    %6408 = vmatprep.subr.bf16.mxu0 %v6308
    %6409 = vmatpush1.bf16.msra.mxu0 %v6307
    %6410 = vmatprep.subr.bf16.mxu0 %v6312
    %6411 = vmatpush1.bf16.msra.mxu0 %v6311
    %6412 = vmatprep.subr.bf16.mxu0 %v6316
    %6413 = vmatpush1.bf16.msra.mxu0 %v6315
    %6414 = vmatprep.subr.bf16.mxu0 %v6320
    %6415 = vmatpush1.bf16.msra.mxu0 %v6319
    %6416 = vmatprep.subr.bf16.mxu0 %v6324
    %6417 = vmatpush1.bf16.msra.mxu0 %v6323
    %6418 = vmatprep.subr.bf16.mxu0 %v6328
    %6419 = vmatpush1.bf16.msra.mxu0 %v6327
    %6420 = vmatprep.subr.bf16.mxu0 %v6332
    %6421 = vmatpush1.bf16.msra.mxu0 %v6331
    %6422 = vmatprep.subr.bf16.mxu0 0
    %6423 = vmatpush1.bf16.msra.mxu0 0
    %6424 = vmatprep.subr.bf16.mxu0 0
    %6425 = vmatpush1.bf16.msra.mxu0 0
    %6426 = vmatprep.subr.bf16.mxu0 0
    %6427 = vmatpush1.bf16.msra.mxu0 0
    %6428 = vmatprep.subr.bf16.mxu0 0
    %6429 = vmatpush1.bf16.msra.mxu0 0
    %6430 = vmatprep.subr.bf16.mxu0 0
    %6431 = vmatpush1.bf16.msra.mxu0 0
    %6432 = vmatprep.subr.bf16.mxu0 0
    %6433 = vmatpush1.bf16.msra.mxu0 0
    %6434 = vmatprep.subr.bf16.mxu0 0
    %6435 = vmatpush1.bf16.msra.mxu0 0
    %6436 = vmatprep.subr.bf16.mxu0 0
    %6437 = vmatpush1.bf16.msra.mxu0 0
    %6438 = vmatprep.mubr.bf16.mxu0 0
    %6439 = vmatmul.mubr.bf16.gmra.mrb[0].mxu0 %v6172
    %v6440 = vpop.f32.mrb[0].mxu0
    %v6441 = vadd.f32 0.0, %v6440
    %v6442 = vpop.f32.mrb[0].mxu0
    %v6443 = vadd.f32 0.0, %v6442
    %v6444 = vpop.f32.mrb[0].mxu0
    %v6445 = vpop.f32.mrb[0].mxu0
    %6446 = vdwg.mxu0
    %v6447 = vadd.f32 %v6168, %v6400
    %v6448 = vadd.f32 %v6169, %v6402
    %v6449 = vadd.f32 %v6170, %v6441
    %v6450 = vadd.f32 %v6171, %v6443
    %v6451 = vxor.u32 %v6447, 2147483648
    %v6452 = vmul.f32 %v6451, 1.442695
    %v6453 = vpow.pop %v6452
    %v6454 = vadd.f32 %v6453, 1.0
    %v6455 = vrcp.pop %v6454
    %v6456 = vmul.f32 1.0, %v6455
    %v6457 = vxor.u32 %v6448, 2147483648
    %v6458 = vmul.f32 %v6457, 1.442695
    %v6459 = vpow.pop %v6458
    %v6460 = vadd.f32 %v6459, 1.0
    %v6461 = vrcp.pop %v6460
    %v6462 = vmul.f32 1.0, %v6461
    %v6463 = vtanh.pop %v6449
    %v6464 = vxor.u32 %v6450, 2147483648
    %v6465 = vmul.f32 %v6464, 1.442695
    %v6466 = vpow.pop %v6465
    %v6467 = vadd.f32 %v6466, 1.0
    %v6468 = vrcp.pop %v6467
    %v6469 = vmul.f32 1.0, %v6468
    %v6470 = vmul.f32 %v6462, %v5579
    %v6471 = vmul.f32 %v6456, %v6463
    %v6472 = vadd.f32 %v6470, %v6471
    %v6473 = vtanh.pop %v6472
    %v6474 = vmul.f32 %v6469, %v6473
    %v6475 = vld [vmem:[#allocation11] sm:$0xff]
    %v6476 = vld [vmem:[#allocation11 + $0x8] sm:$0xff]
    %v6477 = vld [vmem:[#allocation11 + $0x10] sm:$0xff]
    %v6478 = vld [vmem:[#allocation11 + $0x18] sm:$0xff]
    %v6479 = vld [vmem:[#allocation11 + $0x20] sm:$0xff]
    %v6480 = vld [vmem:[#allocation11 + $0x28] sm:$0xff]
    %v6481 = vld [vmem:[#allocation11 + $0x30] sm:$0xff]
    %v6482 = vld [vmem:[#allocation11 + $0x38] sm:$0xff]
    %v6483 = vld [vmem:[#allocation11 + $0x40] sm:$0xff]
    %v6484 = vld [vmem:[#allocation11 + $0x48] sm:$0xff]
    %v6485 = vld [vmem:[#allocation11 + $0x50] sm:$0xff]
    %v6486 = vld [vmem:[#allocation11 + $0x58] sm:$0xff]
    %v6487 = vld [vmem:[#allocation11 + $0x60] sm:$0xff]
    %v6488 = vld [vmem:[#allocation11 + $0x68] sm:$0xff]
    %v6489 = vld [vmem:[#allocation11 + $0x70] sm:$0xff]
    %v6490 = vld [vmem:[#allocation11 + $0x78] sm:$0xff]
    %v6491 = vld [vmem:[#allocation11 + $0x80] sm:$0xff]
    %v6492 = vld [vmem:[#allocation11 + $0x88] sm:$0xff]
    %v6493 = vld [vmem:[#allocation11 + $0x90] sm:$0xff]
    %v6494 = vld [vmem:[#allocation11 + $0x98] sm:$0xff]
    %v6495 = vld [vmem:[#allocation11 + $0xa0] sm:$0xff]
    %v6496 = vld [vmem:[#allocation11 + $0xa8] sm:$0xff]
    %v6497 = vld [vmem:[#allocation11 + $0xb0] sm:$0xff]
    %v6498 = vld [vmem:[#allocation11 + $0xb8] sm:$0xff]
    %v6499 = vld [vmem:[#allocation11 + $0xc0] sm:$0xff]
    %v6500 = vld [vmem:[#allocation11 + $0xc8] sm:$0xff]
    %v6501 = vld [vmem:[#allocation11 + $0xd0] sm:$0xff]
    %v6502 = vld [vmem:[#allocation11 + $0xd8] sm:$0xff]
    %v6503 = vld [vmem:[#allocation11 + $0xe0] sm:$0xff]
    %v6504 = vld [vmem:[#allocation11 + $0xe8] sm:$0xff]
    %v6505 = vld [vmem:[#allocation11 + $0xf0] sm:$0xff]
    %v6506 = vld [vmem:[#allocation11 + $0xf8] sm:$0xff]
    %v6539 = vunpack.c.l.b16 %v6475
    %v6540 = vunpack.c.h.b16 %v6475
    %v6541 = vunpack.c.l.b16 %v6476
    %v6542 = vunpack.c.h.b16 %v6476
    %v6543 = vunpack.c.l.b16 %v6477
    %v6544 = vunpack.c.h.b16 %v6477
    %v6545 = vunpack.c.l.b16 %v6478
    %v6546 = vunpack.c.h.b16 %v6478
    %v6547 = vunpack.c.l.b16 %v6479
    %v6548 = vunpack.c.h.b16 %v6479
    %v6549 = vunpack.c.l.b16 %v6480
    %v6550 = vunpack.c.h.b16 %v6480
    %v6551 = vunpack.c.l.b16 %v6481
    %v6552 = vunpack.c.h.b16 %v6481
    %v6553 = vunpack.c.l.b16 %v6482
    %v6554 = vunpack.c.h.b16 %v6482
    %v6555 = vunpack.c.l.b16 %v6483
    %v6556 = vunpack.c.h.b16 %v6483
    %v6557 = vunpack.c.l.b16 %v6484
    %v6558 = vunpack.c.h.b16 %v6484
    %v6559 = vunpack.c.l.b16 %v6485
    %v6560 = vunpack.c.h.b16 %v6485
    %v6561 = vunpack.c.l.b16 %v6486
    %v6562 = vunpack.c.h.b16 %v6486
    %v6563 = vunpack.c.l.b16 %v6487
    %v6564 = vunpack.c.h.b16 %v6487
    %v6565 = vunpack.c.l.b16 %v6488
    %v6566 = vunpack.c.h.b16 %v6488
    %v6567 = vunpack.c.l.b16 %v6489
    %v6568 = vunpack.c.h.b16 %v6489
    %v6569 = vunpack.c.l.b16 %v6490
    %v6570 = vunpack.c.h.b16 %v6490
    %v6571 = vunpack.c.l.b16 %v6491
    %v6572 = vunpack.c.h.b16 %v6491
    %v6573 = vunpack.c.l.b16 %v6492
    %v6574 = vunpack.c.h.b16 %v6492
    %v6575 = vunpack.c.l.b16 %v6493
    %v6576 = vunpack.c.h.b16 %v6493
    %v6577 = vunpack.c.l.b16 %v6494
    %v6578 = vunpack.c.h.b16 %v6494
    %v6579 = vunpack.c.l.b16 %v6495
    %v6580 = vunpack.c.h.b16 %v6495
    %v6581 = vunpack.c.l.b16 %v6496
    %v6582 = vunpack.c.h.b16 %v6496
    %v6583 = vunpack.c.l.b16 %v6497
    %v6584 = vunpack.c.h.b16 %v6497
    %v6585 = vunpack.c.l.b16 %v6498
    %v6586 = vunpack.c.h.b16 %v6498
    %v6587 = vunpack.c.l.b16 %v6499
    %v6588 = vunpack.c.h.b16 %v6499
    %v6589 = vunpack.c.l.b16 %v6500
    %v6590 = vunpack.c.h.b16 %v6500
    %v6591 = vunpack.c.l.b16 %v6501
    %v6592 = vunpack.c.h.b16 %v6501
    %v6593 = vunpack.c.l.b16 %v6502
    %v6594 = vunpack.c.h.b16 %v6502
    %v6595 = vunpack.c.l.b16 %v6503
    %v6596 = vunpack.c.h.b16 %v6503
    %v6597 = vunpack.c.l.b16 %v6504
    %v6598 = vunpack.c.h.b16 %v6504
    %v6599 = vunpack.c.l.b16 %v6505
    %v6600 = vunpack.c.h.b16 %v6505
    %v6601 = vunpack.c.l.b16 %v6506
    %v6602 = vunpack.c.h.b16 %v6506
    %v6603 = vpack.c.b16 %v6543, %v6539
    %v6604 = vpack.c.b16 %v6544, %v6540
    %v6605 = vpack.c.b16 %v6545, %v6541
    %v6606 = vpack.c.b16 %v6546, %v6542
    %v6607 = vpack.c.b16 %v6551, %v6547
    %v6608 = vpack.c.b16 %v6552, %v6548
    %v6609 = vpack.c.b16 %v6553, %v6549
    %v6610 = vpack.c.b16 %v6554, %v6550
    %v6611 = vpack.c.b16 %v6559, %v6555
    %v6612 = vpack.c.b16 %v6560, %v6556
    %v6613 = vpack.c.b16 %v6561, %v6557
    %v6614 = vpack.c.b16 %v6562, %v6558
    %v6615 = vpack.c.b16 %v6567, %v6563
    %v6616 = vpack.c.b16 %v6568, %v6564
    %v6617 = vpack.c.b16 %v6569, %v6565
    %v6618 = vpack.c.b16 %v6570, %v6566
    %v6619 = vpack.c.b16 %v6575, %v6571
    %v6620 = vpack.c.b16 %v6576, %v6572
    %v6621 = vpack.c.b16 %v6577, %v6573
    %v6622 = vpack.c.b16 %v6578, %v6574
    %v6623 = vpack.c.b16 %v6583, %v6579
    %v6624 = vpack.c.b16 %v6584, %v6580
    %v6625 = vpack.c.b16 %v6585, %v6581
    %v6626 = vpack.c.b16 %v6586, %v6582
    %v6627 = vpack.c.b16 %v6591, %v6587
    %v6628 = vpack.c.b16 %v6592, %v6588
    %v6629 = vpack.c.b16 %v6593, %v6589
    %v6630 = vpack.c.b16 %v6594, %v6590
    %v6631 = vpack.c.b16 %v6599, %v6595
    %v6632 = vpack.c.b16 %v6600, %v6596
    %v6633 = vpack.c.b16 %v6601, %v6597
    %v6634 = vpack.c.b16 %v6602, %v6598
    %6667 = vmatprep.subr.bf16.mxu0 %v6604
    %6668 = vmatpush1.bf16.msra.mxu0 %v6603
    %6669 = vmatprep.subr.bf16.mxu0 %v6608
    %6670 = vmatpush1.bf16.msra.mxu0 %v6607
    %6671 = vmatprep.subr.bf16.mxu0 %v6612
    %6672 = vmatpush1.bf16.msra.mxu0 %v6611
    %6673 = vmatprep.subr.bf16.mxu0 %v6616
    %6674 = vmatpush1.bf16.msra.mxu0 %v6615
    %6675 = vmatprep.subr.bf16.mxu0 %v6620
    %6676 = vmatpush1.bf16.msra.mxu0 %v6619
    %6677 = vmatprep.subr.bf16.mxu0 %v6624
    %6678 = vmatpush1.bf16.msra.mxu0 %v6623
    %6679 = vmatprep.subr.bf16.mxu0 %v6628
    %6680 = vmatpush1.bf16.msra.mxu0 %v6627
    %6681 = vmatprep.subr.bf16.mxu0 %v6632
    %6682 = vmatpush1.bf16.msra.mxu0 %v6631
    %6683 = vmatprep.subr.bf16.mxu0 0
    %6684 = vmatpush1.bf16.msra.mxu0 0
    %6685 = vmatprep.subr.bf16.mxu0 0
    %6686 = vmatpush1.bf16.msra.mxu0 0
    %6687 = vmatprep.subr.bf16.mxu0 0
    %6688 = vmatpush1.bf16.msra.mxu0 0
    %6689 = vmatprep.subr.bf16.mxu0 0
    %6690 = vmatpush1.bf16.msra.mxu0 0
    %6691 = vmatprep.subr.bf16.mxu0 0
    %6692 = vmatpush1.bf16.msra.mxu0 0
    %6693 = vmatprep.subr.bf16.mxu0 0
    %6694 = vmatpush1.bf16.msra.mxu0 0
    %6695 = vmatprep.subr.bf16.mxu0 0
    %6696 = vmatpush1.bf16.msra.mxu0 0
    %6697 = vmatprep.subr.bf16.mxu0 0
    %6698 = vmatpush1.bf16.msra.mxu0 0
    %6699 = vmatprep.mubr.bf16.mxu0 0
    %6700 = vmatmul.mubr.bf16.gmra.mrb[0].mxu0 %v6172
    %v6701 = vpop.f32.mrb[0].mxu0
    %v6702 = vadd.f32 %v659, %v6701
    %v6703 = vpop.f32.mrb[0].mxu0
    %v6704 = vadd.f32 %v663, %v6703
    %v6705 = vpop.f32.mrb[0].mxu0
    %v6706 = vpop.f32.mrb[0].mxu0
    %6707 = vdwg.mxu0
    %6708 = vmatprep.subr.bf16.mxu0 %v6606
    %6709 = vmatpush1.bf16.msra.mxu0 %v6605
    %6710 = vmatprep.subr.bf16.mxu0 %v6610
    %6711 = vmatpush1.bf16.msra.mxu0 %v6609
    %6712 = vmatprep.subr.bf16.mxu0 %v6614
    %6713 = vmatpush1.bf16.msra.mxu0 %v6613
    %6714 = vmatprep.subr.bf16.mxu0 %v6618
    %6715 = vmatpush1.bf16.msra.mxu0 %v6617
    %6716 = vmatprep.subr.bf16.mxu0 %v6622
    %6717 = vmatpush1.bf16.msra.mxu0 %v6621
    %6718 = vmatprep.subr.bf16.mxu0 %v6626
    %6719 = vmatpush1.bf16.msra.mxu0 %v6625
    %6720 = vmatprep.subr.bf16.mxu0 %v6630
    %6721 = vmatpush1.bf16.msra.mxu0 %v6629
    %6722 = vmatprep.subr.bf16.mxu0 %v6634
    %6723 = vmatpush1.bf16.msra.mxu0 %v6633
    %6724 = vmatprep.subr.bf16.mxu0 0
    %6725 = vmatpush1.bf16.msra.mxu0 0
    %6726 = vmatprep.subr.bf16.mxu0 0
    %6727 = vmatpush1.bf16.msra.mxu0 0
    %6728 = vmatprep.subr.bf16.mxu0 0
    %6729 = vmatpush1.bf16.msra.mxu0 0
    %6730 = vmatprep.subr.bf16.mxu0 0
    %6731 = vmatpush1.bf16.msra.mxu0 0
    %6732 = vmatprep.subr.bf16.mxu0 0
    %6733 = vmatpush1.bf16.msra.mxu0 0
    %6734 = vmatprep.subr.bf16.mxu0 0
    %6735 = vmatpush1.bf16.msra.mxu0 0
    %6736 = vmatprep.subr.bf16.mxu0 0
    %6737 = vmatpush1.bf16.msra.mxu0 0
    %6738 = vmatprep.subr.bf16.mxu0 0
    %6739 = vmatpush1.bf16.msra.mxu0 0
    %6740 = vmatprep.mubr.bf16.mxu0 0
    %6741 = vmatmul.mubr.bf16.gmra.mrb[0].mxu0 %v6172
    %v6742 = vpop.f32.mrb[0].mxu0
    %v6743 = vadd.f32 %v667, %v6742
    %v6744 = vpop.f32.mrb[0].mxu0
    %v6745 = vadd.f32 %v671, %v6744
    %v6746 = vpop.f32.mrb[0].mxu0
    %v6747 = vpop.f32.mrb[0].mxu0
    %6748 = vdwg.mxu0
    %v6749 = vld [vmem:[#allocation10] sm:$0xff]
    %v6750 = vld [vmem:[#allocation10 + $0x8] sm:$0xff]
    %v6751 = vld [vmem:[#allocation10 + $0x10] sm:$0xff]
    %v6752 = vld [vmem:[#allocation10 + $0x18] sm:$0xff]
    %v6753 = vld [vmem:[#allocation10 + $0x20] sm:$0xff]
    %v6754 = vld [vmem:[#allocation10 + $0x28] sm:$0xff]
    %v6755 = vld [vmem:[#allocation10 + $0x30] sm:$0xff]
    %v6756 = vld [vmem:[#allocation10 + $0x38] sm:$0xff]
    %v6757 = vld [vmem:[#allocation10 + $0x40] sm:$0xff]
    %v6758 = vld [vmem:[#allocation10 + $0x48] sm:$0xff]
    %v6759 = vld [vmem:[#allocation10 + $0x50] sm:$0xff]
    %v6760 = vld [vmem:[#allocation10 + $0x58] sm:$0xff]
    %v6761 = vld [vmem:[#allocation10 + $0x60] sm:$0xff]
    %v6762 = vld [vmem:[#allocation10 + $0x68] sm:$0xff]
    %v6763 = vld [vmem:[#allocation10 + $0x70] sm:$0xff]
    %v6764 = vld [vmem:[#allocation10 + $0x78] sm:$0xff]
    %v6765 = vld [vmem:[#allocation10 + $0x80] sm:$0xff]
    %v6766 = vld [vmem:[#allocation10 + $0x88] sm:$0xff]
    %v6767 = vld [vmem:[#allocation10 + $0x90] sm:$0xff]
    %v6768 = vld [vmem:[#allocation10 + $0x98] sm:$0xff]
    %v6769 = vld [vmem:[#allocation10 + $0xa0] sm:$0xff]
    %v6770 = vld [vmem:[#allocation10 + $0xa8] sm:$0xff]
    %v6771 = vld [vmem:[#allocation10 + $0xb0] sm:$0xff]
    %v6772 = vld [vmem:[#allocation10 + $0xb8] sm:$0xff]
    %v6773 = vld [vmem:[#allocation10 + $0xc0] sm:$0xff]
    %v6774 = vld [vmem:[#allocation10 + $0xc8] sm:$0xff]
    %v6775 = vld [vmem:[#allocation10 + $0xd0] sm:$0xff]
    %v6776 = vld [vmem:[#allocation10 + $0xd8] sm:$0xff]
    %v6777 = vld [vmem:[#allocation10 + $0xe0] sm:$0xff]
    %v6778 = vld [vmem:[#allocation10 + $0xe8] sm:$0xff]
    %v6779 = vld [vmem:[#allocation10 + $0xf0] sm:$0xff]
    %v6780 = vld [vmem:[#allocation10 + $0xf8] sm:$0xff]
    %v6813 = vunpack.c.l.b16 %v6749
    %v6814 = vunpack.c.h.b16 %v6749
    %v6815 = vunpack.c.l.b16 %v6750
    %v6816 = vunpack.c.h.b16 %v6750
    %v6817 = vunpack.c.l.b16 %v6751
    %v6818 = vunpack.c.h.b16 %v6751
    %v6819 = vunpack.c.l.b16 %v6752
    %v6820 = vunpack.c.h.b16 %v6752
    %v6821 = vunpack.c.l.b16 %v6753
    %v6822 = vunpack.c.h.b16 %v6753
    %v6823 = vunpack.c.l.b16 %v6754
    %v6824 = vunpack.c.h.b16 %v6754
    %v6825 = vunpack.c.l.b16 %v6755
    %v6826 = vunpack.c.h.b16 %v6755
    %v6827 = vunpack.c.l.b16 %v6756
    %v6828 = vunpack.c.h.b16 %v6756
    %v6829 = vunpack.c.l.b16 %v6757
    %v6830 = vunpack.c.h.b16 %v6757
    %v6831 = vunpack.c.l.b16 %v6758
    %v6832 = vunpack.c.h.b16 %v6758
    %v6833 = vunpack.c.l.b16 %v6759
    %v6834 = vunpack.c.h.b16 %v6759
    %v6835 = vunpack.c.l.b16 %v6760
    %v6836 = vunpack.c.h.b16 %v6760
    %v6837 = vunpack.c.l.b16 %v6761
    %v6838 = vunpack.c.h.b16 %v6761
    %v6839 = vunpack.c.l.b16 %v6762
    %v6840 = vunpack.c.h.b16 %v6762
    %v6841 = vunpack.c.l.b16 %v6763
    %v6842 = vunpack.c.h.b16 %v6763
    %v6843 = vunpack.c.l.b16 %v6764
    %v6844 = vunpack.c.h.b16 %v6764
    %v6845 = vunpack.c.l.b16 %v6765
    %v6846 = vunpack.c.h.b16 %v6765
    %v6847 = vunpack.c.l.b16 %v6766
    %v6848 = vunpack.c.h.b16 %v6766
    %v6849 = vunpack.c.l.b16 %v6767
    %v6850 = vunpack.c.h.b16 %v6767
    %v6851 = vunpack.c.l.b16 %v6768
    %v6852 = vunpack.c.h.b16 %v6768
    %v6853 = vunpack.c.l.b16 %v6769
    %v6854 = vunpack.c.h.b16 %v6769
    %v6855 = vunpack.c.l.b16 %v6770
    %v6856 = vunpack.c.h.b16 %v6770
    %v6857 = vunpack.c.l.b16 %v6771
    %v6858 = vunpack.c.h.b16 %v6771
    %v6859 = vunpack.c.l.b16 %v6772
    %v6860 = vunpack.c.h.b16 %v6772
    %v6861 = vunpack.c.l.b16 %v6773
    %v6862 = vunpack.c.h.b16 %v6773
    %v6863 = vunpack.c.l.b16 %v6774
    %v6864 = vunpack.c.h.b16 %v6774
    %v6865 = vunpack.c.l.b16 %v6775
    %v6866 = vunpack.c.h.b16 %v6775
    %v6867 = vunpack.c.l.b16 %v6776
    %v6868 = vunpack.c.h.b16 %v6776
    %v6869 = vunpack.c.l.b16 %v6777
    %v6870 = vunpack.c.h.b16 %v6777
    %v6871 = vunpack.c.l.b16 %v6778
    %v6872 = vunpack.c.h.b16 %v6778
    %v6873 = vunpack.c.l.b16 %v6779
    %v6874 = vunpack.c.h.b16 %v6779
    %v6875 = vunpack.c.l.b16 %v6780
    %v6876 = vunpack.c.h.b16 %v6780
    %v6877 = vpack.c.b16 %v6817, %v6813
    %v6878 = vpack.c.b16 %v6818, %v6814
    %v6879 = vpack.c.b16 %v6819, %v6815
    %v6880 = vpack.c.b16 %v6820, %v6816
    %v6881 = vpack.c.b16 %v6825, %v6821
    %v6882 = vpack.c.b16 %v6826, %v6822
    %v6883 = vpack.c.b16 %v6827, %v6823
    %v6884 = vpack.c.b16 %v6828, %v6824
    %v6885 = vpack.c.b16 %v6833, %v6829
    %v6886 = vpack.c.b16 %v6834, %v6830
    %v6887 = vpack.c.b16 %v6835, %v6831
    %v6888 = vpack.c.b16 %v6836, %v6832
    %v6889 = vpack.c.b16 %v6841, %v6837
    %v6890 = vpack.c.b16 %v6842, %v6838
    %v6891 = vpack.c.b16 %v6843, %v6839
    %v6892 = vpack.c.b16 %v6844, %v6840
    %v6893 = vpack.c.b16 %v6849, %v6845
    %v6894 = vpack.c.b16 %v6850, %v6846
    %v6895 = vpack.c.b16 %v6851, %v6847
    %v6896 = vpack.c.b16 %v6852, %v6848
    %v6897 = vpack.c.b16 %v6857, %v6853
    %v6898 = vpack.c.b16 %v6858, %v6854
    %v6899 = vpack.c.b16 %v6859, %v6855
    %v6900 = vpack.c.b16 %v6860, %v6856
    %v6901 = vpack.c.b16 %v6865, %v6861
    %v6902 = vpack.c.b16 %v6866, %v6862
    %v6903 = vpack.c.b16 %v6867, %v6863
    %v6904 = vpack.c.b16 %v6868, %v6864
    %v6905 = vpack.c.b16 %v6873, %v6869
    %v6906 = vpack.c.b16 %v6874, %v6870
    %v6907 = vpack.c.b16 %v6875, %v6871
    %v6908 = vpack.c.b16 %v6876, %v6872
    %6941 = vmatprep.subr.bf16.mxu0 %v6878
    %6942 = vmatpush1.bf16.msra.mxu0 %v6877
    %6943 = vmatprep.subr.bf16.mxu0 %v6882
    %6944 = vmatpush1.bf16.msra.mxu0 %v6881
    %6945 = vmatprep.subr.bf16.mxu0 %v6886
    %6946 = vmatpush1.bf16.msra.mxu0 %v6885
    %6947 = vmatprep.subr.bf16.mxu0 %v6890
    %6948 = vmatpush1.bf16.msra.mxu0 %v6889
    %6949 = vmatprep.subr.bf16.mxu0 %v6894
    %6950 = vmatpush1.bf16.msra.mxu0 %v6893
    %6951 = vmatprep.subr.bf16.mxu0 %v6898
    %6952 = vmatpush1.bf16.msra.mxu0 %v6897
    %6953 = vmatprep.subr.bf16.mxu0 %v6902
    %6954 = vmatpush1.bf16.msra.mxu0 %v6901
    %6955 = vmatprep.subr.bf16.mxu0 %v6906
    %6956 = vmatpush1.bf16.msra.mxu0 %v6905
    %6957 = vmatprep.subr.bf16.mxu0 0
    %6958 = vmatpush1.bf16.msra.mxu0 0
    %6959 = vmatprep.subr.bf16.mxu0 0
    %6960 = vmatpush1.bf16.msra.mxu0 0
    %6961 = vmatprep.subr.bf16.mxu0 0
    %6962 = vmatpush1.bf16.msra.mxu0 0
    %6963 = vmatprep.subr.bf16.mxu0 0
    %6964 = vmatpush1.bf16.msra.mxu0 0
    %6965 = vmatprep.subr.bf16.mxu0 0
    %6966 = vmatpush1.bf16.msra.mxu0 0
    %6967 = vmatprep.subr.bf16.mxu0 0
    %6968 = vmatpush1.bf16.msra.mxu0 0
    %6969 = vmatprep.subr.bf16.mxu0 0
    %6970 = vmatpush1.bf16.msra.mxu0 0
    %6971 = vmatprep.subr.bf16.mxu0 0
    %6972 = vmatpush1.bf16.msra.mxu0 0
    %6973 = vmatprep.mubr.bf16.mxu0 0
    %6974 = vmatmul.mubr.bf16.gmra.mrb[0].mxu0 %v6158
    %v6975 = vpop.f32.mrb[0].mxu0
    %v6976 = vadd.f32 0.0, %v6975
    %v6977 = vpop.f32.mrb[0].mxu0
    %v6978 = vadd.f32 0.0, %v6977
    %v6979 = vpop.f32.mrb[0].mxu0
    %v6980 = vpop.f32.mrb[0].mxu0
    %6981 = vdwg.mxu0
    %6982 = vmatprep.subr.bf16.mxu0 %v6880
    %6983 = vmatpush1.bf16.msra.mxu0 %v6879
    %6984 = vmatprep.subr.bf16.mxu0 %v6884
    %6985 = vmatpush1.bf16.msra.mxu0 %v6883
    %6986 = vmatprep.subr.bf16.mxu0 %v6888
    %6987 = vmatpush1.bf16.msra.mxu0 %v6887
    %6988 = vmatprep.subr.bf16.mxu0 %v6892
    %6989 = vmatpush1.bf16.msra.mxu0 %v6891
    %6990 = vmatprep.subr.bf16.mxu0 %v6896
    %6991 = vmatpush1.bf16.msra.mxu0 %v6895
    %6992 = vmatprep.subr.bf16.mxu0 %v6900
    %6993 = vmatpush1.bf16.msra.mxu0 %v6899
    %6994 = vmatprep.subr.bf16.mxu0 %v6904
    %6995 = vmatpush1.bf16.msra.mxu0 %v6903
    %6996 = vmatprep.subr.bf16.mxu0 %v6908
    %6997 = vmatpush1.bf16.msra.mxu0 %v6907
    %6998 = vmatprep.subr.bf16.mxu0 0
    %6999 = vmatpush1.bf16.msra.mxu0 0
    %7000 = vmatprep.subr.bf16.mxu0 0
    %7001 = vmatpush1.bf16.msra.mxu0 0
    %7002 = vmatprep.subr.bf16.mxu0 0
    %7003 = vmatpush1.bf16.msra.mxu0 0
    %7004 = vmatprep.subr.bf16.mxu0 0
    %7005 = vmatpush1.bf16.msra.mxu0 0
    %7006 = vmatprep.subr.bf16.mxu0 0
    %7007 = vmatpush1.bf16.msra.mxu0 0
    %7008 = vmatprep.subr.bf16.mxu0 0
    %7009 = vmatpush1.bf16.msra.mxu0 0
    %7010 = vmatprep.subr.bf16.mxu0 0
    %7011 = vmatpush1.bf16.msra.mxu0 0
    %7012 = vmatprep.subr.bf16.mxu0 0
    %7013 = vmatpush1.bf16.msra.mxu0 0
    %7014 = vmatprep.mubr.bf16.mxu0 0
    %7015 = vmatmul.mubr.bf16.gmra.mrb[0].mxu0 %v6158
    %v7016 = vpop.f32.mrb[0].mxu0
    %v7017 = vadd.f32 0.0, %v7016
    %v7018 = vpop.f32.mrb[0].mxu0
    %v7019 = vadd.f32 0.0, %v7018
    %v7020 = vpop.f32.mrb[0].mxu0
    %v7021 = vpop.f32.mrb[0].mxu0
    %7022 = vdwg.mxu0
    %v7023 = vadd.f32 %v6702, %v6976
    %v7024 = vadd.f32 %v6704, %v6978
    %v7025 = vadd.f32 %v6743, %v7017
    %v7026 = vadd.f32 %v6745, %v7019
    %v7027 = vxor.u32 %v7023, 2147483648
    %v7028 = vmul.f32 %v7027, 1.442695
    %v7029 = vpow.pop %v7028
    %v7030 = vadd.f32 %v7029, 1.0
    %v7031 = vrcp.pop %v7030
    %v7032 = vmul.f32 1.0, %v7031
    %v7033 = vxor.u32 %v7024, 2147483648
    %v7034 = vmul.f32 %v7033, 1.442695
    %v7035 = vpow.pop %v7034
    %v7036 = vadd.f32 %v7035, 1.0
    %v7037 = vrcp.pop %v7036
    %v7038 = vmul.f32 1.0, %v7037
    %v7039 = vtanh.pop %v7025
    %v7040 = vxor.u32 %v7026, 2147483648
    %v7041 = vmul.f32 %v7040, 1.442695
    %v7042 = vpow.pop %v7041
    %v7043 = vadd.f32 %v7042, 1.0
    %v7044 = vrcp.pop %v7043
    %v7045 = vmul.f32 1.0, %v7044
    %v7046 = vmul.f32 %v7038, %v6155
    %v7047 = vmul.f32 %v7032, %v7039
    %v7048 = vadd.f32 %v7046, %v7047
    %v7049 = vtanh.pop %v7048
    %v7050 = vmul.f32 %v7045, %v7049
    %v7051 = vpack.c.bf16 %v7050, %v7050
    %s7052 = scalar_lea.vmem [#allocation3], 24
    %7053 = vst [vmem:[%s7052] sm:$0xf] %v7051
    %v7054 = vpack.c.bf16 %v6474, %v6474
    %v7055 = vld [vmem:[#allocation11] sm:$0xff]
    %v7056 = vld [vmem:[#allocation11 + $0x8] sm:$0xff]
    %v7057 = vld [vmem:[#allocation11 + $0x10] sm:$0xff]
    %v7058 = vld [vmem:[#allocation11 + $0x18] sm:$0xff]
    %v7059 = vld [vmem:[#allocation11 + $0x20] sm:$0xff]
    %v7060 = vld [vmem:[#allocation11 + $0x28] sm:$0xff]
    %v7061 = vld [vmem:[#allocation11 + $0x30] sm:$0xff]
    %v7062 = vld [vmem:[#allocation11 + $0x38] sm:$0xff]
    %v7063 = vld [vmem:[#allocation11 + $0x40] sm:$0xff]
    %v7064 = vld [vmem:[#allocation11 + $0x48] sm:$0xff]
    %v7065 = vld [vmem:[#allocation11 + $0x50] sm:$0xff]
    %v7066 = vld [vmem:[#allocation11 + $0x58] sm:$0xff]
    %v7067 = vld [vmem:[#allocation11 + $0x60] sm:$0xff]
    %v7068 = vld [vmem:[#allocation11 + $0x68] sm:$0xff]
    %v7069 = vld [vmem:[#allocation11 + $0x70] sm:$0xff]
    %v7070 = vld [vmem:[#allocation11 + $0x78] sm:$0xff]
    %v7071 = vld [vmem:[#allocation11 + $0x80] sm:$0xff]
    %v7072 = vld [vmem:[#allocation11 + $0x88] sm:$0xff]
    %v7073 = vld [vmem:[#allocation11 + $0x90] sm:$0xff]
    %v7074 = vld [vmem:[#allocation11 + $0x98] sm:$0xff]
    %v7075 = vld [vmem:[#allocation11 + $0xa0] sm:$0xff]
    %v7076 = vld [vmem:[#allocation11 + $0xa8] sm:$0xff]
    %v7077 = vld [vmem:[#allocation11 + $0xb0] sm:$0xff]
    %v7078 = vld [vmem:[#allocation11 + $0xb8] sm:$0xff]
    %v7079 = vld [vmem:[#allocation11 + $0xc0] sm:$0xff]
    %v7080 = vld [vmem:[#allocation11 + $0xc8] sm:$0xff]
    %v7081 = vld [vmem:[#allocation11 + $0xd0] sm:$0xff]
    %v7082 = vld [vmem:[#allocation11 + $0xd8] sm:$0xff]
    %v7083 = vld [vmem:[#allocation11 + $0xe0] sm:$0xff]
    %v7084 = vld [vmem:[#allocation11 + $0xe8] sm:$0xff]
    %v7085 = vld [vmem:[#allocation11 + $0xf0] sm:$0xff]
    %v7086 = vld [vmem:[#allocation11 + $0xf8] sm:$0xff]
    %v7119 = vunpack.c.l.b16 %v7055
    %v7120 = vunpack.c.h.b16 %v7055
    %v7121 = vunpack.c.l.b16 %v7056
    %v7122 = vunpack.c.h.b16 %v7056
    %v7123 = vunpack.c.l.b16 %v7057
    %v7124 = vunpack.c.h.b16 %v7057
    %v7125 = vunpack.c.l.b16 %v7058
    %v7126 = vunpack.c.h.b16 %v7058
    %v7127 = vunpack.c.l.b16 %v7059
    %v7128 = vunpack.c.h.b16 %v7059
    %v7129 = vunpack.c.l.b16 %v7060
    %v7130 = vunpack.c.h.b16 %v7060
    %v7131 = vunpack.c.l.b16 %v7061
    %v7132 = vunpack.c.h.b16 %v7061
    %v7133 = vunpack.c.l.b16 %v7062
    %v7134 = vunpack.c.h.b16 %v7062
    %v7135 = vunpack.c.l.b16 %v7063
    %v7136 = vunpack.c.h.b16 %v7063
    %v7137 = vunpack.c.l.b16 %v7064
    %v7138 = vunpack.c.h.b16 %v7064
    %v7139 = vunpack.c.l.b16 %v7065
    %v7140 = vunpack.c.h.b16 %v7065
    %v7141 = vunpack.c.l.b16 %v7066
    %v7142 = vunpack.c.h.b16 %v7066
    %v7143 = vunpack.c.l.b16 %v7067
    %v7144 = vunpack.c.h.b16 %v7067
    %v7145 = vunpack.c.l.b16 %v7068
    %v7146 = vunpack.c.h.b16 %v7068
    %v7147 = vunpack.c.l.b16 %v7069
    %v7148 = vunpack.c.h.b16 %v7069
    %v7149 = vunpack.c.l.b16 %v7070
    %v7150 = vunpack.c.h.b16 %v7070
    %v7151 = vunpack.c.l.b16 %v7071
    %v7152 = vunpack.c.h.b16 %v7071
    %v7153 = vunpack.c.l.b16 %v7072
    %v7154 = vunpack.c.h.b16 %v7072
    %v7155 = vunpack.c.l.b16 %v7073
    %v7156 = vunpack.c.h.b16 %v7073
    %v7157 = vunpack.c.l.b16 %v7074
    %v7158 = vunpack.c.h.b16 %v7074
    %v7159 = vunpack.c.l.b16 %v7075
    %v7160 = vunpack.c.h.b16 %v7075
    %v7161 = vunpack.c.l.b16 %v7076
    %v7162 = vunpack.c.h.b16 %v7076
    %v7163 = vunpack.c.l.b16 %v7077
    %v7164 = vunpack.c.h.b16 %v7077
    %v7165 = vunpack.c.l.b16 %v7078
    %v7166 = vunpack.c.h.b16 %v7078
    %v7167 = vunpack.c.l.b16 %v7079
    %v7168 = vunpack.c.h.b16 %v7079
    %v7169 = vunpack.c.l.b16 %v7080
    %v7170 = vunpack.c.h.b16 %v7080
    %v7171 = vunpack.c.l.b16 %v7081
    %v7172 = vunpack.c.h.b16 %v7081
    %v7173 = vunpack.c.l.b16 %v7082
    %v7174 = vunpack.c.h.b16 %v7082
    %v7175 = vunpack.c.l.b16 %v7083
    %v7176 = vunpack.c.h.b16 %v7083
    %v7177 = vunpack.c.l.b16 %v7084
    %v7178 = vunpack.c.h.b16 %v7084
    %v7179 = vunpack.c.l.b16 %v7085
    %v7180 = vunpack.c.h.b16 %v7085
    %v7181 = vunpack.c.l.b16 %v7086
    %v7182 = vunpack.c.h.b16 %v7086
    %v7183 = vpack.c.b16 %v7123, %v7119
    %v7184 = vpack.c.b16 %v7124, %v7120
    %v7185 = vpack.c.b16 %v7125, %v7121
    %v7186 = vpack.c.b16 %v7126, %v7122
    %v7187 = vpack.c.b16 %v7131, %v7127
    %v7188 = vpack.c.b16 %v7132, %v7128
    %v7189 = vpack.c.b16 %v7133, %v7129
    %v7190 = vpack.c.b16 %v7134, %v7130
    %v7191 = vpack.c.b16 %v7139, %v7135
    %v7192 = vpack.c.b16 %v7140, %v7136
    %v7193 = vpack.c.b16 %v7141, %v7137
    %v7194 = vpack.c.b16 %v7142, %v7138
    %v7195 = vpack.c.b16 %v7147, %v7143
    %v7196 = vpack.c.b16 %v7148, %v7144
    %v7197 = vpack.c.b16 %v7149, %v7145
    %v7198 = vpack.c.b16 %v7150, %v7146
    %v7199 = vpack.c.b16 %v7155, %v7151
    %v7200 = vpack.c.b16 %v7156, %v7152
    %v7201 = vpack.c.b16 %v7157, %v7153
    %v7202 = vpack.c.b16 %v7158, %v7154
    %v7203 = vpack.c.b16 %v7163, %v7159
    %v7204 = vpack.c.b16 %v7164, %v7160
    %v7205 = vpack.c.b16 %v7165, %v7161
    %v7206 = vpack.c.b16 %v7166, %v7162
    %v7207 = vpack.c.b16 %v7171, %v7167
    %v7208 = vpack.c.b16 %v7172, %v7168
    %v7209 = vpack.c.b16 %v7173, %v7169
    %v7210 = vpack.c.b16 %v7174, %v7170
    %v7211 = vpack.c.b16 %v7179, %v7175
    %v7212 = vpack.c.b16 %v7180, %v7176
    %v7213 = vpack.c.b16 %v7181, %v7177
    %v7214 = vpack.c.b16 %v7182, %v7178
    %7247 = vmatprep.subr.bf16.mxu0 %v7184
    %7248 = vmatpush1.bf16.msra.mxu0 %v7183
    %7249 = vmatprep.subr.bf16.mxu0 %v7188
    %7250 = vmatpush1.bf16.msra.mxu0 %v7187
    %7251 = vmatprep.subr.bf16.mxu0 %v7192
    %7252 = vmatpush1.bf16.msra.mxu0 %v7191
    %7253 = vmatprep.subr.bf16.mxu0 %v7196
    %7254 = vmatpush1.bf16.msra.mxu0 %v7195
    %7255 = vmatprep.subr.bf16.mxu0 %v7200
    %7256 = vmatpush1.bf16.msra.mxu0 %v7199
    %7257 = vmatprep.subr.bf16.mxu0 %v7204
    %7258 = vmatpush1.bf16.msra.mxu0 %v7203
    %7259 = vmatprep.subr.bf16.mxu0 %v7208
    %7260 = vmatpush1.bf16.msra.mxu0 %v7207
    %7261 = vmatprep.subr.bf16.mxu0 %v7212
    %7262 = vmatpush1.bf16.msra.mxu0 %v7211
    %7263 = vmatprep.subr.bf16.mxu0 0
    %7264 = vmatpush1.bf16.msra.mxu0 0
    %7265 = vmatprep.subr.bf16.mxu0 0
    %7266 = vmatpush1.bf16.msra.mxu0 0
    %7267 = vmatprep.subr.bf16.mxu0 0
    %7268 = vmatpush1.bf16.msra.mxu0 0
    %7269 = vmatprep.subr.bf16.mxu0 0
    %7270 = vmatpush1.bf16.msra.mxu0 0
    %7271 = vmatprep.subr.bf16.mxu0 0
    %7272 = vmatpush1.bf16.msra.mxu0 0
    %7273 = vmatprep.subr.bf16.mxu0 0
    %7274 = vmatpush1.bf16.msra.mxu0 0
    %7275 = vmatprep.subr.bf16.mxu0 0
    %7276 = vmatpush1.bf16.msra.mxu0 0
    %7277 = vmatprep.subr.bf16.mxu0 0
    %7278 = vmatpush1.bf16.msra.mxu0 0
    %7279 = vmatprep.mubr.bf16.mxu0 0
    %7280 = vmatmul.mubr.bf16.gmra.mrb[0].mxu0 %v7054
    %v7281 = vpop.f32.mrb[0].mxu0
    %v7282 = vadd.f32 %v659, %v7281
    %v7283 = vpop.f32.mrb[0].mxu0
    %v7284 = vadd.f32 %v663, %v7283
    %v7285 = vpop.f32.mrb[0].mxu0
    %v7286 = vpop.f32.mrb[0].mxu0
    %7287 = vdwg.mxu0
    %7288 = vmatprep.subr.bf16.mxu0 %v7186
    %7289 = vmatpush1.bf16.msra.mxu0 %v7185
    %7290 = vmatprep.subr.bf16.mxu0 %v7190
    %7291 = vmatpush1.bf16.msra.mxu0 %v7189
    %7292 = vmatprep.subr.bf16.mxu0 %v7194
    %7293 = vmatpush1.bf16.msra.mxu0 %v7193
    %7294 = vmatprep.subr.bf16.mxu0 %v7198
    %7295 = vmatpush1.bf16.msra.mxu0 %v7197
    %7296 = vmatprep.subr.bf16.mxu0 %v7202
    %7297 = vmatpush1.bf16.msra.mxu0 %v7201
    %7298 = vmatprep.subr.bf16.mxu0 %v7206
    %7299 = vmatpush1.bf16.msra.mxu0 %v7205
    %7300 = vmatprep.subr.bf16.mxu0 %v7210
    %7301 = vmatpush1.bf16.msra.mxu0 %v7209
    %7302 = vmatprep.subr.bf16.mxu0 %v7214
    %7303 = vmatpush1.bf16.msra.mxu0 %v7213
    %7304 = vmatprep.subr.bf16.mxu0 0
    %7305 = vmatpush1.bf16.msra.mxu0 0
    %7306 = vmatprep.subr.bf16.mxu0 0
    %7307 = vmatpush1.bf16.msra.mxu0 0
    %7308 = vmatprep.subr.bf16.mxu0 0
    %7309 = vmatpush1.bf16.msra.mxu0 0
    %7310 = vmatprep.subr.bf16.mxu0 0
    %7311 = vmatpush1.bf16.msra.mxu0 0
    %7312 = vmatprep.subr.bf16.mxu0 0
    %7313 = vmatpush1.bf16.msra.mxu0 0
    %7314 = vmatprep.subr.bf16.mxu0 0
    %7315 = vmatpush1.bf16.msra.mxu0 0
    %7316 = vmatprep.subr.bf16.mxu0 0
    %7317 = vmatpush1.bf16.msra.mxu0 0
    %7318 = vmatprep.subr.bf16.mxu0 0
    %7319 = vmatpush1.bf16.msra.mxu0 0
    %7320 = vmatprep.mubr.bf16.mxu0 0
    %7321 = vmatmul.mubr.bf16.gmra.mrb[0].mxu0 %v7054
    %v7322 = vpop.f32.mrb[0].mxu0
    %v7323 = vadd.f32 %v667, %v7322
    %v7324 = vpop.f32.mrb[0].mxu0
    %v7325 = vadd.f32 %v671, %v7324
    %v7326 = vpop.f32.mrb[0].mxu0
    %v7327 = vpop.f32.mrb[0].mxu0
    %7328 = vdwg.mxu0
    %v7329 = vld [vmem:[#allocation10] sm:$0xff]
    %v7330 = vld [vmem:[#allocation10 + $0x8] sm:$0xff]
    %v7331 = vld [vmem:[#allocation10 + $0x10] sm:$0xff]
    %v7332 = vld [vmem:[#allocation10 + $0x18] sm:$0xff]
    %v7333 = vld [vmem:[#allocation10 + $0x20] sm:$0xff]
    %v7334 = vld [vmem:[#allocation10 + $0x28] sm:$0xff]
    %v7335 = vld [vmem:[#allocation10 + $0x30] sm:$0xff]
    %v7336 = vld [vmem:[#allocation10 + $0x38] sm:$0xff]
    %v7337 = vld [vmem:[#allocation10 + $0x40] sm:$0xff]
    %v7338 = vld [vmem:[#allocation10 + $0x48] sm:$0xff]
    %v7339 = vld [vmem:[#allocation10 + $0x50] sm:$0xff]
    %v7340 = vld [vmem:[#allocation10 + $0x58] sm:$0xff]
    %v7341 = vld [vmem:[#allocation10 + $0x60] sm:$0xff]
    %v7342 = vld [vmem:[#allocation10 + $0x68] sm:$0xff]
    %v7343 = vld [vmem:[#allocation10 + $0x70] sm:$0xff]
    %v7344 = vld [vmem:[#allocation10 + $0x78] sm:$0xff]
    %v7345 = vld [vmem:[#allocation10 + $0x80] sm:$0xff]
    %v7346 = vld [vmem:[#allocation10 + $0x88] sm:$0xff]
    %v7347 = vld [vmem:[#allocation10 + $0x90] sm:$0xff]
    %v7348 = vld [vmem:[#allocation10 + $0x98] sm:$0xff]
    %v7349 = vld [vmem:[#allocation10 + $0xa0] sm:$0xff]
    %v7350 = vld [vmem:[#allocation10 + $0xa8] sm:$0xff]
    %v7351 = vld [vmem:[#allocation10 + $0xb0] sm:$0xff]
    %v7352 = vld [vmem:[#allocation10 + $0xb8] sm:$0xff]
    %v7353 = vld [vmem:[#allocation10 + $0xc0] sm:$0xff]
    %v7354 = vld [vmem:[#allocation10 + $0xc8] sm:$0xff]
    %v7355 = vld [vmem:[#allocation10 + $0xd0] sm:$0xff]
    %v7356 = vld [vmem:[#allocation10 + $0xd8] sm:$0xff]
    %v7357 = vld [vmem:[#allocation10 + $0xe0] sm:$0xff]
    %v7358 = vld [vmem:[#allocation10 + $0xe8] sm:$0xff]
    %v7359 = vld [vmem:[#allocation10 + $0xf0] sm:$0xff]
    %v7360 = vld [vmem:[#allocation10 + $0xf8] sm:$0xff]
    %v7393 = vunpack.c.l.b16 %v7329
    %v7394 = vunpack.c.h.b16 %v7329
    %v7395 = vunpack.c.l.b16 %v7330
    %v7396 = vunpack.c.h.b16 %v7330
    %v7397 = vunpack.c.l.b16 %v7331
    %v7398 = vunpack.c.h.b16 %v7331
    %v7399 = vunpack.c.l.b16 %v7332
    %v7400 = vunpack.c.h.b16 %v7332
    %v7401 = vunpack.c.l.b16 %v7333
    %v7402 = vunpack.c.h.b16 %v7333
    %v7403 = vunpack.c.l.b16 %v7334
    %v7404 = vunpack.c.h.b16 %v7334
    %v7405 = vunpack.c.l.b16 %v7335
    %v7406 = vunpack.c.h.b16 %v7335
    %v7407 = vunpack.c.l.b16 %v7336
    %v7408 = vunpack.c.h.b16 %v7336
    %v7409 = vunpack.c.l.b16 %v7337
    %v7410 = vunpack.c.h.b16 %v7337
    %v7411 = vunpack.c.l.b16 %v7338
    %v7412 = vunpack.c.h.b16 %v7338
    %v7413 = vunpack.c.l.b16 %v7339
    %v7414 = vunpack.c.h.b16 %v7339
    %v7415 = vunpack.c.l.b16 %v7340
    %v7416 = vunpack.c.h.b16 %v7340
    %v7417 = vunpack.c.l.b16 %v7341
    %v7418 = vunpack.c.h.b16 %v7341
    %v7419 = vunpack.c.l.b16 %v7342
    %v7420 = vunpack.c.h.b16 %v7342
    %v7421 = vunpack.c.l.b16 %v7343
    %v7422 = vunpack.c.h.b16 %v7343
    %v7423 = vunpack.c.l.b16 %v7344
    %v7424 = vunpack.c.h.b16 %v7344
    %v7425 = vunpack.c.l.b16 %v7345
    %v7426 = vunpack.c.h.b16 %v7345
    %v7427 = vunpack.c.l.b16 %v7346
    %v7428 = vunpack.c.h.b16 %v7346
    %v7429 = vunpack.c.l.b16 %v7347
    %v7430 = vunpack.c.h.b16 %v7347
    %v7431 = vunpack.c.l.b16 %v7348
    %v7432 = vunpack.c.h.b16 %v7348
    %v7433 = vunpack.c.l.b16 %v7349
    %v7434 = vunpack.c.h.b16 %v7349
    %v7435 = vunpack.c.l.b16 %v7350
    %v7436 = vunpack.c.h.b16 %v7350
    %v7437 = vunpack.c.l.b16 %v7351
    %v7438 = vunpack.c.h.b16 %v7351
    %v7439 = vunpack.c.l.b16 %v7352
    %v7440 = vunpack.c.h.b16 %v7352
    %v7441 = vunpack.c.l.b16 %v7353
    %v7442 = vunpack.c.h.b16 %v7353
    %v7443 = vunpack.c.l.b16 %v7354
    %v7444 = vunpack.c.h.b16 %v7354
    %v7445 = vunpack.c.l.b16 %v7355
    %v7446 = vunpack.c.h.b16 %v7355
    %v7447 = vunpack.c.l.b16 %v7356
    %v7448 = vunpack.c.h.b16 %v7356
    %v7449 = vunpack.c.l.b16 %v7357
    %v7450 = vunpack.c.h.b16 %v7357
    %v7451 = vunpack.c.l.b16 %v7358
    %v7452 = vunpack.c.h.b16 %v7358
    %v7453 = vunpack.c.l.b16 %v7359
    %v7454 = vunpack.c.h.b16 %v7359
    %v7455 = vunpack.c.l.b16 %v7360
    %v7456 = vunpack.c.h.b16 %v7360
    %v7457 = vpack.c.b16 %v7397, %v7393
    %v7458 = vpack.c.b16 %v7398, %v7394
    %v7459 = vpack.c.b16 %v7399, %v7395
    %v7460 = vpack.c.b16 %v7400, %v7396
    %v7461 = vpack.c.b16 %v7405, %v7401
    %v7462 = vpack.c.b16 %v7406, %v7402
    %v7463 = vpack.c.b16 %v7407, %v7403
    %v7464 = vpack.c.b16 %v7408, %v7404
    %v7465 = vpack.c.b16 %v7413, %v7409
    %v7466 = vpack.c.b16 %v7414, %v7410
    %v7467 = vpack.c.b16 %v7415, %v7411
    %v7468 = vpack.c.b16 %v7416, %v7412
    %v7469 = vpack.c.b16 %v7421, %v7417
    %v7470 = vpack.c.b16 %v7422, %v7418
    %v7471 = vpack.c.b16 %v7423, %v7419
    %v7472 = vpack.c.b16 %v7424, %v7420
    %v7473 = vpack.c.b16 %v7429, %v7425
    %v7474 = vpack.c.b16 %v7430, %v7426
    %v7475 = vpack.c.b16 %v7431, %v7427
    %v7476 = vpack.c.b16 %v7432, %v7428
    %v7477 = vpack.c.b16 %v7437, %v7433
    %v7478 = vpack.c.b16 %v7438, %v7434
    %v7479 = vpack.c.b16 %v7439, %v7435
    %v7480 = vpack.c.b16 %v7440, %v7436
    %v7481 = vpack.c.b16 %v7445, %v7441
    %v7482 = vpack.c.b16 %v7446, %v7442
    %v7483 = vpack.c.b16 %v7447, %v7443
    %v7484 = vpack.c.b16 %v7448, %v7444
    %v7485 = vpack.c.b16 %v7453, %v7449
    %v7486 = vpack.c.b16 %v7454, %v7450
    %v7487 = vpack.c.b16 %v7455, %v7451
    %v7488 = vpack.c.b16 %v7456, %v7452
    %7521 = vmatprep.subr.bf16.mxu0 %v7458
    %7522 = vmatpush1.bf16.msra.mxu0 %v7457
    %7523 = vmatprep.subr.bf16.mxu0 %v7462
    %7524 = vmatpush1.bf16.msra.mxu0 %v7461
    %7525 = vmatprep.subr.bf16.mxu0 %v7466
    %7526 = vmatpush1.bf16.msra.mxu0 %v7465
    %7527 = vmatprep.subr.bf16.mxu0 %v7470
    %7528 = vmatpush1.bf16.msra.mxu0 %v7469
    %7529 = vmatprep.subr.bf16.mxu0 %v7474
    %7530 = vmatpush1.bf16.msra.mxu0 %v7473
    %7531 = vmatprep.subr.bf16.mxu0 %v7478
    %7532 = vmatpush1.bf16.msra.mxu0 %v7477
    %7533 = vmatprep.subr.bf16.mxu0 %v7482
    %7534 = vmatpush1.bf16.msra.mxu0 %v7481
    %7535 = vmatprep.subr.bf16.mxu0 %v7486
    %7536 = vmatpush1.bf16.msra.mxu0 %v7485
    %7537 = vmatprep.subr.bf16.mxu0 0
    %7538 = vmatpush1.bf16.msra.mxu0 0
    %7539 = vmatprep.subr.bf16.mxu0 0
    %7540 = vmatpush1.bf16.msra.mxu0 0
    %7541 = vmatprep.subr.bf16.mxu0 0
    %7542 = vmatpush1.bf16.msra.mxu0 0
    %7543 = vmatprep.subr.bf16.mxu0 0
    %7544 = vmatpush1.bf16.msra.mxu0 0
    %7545 = vmatprep.subr.bf16.mxu0 0
    %7546 = vmatpush1.bf16.msra.mxu0 0
    %7547 = vmatprep.subr.bf16.mxu0 0
    %7548 = vmatpush1.bf16.msra.mxu0 0
    %7549 = vmatprep.subr.bf16.mxu0 0
    %7550 = vmatpush1.bf16.msra.mxu0 0
    %7551 = vmatprep.subr.bf16.mxu0 0
    %7552 = vmatpush1.bf16.msra.mxu0 0
    %7553 = vmatprep.mubr.bf16.mxu0 0
    %7554 = vmatmul.mubr.bf16.gmra.mrb[0].mxu0 %v7051
    %v7555 = vpop.f32.mrb[0].mxu0
    %v7556 = vadd.f32 0.0, %v7555
    %v7557 = vpop.f32.mrb[0].mxu0
    %v7558 = vadd.f32 0.0, %v7557
    %v7559 = vpop.f32.mrb[0].mxu0
    %v7560 = vpop.f32.mrb[0].mxu0
    %7561 = vdwg.mxu0
    %7562 = vmatprep.subr.bf16.mxu0 %v7460
    %7563 = vmatpush1.bf16.msra.mxu0 %v7459
    %7564 = vmatprep.subr.bf16.mxu0 %v7464
    %7565 = vmatpush1.bf16.msra.mxu0 %v7463
    %7566 = vmatprep.subr.bf16.mxu0 %v7468
    %7567 = vmatpush1.bf16.msra.mxu0 %v7467
    %7568 = vmatprep.subr.bf16.mxu0 %v7472
    %7569 = vmatpush1.bf16.msra.mxu0 %v7471
    %7570 = vmatprep.subr.bf16.mxu0 %v7476
    %7571 = vmatpush1.bf16.msra.mxu0 %v7475
    %7572 = vmatprep.subr.bf16.mxu0 %v7480
    %7573 = vmatpush1.bf16.msra.mxu0 %v7479
    %7574 = vmatprep.subr.bf16.mxu0 %v7484
    %7575 = vmatpush1.bf16.msra.mxu0 %v7483
    %7576 = vmatprep.subr.bf16.mxu0 %v7488
    %7577 = vmatpush1.bf16.msra.mxu0 %v7487
    %7578 = vmatprep.subr.bf16.mxu0 0
    %7579 = vmatpush1.bf16.msra.mxu0 0
    %7580 = vmatprep.subr.bf16.mxu0 0
    %7581 = vmatpush1.bf16.msra.mxu0 0
    %7582 = vmatprep.subr.bf16.mxu0 0
    %7583 = vmatpush1.bf16.msra.mxu0 0
    %7584 = vmatprep.subr.bf16.mxu0 0
    %7585 = vmatpush1.bf16.msra.mxu0 0
    %7586 = vmatprep.subr.bf16.mxu0 0
    %7587 = vmatpush1.bf16.msra.mxu0 0
    %7588 = vmatprep.subr.bf16.mxu0 0
    %7589 = vmatpush1.bf16.msra.mxu0 0
    %7590 = vmatprep.subr.bf16.mxu0 0
    %7591 = vmatpush1.bf16.msra.mxu0 0
    %7592 = vmatprep.subr.bf16.mxu0 0
    %7593 = vmatpush1.bf16.msra.mxu0 0
    %7594 = vmatprep.mubr.bf16.mxu0 0
    %7595 = vmatmul.mubr.bf16.gmra.mrb[0].mxu0 %v7051
    %v7596 = vpop.f32.mrb[0].mxu0
    %v7597 = vadd.f32 0.0, %v7596
    %v7598 = vpop.f32.mrb[0].mxu0
    %v7599 = vadd.f32 0.0, %v7598
    %v7600 = vpop.f32.mrb[0].mxu0
    %v7601 = vpop.f32.mrb[0].mxu0
    %7602 = vdwg.mxu0
    %v7603 = vadd.f32 %v7282, %v7556
    %v7604 = vadd.f32 %v7284, %v7558
    %v7605 = vadd.f32 %v7323, %v7597
    %v7606 = vadd.f32 %v7325, %v7599
    %v7607 = vxor.u32 %v7603, 2147483648
    %v7608 = vmul.f32 %v7607, 1.442695
    %v7609 = vpow.pop %v7608
    %v7610 = vadd.f32 %v7609, 1.0
    %v7611 = vrcp.pop %v7610
    %v7612 = vmul.f32 1.0, %v7611
    %v7613 = vxor.u32 %v7604, 2147483648
    %v7614 = vmul.f32 %v7613, 1.442695
    %v7615 = vpow.pop %v7614
    %v7616 = vadd.f32 %v7615, 1.0
    %v7617 = vrcp.pop %v7616
    %v7618 = vmul.f32 1.0, %v7617
    %v7619 = vtanh.pop %v7605
    %v7620 = vxor.u32 %v7606, 2147483648
    %v7621 = vmul.f32 %v7620, 1.442695
    %v7622 = vpow.pop %v7621
    %v7623 = vadd.f32 %v7622, 1.0
    %v7624 = vrcp.pop %v7623
    %v7625 = vmul.f32 1.0, %v7624
    %v7626 = vmul.f32 %v7618, %v7048
    %v7627 = vmul.f32 %v7612, %v7619
    %v7628 = vadd.f32 %v7626, %v7627
    %v7629 = vtanh.pop %v7628
    %v7630 = vmul.f32 %v7625, %v7629
    %v7631 = vpack.c.bf16 %v7630, %v7630
    %s7632 = scalar_lea.vmem [#allocation3], 28
    %7633 = vst [vmem:[%s7632] sm:$0xf] %v7631
    %7634 = vst [vmem:[#allocation4] sm:$0xff] %v6474
    %7635 = vst [vmem:[#allocation5] sm:$0xff] %v6472
    %7636 = vst [vmem:[%s678] sm:$0xff] %v7630
    %7637 = vst [vmem:[%s680] sm:$0xff] %v7628
    %v7638 = vld [vmem:[#allocation3] sm:$0xf]
    %v7639 = vld [vmem:[#allocation3 + $0x4] sm:$0xf]
    %v7640 = vld [vmem:[#allocation3 + $0x8] sm:$0xf]
    %v7641 = vld [vmem:[#allocation3 + $0xc] sm:$0xf]
    %v7642 = vld [vmem:[#allocation3 + $0x10] sm:$0xf]
    %v7643 = vld [vmem:[#allocation3 + $0x14] sm:$0xf]
    %v7644 = vld [vmem:[#allocation3 + $0x18] sm:$0xf]
    %v7645 = vld [vmem:[#allocation3 + $0x1c] sm:$0xf]
    %v7646 = vld [vmem:[%s7] sm:$0xf]
    %v7647 = vld [vmem:[%s7 + $0x4] sm:$0xf]
    %v7648 = vld [vmem:[%s7 + $0x8] sm:$0xf]
    %v7649 = vld [vmem:[%s7 + $0xc] sm:$0xf]
    %v7650 = vld [vmem:[%s7 + $0x10] sm:$0xf]
    %v7651 = vld [vmem:[%s7 + $0x14] sm:$0xf]
    %v7652 = vld [vmem:[%s7 + $0x18] sm:$0xf]
    %v7653 = vld [vmem:[%s7 + $0x1c] sm:$0xf]
    %v7654 = vld [vmem:[%s7 + $0x20] sm:$0xf]
    %v7655 = vld [vmem:[%s7 + $0x24] sm:$0xf]
    %v7656 = vld [vmem:[%s7 + $0x28] sm:$0xf]
    %v7657 = vld [vmem:[%s7 + $0x2c] sm:$0xf]
    %v7658 = vld [vmem:[%s7 + $0x30] sm:$0xf]
    %v7659 = vld [vmem:[%s7 + $0x34] sm:$0xf]
    %v7660 = vld [vmem:[%s7 + $0x38] sm:$0xf]
    %v7661 = vld [vmem:[%s7 + $0x3c] sm:$0xf]
    %v7662 = vld [vmem:[%s8] sm:$0x1]
    %v7664 = vlaneseq
    %v7665 = vshrl.u32 %v7664, 7
    %v7666 = vsub.s32 0, %v7665
    %v7667 = vrot.slane %v7662, %v7666
    %v7677 = vunpack.c.l.b16 %v7638
    %v7678 = vunpack.c.l.b16 %v7639
    %v7679 = vunpack.c.l.b16 %v7640
    %v7680 = vunpack.c.l.b16 %v7641
    %v7681 = vunpack.c.l.b16 %v7642
    %v7682 = vunpack.c.l.b16 %v7643
    %v7683 = vunpack.c.l.b16 %v7644
    %v7684 = vunpack.c.l.b16 %v7645
    %v7685 = vpack.c.b16 %v7678, %v7677
    %v7686 = vpack.c.b16 %v7680, %v7679
    %v7687 = vpack.c.b16 %v7682, %v7681
    %v7688 = vpack.c.b16 %v7684, %v7683
    %v7709 = vunpack.c.l.b16 %v7646
    %v7710 = vunpack.c.l.b16 %v7647
    %v7711 = vunpack.c.l.b16 %v7648
    %v7712 = vunpack.c.l.b16 %v7649
    %v7713 = vunpack.c.l.b16 %v7650
    %v7714 = vunpack.c.l.b16 %v7651
    %v7715 = vunpack.c.l.b16 %v7652
    %v7716 = vunpack.c.l.b16 %v7653
    %v7717 = vunpack.c.l.b16 %v7654
    %v7718 = vunpack.c.l.b16 %v7655
    %v7719 = vunpack.c.l.b16 %v7656
    %v7720 = vunpack.c.l.b16 %v7657
    %v7721 = vunpack.c.l.b16 %v7658
    %v7722 = vunpack.c.l.b16 %v7659
    %v7723 = vunpack.c.l.b16 %v7660
    %v7724 = vunpack.c.l.b16 %v7661
    %v7725 = vpack.c.b16 %v7710, %v7709
    %v7726 = vpack.c.b16 %v7712, %v7711
    %v7727 = vpack.c.b16 %v7714, %v7713
    %v7728 = vpack.c.b16 %v7716, %v7715
    %v7729 = vpack.c.b16 %v7718, %v7717
    %v7730 = vpack.c.b16 %v7720, %v7719
    %v7731 = vpack.c.b16 %v7722, %v7721
    %v7732 = vpack.c.b16 %v7724, %v7723
    %7741 = vmatprep.subr.bf16.mxu0 0
    %7742 = vmatpush1.bf16.msra.mxu0 %v7725
    %7743 = vmatprep.subr.bf16.mxu0 0
    %7744 = vmatpush1.bf16.msra.mxu0 %v7726
    %7745 = vmatprep.subr.bf16.mxu0 0
    %7746 = vmatpush1.bf16.msra.mxu0 %v7727
    %7747 = vmatprep.subr.bf16.mxu0 0
    %7748 = vmatpush1.bf16.msra.mxu0 %v7728
    %7749 = vmatprep.subr.bf16.mxu0 0
    %7750 = vmatpush1.bf16.msra.mxu0 %v7729
    %7751 = vmatprep.subr.bf16.mxu0 0
    %7752 = vmatpush1.bf16.msra.mxu0 %v7730
    %7753 = vmatprep.subr.bf16.mxu0 0
    %7754 = vmatpush1.bf16.msra.mxu0 %v7731
    %7755 = vmatprep.subr.bf16.mxu0 0
    %7756 = vmatpush1.bf16.msra.mxu0 %v7732
    %7757 = vmatprep.subr.bf16.mxu0 0
    %7758 = vmatpush1.bf16.msra.mxu0 0
    %7759 = vmatprep.subr.bf16.mxu0 0
    %7760 = vmatpush1.bf16.msra.mxu0 0
    %7761 = vmatprep.subr.bf16.mxu0 0
    %7762 = vmatpush1.bf16.msra.mxu0 0
    %7763 = vmatprep.subr.bf16.mxu0 0
    %7764 = vmatpush1.bf16.msra.mxu0 0
    %7765 = vmatprep.subr.bf16.mxu0 0
    %7766 = vmatpush1.bf16.msra.mxu0 0
    %7767 = vmatprep.subr.bf16.mxu0 0
    %7768 = vmatpush1.bf16.msra.mxu0 0
    %7769 = vmatprep.subr.bf16.mxu0 0
    %7770 = vmatpush1.bf16.msra.mxu0 0
    %7771 = vmatprep.subr.bf16.mxu0 0
    %7772 = vmatpush1.bf16.msra.mxu0 0
    %7773 = vmatprep.mubr.bf16.mxu0 0
    %7774 = vmatmul.mubr.bf16.gmra.mrb[0].mxu0 %v7685
    %v7775 = vpop.f32.mrb[0].mxu0
    %v7776 = vadd.f32 %v7667, %v7775
    %v7777 = vpop.f32.mrb[0].mxu0
    %v7778 = vpop.f32.mrb[0].mxu0
    %v7779 = vadd.f32 %v7667, %v7778
    %v7780 = vpop.f32.mrb[0].mxu0
    %7781 = vmatprep.mubr.bf16.mxu0 0
    %7782 = vmatmul.mubr.bf16.gmra.mrb[0].mxu0 %v7686
    %v7783 = vpop.f32.mrb[0].mxu0
    %v7784 = vadd.f32 %v7667, %v7783
    %v7785 = vpop.f32.mrb[0].mxu0
    %v7786 = vpop.f32.mrb[0].mxu0
    %v7787 = vadd.f32 %v7667, %v7786
    %v7788 = vpop.f32.mrb[0].mxu0
    %7789 = vmatprep.mubr.bf16.mxu0 0
    %7790 = vmatmul.mubr.bf16.gmra.mrb[0].mxu0 %v7687
    %v7791 = vpop.f32.mrb[0].mxu0
    %v7792 = vadd.f32 %v7667, %v7791
    %v7793 = vpop.f32.mrb[0].mxu0
    %v7794 = vpop.f32.mrb[0].mxu0
    %v7795 = vadd.f32 %v7667, %v7794
    %v7796 = vpop.f32.mrb[0].mxu0
    %7797 = vmatprep.mubr.bf16.mxu0 0
    %7798 = vmatmul.mubr.bf16.gmra.mrb[0].mxu0 %v7688
    %v7799 = vpop.f32.mrb[0].mxu0
    %v7800 = vadd.f32 %v7667, %v7799
    %v7801 = vpop.f32.mrb[0].mxu0
    %v7802 = vpop.f32.mrb[0].mxu0
    %v7803 = vadd.f32 %v7667, %v7802
    %v7804 = vpop.f32.mrb[0].mxu0
    %7805 = vdwg.mxu0
    %7806 = vst [vmem:[%s9] sm:$0xff] %v7776
    %7807 = vst [vmem:[%s9 + $0x8] sm:$0xff] %v7779
    %7808 = vst [vmem:[%s9 + $0x10] sm:$0xff] %v7784
    %7809 = vst [vmem:[%s9 + $0x18] sm:$0xff] %v7787
    %7810 = vst [vmem:[%s9 + $0x20] sm:$0xff] %v7792
    %7811 = vst [vmem:[%s9 + $0x28] sm:$0xff] %v7795
    %7812 = vst [vmem:[%s9 + $0x30] sm:$0xff] %v7800
    %7813 = vst [vmem:[%s9 + $0x38] sm:$0xff] %v7803
    // Predicated region
    $region58: #{next_character_lstm_forward.1} parent=1 // pred_check
      _
    $region59: #{next_character_lstm_forward.1} parent=1 // pred_check_branch
      %7815 = sbr.rel (0) target = $region61
    $region60: #{next_character_lstm_forward.1} parent=1 // pred_region
      _
    $region61: #{next_character_lstm_forward.1} parent=1 // pred_fallthru
      _
    // Predicated region
    $region62: #{next_character_lstm_forward.1} parent=1 // pred_check
      _
    $region63: #{next_character_lstm_forward.1} parent=1 // pred_check_branch
      %7817 = sbr.rel (0) target = $region65
    $region64: #{next_character_lstm_forward.1} parent=1 // pred_region
      _
    $region65: #{next_character_lstm_forward.1} parent=1 // pred_fallthru
      _
    %7818 = vsyncpa [#allocation7], 1
    %7819 = vsyncpa [#allocation9], 1
    %7820 = vsyncpa [#allocation12], 1

</llo_original>
